<compile_context>
chip_gen: v5e
topology: v5e:2x2
jax: 0.10.0
libtpu: 0.0.40
codegen_flags: <defaults>
</compile_context>

<pallas_src>
import numpy as np
import jax
import jax.numpy as jnp
from jax.experimental import pallas as pl
from jax.experimental.pallas import tpu as pltpu

NC = 80                        # yolov5 default num classes
NA = 3                         # anchors per scale
NO = NC + 5                    # 85
C_DET = NA * NO                # 255
CP = 256                       # lane-dense padded Detect width
STRIDES = (8.0, 16.0, 32.0)    # 256 / feature-map size, as in Model.__init__
BACKBONE_CH = (32, 64, 128)    # surrogate P3/P4/P5 widths
ROW_TILE_TARGET = 1024         # target P3 rows per grid step
ANCHORS_PX = np.array(         # yolov5s anchors (pixel units -> Detect.anchor_grid)
    [[[10, 13], [16, 30], [33, 23]],
     [[30, 61], [62, 45], [59, 119]],
     [[116, 90], [156, 198], [373, 326]]], np.float32)


# ----------------------------- kernel ---------------------------------------

def _silu(y):
    # y * sigmoid(y); exp -> EUP, approx reciprocal -> EUP vrcp (frees VALU slots)
    return y * pl.reciprocal(1.0 + jnp.exp(-y), approx=True)


def _detect_head(feat_bf16, wd_ref, coef_ref, grid_ref, raw_ref, dec_ref):
    """1x1 Detect conv (bf16 MXU, f32 acc) + full inference decode, width 256."""
    coef = coef_ref[...]                              # (8, 256) coefficient table
    raw = jnp.dot(feat_bf16, wd_ref[...],
                  preferred_element_type=jnp.float32) + coef[0:1, :]
    raw_ref[...] = raw                                # x[i]: pre-sigmoid logits
    sig = pl.reciprocal(1.0 + jnp.exp(-raw), approx=True)   # y = x[i].sigmoid()
    g = grid_ref[...]                                 # (rows, 2) = (gx, gy)
    # dec = sig*(Aq*sig + Al) + gx*Gx + gy*Gy + C0    (per-column FMA coefficients)
    dec_ref[...] = (sig * (coef[1:2, :] * sig + coef[2:3, :])
                    + g[:, 0:1] * coef[3:4, :]
                    + g[:, 1:2] * coef[4:5, :]
                    + coef[5:6, :])


def fused_yolo_kernel(rows_ref, w1_ref, b1_ref, w2_ref, b2_ref,
                      pool1_ref, pool2_ref,
                      wd0_ref, coef0_ref, grid0_ref,
                      wd1_ref, coef1_ref, grid1_ref,
                      wd2_ref, coef2_ref, grid2_ref,
                      raw0_ref, dec0_ref, raw1_ref, dec1_ref,
                      raw2_ref, dec2_ref):
    # ---- surrogate backbone; all intermediates stay on-chip ----
    # P3: stem pre-activation (R3-tile, 32) computed by XLA wrapper; SiLU here.
    f3 = _silu(rows_ref[...])
    f3b = f3.astype(jnp.bfloat16)

    # P4: tile-local 2x2 avg pool (small constant bf16 matrix) + 1x1 conv + SiLU
    p4 = jnp.dot(pool1_ref[...], f3b, preferred_element_type=jnp.float32)
    f4 = _silu(jnp.dot(p4.astype(jnp.bfloat16), w1_ref[...],
                       preferred_element_type=jnp.float32) + b1_ref[...])
    f4b = f4.astype(jnp.bfloat16)

    # P5
    p5 = jnp.dot(pool2_ref[...], f4b, preferred_element_type=jnp.float32)
    f5 = _silu(jnp.dot(p5.astype(jnp.bfloat16), w2_ref[...],
                       preferred_element_type=jnp.float32) + b2_ref[...])
    f5b = f5.astype(jnp.bfloat16)

    # ---- Detect heads (inference decode), one per scale ----
    _detect_head(f3b, wd0_ref, coef0_ref, grid0_ref, raw0_ref, dec0_ref)
    _detect_head(f4b, wd1_ref, coef1_ref, grid1_ref, raw1_ref, dec1_ref)
    _detect_head(f5b, wd2_ref, coef2_ref, grid2_ref, raw2_ref, dec2_ref)


# ----------------------------- tiling helpers --------------------------------

def _choose_row_tile(R3, W3, target=ROW_TILE_TARGET):
    """P3-row tile: multiple of 4*W3 (both 2x2 pools tile-local) and of 128
    (so the P5 output block sublane count T3/16 is a multiple of 8), dividing R3."""
    unit = int(np.lcm(128, 4 * W3))
    if R3 % unit != 0 or R3 <= unit:
        return R3                      # single tile; blocks equal full dims
    t = max(unit, (min(target, R3) // unit) * unit)
    while R3 % t:
        t -= unit
    return t


def _local_pool_matrix(rows_in, width):
    """(rows_in//4, rows_in) matrix: 2x2 average pooling on row-major (y, x) rows."""
    rows_out, wo = rows_in // 4, width // 2
    P = np.zeros((rows_out, rows_in), np.float32)
    r = np.arange(rows_out)
    yo, xo = r // wo, r % wo
    for dy in range(2):
        for dx in range(2):
            P[r, (2 * yo + dy) * width + 2 * xo + dx] = 0.25
    return P


def _grid_xy(B, H, W):
    gy, gx = np.meshgrid(np.arange(H), np.arange(W), indexing="ij")
    g = np.stack([gx, gy], -1).reshape(H * W, 2).astype(np.float32)
    return np.tile(g, (B, 1))


# ----------------------------- pallas_call wrapper ----------------------------

def fused_yolo(params, rows_in, B, H3, W3):
    R3 = B * H3 * W3
    R4, R5 = R3 // 4, R3 // 16
    T3 = _choose_row_tile(R3, W3)
    T4, T5 = T3 // 4, T3 // 16

    pool1 = jnp.asarray(_local_pool_matrix(T3, W3), jnp.bfloat16)
    pool2 = jnp.asarray(_local_pool_matrix(T4, W3 // 2), jnp.bfloat16)
    grid0 = jnp.asarray(_grid_xy(B, H3, W3))
    grid1 = jnp.asarray(_grid_xy(B, H3 // 2, W3 // 2))
    grid2 = jnp.asarray(_grid_xy(B, H3 // 4, W3 // 4))

    args = (rows_in,
            params["bb_w1"], params["bb_b1"],
            params["bb_w2"], params["bb_b2"],
            pool1, pool2,
            params["det_w0"], params["coef0"], grid0,
            params["det_w1"], params["coef1"], grid1,
            params["det_w2"], params["coef2"], grid2)

    def const(shape):
        n = len(shape)
        return pl.BlockSpec(shape, lambda i: (0,) * n)

    in_specs = [
        pl.BlockSpec((T3, rows_in.shape[1]), lambda i: (i, 0)),      # rows_in
        const(params["bb_w1"].shape), const(params["bb_b1"].shape),
        const(params["bb_w2"].shape), const(params["bb_b2"].shape),
        const(pool1.shape), const(pool2.shape),
        const(params["det_w0"].shape), const(params["coef0"].shape),
        pl.BlockSpec((T3, 2), lambda i: (i, 0)),                     # grid0
        const(params["det_w1"].shape), const(params["coef1"].shape),
        pl.BlockSpec((T4, 2), lambda i: (i, 0)),                     # grid1
        const(params["det_w2"].shape), const(params["coef2"].shape),
        pl.BlockSpec((T5, 2), lambda i: (i, 0)),                     # grid2
    ]

    out_shape = (jax.ShapeDtypeStruct((R3, CP), jnp.float32),
                 jax.ShapeDtypeStruct((R3, CP), jnp.float32),
                 jax.ShapeDtypeStruct((R4, CP), jnp.float32),
                 jax.ShapeDtypeStruct((R4, CP), jnp.float32),
                 jax.ShapeDtypeStruct((R5, CP), jnp.float32),
                 jax.ShapeDtypeStruct((R5, CP), jnp.float32))
    out_specs = (pl.BlockSpec((T3, CP), lambda i: (i, 0)),
                 pl.BlockSpec((T3, CP), lambda i: (i, 0)),
                 pl.BlockSpec((T4, CP), lambda i: (i, 0)),
                 pl.BlockSpec((T4, CP), lambda i: (i, 0)),
                 pl.BlockSpec((T5, CP), lambda i: (i, 0)),
                 pl.BlockSpec((T5, CP), lambda i: (i, 0)))

    return pl.pallas_call(
        fused_yolo_kernel,
        out_shape=out_shape,
        grid=(R3 // T3,),
        in_specs=in_specs,
        out_specs=out_specs,
        compiler_params=pltpu.CompilerParams(
            dimension_semantics=("parallel",),        # megacore on v7x, no-op on v5e/v6e
            vmem_limit_bytes=48 * 1024 * 1024),
    )(*args)


# ----------------------------- model wrapper ----------------------------------

def _split_scale(raw, dec, B, H, W):
    # PyTorch: x[i] = conv(x).view(bs, na, no, ny, nx).permute(0, 1, 3, 4, 2)
    # The [:, :C_DET] slice fuses into the transpose copy in XLA (single pass).
    x_i = raw[:, :C_DET].reshape(B, H, W, NA, NO).transpose(0, 3, 1, 2, 4)
    # z[i] = decoded y.view(bs, -1, no)
    z_i = (dec[:, :C_DET].reshape(B, H, W, NA, NO)
           .transpose(0, 3, 1, 2, 4).reshape(B, NA * H * W, NO))
    return x_i, z_i


@jax.jit
def yolo_forward(params, x):
    # TODO(synk): full YOLOv5 backbone (Conv/C3/SPPF per yaml) is not
    # reconstructible from the given source; surrogate pyramid (avg-pool
    # downsample + 1x1 conv + SiLU) produces P3/P4/P5 features.
    B, Cin, H0, W0 = x.shape
    if H0 % 32 or W0 % 32:
        raise ValueError("input spatial dims must be multiples of 32")
    H3, W3 = H0 // 8, W0 // 8
    # 8x stem downsample + lane-sparse Cin=3 1x1 conv done in XLA (pre-activation)
    xp = x.reshape(B, Cin, H3, 8, W3, 8).mean(axis=(3, 5))           # (B, 3, H3, W3)
    rows0 = jnp.transpose(xp, (0, 2, 3, 1)).reshape(B * H3 * W3, Cin)
    rows_in = rows0 @ params["bb_w0"] + params["bb_b0"]              # (R3, 32)

    raw0, dec0, raw1, dec1, raw2, dec2 = fused_yolo(params, rows_in, B, H3, W3)

    x0, z0 = _split_scale(raw0, dec0, B, H3, W3)
    x1, z1 = _split_scale(raw1, dec1, B, H3 // 2, W3 // 2)
    x2, z2 = _split_scale(raw2, dec2, B, H3 // 4, W3 // 4)
    # Detect (eval path): (cat(z, 1), x_list)
    return jnp.concatenate([z0, z1, z2], axis=1), [x0, x1, x2]


def model_forward(params, x, im_q, im_k):
    # moco_forward(im_q, im_k) is a literal stub in the reference model: it
    # returns constant strings and performs no tensor compute.
    # TODO(synk): MoCo encoders / queue / all_gather are outside forward()'s
    # compute graph and are not translated.
    output, target = "output", "target"
    return output, target, yolo_forward(params, x)


# ----------------------------- parameters ------------------------------------

def build_params(key):
    keys = jax.random.split(key, 6)
    params = {}

    # surrogate backbone 1x1 convs (stem conv stays f32: applied in XLA wrapper)
    cin = 3
    for i, cout in enumerate(BACKBONE_CH):
        w = (0.1 / np.sqrt(cin)) * jax.random.normal(keys[i], (cin, cout), jnp.float32)
        params[f"bb_w{i}"] = w if i == 0 else w.astype(jnp.bfloat16)
        params[f"bb_b{i}"] = jnp.zeros((1, cout), jnp.float32)
        cin = cout

    # Detect heads: zero-padded (Cin, 256) bf16 weights + merged (8, 256) f32 coef table
    for i, c in enumerate(BACKBONE_CH):
        s = STRIDES[i]
        w = (0.1 / np.sqrt(c)) * jax.random.normal(keys[3 + i], (c, C_DET), jnp.float32)
        params[f"det_w{i}"] = jnp.pad(w, ((0, 0), (0, CP - C_DET))).astype(jnp.bfloat16)

        # _initialize_biases(): objectness / class bias offsets
        bias = np.zeros((NA, NO), np.float32)
        bias[:, 4] += np.log(8.0 / (640.0 / s) ** 2)
        bias[:, 5:] += np.log(0.6 / (NC - 0.99))

        # rows: 0 bias, 1 Aq, 2 Al, 3 Gx, 4 Gy, 5 C0, 6-7 unused (padded col 255 = 0)
        coef = np.zeros((8, CP), np.float32)
        coef[0, :C_DET] = bias.reshape(-1)
        for a in range(NA):
            base = a * NO
            coef[2, base + 0] = 2.0 * s                 # xy: 2*sig*stride
            coef[2, base + 1] = 2.0 * s
            coef[3, base + 0] = s                       # + gx*stride
            coef[4, base + 1] = s                       # + gy*stride
            coef[5, base + 0] = -0.5 * s                # - 0.5*stride
            coef[5, base + 1] = -0.5 * s
            coef[1, base + 2] = 4.0 * ANCHORS_PX[i, a, 0]   # wh: (2*sig)^2*anchor
            coef[1, base + 3] = 4.0 * ANCHORS_PX[i, a, 1]
            coef[2, base + 4:base + NO] = 1.0           # obj/cls: plain sigmoid
        params[f"coef{i}"] = jnp.asarray(coef)
    return params


if __name__ == "__main__":
    key = jax.random.PRNGKey(0)
    kx, kq, kk, kp = jax.random.split(key, 4)
    # s=256 is the probe size Model.__init__ uses to derive Detect strides;
    # it also exercises the multi-tile grid (R3 = 2048 rows -> 2 tiles of 1024).
    B, H0, W0 = 2, 256, 256
    x = jax.random.normal(kx, (B, 3, H0, W0), jnp.float32)
    im_q = jax.random.normal(kq, (B, 3, 64, 64), jnp.float32)   # moco stub inputs
    im_k = jax.random.normal(kk, (B, 3, 64, 64), jnp.float32)
    params = build_params(kp)

    output, target, (pred, x_list) = model_forward(params, x, im_q, im_k)
    jax.block_until_ready(pred)
    for xi in x_list:
        jax.block_until_ready(xi)

    H3, W3 = H0 // 8, W0 // 8
    assert output == "output" and target == "target"
    n_pred = NA * (H3 * W3 + (H3 // 2) * (W3 // 2) + (H3 // 4) * (W3 // 4))
    assert pred.shape == (B, n_pred, NO)
    assert x_list[0].shape == (B, NA, H3, W3, NO)
    assert x_list[1].shape == (B, NA, H3 // 2, W3 // 2, NO)
    assert x_list[2].shape == (B, NA, H3 // 4, W3 // 4, NO)
    assert bool(jnp.all(jnp.isfinite(pred)))
    print("KERNEL_OK")
</pallas_src>

<mosaic_0001>
module attributes {stable_mosaic.version = 11 : i64} {
  func.func @fused_yolo_kernel(%arg0: i32, %arg1: memref<1024x32xf32, #tpu.memory_space<vmem>>, %arg2: memref<32x64xbf16, #tpu.memory_space<vmem>>, %arg3: memref<1x64xf32, #tpu.memory_space<vmem>>, %arg4: memref<64x128xbf16, #tpu.memory_space<vmem>>, %arg5: memref<1x128xf32, #tpu.memory_space<vmem>>, %arg6: memref<256x1024xbf16, #tpu.memory_space<vmem>>, %arg7: memref<64x256xbf16, #tpu.memory_space<vmem>>, %arg8: memref<32x256xbf16, #tpu.memory_space<vmem>>, %arg9: memref<8x256xf32, #tpu.memory_space<vmem>>, %arg10: memref<1024x2xf32, #tpu.memory_space<vmem>>, %arg11: memref<64x256xbf16, #tpu.memory_space<vmem>>, %arg12: memref<8x256xf32, #tpu.memory_space<vmem>>, %arg13: memref<256x2xf32, #tpu.memory_space<vmem>>, %arg14: memref<128x256xbf16, #tpu.memory_space<vmem>>, %arg15: memref<8x256xf32, #tpu.memory_space<vmem>>, %arg16: memref<64x2xf32, #tpu.memory_space<vmem>>, %arg17: memref<1024x256xf32, #tpu.memory_space<vmem>>, %arg18: memref<1024x256xf32, #tpu.memory_space<vmem>>, %arg19: memref<256x256xf32, #tpu.memory_space<vmem>>, %arg20: memref<256x256xf32, #tpu.memory_space<vmem>>, %arg21: memref<64x256xf32, #tpu.memory_space<vmem>>, %arg22: memref<64x256xf32, #tpu.memory_space<vmem>>) attributes {dimension_semantics = [#tpu.dimension_semantics<parallel>], iteration_bounds = array<i64: 2>, scalar_prefetch = 0 : i64, scratch_operands = 0 : i64, tpu.core_type = #tpu.core_type<tc>, window_params = [{transform_indices = @transform_0, window_bounds = array<i64: 1024, 32>}, {pipeline_mode = #tpu.pipeline_mode<synchronous>, transform_indices = @transform_1, window_bounds = array<i64: 32, 64>}, {pipeline_mode = #tpu.pipeline_mode<synchronous>, transform_indices = @transform_2, window_bounds = array<i64: 1, 64>}, {pipeline_mode = #tpu.pipeline_mode<synchronous>, transform_indices = @transform_3, window_bounds = array<i64: 64, 128>}, {pipeline_mode = #tpu.pipeline_mode<synchronous>, transform_indices = @transform_4, window_bounds = array<i64: 1, 128>}, {pipeline_mode = #tpu.pipeline_mode<synchronous>, transform_indices = @transform_5, window_bounds = array<i64: 256, 1024>}, {pipeline_mode = #tpu.pipeline_mode<synchronous>, transform_indices = @transform_6, window_bounds = array<i64: 64, 256>}, {pipeline_mode = #tpu.pipeline_mode<synchronous>, transform_indices = @transform_7, window_bounds = array<i64: 32, 256>}, {pipeline_mode = #tpu.pipeline_mode<synchronous>, transform_indices = @transform_8, window_bounds = array<i64: 8, 256>}, {transform_indices = @transform_9, window_bounds = array<i64: 1024, 2>}, {pipeline_mode = #tpu.pipeline_mode<synchronous>, transform_indices = @transform_10, window_bounds = array<i64: 64, 256>}, {pipeline_mode = #tpu.pipeline_mode<synchronous>, transform_indices = @transform_11, window_bounds = array<i64: 8, 256>}, {transform_indices = @transform_12, window_bounds = array<i64: 256, 2>}, {pipeline_mode = #tpu.pipeline_mode<synchronous>, transform_indices = @transform_13, window_bounds = array<i64: 128, 256>}, {pipeline_mode = #tpu.pipeline_mode<synchronous>, transform_indices = @transform_14, window_bounds = array<i64: 8, 256>}, {transform_indices = @transform_15, window_bounds = array<i64: 64, 2>}, {transform_indices = @transform_16, window_bounds = array<i64: 1024, 256>}, {transform_indices = @transform_17, window_bounds = array<i64: 1024, 256>}, {transform_indices = @transform_18, window_bounds = array<i64: 256, 256>}, {transform_indices = @transform_19, window_bounds = array<i64: 256, 256>}, {transform_indices = @transform_20, window_bounds = array<i64: 64, 256>}, {transform_indices = @transform_21, window_bounds = array<i64: 64, 256>}]} {
    %c0 = arith.constant 0 : index
    %c0_0 = arith.constant 0 : index
    %0 = vector.load %arg1[%c0, %c0_0] : memref<1024x32xf32, #tpu.memory_space<vmem>>, vector<1024x32xf32>
    %cst = arith.constant 0.000000e+00 : f32
    %1 = vector.broadcast %cst : f32 to vector<1024x32xf32>
    %2 = arith.subf %1, %0 : vector<1024x32xf32>
    %3 = math.exp %2 : vector<1024x32xf32>
    %cst_1 = arith.constant 1.000000e+00 : f32
    %4 = vector.broadcast %cst_1 : f32 to vector<1024x32xf32>
    %5 = arith.addf %4, %3 : vector<1024x32xf32>
    %6 = tpu.reciprocal %5 {approx = true} : vector<1024x32xf32> -> vector<1024x32xf32>
    %7 = arith.mulf %0, %6 : vector<1024x32xf32>
    %8 = arith.truncf %7 : vector<1024x32xf32> to vector<1024x32xbf16>
    %c0_2 = arith.constant 0 : index
    %c0_3 = arith.constant 0 : index
    %9 = vector.load %arg6[%c0_2, %c0_3] : memref<256x1024xbf16, #tpu.memory_space<vmem>>, vector<256x1024xbf16>
    %cst_4 = arith.constant dense<0.000000e+00> : vector<256x32xf32>
    %10 = tpu.matmul %9, %8, %cst_4 {dimension_numbers = #tpu.dot_dimension_numbers<[1], [0], [0], [1], [0, 0, 1, 1], [], []>} : vector<256x1024xbf16>, vector<1024x32xbf16>, vector<256x32xf32> -> vector<256x32xf32>
    %11 = arith.truncf %10 : vector<256x32xf32> to vector<256x32xbf16>
    %c0_5 = arith.constant 0 : index
    %c0_6 = arith.constant 0 : index
    %12 = vector.load %arg2[%c0_5, %c0_6] : memref<32x64xbf16, #tpu.memory_space<vmem>>, vector<32x64xbf16>
    %cst_7 = arith.constant dense<0.000000e+00> : vector<256x64xf32>
    %13 = tpu.matmul %11, %12, %cst_7 {dimension_numbers = #tpu.dot_dimension_numbers<[1], [0], [0], [1], [0, 0, 1, 1], [], []>} : vector<256x32xbf16>, vector<32x64xbf16>, vector<256x64xf32> -> vector<256x64xf32>
    %c0_8 = arith.constant 0 : index
    %c0_9 = arith.constant 0 : index
    %14 = vector.load %arg3[%c0_8, %c0_9] : memref<1x64xf32, #tpu.memory_space<vmem>>, vector<1x64xf32>
    %15 = vector.broadcast %14 : vector<1x64xf32> to vector<256x64xf32>
    %16 = arith.addf %13, %15 : vector<256x64xf32>
    %cst_10 = arith.constant 0.000000e+00 : f32
    %17 = vector.broadcast %cst_10 : f32 to vector<256x64xf32>
    %18 = arith.subf %17, %16 : vector<256x64xf32>
    %19 = math.exp %18 : vector<256x64xf32>
    %cst_11 = arith.constant 1.000000e+00 : f32
    %20 = vector.broadcast %cst_11 : f32 to vector<256x64xf32>
    %21 = arith.addf %20, %19 : vector<256x64xf32>
    %22 = tpu.reciprocal %21 {approx = true} : vector<256x64xf32> -> vector<256x64xf32>
    %23 = arith.mulf %16, %22 : vector<256x64xf32>
    %24 = arith.truncf %23 : vector<256x64xf32> to vector<256x64xbf16>
    %c0_12 = arith.constant 0 : index
    %c0_13 = arith.constant 0 : index
    %25 = vector.load %arg7[%c0_12, %c0_13] : memref<64x256xbf16, #tpu.memory_space<vmem>>, vector<64x256xbf16>
    %cst_14 = arith.constant dense<0.000000e+00> : vector<64x64xf32>
    %26 = tpu.matmul %25, %24, %cst_14 {dimension_numbers = #tpu.dot_dimension_numbers<[1], [0], [0], [1], [0, 0, 1, 1], [], []>} : vector<64x256xbf16>, vector<256x64xbf16>, vector<64x64xf32> -> vector<64x64xf32>
    %27 = arith.truncf %26 : vector<64x64xf32> to vector<64x64xbf16>
    %c0_15 = arith.constant 0 : index
    %c0_16 = arith.constant 0 : index
    %28 = vector.load %arg4[%c0_15, %c0_16] : memref<64x128xbf16, #tpu.memory_space<vmem>>, vector<64x128xbf16>
    %cst_17 = arith.constant dense<0.000000e+00> : vector<64x128xf32>
    %29 = tpu.matmul %27, %28, %cst_17 {dimension_numbers = #tpu.dot_dimension_numbers<[1], [0], [0], [1], [0, 0, 1, 1], [], []>} : vector<64x64xbf16>, vector<64x128xbf16>, vector<64x128xf32> -> vector<64x128xf32>
    %c0_18 = arith.constant 0 : index
    %c0_19 = arith.constant 0 : index
    %30 = vector.load %arg5[%c0_18, %c0_19] : memref<1x128xf32, #tpu.memory_space<vmem>>, vector<1x128xf32>
    %31 = vector.broadcast %30 : vector<1x128xf32> to vector<64x128xf32>
    %32 = arith.addf %29, %31 : vector<64x128xf32>
    %cst_20 = arith.constant 0.000000e+00 : f32
    %33 = vector.broadcast %cst_20 : f32 to vector<64x128xf32>
    %34 = arith.subf %33, %32 : vector<64x128xf32>
    %35 = math.exp %34 : vector<64x128xf32>
    %cst_21 = arith.constant 1.000000e+00 : f32
    %36 = vector.broadcast %cst_21 : f32 to vector<64x128xf32>
    %37 = arith.addf %36, %35 : vector<64x128xf32>
    %38 = tpu.reciprocal %37 {approx = true} : vector<64x128xf32> -> vector<64x128xf32>
    %39 = arith.mulf %32, %38 : vector<64x128xf32>
    %40 = arith.truncf %39 : vector<64x128xf32> to vector<64x128xbf16>
    %c0_22 = arith.constant 0 : index
    %c0_23 = arith.constant 0 : index
    %41 = vector.load %arg9[%c0_22, %c0_23] : memref<8x256xf32, #tpu.memory_space<vmem>>, vector<8x256xf32>
    %c0_24 = arith.constant 0 : index
    %c0_25 = arith.constant 0 : index
    %42 = vector.load %arg8[%c0_24, %c0_25] : memref<32x256xbf16, #tpu.memory_space<vmem>>, vector<32x256xbf16>
    %cst_26 = arith.constant dense<0.000000e+00> : vector<1024x256xf32>
    %43 = tpu.matmul %8, %42, %cst_26 {dimension_numbers = #tpu.dot_dimension_numbers<[1], [0], [0], [1], [0, 0, 1, 1], [], []>} : vector<1024x32xbf16>, vector<32x256xbf16>, vector<1024x256xf32> -> vector<1024x256xf32>
    %44 = vector.extract_strided_slice %41 {offsets = [0, 0], sizes = [1, 256], strides = [1, 1]} : vector<8x256xf32> to vector<1x256xf32>
    %45 = vector.broadcast %44 : vector<1x256xf32> to vector<1024x256xf32>
    %46 = arith.addf %43, %45 : vector<1024x256xf32>
    %c0_27 = arith.constant 0 : index
    %c0_28 = arith.constant 0 : index
    %47 = vector.load %arg17[%c0_27, %c0_28] : memref<1024x256xf32, #tpu.memory_space<vmem>>, vector<1024x256xf32>
    tpu.vector_store %arg17[%c0_27, %c0_28], %46 {strides = array<i32>} : memref<1024x256xf32, #tpu.memory_space<vmem>>, vector<1024x256xf32>,
    %cst_29 = arith.constant 0.000000e+00 : f32
    %48 = vector.broadcast %cst_29 : f32 to vector<1024x256xf32>
    %49 = arith.subf %48, %46 : vector<1024x256xf32>
    %50 = math.exp %49 : vector<1024x256xf32>
    %cst_30 = arith.constant 1.000000e+00 : f32
    %51 = vector.broadcast %cst_30 : f32 to vector<1024x256xf32>
    %52 = arith.addf %51, %50 : vector<1024x256xf32>
    %53 = tpu.reciprocal %52 {approx = true} : vector<1024x256xf32> -> vector<1024x256xf32>
    %c0_31 = arith.constant 0 : index
    %c0_32 = arith.constant 0 : index
    %54 = vector.load %arg10[%c0_31, %c0_32] : memref<1024x2xf32, #tpu.memory_space<vmem>>, vector<1024x2xf32>
    %55 = vector.extract_strided_slice %41 {offsets = [1, 0], sizes = [1, 256], strides = [1, 1]} : vector<8x256xf32> to vector<1x256xf32>
    %56 = vector.broadcast %55 : vector<1x256xf32> to vector<1024x256xf32>
    %57 = arith.mulf %56, %53 : vector<1024x256xf32>
    %58 = vector.extract_strided_slice %41 {offsets = [2, 0], sizes = [1, 256], strides = [1, 1]} : vector<8x256xf32> to vector<1x256xf32>
    %59 = vector.broadcast %58 : vector<1x256xf32> to vector<1024x256xf32>
    %60 = arith.addf %57, %59 : vector<1024x256xf32>
    %61 = arith.mulf %53, %60 : vector<1024x256xf32>
    %62 = vector.extract_strided_slice %54 {offsets = [0, 0], sizes = [1024, 1], strides = [1, 1]} : vector<1024x2xf32> to vector<1024x1xf32>
    %63 = vector.extract_strided_slice %41 {offsets = [3, 0], sizes = [1, 256], strides = [1, 1]} : vector<8x256xf32> to vector<1x256xf32>
    %64 = vector.broadcast %62 : vector<1024x1xf32> to vector<1024x256xf32>
    %65 = vector.broadcast %63 : vector<1x256xf32> to vector<1024x256xf32>
    %66 = arith.mulf %64, %65 : vector<1024x256xf32>
    %67 = arith.addf %61, %66 : vector<1024x256xf32>
    %68 = vector.extract_strided_slice %54 {offsets = [0, 1], sizes = [1024, 1], strides = [1, 1]} : vector<1024x2xf32> to vector<1024x1xf32>
    %69 = vector.extract_strided_slice %41 {offsets = [4, 0], sizes = [1, 256], strides = [1, 1]} : vector<8x256xf32> to vector<1x256xf32>
    %70 = vector.broadcast %68 : vector<1024x1xf32> to vector<1024x256xf32>
    %71 = vector.broadcast %69 : vector<1x256xf32> to vector<1024x256xf32>
    %72 = arith.mulf %70, %71 : vector<1024x256xf32>
    %73 = arith.addf %67, %72 : vector<1024x256xf32>
    %74 = vector.extract_strided_slice %41 {offsets = [5, 0], sizes = [1, 256], strides = [1, 1]} : vector<8x256xf32> to vector<1x256xf32>
    %75 = vector.broadcast %74 : vector<1x256xf32> to vector<1024x256xf32>
    %76 = arith.addf %73, %75 : vector<1024x256xf32>
    %c0_33 = arith.constant 0 : index
    %c0_34 = arith.constant 0 : index
    %77 = vector.load %arg18[%c0_33, %c0_34] : memref<1024x256xf32, #tpu.memory_space<vmem>>, vector<1024x256xf32>
    tpu.vector_store %arg18[%c0_33, %c0_34], %76 {strides = array<i32>} : memref<1024x256xf32, #tpu.memory_space<vmem>>, vector<1024x256xf32>,
    %c0_35 = arith.constant 0 : index
    %c0_36 = arith.constant 0 : index
    %78 = vector.load %arg12[%c0_35, %c0_36] : memref<8x256xf32, #tpu.memory_space<vmem>>, vector<8x256xf32>
    %c0_37 = arith.constant 0 : index
    %c0_38 = arith.constant 0 : index
    %79 = vector.load %arg11[%c0_37, %c0_38] : memref<64x256xbf16, #tpu.memory_space<vmem>>, vector<64x256xbf16>
    %cst_39 = arith.constant dense<0.000000e+00> : vector<256x256xf32>
    %80 = tpu.matmul %24, %79, %cst_39 {dimension_numbers = #tpu.dot_dimension_numbers<[1], [0], [0], [1], [0, 0, 1, 1], [], []>} : vector<256x64xbf16>, vector<64x256xbf16>, vector<256x256xf32> -> vector<256x256xf32>
    %81 = vector.extract_strided_slice %78 {offsets = [0, 0], sizes = [1, 256], strides = [1, 1]} : vector<8x256xf32> to vector<1x256xf32>
    %82 = vector.broadcast %81 : vector<1x256xf32> to vector<256x256xf32>
    %83 = arith.addf %80, %82 : vector<256x256xf32>
    %c0_40 = arith.constant 0 : index
    %c0_41 = arith.constant 0 : index
    %84 = vector.load %arg19[%c0_40, %c0_41] : memref<256x256xf32, #tpu.memory_space<vmem>>, vector<256x256xf32>
    tpu.vector_store %arg19[%c0_40, %c0_41], %83 {strides = array<i32>} : memref<256x256xf32, #tpu.memory_space<vmem>>, vector<256x256xf32>,
    %cst_42 = arith.constant 0.000000e+00 : f32
    %85 = vector.broadcast %cst_42 : f32 to vector<256x256xf32>
    %86 = arith.subf %85, %83 : vector<256x256xf32>
    %87 = math.exp %86 : vector<256x256xf32>
    %cst_43 = arith.constant 1.000000e+00 : f32
    %88 = vector.broadcast %cst_43 : f32 to vector<256x256xf32>
    %89 = arith.addf %88, %87 : vector<256x256xf32>
    %90 = tpu.reciprocal %89 {approx = true} : vector<256x256xf32> -> vector<256x256xf32>
    %c0_44 = arith.constant 0 : index
    %c0_45 = arith.constant 0 : index
    %91 = vector.load %arg13[%c0_44, %c0_45] : memref<256x2xf32, #tpu.memory_space<vmem>>, vector<256x2xf32>
    %92 = vector.extract_strided_slice %78 {offsets = [1, 0], sizes = [1, 256], strides = [1, 1]} : vector<8x256xf32> to vector<1x256xf32>
    %93 = vector.broadcast %92 : vector<1x256xf32> to vector<256x256xf32>
    %94 = arith.mulf %93, %90 : vector<256x256xf32>
    %95 = vector.extract_strided_slice %78 {offsets = [2, 0], sizes = [1, 256], strides = [1, 1]} : vector<8x256xf32> to vector<1x256xf32>
    %96 = vector.broadcast %95 : vector<1x256xf32> to vector<256x256xf32>
    %97 = arith.addf %94, %96 : vector<256x256xf32>
    %98 = arith.mulf %90, %97 : vector<256x256xf32>
    %99 = vector.extract_strided_slice %91 {offsets = [0, 0], sizes = [256, 1], strides = [1, 1]} : vector<256x2xf32> to vector<256x1xf32>
    %100 = vector.extract_strided_slice %78 {offsets = [3, 0], sizes = [1, 256], strides = [1, 1]} : vector<8x256xf32> to vector<1x256xf32>
    %101 = vector.broadcast %99 : vector<256x1xf32> to vector<256x256xf32>
    %102 = vector.broadcast %100 : vector<1x256xf32> to vector<256x256xf32>
    %103 = arith.mulf %101, %102 : vector<256x256xf32>
    %104 = arith.addf %98, %103 : vector<256x256xf32>
    %105 = vector.extract_strided_slice %91 {offsets = [0, 1], sizes = [256, 1], strides = [1, 1]} : vector<256x2xf32> to vector<256x1xf32>
    %106 = vector.extract_strided_slice %78 {offsets = [4, 0], sizes = [1, 256], strides = [1, 1]} : vector<8x256xf32> to vector<1x256xf32>
    %107 = vector.broadcast %105 : vector<256x1xf32> to vector<256x256xf32>
    %108 = vector.broadcast %106 : vector<1x256xf32> to vector<256x256xf32>
    %109 = arith.mulf %107, %108 : vector<256x256xf32>
    %110 = arith.addf %104, %109 : vector<256x256xf32>
    %111 = vector.extract_strided_slice %78 {offsets = [5, 0], sizes = [1, 256], strides = [1, 1]} : vector<8x256xf32> to vector<1x256xf32>
    %112 = vector.broadcast %111 : vector<1x256xf32> to vector<256x256xf32>
    %113 = arith.addf %110, %112 : vector<256x256xf32>
    %c0_46 = arith.constant 0 : index
    %c0_47 = arith.constant 0 : index
    %114 = vector.load %arg20[%c0_46, %c0_47] : memref<256x256xf32, #tpu.memory_space<vmem>>, vector<256x256xf32>
    tpu.vector_store %arg20[%c0_46, %c0_47], %113 {strides = array<i32>} : memref<256x256xf32, #tpu.memory_space<vmem>>, vector<256x256xf32>,
    %c0_48 = arith.constant 0 : index
    %c0_49 = arith.constant 0 : index
    %115 = vector.load %arg15[%c0_48, %c0_49] : memref<8x256xf32, #tpu.memory_space<vmem>>, vector<8x256xf32>
    %c0_50 = arith.constant 0 : index
    %c0_51 = arith.constant 0 : index
    %116 = vector.load %arg14[%c0_50, %c0_51] : memref<128x256xbf16, #tpu.memory_space<vmem>>, vector<128x256xbf16>
    %cst_52 = arith.constant dense<0.000000e+00> : vector<64x256xf32>
    %117 = tpu.matmul %40, %116, %cst_52 {dimension_numbers = #tpu.dot_dimension_numbers<[1], [0], [0], [1], [0, 0, 1, 1], [], []>} : vector<64x128xbf16>, vector<128x256xbf16>, vector<64x256xf32> -> vector<64x256xf32>
    %118 = vector.extract_strided_slice %115 {offsets = [0, 0], sizes = [1, 256], strides = [1, 1]} : vector<8x256xf32> to vector<1x256xf32>
    %119 = vector.broadcast %118 : vector<1x256xf32> to vector<64x256xf32>
    %120 = arith.addf %117, %119 : vector<64x256xf32>
    %c0_53 = arith.constant 0 : index
    %c0_54 = arith.constant 0 : index
    %121 = vector.load %arg21[%c0_53, %c0_54] : memref<64x256xf32, #tpu.memory_space<vmem>>, vector<64x256xf32>
    tpu.vector_store %arg21[%c0_53, %c0_54], %120 {strides = array<i32>} : memref<64x256xf32, #tpu.memory_space<vmem>>, vector<64x256xf32>,
    %cst_55 = arith.constant 0.000000e+00 : f32
    %122 = vector.broadcast %cst_55 : f32 to vector<64x256xf32>
    %123 = arith.subf %122, %120 : vector<64x256xf32>
    %124 = math.exp %123 : vector<64x256xf32>
    %cst_56 = arith.constant 1.000000e+00 : f32
    %125 = vector.broadcast %cst_56 : f32 to vector<64x256xf32>
    %126 = arith.addf %125, %124 : vector<64x256xf32>
    %127 = tpu.reciprocal %126 {approx = true} : vector<64x256xf32> -> vector<64x256xf32>
    %c0_57 = arith.constant 0 : index
    %c0_58 = arith.constant 0 : index
    %128 = vector.load %arg16[%c0_57, %c0_58] : memref<64x2xf32, #tpu.memory_space<vmem>>, vector<64x2xf32>
    %129 = vector.extract_strided_slice %115 {offsets = [1, 0], sizes = [1, 256], strides = [1, 1]} : vector<8x256xf32> to vector<1x256xf32>
    %130 = vector.broadcast %129 : vector<1x256xf32> to vector<64x256xf32>
    %131 = arith.mulf %130, %127 : vector<64x256xf32>
    %132 = vector.extract_strided_slice %115 {offsets = [2, 0], sizes = [1, 256], strides = [1, 1]} : vector<8x256xf32> to vector<1x256xf32>
    %133 = vector.broadcast %132 : vector<1x256xf32> to vector<64x256xf32>
    %134 = arith.addf %131, %133 : vector<64x256xf32>
    %135 = arith.mulf %127, %134 : vector<64x256xf32>
    %136 = vector.extract_strided_slice %128 {offsets = [0, 0], sizes = [64, 1], strides = [1, 1]} : vector<64x2xf32> to vector<64x1xf32>
    %137 = vector.extract_strided_slice %115 {offsets = [3, 0], sizes = [1, 256], strides = [1, 1]} : vector<8x256xf32> to vector<1x256xf32>
    %138 = vector.broadcast %136 : vector<64x1xf32> to vector<64x256xf32>
    %139 = vector.broadcast %137 : vector<1x256xf32> to vector<64x256xf32>
    %140 = arith.mulf %138, %139 : vector<64x256xf32>
    %141 = arith.addf %135, %140 : vector<64x256xf32>
    %142 = vector.extract_strided_slice %128 {offsets = [0, 1], sizes = [64, 1], strides = [1, 1]} : vector<64x2xf32> to vector<64x1xf32>
    %143 = vector.extract_strided_slice %115 {offsets = [4, 0], sizes = [1, 256], strides = [1, 1]} : vector<8x256xf32> to vector<1x256xf32>
    %144 = vector.broadcast %142 : vector<64x1xf32> to vector<64x256xf32>
    %145 = vector.broadcast %143 : vector<1x256xf32> to vector<64x256xf32>
    %146 = arith.mulf %144, %145 : vector<64x256xf32>
    %147 = arith.addf %141, %146 : vector<64x256xf32>
    %148 = vector.extract_strided_slice %115 {offsets = [5, 0], sizes = [1, 256], strides = [1, 1]} : vector<8x256xf32> to vector<1x256xf32>
    %149 = vector.broadcast %148 : vector<1x256xf32> to vector<64x256xf32>
    %150 = arith.addf %147, %149 : vector<64x256xf32>
    %c0_59 = arith.constant 0 : index
    %c0_60 = arith.constant 0 : index
    %151 = vector.load %arg22[%c0_59, %c0_60] : memref<64x256xf32, #tpu.memory_space<vmem>>, vector<64x256xf32>
    tpu.vector_store %arg22[%c0_59, %c0_60], %150 {strides = array<i32>} : memref<64x256xf32, #tpu.memory_space<vmem>>, vector<64x256xf32>,
    return
  }
  func.func @transform_0(%arg0: i32) -> (i32, i32) {
    %c0_i32 = arith.constant 0 : i32
    %c0_i32_0 = arith.constant 0 : i32
    return %arg0, %c0_i32 : i32, i32
  }
  func.func @transform_1(%arg0: i32) -> (i32, i32) {
    %c0_i32 = arith.constant 0 : i32
    %c0_i32_0 = arith.constant 0 : i32
    %c0_i32_1 = arith.constant 0 : i32
    return %c0_i32, %c0_i32_0 : i32, i32
  }
  func.func @transform_2(%arg0: i32) -> (i32, i32) {
    %c0_i32 = arith.constant 0 : i32
    %c0_i32_0 = arith.constant 0 : i32
    %c0_i32_1 = arith.constant 0 : i32
    return %c0_i32, %c0_i32_0 : i32, i32
  }
  func.func @transform_3(%arg0: i32) -> (i32, i32) {
    %c0_i32 = arith.constant 0 : i32
    %c0_i32_0 = arith.constant 0 : i32
    %c0_i32_1 = arith.constant 0 : i32
    return %c0_i32, %c0_i32_0 : i32, i32
  }
  func.func @transform_4(%arg0: i32) -> (i32, i32) {
    %c0_i32 = arith.constant 0 : i32
    %c0_i32_0 = arith.constant 0 : i32
    %c0_i32_1 = arith.constant 0 : i32
    return %c0_i32, %c0_i32_0 : i32, i32
  }
  func.func @transform_5(%arg0: i32) -> (i32, i32) {
    %c0_i32 = arith.constant 0 : i32
    %c0_i32_0 = arith.constant 0 : i32
    %c0_i32_1 = arith.constant 0 : i32
    return %c0_i32, %c0_i32_0 : i32, i32
  }
  func.func @transform_6(%arg0: i32) -> (i32, i32) {
    %c0_i32 = arith.constant 0 : i32
    %c0_i32_0 = arith.constant 0 : i32
    %c0_i32_1 = arith.constant 0 : i32
    return %c0_i32, %c0_i32_0 : i32, i32
  }
  func.func @transform_7(%arg0: i32) -> (i32, i32) {
    %c0_i32 = arith.constant 0 : i32
    %c0_i32_0 = arith.constant 0 : i32
    %c0_i32_1 = arith.constant 0 : i32
    return %c0_i32, %c0_i32_0 : i32, i32
  }
  func.func @transform_8(%arg0: i32) -> (i32, i32) {
    %c0_i32 = arith.constant 0 : i32
    %c0_i32_0 = arith.constant 0 : i32
    %c0_i32_1 = arith.constant 0 : i32
    return %c0_i32, %c0_i32_0 : i32, i32
  }
  func.func @transform_9(%arg0: i32) -> (i32, i32) {
    %c0_i32 = arith.constant 0 : i32
    %c0_i32_0 = arith.constant 0 : i32
    return %arg0, %c0_i32 : i32, i32
  }
  func.func @transform_10(%arg0: i32) -> (i32, i32) {
    %c0_i32 = arith.constant 0 : i32
    %c0_i32_0 = arith.constant 0 : i32
    %c0_i32_1 = arith.constant 0 : i32
    return %c0_i32, %c0_i32_0 : i32, i32
  }
  func.func @transform_11(%arg0: i32) -> (i32, i32) {
    %c0_i32 = arith.constant 0 : i32
    %c0_i32_0 = arith.constant 0 : i32
    %c0_i32_1 = arith.constant 0 : i32
    return %c0_i32, %c0_i32_0 : i32, i32
  }
  func.func @transform_12(%arg0: i32) -> (i32, i32) {
    %c0_i32 = arith.constant 0 : i32
    %c0_i32_0 = arith.constant 0 : i32
    return %arg0, %c0_i32 : i32, i32
  }
  func.func @transform_13(%arg0: i32) -> (i32, i32) {
    %c0_i32 = arith.constant 0 : i32
    %c0_i32_0 = arith.constant 0 : i32
    %c0_i32_1 = arith.constant 0 : i32
    return %c0_i32, %c0_i32_0 : i32, i32
  }
  func.func @transform_14(%arg0: i32) -> (i32, i32) {
    %c0_i32 = arith.constant 0 : i32
    %c0_i32_0 = arith.constant 0 : i32
    %c0_i32_1 = arith.constant 0 : i32
    return %c0_i32, %c0_i32_0 : i32, i32
  }
  func.func @transform_15(%arg0: i32) -> (i32, i32) {
    %c0_i32 = arith.constant 0 : i32
    %c0_i32_0 = arith.constant 0 : i32
    return %arg0, %c0_i32 : i32, i32
  }
  func.func @transform_16(%arg0: i32) -> (i32, i32) {
    %c0_i32 = arith.constant 0 : i32
    %c0_i32_0 = arith.constant 0 : i32
    return %arg0, %c0_i32 : i32, i32
  }
  func.func @transform_17(%arg0: i32) -> (i32, i32) {
    %c0_i32 = arith.constant 0 : i32
    %c0_i32_0 = arith.constant 0 : i32
    return %arg0, %c0_i32 : i32, i32
  }
  func.func @transform_18(%arg0: i32) -> (i32, i32) {
    %c0_i32 = arith.constant 0 : i32
    %c0_i32_0 = arith.constant 0 : i32
    return %arg0, %c0_i32 : i32, i32
  }
  func.func @transform_19(%arg0: i32) -> (i32, i32) {
    %c0_i32 = arith.constant 0 : i32
    %c0_i32_0 = arith.constant 0 : i32
    return %arg0, %c0_i32 : i32, i32
  }
  func.func @transform_20(%arg0: i32) -> (i32, i32) {
    %c0_i32 = arith.constant 0 : i32
    %c0_i32_0 = arith.constant 0 : i32
    return %arg0, %c0_i32 : i32, i32
  }
  func.func @transform_21(%arg0: i32) -> (i32, i32) {
    %c0_i32 = arith.constant 0 : i32
    %c0_i32_0 = arith.constant 0 : i32
    return %arg0, %c0_i32 : i32, i32
  }
}

</mosaic_0001>

<llo_original>
// kernel: yolo_forward.1
$region0: #{yolo_forward.1}
  #allocation0 [shape = 'u32[]', space=smem, size = 0x4, offset = 0x4, fixed_abs, tag = 'smem constant byte address 0x4 - core index']
  #allocation1 [shape = 'u32[72,128]{1,0:T(1,128)}', space=vmem, size = 0x9000, scoped, tag = 'internal scratch']
  %s0 = inlined_call_operand.vmem [shape: f32[2048,32], index: 0, kind: input, shape index: {}]
  %s1 = inlined_call_operand.vmem [shape: bf16[32,64], index: 1, kind: input, shape index: {}]
  %s2 = inlined_call_operand.vmem [shape: f32[1,64], index: 2, kind: input, shape index: {}]
  %s3 = inlined_call_operand.vmem [shape: bf16[64,128], index: 3, kind: input, shape index: {}]
  %s4 = inlined_call_operand.vmem [shape: f32[1,128], index: 4, kind: input, shape index: {}]
  %s5 = inlined_call_operand.vmem [shape: bf16[256,1024], index: 5, kind: input, shape index: {}]
  %s6 = inlined_call_operand.vmem [shape: bf16[64,256], index: 6, kind: input, shape index: {}]
  %s7 = inlined_call_operand.vmem [shape: bf16[32,256], index: 7, kind: input, shape index: {}]
  %s8 = inlined_call_operand.vmem [shape: f32[8,256], index: 8, kind: input, shape index: {}]
  %s9 = inlined_call_operand.vmem [shape: f32[2048,2], index: 9, kind: input, shape index: {}]
  %s10 = inlined_call_operand.vmem [shape: bf16[64,256], index: 10, kind: input, shape index: {}]
  %s11 = inlined_call_operand.vmem [shape: f32[8,256], index: 11, kind: input, shape index: {}]
  %s12 = inlined_call_operand.vmem [shape: f32[512,2], index: 12, kind: input, shape index: {}]
  %s13 = inlined_call_operand.vmem [shape: bf16[128,256], index: 13, kind: input, shape index: {}]
  %s14 = inlined_call_operand.vmem [shape: f32[8,256], index: 14, kind: input, shape index: {}]
  %s15 = inlined_call_operand.vmem [shape: f32[128,2], index: 15, kind: input, shape index: {}]
  %s16 = inlined_call_operand.vmem [shape: f32[2048,256], index: 16, kind: output, shape index: {0}]
  %s17 = inlined_call_operand.vmem [shape: f32[2048,256], index: 17, kind: output, shape index: {1}]
  %s18 = inlined_call_operand.vmem [shape: f32[512,256], index: 18, kind: output, shape index: {2}]
  %s19 = inlined_call_operand.vmem [shape: f32[512,256], index: 19, kind: output, shape index: {3}]
  %s20 = inlined_call_operand.vmem [shape: f32[128,256], index: 20, kind: output, shape index: {4}]
  %s21 = inlined_call_operand.vmem [shape: f32[128,256], index: 21, kind: output, shape index: {5}]
  %22 = xla_tuple %s16, %s17, %s18, %s19, %s20, %s21
  %s23 = sld [smem:[#allocation0]]
  $region137: #{yolo_forward.1} parent=0
    _
  %s25 = ssub.s32 1, %s23
  %s26 = scalar_select 0, %s25, %s23
  loop: start=0, step=1, limit=4
  $region2: #{yolo_forward.1} parent=0 // loop_pre_header
    _
  $region3: #{yolo_forward.1} parent=0 // loop_header
    %s28 = sphi 0, %s32
    %p29 = scmp.ge.s32.totalorder %s28, 4
    %s38 = sphi 0, %s40
    %s41 = sphi 0, %s38
    %s42 = sphi 0, %s41
    %s58 = sphi 0, %s42
    %s62 = sphi 0, %s62
    %s64 = sphi 0, %s62
    %s65 = sphi 0, %s64
    %s79 = sphi 0, %s65
    %s83 = sphi 0, %s83
    %s85 = sphi 0, %s83
    %s86 = sphi 0, %s85
    %s100 = sphi 0, %s86
    %s104 = sphi 0, %s104
    %s106 = sphi 0, %s104
    %s107 = sphi 0, %s106
    %s121 = sphi 0, %s107
    %s125 = sphi 0, %s125
    %s127 = sphi 0, %s125
    %s128 = sphi 0, %s127
    %s142 = sphi 0, %s128
    %s146 = sphi 0, %s146
    %s148 = sphi 0, %s146
    %s149 = sphi 0, %s148
    %s163 = sphi 0, %s149
    %s167 = sphi 0, %s167
    %s169 = sphi 0, %s167
    %s170 = sphi 0, %s169
    %s184 = sphi 0, %s170
    %s188 = sphi 0, %s188
    %s190 = sphi 0, %s188
    %s191 = sphi 0, %s190
    %s205 = sphi 0, %s191
    %s209 = sphi 0, %s209
    %s211 = sphi 0, %s209
    %s212 = sphi 0, %s211
    %s226 = sphi 0, %s212
    %s232 = sphi 0, %s234
    %s235 = sphi 0, %s232
    %s236 = sphi 0, %s235
    %s252 = sphi 0, %s236
    %s256 = sphi 0, %s256
    %s258 = sphi 0, %s256
    %s259 = sphi 0, %s258
    %s273 = sphi 0, %s259
    %s277 = sphi 0, %s277
    %s279 = sphi 0, %s277
    %s280 = sphi 0, %s279
    %s294 = sphi 0, %s280
    %s300 = sphi 0, %s302
    %s303 = sphi 0, %s300
    %s304 = sphi 0, %s303
    %s320 = sphi 0, %s304
    %s324 = sphi 0, %s324
    %s326 = sphi 0, %s324
    %s327 = sphi 0, %s326
    %s341 = sphi 0, %s327
    %s345 = sphi 0, %s345
    %s347 = sphi 0, %s345
    %s348 = sphi 0, %s347
    %s362 = sphi 0, %s348
    %s368 = sphi 0, %s370
    %s371 = sphi 0, %s368
    %s372 = sphi 0, %s371
    %s388 = sphi 0, %s372
    %s394 = sphi 0, %s396
    %s397 = sphi 0, %s394
    %s398 = sphi 0, %s397
    %s414 = sphi 0, %s398
    %s420 = sphi 0, %s422
    %s423 = sphi 0, %s420
    %s424 = sphi 0, %s423
    %s440 = sphi 0, %s424
    %s446 = sphi 0, %s448
    %s449 = sphi 0, %s446
    %s450 = sphi 0, %s449
    %s466 = sphi 0, %s450
    %s472 = sphi 0, %s474
    %s475 = sphi 0, %s472
    %s476 = sphi 0, %s475
    %s492 = sphi 0, %s476
    %s498 = sphi 0, %s500
    %s501 = sphi 0, %s498
    %s502 = sphi 0, %s501
    %s518 = sphi 0, %s502
    %s524 = sphi 0, %s526
    %s527 = sphi 0, %s524
    %s528 = sphi 0, %s527
    %s544 = sphi 0, %s528
  $region4: #{yolo_forward.1} parent=0 // loop_header_branch
    %31 = sbr.rel (%p29) target = $region8
  $region5: #{yolo_forward.1} parent=0 // loop_body
    %s33 = ssub.s32 %s28, 1
    %s34 = ssub.s32 %s28, 2
    %s35 = sadd.s32 %s28, 1
    %s36 = ssub.s32 %s28, %s35
    %p37 = scmp.eq.s32.totalorder %s36, 0
    %s39 = sadd.s32 %s38, 1
    %s40 = scalar_select %p37, %s38, %s39
    %p43 = pneg %p37
    %p44 = scmp.eq.s32.totalorder %s28, 1
    %p45 = por %p43, %p44
    %p46 = scmp.ne.s32.totalorder %s38, %s41
    %p47 = scmp.eq.s32.totalorder %s28, 0
    %p48 = por %p46, %p47
    %p49 = scmp.ne.s32.totalorder %s38, %s41
    %p50 = scmp.eq.s32.totalorder %s33, 1
    %p51 = por %p49, %p50
    %p52 = scmp.ne.s32.totalorder %s41, %s42
    %p53 = scmp.eq.s32.totalorder %s33, 0
    %p54 = por %p52, %p53
    %p55 = scmp.ne.s32.totalorder %s41, %s42
    %p56 = scmp.eq.s32.totalorder %s34, 1
    %p57 = por %p55, %p56
    %p59 = scmp.ne.s32.totalorder %s42, %s58
    %p60 = scmp.eq.s32.totalorder %s34, 0
    %p61 = por %p59, %p60
    %s63 = sadd.s32 %s62, 1
    %p66 = scmp.eq.s32.totalorder %s28, 1
    %p67 = scmp.ne.s32.totalorder %s62, %s64
    %p68 = scmp.eq.s32.totalorder %s28, 0
    %p69 = por %p67, %p68
    %p70 = scmp.ne.s32.totalorder %s62, %s64
    %p71 = scmp.eq.s32.totalorder %s33, 1
    %p72 = por %p70, %p71
    %p73 = scmp.ne.s32.totalorder %s64, %s65
    %p74 = scmp.eq.s32.totalorder %s33, 0
    %p75 = por %p73, %p74
    %p76 = scmp.ne.s32.totalorder %s64, %s65
    %p77 = scmp.eq.s32.totalorder %s34, 1
    %p78 = por %p76, %p77
    %p80 = scmp.ne.s32.totalorder %s65, %s79
    %p81 = scmp.eq.s32.totalorder %s34, 0
    %p82 = por %p80, %p81
    %s84 = sadd.s32 %s83, 1
    %p87 = scmp.eq.s32.totalorder %s28, 1
    %p88 = scmp.ne.s32.totalorder %s83, %s85
    %p89 = scmp.eq.s32.totalorder %s28, 0
    %p90 = por %p88, %p89
    %p91 = scmp.ne.s32.totalorder %s83, %s85
    %p92 = scmp.eq.s32.totalorder %s33, 1
    %p93 = por %p91, %p92
    %p94 = scmp.ne.s32.totalorder %s85, %s86
    %p95 = scmp.eq.s32.totalorder %s33, 0
    %p96 = por %p94, %p95
    %p97 = scmp.ne.s32.totalorder %s85, %s86
    %p98 = scmp.eq.s32.totalorder %s34, 1
    %p99 = por %p97, %p98
    %p101 = scmp.ne.s32.totalorder %s86, %s100
    %p102 = scmp.eq.s32.totalorder %s34, 0
    %p103 = por %p101, %p102
    %s105 = sadd.s32 %s104, 1
    %p108 = scmp.eq.s32.totalorder %s28, 1
    %p109 = scmp.ne.s32.totalorder %s104, %s106
    %p110 = scmp.eq.s32.totalorder %s28, 0
    %p111 = por %p109, %p110
    %p112 = scmp.ne.s32.totalorder %s104, %s106
    %p113 = scmp.eq.s32.totalorder %s33, 1
    %p114 = por %p112, %p113
    %p115 = scmp.ne.s32.totalorder %s106, %s107
    %p116 = scmp.eq.s32.totalorder %s33, 0
    %p117 = por %p115, %p116
    %p118 = scmp.ne.s32.totalorder %s106, %s107
    %p119 = scmp.eq.s32.totalorder %s34, 1
    %p120 = por %p118, %p119
    %p122 = scmp.ne.s32.totalorder %s107, %s121
    %p123 = scmp.eq.s32.totalorder %s34, 0
    %p124 = por %p122, %p123
    %s126 = sadd.s32 %s125, 1
    %p129 = scmp.eq.s32.totalorder %s28, 1
    %p130 = scmp.ne.s32.totalorder %s125, %s127
    %p131 = scmp.eq.s32.totalorder %s28, 0
    %p132 = por %p130, %p131
    %p133 = scmp.ne.s32.totalorder %s125, %s127
    %p134 = scmp.eq.s32.totalorder %s33, 1
    %p135 = por %p133, %p134
    %p136 = scmp.ne.s32.totalorder %s127, %s128
    %p137 = scmp.eq.s32.totalorder %s33, 0
    %p138 = por %p136, %p137
    %p139 = scmp.ne.s32.totalorder %s127, %s128
    %p140 = scmp.eq.s32.totalorder %s34, 1
    %p141 = por %p139, %p140
    %p143 = scmp.ne.s32.totalorder %s128, %s142
    %p144 = scmp.eq.s32.totalorder %s34, 0
    %p145 = por %p143, %p144
    %s147 = sadd.s32 %s146, 1
    %p150 = scmp.eq.s32.totalorder %s28, 1
    %p151 = scmp.ne.s32.totalorder %s146, %s148
    %p152 = scmp.eq.s32.totalorder %s28, 0
    %p153 = por %p151, %p152
    %p154 = scmp.ne.s32.totalorder %s146, %s148
    %p155 = scmp.eq.s32.totalorder %s33, 1
    %p156 = por %p154, %p155
    %p157 = scmp.ne.s32.totalorder %s148, %s149
    %p158 = scmp.eq.s32.totalorder %s33, 0
    %p159 = por %p157, %p158
    %p160 = scmp.ne.s32.totalorder %s148, %s149
    %p161 = scmp.eq.s32.totalorder %s34, 1
    %p162 = por %p160, %p161
    %p164 = scmp.ne.s32.totalorder %s149, %s163
    %p165 = scmp.eq.s32.totalorder %s34, 0
    %p166 = por %p164, %p165
    %s168 = sadd.s32 %s167, 1
    %p171 = scmp.eq.s32.totalorder %s28, 1
    %p172 = scmp.ne.s32.totalorder %s167, %s169
    %p173 = scmp.eq.s32.totalorder %s28, 0
    %p174 = por %p172, %p173
    %p175 = scmp.ne.s32.totalorder %s167, %s169
    %p176 = scmp.eq.s32.totalorder %s33, 1
    %p177 = por %p175, %p176
    %p178 = scmp.ne.s32.totalorder %s169, %s170
    %p179 = scmp.eq.s32.totalorder %s33, 0
    %p180 = por %p178, %p179
    %p181 = scmp.ne.s32.totalorder %s169, %s170
    %p182 = scmp.eq.s32.totalorder %s34, 1
    %p183 = por %p181, %p182
    %p185 = scmp.ne.s32.totalorder %s170, %s184
    %p186 = scmp.eq.s32.totalorder %s34, 0
    %p187 = por %p185, %p186
    %s189 = sadd.s32 %s188, 1
    %p192 = scmp.eq.s32.totalorder %s28, 1
    %p193 = scmp.ne.s32.totalorder %s188, %s190
    %p194 = scmp.eq.s32.totalorder %s28, 0
    %p195 = por %p193, %p194
    %p196 = scmp.ne.s32.totalorder %s188, %s190
    %p197 = scmp.eq.s32.totalorder %s33, 1
    %p198 = por %p196, %p197
    %p199 = scmp.ne.s32.totalorder %s190, %s191
    %p200 = scmp.eq.s32.totalorder %s33, 0
    %p201 = por %p199, %p200
    %p202 = scmp.ne.s32.totalorder %s190, %s191
    %p203 = scmp.eq.s32.totalorder %s34, 1
    %p204 = por %p202, %p203
    %p206 = scmp.ne.s32.totalorder %s191, %s205
    %p207 = scmp.eq.s32.totalorder %s34, 0
    %p208 = por %p206, %p207
    %s210 = sadd.s32 %s209, 1
    %p213 = scmp.eq.s32.totalorder %s28, 1
    %p214 = scmp.ne.s32.totalorder %s209, %s211
    %p215 = scmp.eq.s32.totalorder %s28, 0
    %p216 = por %p214, %p215
    %p217 = scmp.ne.s32.totalorder %s209, %s211
    %p218 = scmp.eq.s32.totalorder %s33, 1
    %p219 = por %p217, %p218
    %p220 = scmp.ne.s32.totalorder %s211, %s212
    %p221 = scmp.eq.s32.totalorder %s33, 0
    %p222 = por %p220, %p221
    %p223 = scmp.ne.s32.totalorder %s211, %s212
    %p224 = scmp.eq.s32.totalorder %s34, 1
    %p225 = por %p223, %p224
    %p227 = scmp.ne.s32.totalorder %s212, %s226
    %p228 = scmp.eq.s32.totalorder %s34, 0
    %p229 = por %p227, %p228
    %s230 = ssub.s32 %s28, %s35
    %p231 = scmp.eq.s32.totalorder %s230, 0
    %s233 = sadd.s32 %s232, 1
    %s234 = scalar_select %p231, %s232, %s233
    %p237 = pneg %p231
    %p238 = scmp.eq.s32.totalorder %s28, 1
    %p239 = por %p237, %p238
    %p240 = scmp.ne.s32.totalorder %s232, %s235
    %p241 = scmp.eq.s32.totalorder %s28, 0
    %p242 = por %p240, %p241
    %p243 = scmp.ne.s32.totalorder %s232, %s235
    %p244 = scmp.eq.s32.totalorder %s33, 1
    %p245 = por %p243, %p244
    %p246 = scmp.ne.s32.totalorder %s235, %s236
    %p247 = scmp.eq.s32.totalorder %s33, 0
    %p248 = por %p246, %p247
    %p249 = scmp.ne.s32.totalorder %s235, %s236
    %p250 = scmp.eq.s32.totalorder %s34, 1
    %p251 = por %p249, %p250
    %p253 = scmp.ne.s32.totalorder %s236, %s252
    %p254 = scmp.eq.s32.totalorder %s34, 0
    %p255 = por %p253, %p254
    %s257 = sadd.s32 %s256, 1
    %p260 = scmp.eq.s32.totalorder %s28, 1
    %p261 = scmp.ne.s32.totalorder %s256, %s258
    %p262 = scmp.eq.s32.totalorder %s28, 0
    %p263 = por %p261, %p262
    %p264 = scmp.ne.s32.totalorder %s256, %s258
    %p265 = scmp.eq.s32.totalorder %s33, 1
    %p266 = por %p264, %p265
    %p267 = scmp.ne.s32.totalorder %s258, %s259
    %p268 = scmp.eq.s32.totalorder %s33, 0
    %p269 = por %p267, %p268
    %p270 = scmp.ne.s32.totalorder %s258, %s259
    %p271 = scmp.eq.s32.totalorder %s34, 1
    %p272 = por %p270, %p271
    %p274 = scmp.ne.s32.totalorder %s259, %s273
    %p275 = scmp.eq.s32.totalorder %s34, 0
    %p276 = por %p274, %p275
    %s278 = sadd.s32 %s277, 1
    %p281 = scmp.eq.s32.totalorder %s28, 1
    %p282 = scmp.ne.s32.totalorder %s277, %s279
    %p283 = scmp.eq.s32.totalorder %s28, 0
    %p284 = por %p282, %p283
    %p285 = scmp.ne.s32.totalorder %s277, %s279
    %p286 = scmp.eq.s32.totalorder %s33, 1
    %p287 = por %p285, %p286
    %p288 = scmp.ne.s32.totalorder %s279, %s280
    %p289 = scmp.eq.s32.totalorder %s33, 0
    %p290 = por %p288, %p289
    %p291 = scmp.ne.s32.totalorder %s279, %s280
    %p292 = scmp.eq.s32.totalorder %s34, 1
    %p293 = por %p291, %p292
    %p295 = scmp.ne.s32.totalorder %s280, %s294
    %p296 = scmp.eq.s32.totalorder %s34, 0
    %p297 = por %p295, %p296
    %s298 = ssub.s32 %s28, %s35
    %p299 = scmp.eq.s32.totalorder %s298, 0
    %s301 = sadd.s32 %s300, 1
    %s302 = scalar_select %p299, %s300, %s301
    %p305 = pneg %p299
    %p306 = scmp.eq.s32.totalorder %s28, 1
    %p307 = por %p305, %p306
    %p308 = scmp.ne.s32.totalorder %s300, %s303
    %p309 = scmp.eq.s32.totalorder %s28, 0
    %p310 = por %p308, %p309
    %p311 = scmp.ne.s32.totalorder %s300, %s303
    %p312 = scmp.eq.s32.totalorder %s33, 1
    %p313 = por %p311, %p312
    %p314 = scmp.ne.s32.totalorder %s303, %s304
    %p315 = scmp.eq.s32.totalorder %s33, 0
    %p316 = por %p314, %p315
    %p317 = scmp.ne.s32.totalorder %s303, %s304
    %p318 = scmp.eq.s32.totalorder %s34, 1
    %p319 = por %p317, %p318
    %p321 = scmp.ne.s32.totalorder %s304, %s320
    %p322 = scmp.eq.s32.totalorder %s34, 0
    %p323 = por %p321, %p322
    %s325 = sadd.s32 %s324, 1
    %p328 = scmp.eq.s32.totalorder %s28, 1
    %p329 = scmp.ne.s32.totalorder %s324, %s326
    %p330 = scmp.eq.s32.totalorder %s28, 0
    %p331 = por %p329, %p330
    %p332 = scmp.ne.s32.totalorder %s324, %s326
    %p333 = scmp.eq.s32.totalorder %s33, 1
    %p334 = por %p332, %p333
    %p335 = scmp.ne.s32.totalorder %s326, %s327
    %p336 = scmp.eq.s32.totalorder %s33, 0
    %p337 = por %p335, %p336
    %p338 = scmp.ne.s32.totalorder %s326, %s327
    %p339 = scmp.eq.s32.totalorder %s34, 1
    %p340 = por %p338, %p339
    %p342 = scmp.ne.s32.totalorder %s327, %s341
    %p343 = scmp.eq.s32.totalorder %s34, 0
    %p344 = por %p342, %p343
    %s346 = sadd.s32 %s345, 1
    %p349 = scmp.eq.s32.totalorder %s28, 1
    %p350 = scmp.ne.s32.totalorder %s345, %s347
    %p351 = scmp.eq.s32.totalorder %s28, 0
    %p352 = por %p350, %p351
    %p353 = scmp.ne.s32.totalorder %s345, %s347
    %p354 = scmp.eq.s32.totalorder %s33, 1
    %p355 = por %p353, %p354
    %p356 = scmp.ne.s32.totalorder %s347, %s348
    %p357 = scmp.eq.s32.totalorder %s33, 0
    %p358 = por %p356, %p357
    %p359 = scmp.ne.s32.totalorder %s347, %s348
    %p360 = scmp.eq.s32.totalorder %s34, 1
    %p361 = por %p359, %p360
    %p363 = scmp.ne.s32.totalorder %s348, %s362
    %p364 = scmp.eq.s32.totalorder %s34, 0
    %p365 = por %p363, %p364
    %s366 = ssub.s32 %s28, %s35
    %p367 = scmp.eq.s32.totalorder %s366, 0
    %s369 = sadd.s32 %s368, 1
    %s370 = scalar_select %p367, %s368, %s369
    %p373 = pneg %p367
    %p374 = scmp.eq.s32.totalorder %s28, 1
    %p375 = por %p373, %p374
    %p376 = scmp.ne.s32.totalorder %s368, %s371
    %p377 = scmp.eq.s32.totalorder %s28, 0
    %p378 = por %p376, %p377
    %p379 = scmp.ne.s32.totalorder %s368, %s371
    %p380 = scmp.eq.s32.totalorder %s33, 1
    %p381 = por %p379, %p380
    %p382 = scmp.ne.s32.totalorder %s371, %s372
    %p383 = scmp.eq.s32.totalorder %s33, 0
    %p384 = por %p382, %p383
    %p385 = scmp.ne.s32.totalorder %s371, %s372
    %p386 = scmp.eq.s32.totalorder %s34, 1
    %p387 = por %p385, %p386
    %p389 = scmp.ne.s32.totalorder %s372, %s388
    %p390 = scmp.eq.s32.totalorder %s34, 0
    %p391 = por %p389, %p390
    %s392 = ssub.s32 %s28, %s35
    %p393 = scmp.eq.s32.totalorder %s392, 0
    %s395 = sadd.s32 %s394, 1
    %s396 = scalar_select %p393, %s394, %s395
    %p399 = pneg %p393
    %p400 = scmp.eq.s32.totalorder %s28, 1
    %p401 = por %p399, %p400
    %p402 = scmp.ne.s32.totalorder %s394, %s397
    %p403 = scmp.eq.s32.totalorder %s28, 0
    %p404 = por %p402, %p403
    %p405 = scmp.ne.s32.totalorder %s394, %s397
    %p406 = scmp.eq.s32.totalorder %s33, 1
    %p407 = por %p405, %p406
    %p408 = scmp.ne.s32.totalorder %s397, %s398
    %p409 = scmp.eq.s32.totalorder %s33, 0
    %p410 = por %p408, %p409
    %p411 = scmp.ne.s32.totalorder %s397, %s398
    %p412 = scmp.eq.s32.totalorder %s34, 1
    %p413 = por %p411, %p412
    %p415 = scmp.ne.s32.totalorder %s398, %s414
    %p416 = scmp.eq.s32.totalorder %s34, 0
    %p417 = por %p415, %p416
    %s418 = ssub.s32 %s28, %s35
    %p419 = scmp.eq.s32.totalorder %s418, 0
    %s421 = sadd.s32 %s420, 1
    %s422 = scalar_select %p419, %s420, %s421
    %p425 = pneg %p419
    %p426 = scmp.eq.s32.totalorder %s28, 1
    %p427 = por %p425, %p426
    %p428 = scmp.ne.s32.totalorder %s420, %s423
    %p429 = scmp.eq.s32.totalorder %s28, 0
    %p430 = por %p428, %p429
    %p431 = scmp.ne.s32.totalorder %s420, %s423
    %p432 = scmp.eq.s32.totalorder %s33, 1
    %p433 = por %p431, %p432
    %p434 = scmp.ne.s32.totalorder %s423, %s424
    %p435 = scmp.eq.s32.totalorder %s33, 0
    %p436 = por %p434, %p435
    %p437 = scmp.ne.s32.totalorder %s423, %s424
    %p438 = scmp.eq.s32.totalorder %s34, 1
    %p439 = por %p437, %p438
    %p441 = scmp.ne.s32.totalorder %s424, %s440
    %p442 = scmp.eq.s32.totalorder %s34, 0
    %p443 = por %p441, %p442
    %s444 = ssub.s32 %s28, %s35
    %p445 = scmp.eq.s32.totalorder %s444, 0
    %s447 = sadd.s32 %s446, 1
    %s448 = scalar_select %p445, %s446, %s447
    %p451 = pneg %p445
    %p452 = scmp.eq.s32.totalorder %s28, 1
    %p453 = por %p451, %p452
    %p454 = scmp.ne.s32.totalorder %s446, %s449
    %p455 = scmp.eq.s32.totalorder %s28, 0
    %p456 = por %p454, %p455
    %p457 = scmp.ne.s32.totalorder %s446, %s449
    %p458 = scmp.eq.s32.totalorder %s33, 1
    %p459 = por %p457, %p458
    %p460 = scmp.ne.s32.totalorder %s449, %s450
    %p461 = scmp.eq.s32.totalorder %s33, 0
    %p462 = por %p460, %p461
    %p463 = scmp.ne.s32.totalorder %s449, %s450
    %p464 = scmp.eq.s32.totalorder %s34, 1
    %p465 = por %p463, %p464
    %p467 = scmp.ne.s32.totalorder %s450, %s466
    %p468 = scmp.eq.s32.totalorder %s34, 0
    %p469 = por %p467, %p468
    %s470 = ssub.s32 %s28, %s35
    %p471 = scmp.eq.s32.totalorder %s470, 0
    %s473 = sadd.s32 %s472, 1
    %s474 = scalar_select %p471, %s472, %s473
    %p477 = pneg %p471
    %p478 = scmp.eq.s32.totalorder %s28, 1
    %p479 = por %p477, %p478
    %p480 = scmp.ne.s32.totalorder %s472, %s475
    %p481 = scmp.eq.s32.totalorder %s28, 0
    %p482 = por %p480, %p481
    %p483 = scmp.ne.s32.totalorder %s472, %s475
    %p484 = scmp.eq.s32.totalorder %s33, 1
    %p485 = por %p483, %p484
    %p486 = scmp.ne.s32.totalorder %s475, %s476
    %p487 = scmp.eq.s32.totalorder %s33, 0
    %p488 = por %p486, %p487
    %p489 = scmp.ne.s32.totalorder %s475, %s476
    %p490 = scmp.eq.s32.totalorder %s34, 1
    %p491 = por %p489, %p490
    %p493 = scmp.ne.s32.totalorder %s476, %s492
    %p494 = scmp.eq.s32.totalorder %s34, 0
    %p495 = por %p493, %p494
    %s496 = ssub.s32 %s28, %s35
    %p497 = scmp.eq.s32.totalorder %s496, 0
    %s499 = sadd.s32 %s498, 1
    %s500 = scalar_select %p497, %s498, %s499
    %p503 = pneg %p497
    %p504 = scmp.eq.s32.totalorder %s28, 1
    %p505 = por %p503, %p504
    %p506 = scmp.ne.s32.totalorder %s498, %s501
    %p507 = scmp.eq.s32.totalorder %s28, 0
    %p508 = por %p506, %p507
    %p509 = scmp.ne.s32.totalorder %s498, %s501
    %p510 = scmp.eq.s32.totalorder %s33, 1
    %p511 = por %p509, %p510
    %p512 = scmp.ne.s32.totalorder %s501, %s502
    %p513 = scmp.eq.s32.totalorder %s33, 0
    %p514 = por %p512, %p513
    %p515 = scmp.ne.s32.totalorder %s501, %s502
    %p516 = scmp.eq.s32.totalorder %s34, 1
    %p517 = por %p515, %p516
    %p519 = scmp.ne.s32.totalorder %s502, %s518
    %p520 = scmp.eq.s32.totalorder %s34, 0
    %p521 = por %p519, %p520
    %s522 = ssub.s32 %s28, %s35
    %p523 = scmp.eq.s32.totalorder %s522, 0
    %s525 = sadd.s32 %s524, 1
    %s526 = scalar_select %p523, %s524, %s525
    %p529 = pneg %p523
    %p530 = scmp.eq.s32.totalorder %s28, 1
    %p531 = por %p529, %p530
    %p532 = scmp.ne.s32.totalorder %s524, %s527
    %p533 = scmp.eq.s32.totalorder %s28, 0
    %p534 = por %p532, %p533
    %p535 = scmp.ne.s32.totalorder %s524, %s527
    %p536 = scmp.eq.s32.totalorder %s33, 1
    %p537 = por %p535, %p536
    %p538 = scmp.ne.s32.totalorder %s527, %s528
    %p539 = scmp.eq.s32.totalorder %s33, 0
    %p540 = por %p538, %p539
    %p541 = scmp.ne.s32.totalorder %s527, %s528
    %p542 = scmp.eq.s32.totalorder %s34, 1
    %p543 = por %p541, %p542
    %p545 = scmp.ne.s32.totalorder %s528, %s544
    %p546 = scmp.eq.s32.totalorder %s34, 0
    %p547 = por %p545, %p546
    %p548 = scmp.le.s32.totalorder 1, %s28
    %p549 = scmp.lt.s32.totalorder %s28, 3
    %p550 = pnand %p548, %p549
    %p551 = pneg %p550
    // Predicated region
    $region9: #{yolo_forward.1} parent=5 // pred_check
      _
    $region10: #{yolo_forward.1} parent=5 // pred_check_branch
      %553 = sbr.rel (%p550) target = $region12
    $region11: #{yolo_forward.1} parent=5 // pred_region
      %s554 = ssub.s32 %s28, 1
      // Predicated region
      $region13: #{yolo_forward.1} parent=11 // pred_check
        %p555 = pneg %p75
      $region14: #{yolo_forward.1} parent=11 // pred_check_branch
        %557 = sbr.rel (%p555) target = $region16
      $region15: #{yolo_forward.1} parent=11 // pred_region
        _
      $region16: #{yolo_forward.1} parent=11 // pred_fallthru
        _
      // Predicated region
      $region17: #{yolo_forward.1} parent=11 // pred_check
        %p558 = pneg %p96
      $region18: #{yolo_forward.1} parent=11 // pred_check_branch
        %560 = sbr.rel (%p558) target = $region20
      $region19: #{yolo_forward.1} parent=11 // pred_region
        _
      $region20: #{yolo_forward.1} parent=11 // pred_fallthru
        _
      // Predicated region
      $region21: #{yolo_forward.1} parent=11 // pred_check
        %p561 = pneg %p117
      $region22: #{yolo_forward.1} parent=11 // pred_check_branch
        %563 = sbr.rel (%p561) target = $region24
      $region23: #{yolo_forward.1} parent=11 // pred_region
        _
      $region24: #{yolo_forward.1} parent=11 // pred_fallthru
        _
      // Predicated region
      $region25: #{yolo_forward.1} parent=11 // pred_check
        %p564 = pneg %p138
      $region26: #{yolo_forward.1} parent=11 // pred_check_branch
        %566 = sbr.rel (%p564) target = $region28
      $region27: #{yolo_forward.1} parent=11 // pred_region
        _
      $region28: #{yolo_forward.1} parent=11 // pred_fallthru
        _
      // Predicated region
      $region29: #{yolo_forward.1} parent=11 // pred_check
        %p567 = pneg %p159
      $region30: #{yolo_forward.1} parent=11 // pred_check_branch
        %569 = sbr.rel (%p567) target = $region32
      $region31: #{yolo_forward.1} parent=11 // pred_region
        _
      $region32: #{yolo_forward.1} parent=11 // pred_fallthru
        _
      // Predicated region
      $region33: #{yolo_forward.1} parent=11 // pred_check
        %p570 = pneg %p180
      $region34: #{yolo_forward.1} parent=11 // pred_check_branch
        %572 = sbr.rel (%p570) target = $region36
      $region35: #{yolo_forward.1} parent=11 // pred_region
        _
      $region36: #{yolo_forward.1} parent=11 // pred_fallthru
        _
      // Predicated region
      $region37: #{yolo_forward.1} parent=11 // pred_check
        %p573 = pneg %p201
      $region38: #{yolo_forward.1} parent=11 // pred_check_branch
        %575 = sbr.rel (%p573) target = $region40
      $region39: #{yolo_forward.1} parent=11 // pred_region
        _
      $region40: #{yolo_forward.1} parent=11 // pred_fallthru
        _
      // Predicated region
      $region41: #{yolo_forward.1} parent=11 // pred_check
        %p576 = pneg %p222
      $region42: #{yolo_forward.1} parent=11 // pred_check_branch
        %578 = sbr.rel (%p576) target = $region44
      $region43: #{yolo_forward.1} parent=11 // pred_region
        _
      $region44: #{yolo_forward.1} parent=11 // pred_fallthru
        _
      // Predicated region
      $region45: #{yolo_forward.1} parent=11 // pred_check
        %p579 = pneg %p269
      $region46: #{yolo_forward.1} parent=11 // pred_check_branch
        %581 = sbr.rel (%p579) target = $region48
      $region47: #{yolo_forward.1} parent=11 // pred_region
        _
      $region48: #{yolo_forward.1} parent=11 // pred_fallthru
        _
      // Predicated region
      $region49: #{yolo_forward.1} parent=11 // pred_check
        %p582 = pneg %p290
      $region50: #{yolo_forward.1} parent=11 // pred_check_branch
        %584 = sbr.rel (%p582) target = $region52
      $region51: #{yolo_forward.1} parent=11 // pred_region
        _
      $region52: #{yolo_forward.1} parent=11 // pred_fallthru
        _
      // Predicated region
      $region53: #{yolo_forward.1} parent=11 // pred_check
        %p585 = pneg %p337
      $region54: #{yolo_forward.1} parent=11 // pred_check_branch
        %587 = sbr.rel (%p585) target = $region56
      $region55: #{yolo_forward.1} parent=11 // pred_region
        _
      $region56: #{yolo_forward.1} parent=11 // pred_fallthru
        _
      // Predicated region
      $region57: #{yolo_forward.1} parent=11 // pred_check
        %p588 = pneg %p358
      $region58: #{yolo_forward.1} parent=11 // pred_check_branch
        %590 = sbr.rel (%p588) target = $region60
      $region59: #{yolo_forward.1} parent=11 // pred_region
        _
      $region60: #{yolo_forward.1} parent=11 // pred_fallthru
        _
    $region12: #{yolo_forward.1} parent=5 // pred_fallthru
      _
    %p591 = scmp.lt.s32.totalorder %s28, 2
    // Predicated region
    $region61: #{yolo_forward.1} parent=5 // pred_check
      %p592 = pneg %p591
    $region62: #{yolo_forward.1} parent=5 // pred_check_branch
      %594 = sbr.rel (%p592) target = $region64
    $region63: #{yolo_forward.1} parent=5 // pred_region
      // Predicated region
      $region65: #{yolo_forward.1} parent=63 // pred_check
        %p595 = pneg %p48
      $region66: #{yolo_forward.1} parent=63 // pred_check_branch
        %597 = sbr.rel (%p595) target = $region68
      $region67: #{yolo_forward.1} parent=63 // pred_region
        %s598 = smul.u32 128, %s28
        %p599 = scmp.lt.s32.totalorder %s598, 255
        %s600 = scalar_select %p599, %s598, 255
        %s601 = smul.addr %s600, 8
        %s602 = scalar_lea.vmem %s0, %s601
        %s603 = smul.u32 128, %s28
      $region68: #{yolo_forward.1} parent=63 // pred_fallthru
        _
      // Predicated region
      $region69: #{yolo_forward.1} parent=63 // pred_check
        %p604 = pneg %p242
      $region70: #{yolo_forward.1} parent=63 // pred_check_branch
        %606 = sbr.rel (%p604) target = $region72
      $region71: #{yolo_forward.1} parent=63 // pred_region
        %s607 = smul.u32 128, %s28
        %p608 = scmp.lt.s32.totalorder %s607, 255
        %s609 = scalar_select %p608, %s607, 255
        %s610 = smul.addr %s609, 8
        %s611 = scalar_lea.vmem %s9, %s610
        %s612 = smul.u32 128, %s28
      $region72: #{yolo_forward.1} parent=63 // pred_fallthru
        _
      // Predicated region
      $region73: #{yolo_forward.1} parent=63 // pred_check
        %p613 = pneg %p310
      $region74: #{yolo_forward.1} parent=63 // pred_check_branch
        %615 = sbr.rel (%p613) target = $region76
      $region75: #{yolo_forward.1} parent=63 // pred_region
        %s616 = smul.u32 32, %s28
        %p617 = scmp.lt.s32.totalorder %s616, 63
        %s618 = scalar_select %p617, %s616, 63
        %s619 = smul.addr %s618, 8
        %s620 = scalar_lea.vmem %s12, %s619
        %s621 = smul.u32 32, %s28
      $region76: #{yolo_forward.1} parent=63 // pred_fallthru
        _
      // Predicated region
      $region77: #{yolo_forward.1} parent=63 // pred_check
        %p622 = pneg %p378
      $region78: #{yolo_forward.1} parent=63 // pred_check_branch
        %624 = sbr.rel (%p622) target = $region80
      $region79: #{yolo_forward.1} parent=63 // pred_region
        %s625 = smul.u32 8, %s28
        %p626 = scmp.lt.s32.totalorder %s625, 15
        %s627 = scalar_select %p626, %s625, 15
        %s628 = smul.addr %s627, 8
        %s629 = scalar_lea.vmem %s15, %s628
        %s630 = smul.u32 8, %s28
      $region80: #{yolo_forward.1} parent=63 // pred_fallthru
        _
    $region64: #{yolo_forward.1} parent=5 // pred_fallthru
      _
    %p631 = scmp.le.s32.totalorder 1, %s28
    %p632 = scmp.lt.s32.totalorder %s28, 3
    %p633 = pnand %p631, %p632
    %p634 = pneg %p633
    // Predicated region
    $region81: #{yolo_forward.1} parent=5 // pred_check
      _
    $region82: #{yolo_forward.1} parent=5 // pred_check_branch
      %636 = sbr.rel (%p633) target = $region84
    $region83: #{yolo_forward.1} parent=5 // pred_region
      %s637 = ssub.s32 %s28, 1
      %s638 = smul.u32 128, %s33
      %p639 = scmp.lt.s32.totalorder %s638, 255
      %s640 = scalar_select %p639, %s638, 255
      %s641 = smul.addr %s640, 8
      %s642 = scalar_lea.vmem %s0, %s641
      %p643 = pneg %p54
      %p644 = pneg %p51
      %p645 = pneg %p75
      %p646 = pneg %p72
      %p647 = pneg %p96
      %p648 = pneg %p93
      %p649 = pneg %p117
      %p650 = pneg %p114
      %p651 = pneg %p138
      %p652 = pneg %p135
      %p653 = pneg %p159
      %p654 = pneg %p156
      %p655 = pneg %p180
      %p656 = pneg %p177
      %p657 = pneg %p201
      %p658 = pneg %p198
      %p659 = pneg %p222
      %p660 = pneg %p219
      %s661 = smul.u32 128, %s33
      %p662 = scmp.lt.s32.totalorder %s661, 255
      %s663 = scalar_select %p662, %s661, 255
      %s664 = smul.addr %s663, 8
      %s665 = scalar_lea.vmem %s9, %s664
      %p666 = pneg %p248
      %p667 = pneg %p245
      %p668 = pneg %p269
      %p669 = pneg %p266
      %p670 = pneg %p290
      %p671 = pneg %p287
      %s672 = smul.u32 32, %s33
      %p673 = scmp.lt.s32.totalorder %s672, 63
      %s674 = scalar_select %p673, %s672, 63
      %s675 = smul.addr %s674, 8
      %s676 = scalar_lea.vmem %s12, %s675
      %p677 = pneg %p316
      %p678 = pneg %p313
      %p679 = pneg %p337
      %p680 = pneg %p334
      %p681 = pneg %p358
      %p682 = pneg %p355
      %s683 = smul.u32 8, %s33
      %p684 = scmp.lt.s32.totalorder %s683, 15
      %s685 = scalar_select %p684, %s683, 15
      %s686 = smul.addr %s685, 8
      %s687 = scalar_lea.vmem %s15, %s686
      %p688 = pneg %p384
      %p689 = pneg %p381
      %p690 = pneg %p410
      %p691 = pneg %p407
      %s692 = smul.u32 128, %s33
      %p693 = scmp.lt.s32.totalorder %s692, 255
      %s694 = scalar_select %p693, %s692, 255
      %s695 = smul.addr %s694, 2
      %s696 = smul.addr %s695, 8
      %s697 = scalar_lea.vmem %s16, %s696
      %p698 = pneg %p436
      %p699 = pneg %p433
      %s700 = smul.u32 128, %s33
      %p701 = scmp.lt.s32.totalorder %s700, 255
      %s702 = scalar_select %p701, %s700, 255
      %s703 = smul.addr %s702, 2
      %s704 = smul.addr %s703, 8
      %s705 = scalar_lea.vmem %s17, %s704
      %p706 = pneg %p462
      %p707 = pneg %p459
      %s708 = smul.u32 32, %s33
      %p709 = scmp.lt.s32.totalorder %s708, 63
      %s710 = scalar_select %p709, %s708, 63
      %s711 = smul.addr %s710, 2
      %s712 = smul.addr %s711, 8
      %s713 = scalar_lea.vmem %s18, %s712
      %p714 = pneg %p488
      %p715 = pneg %p485
      %s716 = smul.u32 32, %s33
      %p717 = scmp.lt.s32.totalorder %s716, 63
      %s718 = scalar_select %p717, %s716, 63
      %s719 = smul.addr %s718, 2
      %s720 = smul.addr %s719, 8
      %s721 = scalar_lea.vmem %s19, %s720
      %p722 = pneg %p514
      %p723 = pneg %p511
      %s724 = smul.u32 8, %s33
      %p725 = scmp.lt.s32.totalorder %s724, 15
      %s726 = scalar_select %p725, %s724, 15
      %s727 = smul.addr %s726, 2
      %s728 = smul.addr %s727, 8
      %s729 = scalar_lea.vmem %s20, %s728
      %p730 = pneg %p540
      %p731 = pneg %p537
      %s732 = smul.u32 8, %s33
      %p733 = scmp.lt.s32.totalorder %s732, 15
      %s734 = scalar_select %p733, %s732, 15
      %s735 = smul.addr %s734, 2
      %s736 = smul.addr %s735, 8
      %s737 = scalar_lea.vmem %s21, %s736
      %s738 = smul.u32 128, %s33
      %p739 = scmp.lt.s32.totalorder %s738, 255
      %s740 = scalar_select %p739, %s738, 255
      %s741 = smul.addr %s740, 8
      %s742 = scalar_lea.vmem %s0, %s741
      %s743 = smul.u32 128, %s33
      %s744 = smul.u32 128, %s33
      %p745 = scmp.lt.s32.totalorder %s744, 255
      %s746 = scalar_select %p745, %s744, 255
      %s747 = smul.addr %s746, 8
      %s748 = scalar_lea.vmem %s9, %s747
      %s749 = smul.u32 128, %s33
      %s750 = smul.u32 32, %s33
      %p751 = scmp.lt.s32.totalorder %s750, 63
      %s752 = scalar_select %p751, %s750, 63
      %s753 = smul.addr %s752, 8
      %s754 = scalar_lea.vmem %s12, %s753
      %s755 = smul.u32 32, %s33
      %s756 = smul.u32 8, %s33
      %p757 = scmp.lt.s32.totalorder %s756, 15
      %s758 = scalar_select %p757, %s756, 15
      %s759 = smul.addr %s758, 8
      %s760 = scalar_lea.vmem %s15, %s759
      %s761 = smul.u32 8, %s33
      %s762 = smul.u32 128, %s33
      %p763 = scmp.lt.s32.totalorder %s762, 255
      %s764 = scalar_select %p763, %s762, 255
      %s765 = smul.addr %s764, 2
      %s766 = smul.addr %s765, 8
      %s767 = scalar_lea.vmem %s16, %s766
      %s768 = smul.u32 128, %s33
      %s769 = smul.u32 128, %s33
      %p770 = scmp.lt.s32.totalorder %s769, 255
      %s771 = scalar_select %p770, %s769, 255
      %s772 = smul.addr %s771, 2
      %s773 = smul.addr %s772, 8
      %s774 = scalar_lea.vmem %s17, %s773
      %s775 = smul.u32 128, %s33
      %s776 = smul.u32 32, %s33
      %p777 = scmp.lt.s32.totalorder %s776, 63
      %s778 = scalar_select %p777, %s776, 63
      %s779 = smul.addr %s778, 2
      %s780 = smul.addr %s779, 8
      %s781 = scalar_lea.vmem %s18, %s780
      %s782 = smul.u32 32, %s33
      %s783 = smul.u32 32, %s33
      %p784 = scmp.lt.s32.totalorder %s783, 63
      %s785 = scalar_select %p784, %s783, 63
      %s786 = smul.addr %s785, 2
      %s787 = smul.addr %s786, 8
      %s788 = scalar_lea.vmem %s19, %s787
      %s789 = smul.u32 32, %s33
      %s790 = smul.u32 8, %s33
      %p791 = scmp.lt.s32.totalorder %s790, 15
      %s792 = scalar_select %p791, %s790, 15
      %s793 = smul.addr %s792, 2
      %s794 = smul.addr %s793, 8
      %s795 = scalar_lea.vmem %s20, %s794
      %s796 = smul.u32 8, %s33
      %s797 = smul.u32 8, %s33
      %p798 = scmp.lt.s32.totalorder %s797, 15
      %s799 = scalar_select %p798, %s797, 15
      %s800 = smul.addr %s799, 2
      %s801 = smul.addr %s800, 8
      %s802 = scalar_lea.vmem %s21, %s801
      %s803 = smul.u32 8, %s33
      %v805 = vld [vmem:[%s742] sm:$0xff]
      %v806 = vld [vmem:[%s742 + $0x8] sm:$0xff]
      %v807 = vld [vmem:[%s742 + $0x10] sm:$0xff]
      %v808 = vld [vmem:[%s742 + $0x18] sm:$0xff]
      %v809 = vld [vmem:[%s742 + $0x20] sm:$0xff]
      %v810 = vld [vmem:[%s742 + $0x28] sm:$0xff]
      %v811 = vld [vmem:[%s742 + $0x30] sm:$0xff]
      %v812 = vld [vmem:[%s742 + $0x38] sm:$0xff]
      %v813 = vld [vmem:[%s742 + $0x40] sm:$0xff]
      %v814 = vld [vmem:[%s742 + $0x48] sm:$0xff]
      %v815 = vld [vmem:[%s742 + $0x50] sm:$0xff]
      %v816 = vld [vmem:[%s742 + $0x58] sm:$0xff]
      %v817 = vld [vmem:[%s742 + $0x60] sm:$0xff]
      %v818 = vld [vmem:[%s742 + $0x68] sm:$0xff]
      %v819 = vld [vmem:[%s742 + $0x70] sm:$0xff]
      %v820 = vld [vmem:[%s742 + $0x78] sm:$0xff]
      %v821 = vld [vmem:[%s742 + $0x80] sm:$0xff]
      %v822 = vld [vmem:[%s742 + $0x88] sm:$0xff]
      %v823 = vld [vmem:[%s742 + $0x90] sm:$0xff]
      %v824 = vld [vmem:[%s742 + $0x98] sm:$0xff]
      %v825 = vld [vmem:[%s742 + $0xa0] sm:$0xff]
      %v826 = vld [vmem:[%s742 + $0xa8] sm:$0xff]
      %v827 = vld [vmem:[%s742 + $0xb0] sm:$0xff]
      %v828 = vld [vmem:[%s742 + $0xb8] sm:$0xff]
      %v829 = vld [vmem:[%s742 + $0xc0] sm:$0xff]
      %v830 = vld [vmem:[%s742 + $0xc8] sm:$0xff]
      %v831 = vld [vmem:[%s742 + $0xd0] sm:$0xff]
      %v832 = vld [vmem:[%s742 + $0xd8] sm:$0xff]
      %v833 = vld [vmem:[%s742 + $0xe0] sm:$0xff]
      %v834 = vld [vmem:[%s742 + $0xe8] sm:$0xff]
      %v835 = vld [vmem:[%s742 + $0xf0] sm:$0xff]
      %v836 = vld [vmem:[%s742 + $0xf8] sm:$0xff]
      %v837 = vld [vmem:[%s742 + $0x100] sm:$0xff]
      %v838 = vld [vmem:[%s742 + $0x108] sm:$0xff]
      %v839 = vld [vmem:[%s742 + $0x110] sm:$0xff]
      %v840 = vld [vmem:[%s742 + $0x118] sm:$0xff]
      %v841 = vld [vmem:[%s742 + $0x120] sm:$0xff]
      %v842 = vld [vmem:[%s742 + $0x128] sm:$0xff]
      %v843 = vld [vmem:[%s742 + $0x130] sm:$0xff]
      %v844 = vld [vmem:[%s742 + $0x138] sm:$0xff]
      %v845 = vld [vmem:[%s742 + $0x140] sm:$0xff]
      %v846 = vld [vmem:[%s742 + $0x148] sm:$0xff]
      %v847 = vld [vmem:[%s742 + $0x150] sm:$0xff]
      %v848 = vld [vmem:[%s742 + $0x158] sm:$0xff]
      %v849 = vld [vmem:[%s742 + $0x160] sm:$0xff]
      %v850 = vld [vmem:[%s742 + $0x168] sm:$0xff]
      %v851 = vld [vmem:[%s742 + $0x170] sm:$0xff]
      %v852 = vld [vmem:[%s742 + $0x178] sm:$0xff]
      %v853 = vld [vmem:[%s742 + $0x180] sm:$0xff]
      %v854 = vld [vmem:[%s742 + $0x188] sm:$0xff]
      %v855 = vld [vmem:[%s742 + $0x190] sm:$0xff]
      %v856 = vld [vmem:[%s742 + $0x198] sm:$0xff]
      %v857 = vld [vmem:[%s742 + $0x1a0] sm:$0xff]
      %v858 = vld [vmem:[%s742 + $0x1a8] sm:$0xff]
      %v859 = vld [vmem:[%s742 + $0x1b0] sm:$0xff]
      %v860 = vld [vmem:[%s742 + $0x1b8] sm:$0xff]
      %v861 = vld [vmem:[%s742 + $0x1c0] sm:$0xff]
      %v862 = vld [vmem:[%s742 + $0x1c8] sm:$0xff]
      %v863 = vld [vmem:[%s742 + $0x1d0] sm:$0xff]
      %v864 = vld [vmem:[%s742 + $0x1d8] sm:$0xff]
      %v865 = vld [vmem:[%s742 + $0x1e0] sm:$0xff]
      %v866 = vld [vmem:[%s742 + $0x1e8] sm:$0xff]
      %v867 = vld [vmem:[%s742 + $0x1f0] sm:$0xff]
      %v868 = vld [vmem:[%s742 + $0x1f8] sm:$0xff]
      %v869 = vld [vmem:[%s742 + $0x200] sm:$0xff]
      %v870 = vld [vmem:[%s742 + $0x208] sm:$0xff]
      %v871 = vld [vmem:[%s742 + $0x210] sm:$0xff]
      %v872 = vld [vmem:[%s742 + $0x218] sm:$0xff]
      %v873 = vld [vmem:[%s742 + $0x220] sm:$0xff]
      %v874 = vld [vmem:[%s742 + $0x228] sm:$0xff]
      %v875 = vld [vmem:[%s742 + $0x230] sm:$0xff]
      %v876 = vld [vmem:[%s742 + $0x238] sm:$0xff]
      %v877 = vld [vmem:[%s742 + $0x240] sm:$0xff]
      %v878 = vld [vmem:[%s742 + $0x248] sm:$0xff]
      %v879 = vld [vmem:[%s742 + $0x250] sm:$0xff]
      %v880 = vld [vmem:[%s742 + $0x258] sm:$0xff]
      %v881 = vld [vmem:[%s742 + $0x260] sm:$0xff]
      %v882 = vld [vmem:[%s742 + $0x268] sm:$0xff]
      %v883 = vld [vmem:[%s742 + $0x270] sm:$0xff]
      %v884 = vld [vmem:[%s742 + $0x278] sm:$0xff]
      %v885 = vld [vmem:[%s742 + $0x280] sm:$0xff]
      %v886 = vld [vmem:[%s742 + $0x288] sm:$0xff]
      %v887 = vld [vmem:[%s742 + $0x290] sm:$0xff]
      %v888 = vld [vmem:[%s742 + $0x298] sm:$0xff]
      %v889 = vld [vmem:[%s742 + $0x2a0] sm:$0xff]
      %v890 = vld [vmem:[%s742 + $0x2a8] sm:$0xff]
      %v891 = vld [vmem:[%s742 + $0x2b0] sm:$0xff]
      %v892 = vld [vmem:[%s742 + $0x2b8] sm:$0xff]
      %v893 = vld [vmem:[%s742 + $0x2c0] sm:$0xff]
      %v894 = vld [vmem:[%s742 + $0x2c8] sm:$0xff]
      %v895 = vld [vmem:[%s742 + $0x2d0] sm:$0xff]
      %v896 = vld [vmem:[%s742 + $0x2d8] sm:$0xff]
      %v897 = vld [vmem:[%s742 + $0x2e0] sm:$0xff]
      %v898 = vld [vmem:[%s742 + $0x2e8] sm:$0xff]
      %v899 = vld [vmem:[%s742 + $0x2f0] sm:$0xff]
      %v900 = vld [vmem:[%s742 + $0x2f8] sm:$0xff]
      %v901 = vld [vmem:[%s742 + $0x300] sm:$0xff]
      %v902 = vld [vmem:[%s742 + $0x308] sm:$0xff]
      %v903 = vld [vmem:[%s742 + $0x310] sm:$0xff]
      %v904 = vld [vmem:[%s742 + $0x318] sm:$0xff]
      %v905 = vld [vmem:[%s742 + $0x320] sm:$0xff]
      %v906 = vld [vmem:[%s742 + $0x328] sm:$0xff]
      %v907 = vld [vmem:[%s742 + $0x330] sm:$0xff]
      %v908 = vld [vmem:[%s742 + $0x338] sm:$0xff]
      %v909 = vld [vmem:[%s742 + $0x340] sm:$0xff]
      %v910 = vld [vmem:[%s742 + $0x348] sm:$0xff]
      %v911 = vld [vmem:[%s742 + $0x350] sm:$0xff]
      %v912 = vld [vmem:[%s742 + $0x358] sm:$0xff]
      %v913 = vld [vmem:[%s742 + $0x360] sm:$0xff]
      %v914 = vld [vmem:[%s742 + $0x368] sm:$0xff]
      %v915 = vld [vmem:[%s742 + $0x370] sm:$0xff]
      %v916 = vld [vmem:[%s742 + $0x378] sm:$0xff]
      %v917 = vld [vmem:[%s742 + $0x380] sm:$0xff]
      %v918 = vld [vmem:[%s742 + $0x388] sm:$0xff]
      %v919 = vld [vmem:[%s742 + $0x390] sm:$0xff]
      %v920 = vld [vmem:[%s742 + $0x398] sm:$0xff]
      %v921 = vld [vmem:[%s742 + $0x3a0] sm:$0xff]
      %v922 = vld [vmem:[%s742 + $0x3a8] sm:$0xff]
      %v923 = vld [vmem:[%s742 + $0x3b0] sm:$0xff]
      %v924 = vld [vmem:[%s742 + $0x3b8] sm:$0xff]
      %v925 = vld [vmem:[%s742 + $0x3c0] sm:$0xff]
      %v926 = vld [vmem:[%s742 + $0x3c8] sm:$0xff]
      %v927 = vld [vmem:[%s742 + $0x3d0] sm:$0xff]
      %v928 = vld [vmem:[%s742 + $0x3d8] sm:$0xff]
      %v929 = vld [vmem:[%s742 + $0x3e0] sm:$0xff]
      %v930 = vld [vmem:[%s742 + $0x3e8] sm:$0xff]
      %v931 = vld [vmem:[%s742 + $0x3f0] sm:$0xff]
      %v932 = vld [vmem:[%s742 + $0x3f8] sm:$0xff]
      %v933 = vsub.f32 0.0, %v805
      %v934 = vsub.f32 0.0, %v806
      %v935 = vsub.f32 0.0, %v807
      %v936 = vsub.f32 0.0, %v808
      %v937 = vsub.f32 0.0, %v809
      %v938 = vsub.f32 0.0, %v810
      %v939 = vsub.f32 0.0, %v811
      %v940 = vsub.f32 0.0, %v812
      %v941 = vsub.f32 0.0, %v813
      %v942 = vsub.f32 0.0, %v814
      %v943 = vsub.f32 0.0, %v815
      %v944 = vsub.f32 0.0, %v816
      %v945 = vsub.f32 0.0, %v817
      %v946 = vsub.f32 0.0, %v818
      %v947 = vsub.f32 0.0, %v819
      %v948 = vsub.f32 0.0, %v820
      %v949 = vsub.f32 0.0, %v821
      %v950 = vsub.f32 0.0, %v822
      %v951 = vsub.f32 0.0, %v823
      %v952 = vsub.f32 0.0, %v824
      %v953 = vsub.f32 0.0, %v825
      %v954 = vsub.f32 0.0, %v826
      %v955 = vsub.f32 0.0, %v827
      %v956 = vsub.f32 0.0, %v828
      %v957 = vsub.f32 0.0, %v829
      %v958 = vsub.f32 0.0, %v830
      %v959 = vsub.f32 0.0, %v831
      %v960 = vsub.f32 0.0, %v832
      %v961 = vsub.f32 0.0, %v833
      %v962 = vsub.f32 0.0, %v834
      %v963 = vsub.f32 0.0, %v835
      %v964 = vsub.f32 0.0, %v836
      %v965 = vsub.f32 0.0, %v837
      %v966 = vsub.f32 0.0, %v838
      %v967 = vsub.f32 0.0, %v839
      %v968 = vsub.f32 0.0, %v840
      %v969 = vsub.f32 0.0, %v841
      %v970 = vsub.f32 0.0, %v842
      %v971 = vsub.f32 0.0, %v843
      %v972 = vsub.f32 0.0, %v844
      %v973 = vsub.f32 0.0, %v845
      %v974 = vsub.f32 0.0, %v846
      %v975 = vsub.f32 0.0, %v847
      %v976 = vsub.f32 0.0, %v848
      %v977 = vsub.f32 0.0, %v849
      %v978 = vsub.f32 0.0, %v850
      %v979 = vsub.f32 0.0, %v851
      %v980 = vsub.f32 0.0, %v852
      %v981 = vsub.f32 0.0, %v853
      %v982 = vsub.f32 0.0, %v854
      %v983 = vsub.f32 0.0, %v855
      %v984 = vsub.f32 0.0, %v856
      %v985 = vsub.f32 0.0, %v857
      %v986 = vsub.f32 0.0, %v858
      %v987 = vsub.f32 0.0, %v859
      %v988 = vsub.f32 0.0, %v860
      %v989 = vsub.f32 0.0, %v861
      %v990 = vsub.f32 0.0, %v862
      %v991 = vsub.f32 0.0, %v863
      %v992 = vsub.f32 0.0, %v864
      %v993 = vsub.f32 0.0, %v865
      %v994 = vsub.f32 0.0, %v866
      %v995 = vsub.f32 0.0, %v867
      %v996 = vsub.f32 0.0, %v868
      %v997 = vsub.f32 0.0, %v869
      %v998 = vsub.f32 0.0, %v870
      %v999 = vsub.f32 0.0, %v871
      %v1000 = vsub.f32 0.0, %v872
      %v1001 = vsub.f32 0.0, %v873
      %v1002 = vsub.f32 0.0, %v874
      %v1003 = vsub.f32 0.0, %v875
      %v1004 = vsub.f32 0.0, %v876
      %v1005 = vsub.f32 0.0, %v877
      %v1006 = vsub.f32 0.0, %v878
      %v1007 = vsub.f32 0.0, %v879
      %v1008 = vsub.f32 0.0, %v880
      %v1009 = vsub.f32 0.0, %v881
      %v1010 = vsub.f32 0.0, %v882
      %v1011 = vsub.f32 0.0, %v883
      %v1012 = vsub.f32 0.0, %v884
      %v1013 = vsub.f32 0.0, %v885
      %v1014 = vsub.f32 0.0, %v886
      %v1015 = vsub.f32 0.0, %v887
      %v1016 = vsub.f32 0.0, %v888
      %v1017 = vsub.f32 0.0, %v889
      %v1018 = vsub.f32 0.0, %v890
      %v1019 = vsub.f32 0.0, %v891
      %v1020 = vsub.f32 0.0, %v892
      %v1021 = vsub.f32 0.0, %v893
      %v1022 = vsub.f32 0.0, %v894
      %v1023 = vsub.f32 0.0, %v895
      %v1024 = vsub.f32 0.0, %v896
      %v1025 = vsub.f32 0.0, %v897
      %v1026 = vsub.f32 0.0, %v898
      %v1027 = vsub.f32 0.0, %v899
      %v1028 = vsub.f32 0.0, %v900
      %v1029 = vsub.f32 0.0, %v901
      %v1030 = vsub.f32 0.0, %v902
      %v1031 = vsub.f32 0.0, %v903
      %v1032 = vsub.f32 0.0, %v904
      %v1033 = vsub.f32 0.0, %v905
      %v1034 = vsub.f32 0.0, %v906
      %v1035 = vsub.f32 0.0, %v907
      %v1036 = vsub.f32 0.0, %v908
      %v1037 = vsub.f32 0.0, %v909
      %v1038 = vsub.f32 0.0, %v910
      %v1039 = vsub.f32 0.0, %v911
      %v1040 = vsub.f32 0.0, %v912
      %v1041 = vsub.f32 0.0, %v913
      %v1042 = vsub.f32 0.0, %v914
      %v1043 = vsub.f32 0.0, %v915
      %v1044 = vsub.f32 0.0, %v916
      %v1045 = vsub.f32 0.0, %v917
      %v1046 = vsub.f32 0.0, %v918
      %v1047 = vsub.f32 0.0, %v919
      %v1048 = vsub.f32 0.0, %v920
      %v1049 = vsub.f32 0.0, %v921
      %v1050 = vsub.f32 0.0, %v922
      %v1051 = vsub.f32 0.0, %v923
      %v1052 = vsub.f32 0.0, %v924
      %v1053 = vsub.f32 0.0, %v925
      %v1054 = vsub.f32 0.0, %v926
      %v1055 = vsub.f32 0.0, %v927
      %v1056 = vsub.f32 0.0, %v928
      %v1057 = vsub.f32 0.0, %v929
      %v1058 = vsub.f32 0.0, %v930
      %v1059 = vsub.f32 0.0, %v931
      %v1060 = vsub.f32 0.0, %v932
      %v1061 = vmul.f32 %v933, 1.442695
      %v1062 = vpow.pop %v1061
      %v1063 = vmul.f32 %v934, 1.442695
      %v1064 = vpow.pop %v1063
      %v1065 = vmul.f32 %v935, 1.442695
      %v1066 = vpow.pop %v1065
      %v1067 = vmul.f32 %v936, 1.442695
      %v1068 = vpow.pop %v1067
      %v1069 = vmul.f32 %v937, 1.442695
      %v1070 = vpow.pop %v1069
      %v1071 = vmul.f32 %v938, 1.442695
      %v1072 = vpow.pop %v1071
      %v1073 = vmul.f32 %v939, 1.442695
      %v1074 = vpow.pop %v1073
      %v1075 = vmul.f32 %v940, 1.442695
      %v1076 = vpow.pop %v1075
      %v1077 = vmul.f32 %v941, 1.442695
      %v1078 = vpow.pop %v1077
      %v1079 = vmul.f32 %v942, 1.442695
      %v1080 = vpow.pop %v1079
      %v1081 = vmul.f32 %v943, 1.442695
      %v1082 = vpow.pop %v1081
      %v1083 = vmul.f32 %v944, 1.442695
      %v1084 = vpow.pop %v1083
      %v1085 = vmul.f32 %v945, 1.442695
      %v1086 = vpow.pop %v1085
      %v1087 = vmul.f32 %v946, 1.442695
      %v1088 = vpow.pop %v1087
      %v1089 = vmul.f32 %v947, 1.442695
      %v1090 = vpow.pop %v1089
      %v1091 = vmul.f32 %v948, 1.442695
      %v1092 = vpow.pop %v1091
      %v1093 = vmul.f32 %v949, 1.442695
      %v1094 = vpow.pop %v1093
      %v1095 = vmul.f32 %v950, 1.442695
      %v1096 = vpow.pop %v1095
      %v1097 = vmul.f32 %v951, 1.442695
      %v1098 = vpow.pop %v1097
      %v1099 = vmul.f32 %v952, 1.442695
      %v1100 = vpow.pop %v1099
      %v1101 = vmul.f32 %v953, 1.442695
      %v1102 = vpow.pop %v1101
      %v1103 = vmul.f32 %v954, 1.442695
      %v1104 = vpow.pop %v1103
      %v1105 = vmul.f32 %v955, 1.442695
      %v1106 = vpow.pop %v1105
      %v1107 = vmul.f32 %v956, 1.442695
      %v1108 = vpow.pop %v1107
      %v1109 = vmul.f32 %v957, 1.442695
      %v1110 = vpow.pop %v1109
      %v1111 = vmul.f32 %v958, 1.442695
      %v1112 = vpow.pop %v1111
      %v1113 = vmul.f32 %v959, 1.442695
      %v1114 = vpow.pop %v1113
      %v1115 = vmul.f32 %v960, 1.442695
      %v1116 = vpow.pop %v1115
      %v1117 = vmul.f32 %v961, 1.442695
      %v1118 = vpow.pop %v1117
      %v1119 = vmul.f32 %v962, 1.442695
      %v1120 = vpow.pop %v1119
      %v1121 = vmul.f32 %v963, 1.442695
      %v1122 = vpow.pop %v1121
      %v1123 = vmul.f32 %v964, 1.442695
      %v1124 = vpow.pop %v1123
      %v1125 = vmul.f32 %v965, 1.442695
      %v1126 = vpow.pop %v1125
      %v1127 = vmul.f32 %v966, 1.442695
      %v1128 = vpow.pop %v1127
      %v1129 = vmul.f32 %v967, 1.442695
      %v1130 = vpow.pop %v1129
      %v1131 = vmul.f32 %v968, 1.442695
      %v1132 = vpow.pop %v1131
      %v1133 = vmul.f32 %v969, 1.442695
      %v1134 = vpow.pop %v1133
      %v1135 = vmul.f32 %v970, 1.442695
      %v1136 = vpow.pop %v1135
      %v1137 = vmul.f32 %v971, 1.442695
      %v1138 = vpow.pop %v1137
      %v1139 = vmul.f32 %v972, 1.442695
      %v1140 = vpow.pop %v1139
      %v1141 = vmul.f32 %v973, 1.442695
      %v1142 = vpow.pop %v1141
      %v1143 = vmul.f32 %v974, 1.442695
      %v1144 = vpow.pop %v1143
      %v1145 = vmul.f32 %v975, 1.442695
      %v1146 = vpow.pop %v1145
      %v1147 = vmul.f32 %v976, 1.442695
      %v1148 = vpow.pop %v1147
      %v1149 = vmul.f32 %v977, 1.442695
      %v1150 = vpow.pop %v1149
      %v1151 = vmul.f32 %v978, 1.442695
      %v1152 = vpow.pop %v1151
      %v1153 = vmul.f32 %v979, 1.442695
      %v1154 = vpow.pop %v1153
      %v1155 = vmul.f32 %v980, 1.442695
      %v1156 = vpow.pop %v1155
      %v1157 = vmul.f32 %v981, 1.442695
      %v1158 = vpow.pop %v1157
      %v1159 = vmul.f32 %v982, 1.442695
      %v1160 = vpow.pop %v1159
      %v1161 = vmul.f32 %v983, 1.442695
      %v1162 = vpow.pop %v1161
      %v1163 = vmul.f32 %v984, 1.442695
      %v1164 = vpow.pop %v1163
      %v1165 = vmul.f32 %v985, 1.442695
      %v1166 = vpow.pop %v1165
      %v1167 = vmul.f32 %v986, 1.442695
      %v1168 = vpow.pop %v1167
      %v1169 = vmul.f32 %v987, 1.442695
      %v1170 = vpow.pop %v1169
      %v1171 = vmul.f32 %v988, 1.442695
      %v1172 = vpow.pop %v1171
      %v1173 = vmul.f32 %v989, 1.442695
      %v1174 = vpow.pop %v1173
      %v1175 = vmul.f32 %v990, 1.442695
      %v1176 = vpow.pop %v1175
      %v1177 = vmul.f32 %v991, 1.442695
      %v1178 = vpow.pop %v1177
      %v1179 = vmul.f32 %v992, 1.442695
      %v1180 = vpow.pop %v1179
      %v1181 = vmul.f32 %v993, 1.442695
      %v1182 = vpow.pop %v1181
      %v1183 = vmul.f32 %v994, 1.442695
      %v1184 = vpow.pop %v1183
      %v1185 = vmul.f32 %v995, 1.442695
      %v1186 = vpow.pop %v1185
      %v1187 = vmul.f32 %v996, 1.442695
      %v1188 = vpow.pop %v1187
      %v1189 = vmul.f32 %v997, 1.442695
      %v1190 = vpow.pop %v1189
      %v1191 = vmul.f32 %v998, 1.442695
      %v1192 = vpow.pop %v1191
      %v1193 = vmul.f32 %v999, 1.442695
      %v1194 = vpow.pop %v1193
      %v1195 = vmul.f32 %v1000, 1.442695
      %v1196 = vpow.pop %v1195
      %v1197 = vmul.f32 %v1001, 1.442695
      %v1198 = vpow.pop %v1197
      %v1199 = vmul.f32 %v1002, 1.442695
      %v1200 = vpow.pop %v1199
      %v1201 = vmul.f32 %v1003, 1.442695
      %v1202 = vpow.pop %v1201
      %v1203 = vmul.f32 %v1004, 1.442695
      %v1204 = vpow.pop %v1203
      %v1205 = vmul.f32 %v1005, 1.442695
      %v1206 = vpow.pop %v1205
      %v1207 = vmul.f32 %v1006, 1.442695
      %v1208 = vpow.pop %v1207
      %v1209 = vmul.f32 %v1007, 1.442695
      %v1210 = vpow.pop %v1209
      %v1211 = vmul.f32 %v1008, 1.442695
      %v1212 = vpow.pop %v1211
      %v1213 = vmul.f32 %v1009, 1.442695
      %v1214 = vpow.pop %v1213
      %v1215 = vmul.f32 %v1010, 1.442695
      %v1216 = vpow.pop %v1215
      %v1217 = vmul.f32 %v1011, 1.442695
      %v1218 = vpow.pop %v1217
      %v1219 = vmul.f32 %v1012, 1.442695
      %v1220 = vpow.pop %v1219
      %v1221 = vmul.f32 %v1013, 1.442695
      %v1222 = vpow.pop %v1221
      %v1223 = vmul.f32 %v1014, 1.442695
      %v1224 = vpow.pop %v1223
      %v1225 = vmul.f32 %v1015, 1.442695
      %v1226 = vpow.pop %v1225
      %v1227 = vmul.f32 %v1016, 1.442695
      %v1228 = vpow.pop %v1227
      %v1229 = vmul.f32 %v1017, 1.442695
      %v1230 = vpow.pop %v1229
      %v1231 = vmul.f32 %v1018, 1.442695
      %v1232 = vpow.pop %v1231
      %v1233 = vmul.f32 %v1019, 1.442695
      %v1234 = vpow.pop %v1233
      %v1235 = vmul.f32 %v1020, 1.442695
      %v1236 = vpow.pop %v1235
      %v1237 = vmul.f32 %v1021, 1.442695
      %v1238 = vpow.pop %v1237
      %v1239 = vmul.f32 %v1022, 1.442695
      %v1240 = vpow.pop %v1239
      %v1241 = vmul.f32 %v1023, 1.442695
      %v1242 = vpow.pop %v1241
      %v1243 = vmul.f32 %v1024, 1.442695
      %v1244 = vpow.pop %v1243
      %v1245 = vmul.f32 %v1025, 1.442695
      %v1246 = vpow.pop %v1245
      %v1247 = vmul.f32 %v1026, 1.442695
      %v1248 = vpow.pop %v1247
      %v1249 = vmul.f32 %v1027, 1.442695
      %v1250 = vpow.pop %v1249
      %v1251 = vmul.f32 %v1028, 1.442695
      %v1252 = vpow.pop %v1251
      %v1253 = vmul.f32 %v1029, 1.442695
      %v1254 = vpow.pop %v1253
      %v1255 = vmul.f32 %v1030, 1.442695
      %v1256 = vpow.pop %v1255
      %v1257 = vmul.f32 %v1031, 1.442695
      %v1258 = vpow.pop %v1257
      %v1259 = vmul.f32 %v1032, 1.442695
      %v1260 = vpow.pop %v1259
      %v1261 = vmul.f32 %v1033, 1.442695
      %v1262 = vpow.pop %v1261
      %v1263 = vmul.f32 %v1034, 1.442695
      %v1264 = vpow.pop %v1263
      %v1265 = vmul.f32 %v1035, 1.442695
      %v1266 = vpow.pop %v1265
      %v1267 = vmul.f32 %v1036, 1.442695
      %v1268 = vpow.pop %v1267
      %v1269 = vmul.f32 %v1037, 1.442695
      %v1270 = vpow.pop %v1269
      %v1271 = vmul.f32 %v1038, 1.442695
      %v1272 = vpow.pop %v1271
      %v1273 = vmul.f32 %v1039, 1.442695
      %v1274 = vpow.pop %v1273
      %v1275 = vmul.f32 %v1040, 1.442695
      %v1276 = vpow.pop %v1275
      %v1277 = vmul.f32 %v1041, 1.442695
      %v1278 = vpow.pop %v1277
      %v1279 = vmul.f32 %v1042, 1.442695
      %v1280 = vpow.pop %v1279
      %v1281 = vmul.f32 %v1043, 1.442695
      %v1282 = vpow.pop %v1281
      %v1283 = vmul.f32 %v1044, 1.442695
      %v1284 = vpow.pop %v1283
      %v1285 = vmul.f32 %v1045, 1.442695
      %v1286 = vpow.pop %v1285
      %v1287 = vmul.f32 %v1046, 1.442695
      %v1288 = vpow.pop %v1287
      %v1289 = vmul.f32 %v1047, 1.442695
      %v1290 = vpow.pop %v1289
      %v1291 = vmul.f32 %v1048, 1.442695
      %v1292 = vpow.pop %v1291
      %v1293 = vmul.f32 %v1049, 1.442695
      %v1294 = vpow.pop %v1293
      %v1295 = vmul.f32 %v1050, 1.442695
      %v1296 = vpow.pop %v1295
      %v1297 = vmul.f32 %v1051, 1.442695
      %v1298 = vpow.pop %v1297
      %v1299 = vmul.f32 %v1052, 1.442695
      %v1300 = vpow.pop %v1299
      %v1301 = vmul.f32 %v1053, 1.442695
      %v1302 = vpow.pop %v1301
      %v1303 = vmul.f32 %v1054, 1.442695
      %v1304 = vpow.pop %v1303
      %v1305 = vmul.f32 %v1055, 1.442695
      %v1306 = vpow.pop %v1305
      %v1307 = vmul.f32 %v1056, 1.442695
      %v1308 = vpow.pop %v1307
      %v1309 = vmul.f32 %v1057, 1.442695
      %v1310 = vpow.pop %v1309
      %v1311 = vmul.f32 %v1058, 1.442695
      %v1312 = vpow.pop %v1311
      %v1313 = vmul.f32 %v1059, 1.442695
      %v1314 = vpow.pop %v1313
      %v1315 = vmul.f32 %v1060, 1.442695
      %v1316 = vpow.pop %v1315
      %v1317 = vadd.f32 %v1062, 1.0
      %v1318 = vadd.f32 %v1064, 1.0
      %v1319 = vadd.f32 %v1066, 1.0
      %v1320 = vadd.f32 %v1068, 1.0
      %v1321 = vadd.f32 %v1070, 1.0
      %v1322 = vadd.f32 %v1072, 1.0
      %v1323 = vadd.f32 %v1074, 1.0
      %v1324 = vadd.f32 %v1076, 1.0
      %v1325 = vadd.f32 %v1078, 1.0
      %v1326 = vadd.f32 %v1080, 1.0
      %v1327 = vadd.f32 %v1082, 1.0
      %v1328 = vadd.f32 %v1084, 1.0
      %v1329 = vadd.f32 %v1086, 1.0
      %v1330 = vadd.f32 %v1088, 1.0
      %v1331 = vadd.f32 %v1090, 1.0
      %v1332 = vadd.f32 %v1092, 1.0
      %v1333 = vadd.f32 %v1094, 1.0
      %v1334 = vadd.f32 %v1096, 1.0
      %v1335 = vadd.f32 %v1098, 1.0
      %v1336 = vadd.f32 %v1100, 1.0
      %v1337 = vadd.f32 %v1102, 1.0
      %v1338 = vadd.f32 %v1104, 1.0
      %v1339 = vadd.f32 %v1106, 1.0
      %v1340 = vadd.f32 %v1108, 1.0
      %v1341 = vadd.f32 %v1110, 1.0
      %v1342 = vadd.f32 %v1112, 1.0
      %v1343 = vadd.f32 %v1114, 1.0
      %v1344 = vadd.f32 %v1116, 1.0
      %v1345 = vadd.f32 %v1118, 1.0
      %v1346 = vadd.f32 %v1120, 1.0
      %v1347 = vadd.f32 %v1122, 1.0
      %v1348 = vadd.f32 %v1124, 1.0
      %v1349 = vadd.f32 %v1126, 1.0
      %v1350 = vadd.f32 %v1128, 1.0
      %v1351 = vadd.f32 %v1130, 1.0
      %v1352 = vadd.f32 %v1132, 1.0
      %v1353 = vadd.f32 %v1134, 1.0
      %v1354 = vadd.f32 %v1136, 1.0
      %v1355 = vadd.f32 %v1138, 1.0
      %v1356 = vadd.f32 %v1140, 1.0
      %v1357 = vadd.f32 %v1142, 1.0
      %v1358 = vadd.f32 %v1144, 1.0
      %v1359 = vadd.f32 %v1146, 1.0
      %v1360 = vadd.f32 %v1148, 1.0
      %v1361 = vadd.f32 %v1150, 1.0
      %v1362 = vadd.f32 %v1152, 1.0
      %v1363 = vadd.f32 %v1154, 1.0
      %v1364 = vadd.f32 %v1156, 1.0
      %v1365 = vadd.f32 %v1158, 1.0
      %v1366 = vadd.f32 %v1160, 1.0
      %v1367 = vadd.f32 %v1162, 1.0
      %v1368 = vadd.f32 %v1164, 1.0
      %v1369 = vadd.f32 %v1166, 1.0
      %v1370 = vadd.f32 %v1168, 1.0
      %v1371 = vadd.f32 %v1170, 1.0
      %v1372 = vadd.f32 %v1172, 1.0
      %v1373 = vadd.f32 %v1174, 1.0
      %v1374 = vadd.f32 %v1176, 1.0
      %v1375 = vadd.f32 %v1178, 1.0
      %v1376 = vadd.f32 %v1180, 1.0
      %v1377 = vadd.f32 %v1182, 1.0
      %v1378 = vadd.f32 %v1184, 1.0
      %v1379 = vadd.f32 %v1186, 1.0
      %v1380 = vadd.f32 %v1188, 1.0
      %v1381 = vadd.f32 %v1190, 1.0
      %v1382 = vadd.f32 %v1192, 1.0
      %v1383 = vadd.f32 %v1194, 1.0
      %v1384 = vadd.f32 %v1196, 1.0
      %v1385 = vadd.f32 %v1198, 1.0
      %v1386 = vadd.f32 %v1200, 1.0
      %v1387 = vadd.f32 %v1202, 1.0
      %v1388 = vadd.f32 %v1204, 1.0
      %v1389 = vadd.f32 %v1206, 1.0
      %v1390 = vadd.f32 %v1208, 1.0
      %v1391 = vadd.f32 %v1210, 1.0
      %v1392 = vadd.f32 %v1212, 1.0
      %v1393 = vadd.f32 %v1214, 1.0
      %v1394 = vadd.f32 %v1216, 1.0
      %v1395 = vadd.f32 %v1218, 1.0
      %v1396 = vadd.f32 %v1220, 1.0
      %v1397 = vadd.f32 %v1222, 1.0
      %v1398 = vadd.f32 %v1224, 1.0
      %v1399 = vadd.f32 %v1226, 1.0
      %v1400 = vadd.f32 %v1228, 1.0
      %v1401 = vadd.f32 %v1230, 1.0
      %v1402 = vadd.f32 %v1232, 1.0
      %v1403 = vadd.f32 %v1234, 1.0
      %v1404 = vadd.f32 %v1236, 1.0
      %v1405 = vadd.f32 %v1238, 1.0
      %v1406 = vadd.f32 %v1240, 1.0
      %v1407 = vadd.f32 %v1242, 1.0
      %v1408 = vadd.f32 %v1244, 1.0
      %v1409 = vadd.f32 %v1246, 1.0
      %v1410 = vadd.f32 %v1248, 1.0
      %v1411 = vadd.f32 %v1250, 1.0
      %v1412 = vadd.f32 %v1252, 1.0
      %v1413 = vadd.f32 %v1254, 1.0
      %v1414 = vadd.f32 %v1256, 1.0
      %v1415 = vadd.f32 %v1258, 1.0
      %v1416 = vadd.f32 %v1260, 1.0
      %v1417 = vadd.f32 %v1262, 1.0
      %v1418 = vadd.f32 %v1264, 1.0
      %v1419 = vadd.f32 %v1266, 1.0
      %v1420 = vadd.f32 %v1268, 1.0
      %v1421 = vadd.f32 %v1270, 1.0
      %v1422 = vadd.f32 %v1272, 1.0
      %v1423 = vadd.f32 %v1274, 1.0
      %v1424 = vadd.f32 %v1276, 1.0
      %v1425 = vadd.f32 %v1278, 1.0
      %v1426 = vadd.f32 %v1280, 1.0
      %v1427 = vadd.f32 %v1282, 1.0
      %v1428 = vadd.f32 %v1284, 1.0
      %v1429 = vadd.f32 %v1286, 1.0
      %v1430 = vadd.f32 %v1288, 1.0
      %v1431 = vadd.f32 %v1290, 1.0
      %v1432 = vadd.f32 %v1292, 1.0
      %v1433 = vadd.f32 %v1294, 1.0
      %v1434 = vadd.f32 %v1296, 1.0
      %v1435 = vadd.f32 %v1298, 1.0
      %v1436 = vadd.f32 %v1300, 1.0
      %v1437 = vadd.f32 %v1302, 1.0
      %v1438 = vadd.f32 %v1304, 1.0
      %v1439 = vadd.f32 %v1306, 1.0
      %v1440 = vadd.f32 %v1308, 1.0
      %v1441 = vadd.f32 %v1310, 1.0
      %v1442 = vadd.f32 %v1312, 1.0
      %v1443 = vadd.f32 %v1314, 1.0
      %v1444 = vadd.f32 %v1316, 1.0
      %v1445 = vrcp.pop %v1317
      %v1446 = vrcp.pop %v1318
      %v1447 = vrcp.pop %v1319
      %v1448 = vrcp.pop %v1320
      %v1449 = vrcp.pop %v1321
      %v1450 = vrcp.pop %v1322
      %v1451 = vrcp.pop %v1323
      %v1452 = vrcp.pop %v1324
      %v1453 = vrcp.pop %v1325
      %v1454 = vrcp.pop %v1326
      %v1455 = vrcp.pop %v1327
      %v1456 = vrcp.pop %v1328
      %v1457 = vrcp.pop %v1329
      %v1458 = vrcp.pop %v1330
      %v1459 = vrcp.pop %v1331
      %v1460 = vrcp.pop %v1332
      %v1461 = vrcp.pop %v1333
      %v1462 = vrcp.pop %v1334
      %v1463 = vrcp.pop %v1335
      %v1464 = vrcp.pop %v1336
      %v1465 = vrcp.pop %v1337
      %v1466 = vrcp.pop %v1338
      %v1467 = vrcp.pop %v1339
      %v1468 = vrcp.pop %v1340
      %v1469 = vrcp.pop %v1341
      %v1470 = vrcp.pop %v1342
      %v1471 = vrcp.pop %v1343
      %v1472 = vrcp.pop %v1344
      %v1473 = vrcp.pop %v1345
      %v1474 = vrcp.pop %v1346
      %v1475 = vrcp.pop %v1347
      %v1476 = vrcp.pop %v1348
      %v1477 = vrcp.pop %v1349
      %v1478 = vrcp.pop %v1350
      %v1479 = vrcp.pop %v1351
      %v1480 = vrcp.pop %v1352
      %v1481 = vrcp.pop %v1353
      %v1482 = vrcp.pop %v1354
      %v1483 = vrcp.pop %v1355
      %v1484 = vrcp.pop %v1356
      %v1485 = vrcp.pop %v1357
      %v1486 = vrcp.pop %v1358
      %v1487 = vrcp.pop %v1359
      %v1488 = vrcp.pop %v1360
      %v1489 = vrcp.pop %v1361
      %v1490 = vrcp.pop %v1362
      %v1491 = vrcp.pop %v1363
      %v1492 = vrcp.pop %v1364
      %v1493 = vrcp.pop %v1365
      %v1494 = vrcp.pop %v1366
      %v1495 = vrcp.pop %v1367
      %v1496 = vrcp.pop %v1368
      %v1497 = vrcp.pop %v1369
      %v1498 = vrcp.pop %v1370
      %v1499 = vrcp.pop %v1371
      %v1500 = vrcp.pop %v1372
      %v1501 = vrcp.pop %v1373
      %v1502 = vrcp.pop %v1374
      %v1503 = vrcp.pop %v1375
      %v1504 = vrcp.pop %v1376
      %v1505 = vrcp.pop %v1377
      %v1506 = vrcp.pop %v1378
      %v1507 = vrcp.pop %v1379
      %v1508 = vrcp.pop %v1380
      %v1509 = vrcp.pop %v1381
      %v1510 = vrcp.pop %v1382
      %v1511 = vrcp.pop %v1383
      %v1512 = vrcp.pop %v1384
      %v1513 = vrcp.pop %v1385
      %v1514 = vrcp.pop %v1386
      %v1515 = vrcp.pop %v1387
      %v1516 = vrcp.pop %v1388
      %v1517 = vrcp.pop %v1389
      %v1518 = vrcp.pop %v1390
      %v1519 = vrcp.pop %v1391
      %v1520 = vrcp.pop %v1392
      %v1521 = vrcp.pop %v1393
      %v1522 = vrcp.pop %v1394
      %v1523 = vrcp.pop %v1395
      %v1524 = vrcp.pop %v1396
      %v1525 = vrcp.pop %v1397
      %v1526 = vrcp.pop %v1398
      %v1527 = vrcp.pop %v1399
      %v1528 = vrcp.pop %v1400
      %v1529 = vrcp.pop %v1401
      %v1530 = vrcp.pop %v1402
      %v1531 = vrcp.pop %v1403
      %v1532 = vrcp.pop %v1404
      %v1533 = vrcp.pop %v1405
      %v1534 = vrcp.pop %v1406
      %v1535 = vrcp.pop %v1407
      %v1536 = vrcp.pop %v1408
      %v1537 = vrcp.pop %v1409
      %v1538 = vrcp.pop %v1410
      %v1539 = vrcp.pop %v1411
      %v1540 = vrcp.pop %v1412
      %v1541 = vrcp.pop %v1413
      %v1542 = vrcp.pop %v1414
      %v1543 = vrcp.pop %v1415
      %v1544 = vrcp.pop %v1416
      %v1545 = vrcp.pop %v1417
      %v1546 = vrcp.pop %v1418
      %v1547 = vrcp.pop %v1419
      %v1548 = vrcp.pop %v1420
      %v1549 = vrcp.pop %v1421
      %v1550 = vrcp.pop %v1422
      %v1551 = vrcp.pop %v1423
      %v1552 = vrcp.pop %v1424
      %v1553 = vrcp.pop %v1425
      %v1554 = vrcp.pop %v1426
      %v1555 = vrcp.pop %v1427
      %v1556 = vrcp.pop %v1428
      %v1557 = vrcp.pop %v1429
      %v1558 = vrcp.pop %v1430
      %v1559 = vrcp.pop %v1431
      %v1560 = vrcp.pop %v1432
      %v1561 = vrcp.pop %v1433
      %v1562 = vrcp.pop %v1434
      %v1563 = vrcp.pop %v1435
      %v1564 = vrcp.pop %v1436
      %v1565 = vrcp.pop %v1437
      %v1566 = vrcp.pop %v1438
      %v1567 = vrcp.pop %v1439
      %v1568 = vrcp.pop %v1440
      %v1569 = vrcp.pop %v1441
      %v1570 = vrcp.pop %v1442
      %v1571 = vrcp.pop %v1443
      %v1572 = vrcp.pop %v1444
      %v1573 = vmul.f32 %v805, %v1445
      %v1574 = vmul.f32 %v806, %v1446
      %v1575 = vmul.f32 %v807, %v1447
      %v1576 = vmul.f32 %v808, %v1448
      %v1577 = vmul.f32 %v809, %v1449
      %v1578 = vmul.f32 %v810, %v1450
      %v1579 = vmul.f32 %v811, %v1451
      %v1580 = vmul.f32 %v812, %v1452
      %v1581 = vmul.f32 %v813, %v1453
      %v1582 = vmul.f32 %v814, %v1454
      %v1583 = vmul.f32 %v815, %v1455
      %v1584 = vmul.f32 %v816, %v1456
      %v1585 = vmul.f32 %v817, %v1457
      %v1586 = vmul.f32 %v818, %v1458
      %v1587 = vmul.f32 %v819, %v1459
      %v1588 = vmul.f32 %v820, %v1460
      %v1589 = vmul.f32 %v821, %v1461
      %v1590 = vmul.f32 %v822, %v1462
      %v1591 = vmul.f32 %v823, %v1463
      %v1592 = vmul.f32 %v824, %v1464
      %v1593 = vmul.f32 %v825, %v1465
      %v1594 = vmul.f32 %v826, %v1466
      %v1595 = vmul.f32 %v827, %v1467
      %v1596 = vmul.f32 %v828, %v1468
      %v1597 = vmul.f32 %v829, %v1469
      %v1598 = vmul.f32 %v830, %v1470
      %v1599 = vmul.f32 %v831, %v1471
      %v1600 = vmul.f32 %v832, %v1472
      %v1601 = vmul.f32 %v833, %v1473
      %v1602 = vmul.f32 %v834, %v1474
      %v1603 = vmul.f32 %v835, %v1475
      %v1604 = vmul.f32 %v836, %v1476
      %v1605 = vmul.f32 %v837, %v1477
      %v1606 = vmul.f32 %v838, %v1478
      %v1607 = vmul.f32 %v839, %v1479
      %v1608 = vmul.f32 %v840, %v1480
      %v1609 = vmul.f32 %v841, %v1481
      %v1610 = vmul.f32 %v842, %v1482
      %v1611 = vmul.f32 %v843, %v1483
      %v1612 = vmul.f32 %v844, %v1484
      %v1613 = vmul.f32 %v845, %v1485
      %v1614 = vmul.f32 %v846, %v1486
      %v1615 = vmul.f32 %v847, %v1487
      %v1616 = vmul.f32 %v848, %v1488
      %v1617 = vmul.f32 %v849, %v1489
      %v1618 = vmul.f32 %v850, %v1490
      %v1619 = vmul.f32 %v851, %v1491
      %v1620 = vmul.f32 %v852, %v1492
      %v1621 = vmul.f32 %v853, %v1493
      %v1622 = vmul.f32 %v854, %v1494
      %v1623 = vmul.f32 %v855, %v1495
      %v1624 = vmul.f32 %v856, %v1496
      %v1625 = vmul.f32 %v857, %v1497
      %v1626 = vmul.f32 %v858, %v1498
      %v1627 = vmul.f32 %v859, %v1499
      %v1628 = vmul.f32 %v860, %v1500
      %v1629 = vmul.f32 %v861, %v1501
      %v1630 = vmul.f32 %v862, %v1502
      %v1631 = vmul.f32 %v863, %v1503
      %v1632 = vmul.f32 %v864, %v1504
      %v1633 = vmul.f32 %v865, %v1505
      %v1634 = vmul.f32 %v866, %v1506
      %v1635 = vmul.f32 %v867, %v1507
      %v1636 = vmul.f32 %v868, %v1508
      %v1637 = vmul.f32 %v869, %v1509
      %v1638 = vmul.f32 %v870, %v1510
      %v1639 = vmul.f32 %v871, %v1511
      %v1640 = vmul.f32 %v872, %v1512
      %v1641 = vmul.f32 %v873, %v1513
      %v1642 = vmul.f32 %v874, %v1514
      %v1643 = vmul.f32 %v875, %v1515
      %v1644 = vmul.f32 %v876, %v1516
      %v1645 = vmul.f32 %v877, %v1517
      %v1646 = vmul.f32 %v878, %v1518
      %v1647 = vmul.f32 %v879, %v1519
      %v1648 = vmul.f32 %v880, %v1520
      %v1649 = vmul.f32 %v881, %v1521
      %v1650 = vmul.f32 %v882, %v1522
      %v1651 = vmul.f32 %v883, %v1523
      %v1652 = vmul.f32 %v884, %v1524
      %v1653 = vmul.f32 %v885, %v1525
      %v1654 = vmul.f32 %v886, %v1526
      %v1655 = vmul.f32 %v887, %v1527
      %v1656 = vmul.f32 %v888, %v1528
      %v1657 = vmul.f32 %v889, %v1529
      %v1658 = vmul.f32 %v890, %v1530
      %v1659 = vmul.f32 %v891, %v1531
      %v1660 = vmul.f32 %v892, %v1532
      %v1661 = vmul.f32 %v893, %v1533
      %v1662 = vmul.f32 %v894, %v1534
      %v1663 = vmul.f32 %v895, %v1535
      %v1664 = vmul.f32 %v896, %v1536
      %v1665 = vmul.f32 %v897, %v1537
      %v1666 = vmul.f32 %v898, %v1538
      %v1667 = vmul.f32 %v899, %v1539
      %v1668 = vmul.f32 %v900, %v1540
      %v1669 = vmul.f32 %v901, %v1541
      %v1670 = vmul.f32 %v902, %v1542
      %v1671 = vmul.f32 %v903, %v1543
      %v1672 = vmul.f32 %v904, %v1544
      %v1673 = vmul.f32 %v905, %v1545
      %v1674 = vmul.f32 %v906, %v1546
      %v1675 = vmul.f32 %v907, %v1547
      %v1676 = vmul.f32 %v908, %v1548
      %v1677 = vmul.f32 %v909, %v1549
      %v1678 = vmul.f32 %v910, %v1550
      %v1679 = vmul.f32 %v911, %v1551
      %v1680 = vmul.f32 %v912, %v1552
      %v1681 = vmul.f32 %v913, %v1553
      %v1682 = vmul.f32 %v914, %v1554
      %v1683 = vmul.f32 %v915, %v1555
      %v1684 = vmul.f32 %v916, %v1556
      %v1685 = vmul.f32 %v917, %v1557
      %v1686 = vmul.f32 %v918, %v1558
      %v1687 = vmul.f32 %v919, %v1559
      %v1688 = vmul.f32 %v920, %v1560
      %v1689 = vmul.f32 %v921, %v1561
      %v1690 = vmul.f32 %v922, %v1562
      %v1691 = vmul.f32 %v923, %v1563
      %v1692 = vmul.f32 %v924, %v1564
      %v1693 = vmul.f32 %v925, %v1565
      %v1694 = vmul.f32 %v926, %v1566
      %v1695 = vmul.f32 %v927, %v1567
      %v1696 = vmul.f32 %v928, %v1568
      %v1697 = vmul.f32 %v929, %v1569
      %v1698 = vmul.f32 %v930, %v1570
      %v1699 = vmul.f32 %v931, %v1571
      %v1700 = vmul.f32 %v932, %v1572
      %v1701 = vpack.c.bf16 %v1574, %v1573
      %v1702 = vpack.c.bf16 %v1576, %v1575
      %v1703 = vpack.c.bf16 %v1578, %v1577
      %v1704 = vpack.c.bf16 %v1580, %v1579
      %v1705 = vpack.c.bf16 %v1582, %v1581
      %v1706 = vpack.c.bf16 %v1584, %v1583
      %v1707 = vpack.c.bf16 %v1586, %v1585
      %v1708 = vpack.c.bf16 %v1588, %v1587
      %v1709 = vpack.c.bf16 %v1590, %v1589
      %v1710 = vpack.c.bf16 %v1592, %v1591
      %v1711 = vpack.c.bf16 %v1594, %v1593
      %v1712 = vpack.c.bf16 %v1596, %v1595
      %v1713 = vpack.c.bf16 %v1598, %v1597
      %v1714 = vpack.c.bf16 %v1600, %v1599
      %v1715 = vpack.c.bf16 %v1602, %v1601
      %v1716 = vpack.c.bf16 %v1604, %v1603
      %v1717 = vpack.c.bf16 %v1606, %v1605
      %v1718 = vpack.c.bf16 %v1608, %v1607
      %v1719 = vpack.c.bf16 %v1610, %v1609
      %v1720 = vpack.c.bf16 %v1612, %v1611
      %v1721 = vpack.c.bf16 %v1614, %v1613
      %v1722 = vpack.c.bf16 %v1616, %v1615
      %v1723 = vpack.c.bf16 %v1618, %v1617
      %v1724 = vpack.c.bf16 %v1620, %v1619
      %v1725 = vpack.c.bf16 %v1622, %v1621
      %v1726 = vpack.c.bf16 %v1624, %v1623
      %v1727 = vpack.c.bf16 %v1626, %v1625
      %v1728 = vpack.c.bf16 %v1628, %v1627
      %v1729 = vpack.c.bf16 %v1630, %v1629
      %v1730 = vpack.c.bf16 %v1632, %v1631
      %v1731 = vpack.c.bf16 %v1634, %v1633
      %v1732 = vpack.c.bf16 %v1636, %v1635
      %v1733 = vpack.c.bf16 %v1638, %v1637
      %v1734 = vpack.c.bf16 %v1640, %v1639
      %v1735 = vpack.c.bf16 %v1642, %v1641
      %v1736 = vpack.c.bf16 %v1644, %v1643
      %v1737 = vpack.c.bf16 %v1646, %v1645
      %v1738 = vpack.c.bf16 %v1648, %v1647
      %v1739 = vpack.c.bf16 %v1650, %v1649
      %v1740 = vpack.c.bf16 %v1652, %v1651
      %v1741 = vpack.c.bf16 %v1654, %v1653
      %v1742 = vpack.c.bf16 %v1656, %v1655
      %v1743 = vpack.c.bf16 %v1658, %v1657
      %v1744 = vpack.c.bf16 %v1660, %v1659
      %v1745 = vpack.c.bf16 %v1662, %v1661
      %v1746 = vpack.c.bf16 %v1664, %v1663
      %v1747 = vpack.c.bf16 %v1666, %v1665
      %v1748 = vpack.c.bf16 %v1668, %v1667
      %v1749 = vpack.c.bf16 %v1670, %v1669
      %v1750 = vpack.c.bf16 %v1672, %v1671
      %v1751 = vpack.c.bf16 %v1674, %v1673
      %v1752 = vpack.c.bf16 %v1676, %v1675
      %v1753 = vpack.c.bf16 %v1678, %v1677
      %v1754 = vpack.c.bf16 %v1680, %v1679
      %v1755 = vpack.c.bf16 %v1682, %v1681
      %v1756 = vpack.c.bf16 %v1684, %v1683
      %v1757 = vpack.c.bf16 %v1686, %v1685
      %v1758 = vpack.c.bf16 %v1688, %v1687
      %v1759 = vpack.c.bf16 %v1690, %v1689
      %v1760 = vpack.c.bf16 %v1692, %v1691
      %v1761 = vpack.c.bf16 %v1694, %v1693
      %v1762 = vpack.c.bf16 %v1696, %v1695
      %v1763 = vpack.c.bf16 %v1698, %v1697
      %v1764 = vpack.c.bf16 %v1700, %v1699
      %v1765 = vld [vmem:[%s5] sm:$0xff]
      %v1766 = vld [vmem:[%s5 + $0x8] sm:$0xff]
      %v1767 = vld [vmem:[%s5 + $0x10] sm:$0xff]
      %v1768 = vld [vmem:[%s5 + $0x18] sm:$0xff]
      %v1769 = vld [vmem:[%s5 + $0x20] sm:$0xff]
      %v1770 = vld [vmem:[%s5 + $0x28] sm:$0xff]
      %v1771 = vld [vmem:[%s5 + $0x30] sm:$0xff]
      %v1772 = vld [vmem:[%s5 + $0x38] sm:$0xff]
      %v1773 = vld [vmem:[%s5 + $0x40] sm:$0xff]
      %v1774 = vld [vmem:[%s5 + $0x48] sm:$0xff]
      %v1775 = vld [vmem:[%s5 + $0x50] sm:$0xff]
      %v1776 = vld [vmem:[%s5 + $0x58] sm:$0xff]
      %v1777 = vld [vmem:[%s5 + $0x60] sm:$0xff]
      %v1778 = vld [vmem:[%s5 + $0x68] sm:$0xff]
      %v1779 = vld [vmem:[%s5 + $0x70] sm:$0xff]
      %v1780 = vld [vmem:[%s5 + $0x78] sm:$0xff]
      %v1781 = vld [vmem:[%s5 + $0x80] sm:$0xff]
      %v1782 = vld [vmem:[%s5 + $0x88] sm:$0xff]
      %v1783 = vld [vmem:[%s5 + $0x90] sm:$0xff]
      %v1784 = vld [vmem:[%s5 + $0x98] sm:$0xff]
      %v1785 = vld [vmem:[%s5 + $0xa0] sm:$0xff]
      %v1786 = vld [vmem:[%s5 + $0xa8] sm:$0xff]
      %v1787 = vld [vmem:[%s5 + $0xb0] sm:$0xff]
      %v1788 = vld [vmem:[%s5 + $0xb8] sm:$0xff]
      %v1789 = vld [vmem:[%s5 + $0xc0] sm:$0xff]
      %v1790 = vld [vmem:[%s5 + $0xc8] sm:$0xff]
      %v1791 = vld [vmem:[%s5 + $0xd0] sm:$0xff]
      %v1792 = vld [vmem:[%s5 + $0xd8] sm:$0xff]
      %v1793 = vld [vmem:[%s5 + $0xe0] sm:$0xff]
      %v1794 = vld [vmem:[%s5 + $0xe8] sm:$0xff]
      %v1795 = vld [vmem:[%s5 + $0xf0] sm:$0xff]
      %v1796 = vld [vmem:[%s5 + $0xf8] sm:$0xff]
      %v1797 = vld [vmem:[%s5 + $0x100] sm:$0xff]
      %v1798 = vld [vmem:[%s5 + $0x108] sm:$0xff]
      %v1799 = vld [vmem:[%s5 + $0x110] sm:$0xff]
      %v1800 = vld [vmem:[%s5 + $0x118] sm:$0xff]
      %v1801 = vld [vmem:[%s5 + $0x120] sm:$0xff]
      %v1802 = vld [vmem:[%s5 + $0x128] sm:$0xff]
      %v1803 = vld [vmem:[%s5 + $0x130] sm:$0xff]
      %v1804 = vld [vmem:[%s5 + $0x138] sm:$0xff]
      %v1805 = vld [vmem:[%s5 + $0x140] sm:$0xff]
      %v1806 = vld [vmem:[%s5 + $0x148] sm:$0xff]
      %v1807 = vld [vmem:[%s5 + $0x150] sm:$0xff]
      %v1808 = vld [vmem:[%s5 + $0x158] sm:$0xff]
      %v1809 = vld [vmem:[%s5 + $0x160] sm:$0xff]
      %v1810 = vld [vmem:[%s5 + $0x168] sm:$0xff]
      %v1811 = vld [vmem:[%s5 + $0x170] sm:$0xff]
      %v1812 = vld [vmem:[%s5 + $0x178] sm:$0xff]
      %v1813 = vld [vmem:[%s5 + $0x180] sm:$0xff]
      %v1814 = vld [vmem:[%s5 + $0x188] sm:$0xff]
      %v1815 = vld [vmem:[%s5 + $0x190] sm:$0xff]
      %v1816 = vld [vmem:[%s5 + $0x198] sm:$0xff]
      %v1817 = vld [vmem:[%s5 + $0x1a0] sm:$0xff]
      %v1818 = vld [vmem:[%s5 + $0x1a8] sm:$0xff]
      %v1819 = vld [vmem:[%s5 + $0x1b0] sm:$0xff]
      %v1820 = vld [vmem:[%s5 + $0x1b8] sm:$0xff]
      %v1821 = vld [vmem:[%s5 + $0x1c0] sm:$0xff]
      %v1822 = vld [vmem:[%s5 + $0x1c8] sm:$0xff]
      %v1823 = vld [vmem:[%s5 + $0x1d0] sm:$0xff]
      %v1824 = vld [vmem:[%s5 + $0x1d8] sm:$0xff]
      %v1825 = vld [vmem:[%s5 + $0x1e0] sm:$0xff]
      %v1826 = vld [vmem:[%s5 + $0x1e8] sm:$0xff]
      %v1827 = vld [vmem:[%s5 + $0x1f0] sm:$0xff]
      %v1828 = vld [vmem:[%s5 + $0x1f8] sm:$0xff]
      %v1829 = vld [vmem:[%s5 + $0x200] sm:$0xff]
      %v1830 = vld [vmem:[%s5 + $0x208] sm:$0xff]
      %v1831 = vld [vmem:[%s5 + $0x210] sm:$0xff]
      %v1832 = vld [vmem:[%s5 + $0x218] sm:$0xff]
      %v1833 = vld [vmem:[%s5 + $0x220] sm:$0xff]
      %v1834 = vld [vmem:[%s5 + $0x228] sm:$0xff]
      %v1835 = vld [vmem:[%s5 + $0x230] sm:$0xff]
      %v1836 = vld [vmem:[%s5 + $0x238] sm:$0xff]
      %v1837 = vld [vmem:[%s5 + $0x240] sm:$0xff]
      %v1838 = vld [vmem:[%s5 + $0x248] sm:$0xff]
      %v1839 = vld [vmem:[%s5 + $0x250] sm:$0xff]
      %v1840 = vld [vmem:[%s5 + $0x258] sm:$0xff]
      %v1841 = vld [vmem:[%s5 + $0x260] sm:$0xff]
      %v1842 = vld [vmem:[%s5 + $0x268] sm:$0xff]
      %v1843 = vld [vmem:[%s5 + $0x270] sm:$0xff]
      %v1844 = vld [vmem:[%s5 + $0x278] sm:$0xff]
      %v1845 = vld [vmem:[%s5 + $0x280] sm:$0xff]
      %v1846 = vld [vmem:[%s5 + $0x288] sm:$0xff]
      %v1847 = vld [vmem:[%s5 + $0x290] sm:$0xff]
      %v1848 = vld [vmem:[%s5 + $0x298] sm:$0xff]
      %v1849 = vld [vmem:[%s5 + $0x2a0] sm:$0xff]
      %v1850 = vld [vmem:[%s5 + $0x2a8] sm:$0xff]
      %v1851 = vld [vmem:[%s5 + $0x2b0] sm:$0xff]
      %v1852 = vld [vmem:[%s5 + $0x2b8] sm:$0xff]
      %v1853 = vld [vmem:[%s5 + $0x2c0] sm:$0xff]
      %v1854 = vld [vmem:[%s5 + $0x2c8] sm:$0xff]
      %v1855 = vld [vmem:[%s5 + $0x2d0] sm:$0xff]
      %v1856 = vld [vmem:[%s5 + $0x2d8] sm:$0xff]
      %v1857 = vld [vmem:[%s5 + $0x2e0] sm:$0xff]
      %v1858 = vld [vmem:[%s5 + $0x2e8] sm:$0xff]
      %v1859 = vld [vmem:[%s5 + $0x2f0] sm:$0xff]
      %v1860 = vld [vmem:[%s5 + $0x2f8] sm:$0xff]
      %v1861 = vld [vmem:[%s5 + $0x300] sm:$0xff]
      %v1862 = vld [vmem:[%s5 + $0x308] sm:$0xff]
      %v1863 = vld [vmem:[%s5 + $0x310] sm:$0xff]
      %v1864 = vld [vmem:[%s5 + $0x318] sm:$0xff]
      %v1865 = vld [vmem:[%s5 + $0x320] sm:$0xff]
      %v1866 = vld [vmem:[%s5 + $0x328] sm:$0xff]
      %v1867 = vld [vmem:[%s5 + $0x330] sm:$0xff]
      %v1868 = vld [vmem:[%s5 + $0x338] sm:$0xff]
      %v1869 = vld [vmem:[%s5 + $0x340] sm:$0xff]
      %v1870 = vld [vmem:[%s5 + $0x348] sm:$0xff]
      %v1871 = vld [vmem:[%s5 + $0x350] sm:$0xff]
      %v1872 = vld [vmem:[%s5 + $0x358] sm:$0xff]
      %v1873 = vld [vmem:[%s5 + $0x360] sm:$0xff]
      %v1874 = vld [vmem:[%s5 + $0x368] sm:$0xff]
      %v1875 = vld [vmem:[%s5 + $0x370] sm:$0xff]
      %v1876 = vld [vmem:[%s5 + $0x378] sm:$0xff]
      %v1877 = vld [vmem:[%s5 + $0x380] sm:$0xff]
      %v1878 = vld [vmem:[%s5 + $0x388] sm:$0xff]
      %v1879 = vld [vmem:[%s5 + $0x390] sm:$0xff]
      %v1880 = vld [vmem:[%s5 + $0x398] sm:$0xff]
      %v1881 = vld [vmem:[%s5 + $0x3a0] sm:$0xff]
      %v1882 = vld [vmem:[%s5 + $0x3a8] sm:$0xff]
      %v1883 = vld [vmem:[%s5 + $0x3b0] sm:$0xff]
      %v1884 = vld [vmem:[%s5 + $0x3b8] sm:$0xff]
      %v1885 = vld [vmem:[%s5 + $0x3c0] sm:$0xff]
      %v1886 = vld [vmem:[%s5 + $0x3c8] sm:$0xff]
      %v1887 = vld [vmem:[%s5 + $0x3d0] sm:$0xff]
      %v1888 = vld [vmem:[%s5 + $0x3d8] sm:$0xff]
      %v1889 = vld [vmem:[%s5 + $0x3e0] sm:$0xff]
      %v1890 = vld [vmem:[%s5 + $0x3e8] sm:$0xff]
      %v1891 = vld [vmem:[%s5 + $0x3f0] sm:$0xff]
      %v1892 = vld [vmem:[%s5 + $0x3f8] sm:$0xff]
      %v2021 = vunpack.c.l.b16 %v1765
      %v2022 = vunpack.c.h.b16 %v1765
      %v2023 = vunpack.c.l.b16 %v1766
      %v2024 = vunpack.c.h.b16 %v1766
      %v2025 = vunpack.c.l.b16 %v1767
      %v2026 = vunpack.c.h.b16 %v1767
      %v2027 = vunpack.c.l.b16 %v1768
      %v2028 = vunpack.c.h.b16 %v1768
      %v2029 = vunpack.c.l.b16 %v1769
      %v2030 = vunpack.c.h.b16 %v1769
      %v2031 = vunpack.c.l.b16 %v1770
      %v2032 = vunpack.c.h.b16 %v1770
      %v2033 = vunpack.c.l.b16 %v1771
      %v2034 = vunpack.c.h.b16 %v1771
      %v2035 = vunpack.c.l.b16 %v1772
      %v2036 = vunpack.c.h.b16 %v1772
      %v2037 = vunpack.c.l.b16 %v1773
      %v2038 = vunpack.c.h.b16 %v1773
      %v2039 = vunpack.c.l.b16 %v1774
      %v2040 = vunpack.c.h.b16 %v1774
      %v2041 = vunpack.c.l.b16 %v1775
      %v2042 = vunpack.c.h.b16 %v1775
      %v2043 = vunpack.c.l.b16 %v1776
      %v2044 = vunpack.c.h.b16 %v1776
      %v2045 = vunpack.c.l.b16 %v1777
      %v2046 = vunpack.c.h.b16 %v1777
      %v2047 = vunpack.c.l.b16 %v1778
      %v2048 = vunpack.c.h.b16 %v1778
      %v2049 = vunpack.c.l.b16 %v1779
      %v2050 = vunpack.c.h.b16 %v1779
      %v2051 = vunpack.c.l.b16 %v1780
      %v2052 = vunpack.c.h.b16 %v1780
      %v2053 = vunpack.c.l.b16 %v1781
      %v2054 = vunpack.c.h.b16 %v1781
      %v2055 = vunpack.c.l.b16 %v1782
      %v2056 = vunpack.c.h.b16 %v1782
      %v2057 = vunpack.c.l.b16 %v1783
      %v2058 = vunpack.c.h.b16 %v1783
      %v2059 = vunpack.c.l.b16 %v1784
      %v2060 = vunpack.c.h.b16 %v1784
      %v2061 = vunpack.c.l.b16 %v1785
      %v2062 = vunpack.c.h.b16 %v1785
      %v2063 = vunpack.c.l.b16 %v1786
      %v2064 = vunpack.c.h.b16 %v1786
      %v2065 = vunpack.c.l.b16 %v1787
      %v2066 = vunpack.c.h.b16 %v1787
      %v2067 = vunpack.c.l.b16 %v1788
      %v2068 = vunpack.c.h.b16 %v1788
      %v2069 = vunpack.c.l.b16 %v1789
      %v2070 = vunpack.c.h.b16 %v1789
      %v2071 = vunpack.c.l.b16 %v1790
      %v2072 = vunpack.c.h.b16 %v1790
      %v2073 = vunpack.c.l.b16 %v1791
      %v2074 = vunpack.c.h.b16 %v1791
      %v2075 = vunpack.c.l.b16 %v1792
      %v2076 = vunpack.c.h.b16 %v1792
      %v2077 = vunpack.c.l.b16 %v1793
      %v2078 = vunpack.c.h.b16 %v1793
      %v2079 = vunpack.c.l.b16 %v1794
      %v2080 = vunpack.c.h.b16 %v1794
      %v2081 = vunpack.c.l.b16 %v1795
      %v2082 = vunpack.c.h.b16 %v1795
      %v2083 = vunpack.c.l.b16 %v1796
      %v2084 = vunpack.c.h.b16 %v1796
      %v2085 = vunpack.c.l.b16 %v1797
      %v2086 = vunpack.c.h.b16 %v1797
      %v2087 = vunpack.c.l.b16 %v1798
      %v2088 = vunpack.c.h.b16 %v1798
      %v2089 = vunpack.c.l.b16 %v1799
      %v2090 = vunpack.c.h.b16 %v1799
      %v2091 = vunpack.c.l.b16 %v1800
      %v2092 = vunpack.c.h.b16 %v1800
      %v2093 = vunpack.c.l.b16 %v1801
      %v2094 = vunpack.c.h.b16 %v1801
      %v2095 = vunpack.c.l.b16 %v1802
      %v2096 = vunpack.c.h.b16 %v1802
      %v2097 = vunpack.c.l.b16 %v1803
      %v2098 = vunpack.c.h.b16 %v1803
      %v2099 = vunpack.c.l.b16 %v1804
      %v2100 = vunpack.c.h.b16 %v1804
      %v2101 = vunpack.c.l.b16 %v1805
      %v2102 = vunpack.c.h.b16 %v1805
      %v2103 = vunpack.c.l.b16 %v1806
      %v2104 = vunpack.c.h.b16 %v1806
      %v2105 = vunpack.c.l.b16 %v1807
      %v2106 = vunpack.c.h.b16 %v1807
      %v2107 = vunpack.c.l.b16 %v1808
      %v2108 = vunpack.c.h.b16 %v1808
      %v2109 = vunpack.c.l.b16 %v1809
      %v2110 = vunpack.c.h.b16 %v1809
      %v2111 = vunpack.c.l.b16 %v1810
      %v2112 = vunpack.c.h.b16 %v1810
      %v2113 = vunpack.c.l.b16 %v1811
      %v2114 = vunpack.c.h.b16 %v1811
      %v2115 = vunpack.c.l.b16 %v1812
      %v2116 = vunpack.c.h.b16 %v1812
      %v2117 = vunpack.c.l.b16 %v1813
      %v2118 = vunpack.c.h.b16 %v1813
      %v2119 = vunpack.c.l.b16 %v1814
      %v2120 = vunpack.c.h.b16 %v1814
      %v2121 = vunpack.c.l.b16 %v1815
      %v2122 = vunpack.c.h.b16 %v1815
      %v2123 = vunpack.c.l.b16 %v1816
      %v2124 = vunpack.c.h.b16 %v1816
      %v2125 = vunpack.c.l.b16 %v1817
      %v2126 = vunpack.c.h.b16 %v1817
      %v2127 = vunpack.c.l.b16 %v1818
      %v2128 = vunpack.c.h.b16 %v1818
      %v2129 = vunpack.c.l.b16 %v1819
      %v2130 = vunpack.c.h.b16 %v1819
      %v2131 = vunpack.c.l.b16 %v1820
      %v2132 = vunpack.c.h.b16 %v1820
      %v2133 = vunpack.c.l.b16 %v1821
      %v2134 = vunpack.c.h.b16 %v1821
      %v2135 = vunpack.c.l.b16 %v1822
      %v2136 = vunpack.c.h.b16 %v1822
      %v2137 = vunpack.c.l.b16 %v1823
      %v2138 = vunpack.c.h.b16 %v1823
      %v2139 = vunpack.c.l.b16 %v1824
      %v2140 = vunpack.c.h.b16 %v1824
      %v2141 = vunpack.c.l.b16 %v1825
      %v2142 = vunpack.c.h.b16 %v1825
      %v2143 = vunpack.c.l.b16 %v1826
      %v2144 = vunpack.c.h.b16 %v1826
      %v2145 = vunpack.c.l.b16 %v1827
      %v2146 = vunpack.c.h.b16 %v1827
      %v2147 = vunpack.c.l.b16 %v1828
      %v2148 = vunpack.c.h.b16 %v1828
      %v2149 = vunpack.c.l.b16 %v1829
      %v2150 = vunpack.c.h.b16 %v1829
      %v2151 = vunpack.c.l.b16 %v1830
      %v2152 = vunpack.c.h.b16 %v1830
      %v2153 = vunpack.c.l.b16 %v1831
      %v2154 = vunpack.c.h.b16 %v1831
      %v2155 = vunpack.c.l.b16 %v1832
      %v2156 = vunpack.c.h.b16 %v1832
      %v2157 = vunpack.c.l.b16 %v1833
      %v2158 = vunpack.c.h.b16 %v1833
      %v2159 = vunpack.c.l.b16 %v1834
      %v2160 = vunpack.c.h.b16 %v1834
      %v2161 = vunpack.c.l.b16 %v1835
      %v2162 = vunpack.c.h.b16 %v1835
      %v2163 = vunpack.c.l.b16 %v1836
      %v2164 = vunpack.c.h.b16 %v1836
      %v2165 = vunpack.c.l.b16 %v1837
      %v2166 = vunpack.c.h.b16 %v1837
      %v2167 = vunpack.c.l.b16 %v1838
      %v2168 = vunpack.c.h.b16 %v1838
      %v2169 = vunpack.c.l.b16 %v1839
      %v2170 = vunpack.c.h.b16 %v1839
      %v2171 = vunpack.c.l.b16 %v1840
      %v2172 = vunpack.c.h.b16 %v1840
      %v2173 = vunpack.c.l.b16 %v1841
      %v2174 = vunpack.c.h.b16 %v1841
      %v2175 = vunpack.c.l.b16 %v1842
      %v2176 = vunpack.c.h.b16 %v1842
      %v2177 = vunpack.c.l.b16 %v1843
      %v2178 = vunpack.c.h.b16 %v1843
      %v2179 = vunpack.c.l.b16 %v1844
      %v2180 = vunpack.c.h.b16 %v1844
      %v2181 = vunpack.c.l.b16 %v1845
      %v2182 = vunpack.c.h.b16 %v1845
      %v2183 = vunpack.c.l.b16 %v1846
      %v2184 = vunpack.c.h.b16 %v1846
      %v2185 = vunpack.c.l.b16 %v1847
      %v2186 = vunpack.c.h.b16 %v1847
      %v2187 = vunpack.c.l.b16 %v1848
      %v2188 = vunpack.c.h.b16 %v1848
      %v2189 = vunpack.c.l.b16 %v1849
      %v2190 = vunpack.c.h.b16 %v1849
      %v2191 = vunpack.c.l.b16 %v1850
      %v2192 = vunpack.c.h.b16 %v1850
      %v2193 = vunpack.c.l.b16 %v1851
      %v2194 = vunpack.c.h.b16 %v1851
      %v2195 = vunpack.c.l.b16 %v1852
      %v2196 = vunpack.c.h.b16 %v1852
      %v2197 = vunpack.c.l.b16 %v1853
      %v2198 = vunpack.c.h.b16 %v1853
      %v2199 = vunpack.c.l.b16 %v1854
      %v2200 = vunpack.c.h.b16 %v1854
      %v2201 = vunpack.c.l.b16 %v1855
      %v2202 = vunpack.c.h.b16 %v1855
      %v2203 = vunpack.c.l.b16 %v1856
      %v2204 = vunpack.c.h.b16 %v1856
      %v2205 = vunpack.c.l.b16 %v1857
      %v2206 = vunpack.c.h.b16 %v1857
      %v2207 = vunpack.c.l.b16 %v1858
      %v2208 = vunpack.c.h.b16 %v1858
      %v2209 = vunpack.c.l.b16 %v1859
      %v2210 = vunpack.c.h.b16 %v1859
      %v2211 = vunpack.c.l.b16 %v1860
      %v2212 = vunpack.c.h.b16 %v1860
      %v2213 = vunpack.c.l.b16 %v1861
      %v2214 = vunpack.c.h.b16 %v1861
      %v2215 = vunpack.c.l.b16 %v1862
      %v2216 = vunpack.c.h.b16 %v1862
      %v2217 = vunpack.c.l.b16 %v1863
      %v2218 = vunpack.c.h.b16 %v1863
      %v2219 = vunpack.c.l.b16 %v1864
      %v2220 = vunpack.c.h.b16 %v1864
      %v2221 = vunpack.c.l.b16 %v1865
      %v2222 = vunpack.c.h.b16 %v1865
      %v2223 = vunpack.c.l.b16 %v1866
      %v2224 = vunpack.c.h.b16 %v1866
      %v2225 = vunpack.c.l.b16 %v1867
      %v2226 = vunpack.c.h.b16 %v1867
      %v2227 = vunpack.c.l.b16 %v1868
      %v2228 = vunpack.c.h.b16 %v1868
      %v2229 = vunpack.c.l.b16 %v1869
      %v2230 = vunpack.c.h.b16 %v1869
      %v2231 = vunpack.c.l.b16 %v1870
      %v2232 = vunpack.c.h.b16 %v1870
      %v2233 = vunpack.c.l.b16 %v1871
      %v2234 = vunpack.c.h.b16 %v1871
      %v2235 = vunpack.c.l.b16 %v1872
      %v2236 = vunpack.c.h.b16 %v1872
      %v2237 = vunpack.c.l.b16 %v1873
      %v2238 = vunpack.c.h.b16 %v1873
      %v2239 = vunpack.c.l.b16 %v1874
      %v2240 = vunpack.c.h.b16 %v1874
      %v2241 = vunpack.c.l.b16 %v1875
      %v2242 = vunpack.c.h.b16 %v1875
      %v2243 = vunpack.c.l.b16 %v1876
      %v2244 = vunpack.c.h.b16 %v1876
      %v2245 = vunpack.c.l.b16 %v1877
      %v2246 = vunpack.c.h.b16 %v1877
      %v2247 = vunpack.c.l.b16 %v1878
      %v2248 = vunpack.c.h.b16 %v1878
      %v2249 = vunpack.c.l.b16 %v1879
      %v2250 = vunpack.c.h.b16 %v1879
      %v2251 = vunpack.c.l.b16 %v1880
      %v2252 = vunpack.c.h.b16 %v1880
      %v2253 = vunpack.c.l.b16 %v1881
      %v2254 = vunpack.c.h.b16 %v1881
      %v2255 = vunpack.c.l.b16 %v1882
      %v2256 = vunpack.c.h.b16 %v1882
      %v2257 = vunpack.c.l.b16 %v1883
      %v2258 = vunpack.c.h.b16 %v1883
      %v2259 = vunpack.c.l.b16 %v1884
      %v2260 = vunpack.c.h.b16 %v1884
      %v2261 = vunpack.c.l.b16 %v1885
      %v2262 = vunpack.c.h.b16 %v1885
      %v2263 = vunpack.c.l.b16 %v1886
      %v2264 = vunpack.c.h.b16 %v1886
      %v2265 = vunpack.c.l.b16 %v1887
      %v2266 = vunpack.c.h.b16 %v1887
      %v2267 = vunpack.c.l.b16 %v1888
      %v2268 = vunpack.c.h.b16 %v1888
      %v2269 = vunpack.c.l.b16 %v1889
      %v2270 = vunpack.c.h.b16 %v1889
      %v2271 = vunpack.c.l.b16 %v1890
      %v2272 = vunpack.c.h.b16 %v1890
      %v2273 = vunpack.c.l.b16 %v1891
      %v2274 = vunpack.c.h.b16 %v1891
      %v2275 = vunpack.c.l.b16 %v1892
      %v2276 = vunpack.c.h.b16 %v1892
      %v2277 = vpack.c.b16 %v2029, %v2021
      %v2278 = vpack.c.b16 %v2030, %v2022
      %v2279 = vpack.c.b16 %v2031, %v2023
      %v2280 = vpack.c.b16 %v2032, %v2024
      %v2281 = vpack.c.b16 %v2033, %v2025
      %v2282 = vpack.c.b16 %v2034, %v2026
      %v2283 = vpack.c.b16 %v2035, %v2027
      %v2284 = vpack.c.b16 %v2036, %v2028
      %v2285 = vpack.c.b16 %v2045, %v2037
      %v2286 = vpack.c.b16 %v2046, %v2038
      %v2287 = vpack.c.b16 %v2047, %v2039
      %v2288 = vpack.c.b16 %v2048, %v2040
      %v2289 = vpack.c.b16 %v2049, %v2041
      %v2290 = vpack.c.b16 %v2050, %v2042
      %v2291 = vpack.c.b16 %v2051, %v2043
      %v2292 = vpack.c.b16 %v2052, %v2044
      %v2293 = vpack.c.b16 %v2061, %v2053
      %v2294 = vpack.c.b16 %v2062, %v2054
      %v2295 = vpack.c.b16 %v2063, %v2055
      %v2296 = vpack.c.b16 %v2064, %v2056
      %v2297 = vpack.c.b16 %v2065, %v2057
      %v2298 = vpack.c.b16 %v2066, %v2058
      %v2299 = vpack.c.b16 %v2067, %v2059
      %v2300 = vpack.c.b16 %v2068, %v2060
      %v2301 = vpack.c.b16 %v2077, %v2069
      %v2302 = vpack.c.b16 %v2078, %v2070
      %v2303 = vpack.c.b16 %v2079, %v2071
      %v2304 = vpack.c.b16 %v2080, %v2072
      %v2305 = vpack.c.b16 %v2081, %v2073
      %v2306 = vpack.c.b16 %v2082, %v2074
      %v2307 = vpack.c.b16 %v2083, %v2075
      %v2308 = vpack.c.b16 %v2084, %v2076
      %v2309 = vpack.c.b16 %v2093, %v2085
      %v2310 = vpack.c.b16 %v2094, %v2086
      %v2311 = vpack.c.b16 %v2095, %v2087
      %v2312 = vpack.c.b16 %v2096, %v2088
      %v2313 = vpack.c.b16 %v2097, %v2089
      %v2314 = vpack.c.b16 %v2098, %v2090
      %v2315 = vpack.c.b16 %v2099, %v2091
      %v2316 = vpack.c.b16 %v2100, %v2092
      %v2317 = vpack.c.b16 %v2109, %v2101
      %v2318 = vpack.c.b16 %v2110, %v2102
      %v2319 = vpack.c.b16 %v2111, %v2103
      %v2320 = vpack.c.b16 %v2112, %v2104
      %v2321 = vpack.c.b16 %v2113, %v2105
      %v2322 = vpack.c.b16 %v2114, %v2106
      %v2323 = vpack.c.b16 %v2115, %v2107
      %v2324 = vpack.c.b16 %v2116, %v2108
      %v2325 = vpack.c.b16 %v2125, %v2117
      %v2326 = vpack.c.b16 %v2126, %v2118
      %v2327 = vpack.c.b16 %v2127, %v2119
      %v2328 = vpack.c.b16 %v2128, %v2120
      %v2329 = vpack.c.b16 %v2129, %v2121
      %v2330 = vpack.c.b16 %v2130, %v2122
      %v2331 = vpack.c.b16 %v2131, %v2123
      %v2332 = vpack.c.b16 %v2132, %v2124
      %v2333 = vpack.c.b16 %v2141, %v2133
      %v2334 = vpack.c.b16 %v2142, %v2134
      %v2335 = vpack.c.b16 %v2143, %v2135
      %v2336 = vpack.c.b16 %v2144, %v2136
      %v2337 = vpack.c.b16 %v2145, %v2137
      %v2338 = vpack.c.b16 %v2146, %v2138
      %v2339 = vpack.c.b16 %v2147, %v2139
      %v2340 = vpack.c.b16 %v2148, %v2140
      %v2341 = vpack.c.b16 %v2157, %v2149
      %v2342 = vpack.c.b16 %v2158, %v2150
      %v2343 = vpack.c.b16 %v2159, %v2151
      %v2344 = vpack.c.b16 %v2160, %v2152
      %v2345 = vpack.c.b16 %v2161, %v2153
      %v2346 = vpack.c.b16 %v2162, %v2154
      %v2347 = vpack.c.b16 %v2163, %v2155
      %v2348 = vpack.c.b16 %v2164, %v2156
      %v2349 = vpack.c.b16 %v2173, %v2165
      %v2350 = vpack.c.b16 %v2174, %v2166
      %v2351 = vpack.c.b16 %v2175, %v2167
      %v2352 = vpack.c.b16 %v2176, %v2168
      %v2353 = vpack.c.b16 %v2177, %v2169
      %v2354 = vpack.c.b16 %v2178, %v2170
      %v2355 = vpack.c.b16 %v2179, %v2171
      %v2356 = vpack.c.b16 %v2180, %v2172
      %v2357 = vpack.c.b16 %v2189, %v2181
      %v2358 = vpack.c.b16 %v2190, %v2182
      %v2359 = vpack.c.b16 %v2191, %v2183
      %v2360 = vpack.c.b16 %v2192, %v2184
      %v2361 = vpack.c.b16 %v2193, %v2185
      %v2362 = vpack.c.b16 %v2194, %v2186
      %v2363 = vpack.c.b16 %v2195, %v2187
      %v2364 = vpack.c.b16 %v2196, %v2188
      %v2365 = vpack.c.b16 %v2205, %v2197
      %v2366 = vpack.c.b16 %v2206, %v2198
      %v2367 = vpack.c.b16 %v2207, %v2199
      %v2368 = vpack.c.b16 %v2208, %v2200
      %v2369 = vpack.c.b16 %v2209, %v2201
      %v2370 = vpack.c.b16 %v2210, %v2202
      %v2371 = vpack.c.b16 %v2211, %v2203
      %v2372 = vpack.c.b16 %v2212, %v2204
      %v2373 = vpack.c.b16 %v2221, %v2213
      %v2374 = vpack.c.b16 %v2222, %v2214
      %v2375 = vpack.c.b16 %v2223, %v2215
      %v2376 = vpack.c.b16 %v2224, %v2216
      %v2377 = vpack.c.b16 %v2225, %v2217
      %v2378 = vpack.c.b16 %v2226, %v2218
      %v2379 = vpack.c.b16 %v2227, %v2219
      %v2380 = vpack.c.b16 %v2228, %v2220
      %v2381 = vpack.c.b16 %v2237, %v2229
      %v2382 = vpack.c.b16 %v2238, %v2230
      %v2383 = vpack.c.b16 %v2239, %v2231
      %v2384 = vpack.c.b16 %v2240, %v2232
      %v2385 = vpack.c.b16 %v2241, %v2233
      %v2386 = vpack.c.b16 %v2242, %v2234
      %v2387 = vpack.c.b16 %v2243, %v2235
      %v2388 = vpack.c.b16 %v2244, %v2236
      %v2389 = vpack.c.b16 %v2253, %v2245
      %v2390 = vpack.c.b16 %v2254, %v2246
      %v2391 = vpack.c.b16 %v2255, %v2247
      %v2392 = vpack.c.b16 %v2256, %v2248
      %v2393 = vpack.c.b16 %v2257, %v2249
      %v2394 = vpack.c.b16 %v2258, %v2250
      %v2395 = vpack.c.b16 %v2259, %v2251
      %v2396 = vpack.c.b16 %v2260, %v2252
      %v2397 = vpack.c.b16 %v2269, %v2261
      %v2398 = vpack.c.b16 %v2270, %v2262
      %v2399 = vpack.c.b16 %v2271, %v2263
      %v2400 = vpack.c.b16 %v2272, %v2264
      %v2401 = vpack.c.b16 %v2273, %v2265
      %v2402 = vpack.c.b16 %v2274, %v2266
      %v2403 = vpack.c.b16 %v2275, %v2267
      %v2404 = vpack.c.b16 %v2276, %v2268
      %2533 = vmatpush.bf16.msra.mxu0 %v1708
      %2534 = vmatpush.bf16.msra.mxu0 %v1707
      %2535 = vmatpush.bf16.msra.mxu0 %v1706
      %2536 = vmatpush.bf16.msra.mxu0 %v1705
      %2537 = vmatpush.bf16.msra.mxu0 %v1704
      %2538 = vmatpush.bf16.msra.mxu0 %v1703
      %2539 = vmatpush.bf16.msra.mxu0 %v1702
      %2540 = vmatpush.bf16.msra.mxu0 %v1701
      %2541 = vmatmul.bf16.gmra.mxu0 %v2277
      %v2542 = vpop.f32.mrf.mxu0
      %v2543 = vadd.f32 0.0, %v2542
      %v2544 = vpop.f32.mrf.mxu0
      %v2545 = vadd.f32 0.0, %v2544
      %2546 = vmatmul.bf16.gmra.mxu0 %v2285
      %v2547 = vpop.f32.mrf.mxu0
      %v2548 = vadd.f32 0.0, %v2547
      %v2549 = vpop.f32.mrf.mxu0
      %v2550 = vadd.f32 0.0, %v2549
      %2551 = vmatmul.bf16.gmra.mxu0 %v2293
      %v2552 = vpop.f32.mrf.mxu0
      %v2553 = vadd.f32 0.0, %v2552
      %v2554 = vpop.f32.mrf.mxu0
      %v2555 = vadd.f32 0.0, %v2554
      %2556 = vmatmul.bf16.gmra.mxu0 %v2301
      %v2557 = vpop.f32.mrf.mxu0
      %v2558 = vadd.f32 0.0, %v2557
      %v2559 = vpop.f32.mrf.mxu0
      %v2560 = vadd.f32 0.0, %v2559
      %2561 = vmatmul.bf16.gmra.mxu0 %v2309
      %v2562 = vpop.f32.mrf.mxu0
      %v2563 = vadd.f32 0.0, %v2562
      %v2564 = vpop.f32.mrf.mxu0
      %v2565 = vadd.f32 0.0, %v2564
      %2566 = vmatmul.bf16.gmra.mxu0 %v2317
      %v2567 = vpop.f32.mrf.mxu0
      %v2568 = vadd.f32 0.0, %v2567
      %v2569 = vpop.f32.mrf.mxu0
      %v2570 = vadd.f32 0.0, %v2569
      %2571 = vmatmul.bf16.gmra.mxu0 %v2325
      %v2572 = vpop.f32.mrf.mxu0
      %v2573 = vadd.f32 0.0, %v2572
      %v2574 = vpop.f32.mrf.mxu0
      %v2575 = vadd.f32 0.0, %v2574
      %2576 = vmatmul.bf16.gmra.mxu0 %v2333
      %v2577 = vpop.f32.mrf.mxu0
      %v2578 = vadd.f32 0.0, %v2577
      %v2579 = vpop.f32.mrf.mxu0
      %v2580 = vadd.f32 0.0, %v2579
      %2581 = vmatmul.bf16.gmra.mxu0 %v2341
      %v2582 = vpop.f32.mrf.mxu0
      %v2583 = vadd.f32 0.0, %v2582
      %v2584 = vpop.f32.mrf.mxu0
      %v2585 = vadd.f32 0.0, %v2584
      %2586 = vmatmul.bf16.gmra.mxu0 %v2349
      %v2587 = vpop.f32.mrf.mxu0
      %v2588 = vadd.f32 0.0, %v2587
      %v2589 = vpop.f32.mrf.mxu0
      %v2590 = vadd.f32 0.0, %v2589
      %2591 = vmatmul.bf16.gmra.mxu0 %v2357
      %v2592 = vpop.f32.mrf.mxu0
      %v2593 = vadd.f32 0.0, %v2592
      %v2594 = vpop.f32.mrf.mxu0
      %v2595 = vadd.f32 0.0, %v2594
      %2596 = vmatmul.bf16.gmra.mxu0 %v2365
      %v2597 = vpop.f32.mrf.mxu0
      %v2598 = vadd.f32 0.0, %v2597
      %v2599 = vpop.f32.mrf.mxu0
      %v2600 = vadd.f32 0.0, %v2599
      %2601 = vmatmul.bf16.gmra.mxu0 %v2373
      %v2602 = vpop.f32.mrf.mxu0
      %v2603 = vadd.f32 0.0, %v2602
      %v2604 = vpop.f32.mrf.mxu0
      %v2605 = vadd.f32 0.0, %v2604
      %2606 = vmatmul.bf16.gmra.mxu0 %v2381
      %v2607 = vpop.f32.mrf.mxu0
      %v2608 = vadd.f32 0.0, %v2607
      %v2609 = vpop.f32.mrf.mxu0
      %v2610 = vadd.f32 0.0, %v2609
      %2611 = vmatmul.bf16.gmra.mxu0 %v2389
      %v2612 = vpop.f32.mrf.mxu0
      %v2613 = vadd.f32 0.0, %v2612
      %v2614 = vpop.f32.mrf.mxu0
      %v2615 = vadd.f32 0.0, %v2614
      %2616 = vmatmul.bf16.gmra.mxu0 %v2397
      %v2617 = vpop.f32.mrf.mxu0
      %v2618 = vadd.f32 0.0, %v2617
      %v2619 = vpop.f32.mrf.mxu0
      %v2620 = vadd.f32 0.0, %v2619
      %2621 = vdwg.mxu0
      %2622 = vmatpush.bf16.msra.mxu0 %v1716
      %2623 = vmatpush.bf16.msra.mxu0 %v1715
      %2624 = vmatpush.bf16.msra.mxu0 %v1714
      %2625 = vmatpush.bf16.msra.mxu0 %v1713
      %2626 = vmatpush.bf16.msra.mxu0 %v1712
      %2627 = vmatpush.bf16.msra.mxu0 %v1711
      %2628 = vmatpush.bf16.msra.mxu0 %v1710
      %2629 = vmatpush.bf16.msra.mxu0 %v1709
      %2630 = vmatmul.bf16.gmra.mxu0 %v2278
      %v2631 = vpop.f32.mrf.mxu0
      %v2632 = vadd.f32 %v2543, %v2631
      %v2633 = vpop.f32.mrf.mxu0
      %v2634 = vadd.f32 %v2545, %v2633
      %2635 = vmatmul.bf16.gmra.mxu0 %v2286
      %v2636 = vpop.f32.mrf.mxu0
      %v2637 = vadd.f32 %v2548, %v2636
      %v2638 = vpop.f32.mrf.mxu0
      %v2639 = vadd.f32 %v2550, %v2638
      %2640 = vmatmul.bf16.gmra.mxu0 %v2294
      %v2641 = vpop.f32.mrf.mxu0
      %v2642 = vadd.f32 %v2553, %v2641
      %v2643 = vpop.f32.mrf.mxu0
      %v2644 = vadd.f32 %v2555, %v2643
      %2645 = vmatmul.bf16.gmra.mxu0 %v2302
      %v2646 = vpop.f32.mrf.mxu0
      %v2647 = vadd.f32 %v2558, %v2646
      %v2648 = vpop.f32.mrf.mxu0
      %v2649 = vadd.f32 %v2560, %v2648
      %2650 = vmatmul.bf16.gmra.mxu0 %v2310
      %v2651 = vpop.f32.mrf.mxu0
      %v2652 = vadd.f32 %v2563, %v2651
      %v2653 = vpop.f32.mrf.mxu0
      %v2654 = vadd.f32 %v2565, %v2653
      %2655 = vmatmul.bf16.gmra.mxu0 %v2318
      %v2656 = vpop.f32.mrf.mxu0
      %v2657 = vadd.f32 %v2568, %v2656
      %v2658 = vpop.f32.mrf.mxu0
      %v2659 = vadd.f32 %v2570, %v2658
      %2660 = vmatmul.bf16.gmra.mxu0 %v2326
      %v2661 = vpop.f32.mrf.mxu0
      %v2662 = vadd.f32 %v2573, %v2661
      %v2663 = vpop.f32.mrf.mxu0
      %v2664 = vadd.f32 %v2575, %v2663
      %2665 = vmatmul.bf16.gmra.mxu0 %v2334
      %v2666 = vpop.f32.mrf.mxu0
      %v2667 = vadd.f32 %v2578, %v2666
      %v2668 = vpop.f32.mrf.mxu0
      %v2669 = vadd.f32 %v2580, %v2668
      %2670 = vmatmul.bf16.gmra.mxu0 %v2342
      %v2671 = vpop.f32.mrf.mxu0
      %v2672 = vadd.f32 %v2583, %v2671
      %v2673 = vpop.f32.mrf.mxu0
      %v2674 = vadd.f32 %v2585, %v2673
      %2675 = vmatmul.bf16.gmra.mxu0 %v2350
      %v2676 = vpop.f32.mrf.mxu0
      %v2677 = vadd.f32 %v2588, %v2676
      %v2678 = vpop.f32.mrf.mxu0
      %v2679 = vadd.f32 %v2590, %v2678
      %2680 = vmatmul.bf16.gmra.mxu0 %v2358
      %v2681 = vpop.f32.mrf.mxu0
      %v2682 = vadd.f32 %v2593, %v2681
      %v2683 = vpop.f32.mrf.mxu0
      %v2684 = vadd.f32 %v2595, %v2683
      %2685 = vmatmul.bf16.gmra.mxu0 %v2366
      %v2686 = vpop.f32.mrf.mxu0
      %v2687 = vadd.f32 %v2598, %v2686
      %v2688 = vpop.f32.mrf.mxu0
      %v2689 = vadd.f32 %v2600, %v2688
      %2690 = vmatmul.bf16.gmra.mxu0 %v2374
      %v2691 = vpop.f32.mrf.mxu0
      %v2692 = vadd.f32 %v2603, %v2691
      %v2693 = vpop.f32.mrf.mxu0
      %v2694 = vadd.f32 %v2605, %v2693
      %2695 = vmatmul.bf16.gmra.mxu0 %v2382
      %v2696 = vpop.f32.mrf.mxu0
      %v2697 = vadd.f32 %v2608, %v2696
      %v2698 = vpop.f32.mrf.mxu0
      %v2699 = vadd.f32 %v2610, %v2698
      %2700 = vmatmul.bf16.gmra.mxu0 %v2390
      %v2701 = vpop.f32.mrf.mxu0
      %v2702 = vadd.f32 %v2613, %v2701
      %v2703 = vpop.f32.mrf.mxu0
      %v2704 = vadd.f32 %v2615, %v2703
      %2705 = vmatmul.bf16.gmra.mxu0 %v2398
      %v2706 = vpop.f32.mrf.mxu0
      %v2707 = vadd.f32 %v2618, %v2706
      %v2708 = vpop.f32.mrf.mxu0
      %v2709 = vadd.f32 %v2620, %v2708
      %2710 = vdwg.mxu0
      %2711 = vmatpush.bf16.msra.mxu0 %v1724
      %2712 = vmatpush.bf16.msra.mxu0 %v1723
      %2713 = vmatpush.bf16.msra.mxu0 %v1722
      %2714 = vmatpush.bf16.msra.mxu0 %v1721
      %2715 = vmatpush.bf16.msra.mxu0 %v1720
      %2716 = vmatpush.bf16.msra.mxu0 %v1719
      %2717 = vmatpush.bf16.msra.mxu0 %v1718
      %2718 = vmatpush.bf16.msra.mxu0 %v1717
      %2719 = vmatmul.bf16.gmra.mxu0 %v2279
      %v2720 = vpop.f32.mrf.mxu0
      %v2721 = vadd.f32 %v2632, %v2720
      %v2722 = vpop.f32.mrf.mxu0
      %v2723 = vadd.f32 %v2634, %v2722
      %2724 = vmatmul.bf16.gmra.mxu0 %v2287
      %v2725 = vpop.f32.mrf.mxu0
      %v2726 = vadd.f32 %v2637, %v2725
      %v2727 = vpop.f32.mrf.mxu0
      %v2728 = vadd.f32 %v2639, %v2727
      %2729 = vmatmul.bf16.gmra.mxu0 %v2295
      %v2730 = vpop.f32.mrf.mxu0
      %v2731 = vadd.f32 %v2642, %v2730
      %v2732 = vpop.f32.mrf.mxu0
      %v2733 = vadd.f32 %v2644, %v2732
      %2734 = vmatmul.bf16.gmra.mxu0 %v2303
      %v2735 = vpop.f32.mrf.mxu0
      %v2736 = vadd.f32 %v2647, %v2735
      %v2737 = vpop.f32.mrf.mxu0
      %v2738 = vadd.f32 %v2649, %v2737
      %2739 = vmatmul.bf16.gmra.mxu0 %v2311
      %v2740 = vpop.f32.mrf.mxu0
      %v2741 = vadd.f32 %v2652, %v2740
      %v2742 = vpop.f32.mrf.mxu0
      %v2743 = vadd.f32 %v2654, %v2742
      %2744 = vmatmul.bf16.gmra.mxu0 %v2319
      %v2745 = vpop.f32.mrf.mxu0
      %v2746 = vadd.f32 %v2657, %v2745
      %v2747 = vpop.f32.mrf.mxu0
      %v2748 = vadd.f32 %v2659, %v2747
      %2749 = vmatmul.bf16.gmra.mxu0 %v2327
      %v2750 = vpop.f32.mrf.mxu0
      %v2751 = vadd.f32 %v2662, %v2750
      %v2752 = vpop.f32.mrf.mxu0
      %v2753 = vadd.f32 %v2664, %v2752
      %2754 = vmatmul.bf16.gmra.mxu0 %v2335
      %v2755 = vpop.f32.mrf.mxu0
      %v2756 = vadd.f32 %v2667, %v2755
      %v2757 = vpop.f32.mrf.mxu0
      %v2758 = vadd.f32 %v2669, %v2757
      %2759 = vmatmul.bf16.gmra.mxu0 %v2343
      %v2760 = vpop.f32.mrf.mxu0
      %v2761 = vadd.f32 %v2672, %v2760
      %v2762 = vpop.f32.mrf.mxu0
      %v2763 = vadd.f32 %v2674, %v2762
      %2764 = vmatmul.bf16.gmra.mxu0 %v2351
      %v2765 = vpop.f32.mrf.mxu0
      %v2766 = vadd.f32 %v2677, %v2765
      %v2767 = vpop.f32.mrf.mxu0
      %v2768 = vadd.f32 %v2679, %v2767
      %2769 = vmatmul.bf16.gmra.mxu0 %v2359
      %v2770 = vpop.f32.mrf.mxu0
      %v2771 = vadd.f32 %v2682, %v2770
      %v2772 = vpop.f32.mrf.mxu0
      %v2773 = vadd.f32 %v2684, %v2772
      %2774 = vmatmul.bf16.gmra.mxu0 %v2367
      %v2775 = vpop.f32.mrf.mxu0
      %v2776 = vadd.f32 %v2687, %v2775
      %v2777 = vpop.f32.mrf.mxu0
      %v2778 = vadd.f32 %v2689, %v2777
      %2779 = vmatmul.bf16.gmra.mxu0 %v2375
      %v2780 = vpop.f32.mrf.mxu0
      %v2781 = vadd.f32 %v2692, %v2780
      %v2782 = vpop.f32.mrf.mxu0
      %v2783 = vadd.f32 %v2694, %v2782
      %2784 = vmatmul.bf16.gmra.mxu0 %v2383
      %v2785 = vpop.f32.mrf.mxu0
      %v2786 = vadd.f32 %v2697, %v2785
      %v2787 = vpop.f32.mrf.mxu0
      %v2788 = vadd.f32 %v2699, %v2787
      %2789 = vmatmul.bf16.gmra.mxu0 %v2391
      %v2790 = vpop.f32.mrf.mxu0
      %v2791 = vadd.f32 %v2702, %v2790
      %v2792 = vpop.f32.mrf.mxu0
      %v2793 = vadd.f32 %v2704, %v2792
      %2794 = vmatmul.bf16.gmra.mxu0 %v2399
      %v2795 = vpop.f32.mrf.mxu0
      %v2796 = vadd.f32 %v2707, %v2795
      %v2797 = vpop.f32.mrf.mxu0
      %v2798 = vadd.f32 %v2709, %v2797
      %2799 = vdwg.mxu0
      %2800 = vmatpush.bf16.msra.mxu0 %v1732
      %2801 = vmatpush.bf16.msra.mxu0 %v1731
      %2802 = vmatpush.bf16.msra.mxu0 %v1730
      %2803 = vmatpush.bf16.msra.mxu0 %v1729
      %2804 = vmatpush.bf16.msra.mxu0 %v1728
      %2805 = vmatpush.bf16.msra.mxu0 %v1727
      %2806 = vmatpush.bf16.msra.mxu0 %v1726
      %2807 = vmatpush.bf16.msra.mxu0 %v1725
      %2808 = vmatmul.bf16.gmra.mxu0 %v2280
      %v2809 = vpop.f32.mrf.mxu0
      %v2810 = vadd.f32 %v2721, %v2809
      %v2811 = vpop.f32.mrf.mxu0
      %v2812 = vadd.f32 %v2723, %v2811
      %2813 = vmatmul.bf16.gmra.mxu0 %v2288
      %v2814 = vpop.f32.mrf.mxu0
      %v2815 = vadd.f32 %v2726, %v2814
      %v2816 = vpop.f32.mrf.mxu0
      %v2817 = vadd.f32 %v2728, %v2816
      %2818 = vmatmul.bf16.gmra.mxu0 %v2296
      %v2819 = vpop.f32.mrf.mxu0
      %v2820 = vadd.f32 %v2731, %v2819
      %v2821 = vpop.f32.mrf.mxu0
      %v2822 = vadd.f32 %v2733, %v2821
      %2823 = vmatmul.bf16.gmra.mxu0 %v2304
      %v2824 = vpop.f32.mrf.mxu0
      %v2825 = vadd.f32 %v2736, %v2824
      %v2826 = vpop.f32.mrf.mxu0
      %v2827 = vadd.f32 %v2738, %v2826
      %2828 = vmatmul.bf16.gmra.mxu0 %v2312
      %v2829 = vpop.f32.mrf.mxu0
      %v2830 = vadd.f32 %v2741, %v2829
      %v2831 = vpop.f32.mrf.mxu0
      %v2832 = vadd.f32 %v2743, %v2831
      %2833 = vmatmul.bf16.gmra.mxu0 %v2320
      %v2834 = vpop.f32.mrf.mxu0
      %v2835 = vadd.f32 %v2746, %v2834
      %v2836 = vpop.f32.mrf.mxu0
      %v2837 = vadd.f32 %v2748, %v2836
      %2838 = vmatmul.bf16.gmra.mxu0 %v2328
      %v2839 = vpop.f32.mrf.mxu0
      %v2840 = vadd.f32 %v2751, %v2839
      %v2841 = vpop.f32.mrf.mxu0
      %v2842 = vadd.f32 %v2753, %v2841
      %2843 = vmatmul.bf16.gmra.mxu0 %v2336
      %v2844 = vpop.f32.mrf.mxu0
      %v2845 = vadd.f32 %v2756, %v2844
      %v2846 = vpop.f32.mrf.mxu0
      %v2847 = vadd.f32 %v2758, %v2846
      %2848 = vmatmul.bf16.gmra.mxu0 %v2344
      %v2849 = vpop.f32.mrf.mxu0
      %v2850 = vadd.f32 %v2761, %v2849
      %v2851 = vpop.f32.mrf.mxu0
      %v2852 = vadd.f32 %v2763, %v2851
      %2853 = vmatmul.bf16.gmra.mxu0 %v2352
      %v2854 = vpop.f32.mrf.mxu0
      %v2855 = vadd.f32 %v2766, %v2854
      %v2856 = vpop.f32.mrf.mxu0
      %v2857 = vadd.f32 %v2768, %v2856
      %2858 = vmatmul.bf16.gmra.mxu0 %v2360
      %v2859 = vpop.f32.mrf.mxu0
      %v2860 = vadd.f32 %v2771, %v2859
      %v2861 = vpop.f32.mrf.mxu0
      %v2862 = vadd.f32 %v2773, %v2861
      %2863 = vmatmul.bf16.gmra.mxu0 %v2368
      %v2864 = vpop.f32.mrf.mxu0
      %v2865 = vadd.f32 %v2776, %v2864
      %v2866 = vpop.f32.mrf.mxu0
      %v2867 = vadd.f32 %v2778, %v2866
      %2868 = vmatmul.bf16.gmra.mxu0 %v2376
      %v2869 = vpop.f32.mrf.mxu0
      %v2870 = vadd.f32 %v2781, %v2869
      %v2871 = vpop.f32.mrf.mxu0
      %v2872 = vadd.f32 %v2783, %v2871
      %2873 = vmatmul.bf16.gmra.mxu0 %v2384
      %v2874 = vpop.f32.mrf.mxu0
      %v2875 = vadd.f32 %v2786, %v2874
      %v2876 = vpop.f32.mrf.mxu0
      %v2877 = vadd.f32 %v2788, %v2876
      %2878 = vmatmul.bf16.gmra.mxu0 %v2392
      %v2879 = vpop.f32.mrf.mxu0
      %v2880 = vadd.f32 %v2791, %v2879
      %v2881 = vpop.f32.mrf.mxu0
      %v2882 = vadd.f32 %v2793, %v2881
      %2883 = vmatmul.bf16.gmra.mxu0 %v2400
      %v2884 = vpop.f32.mrf.mxu0
      %v2885 = vadd.f32 %v2796, %v2884
      %v2886 = vpop.f32.mrf.mxu0
      %v2887 = vadd.f32 %v2798, %v2886
      %2888 = vdwg.mxu0
      %2889 = vmatpush.bf16.msra.mxu0 %v1740
      %2890 = vmatpush.bf16.msra.mxu0 %v1739
      %2891 = vmatpush.bf16.msra.mxu0 %v1738
      %2892 = vmatpush.bf16.msra.mxu0 %v1737
      %2893 = vmatpush.bf16.msra.mxu0 %v1736
      %2894 = vmatpush.bf16.msra.mxu0 %v1735
      %2895 = vmatpush.bf16.msra.mxu0 %v1734
      %2896 = vmatpush.bf16.msra.mxu0 %v1733
      %2897 = vmatmul.bf16.gmra.mxu0 %v2281
      %v2898 = vpop.f32.mrf.mxu0
      %v2899 = vadd.f32 %v2810, %v2898
      %v2900 = vpop.f32.mrf.mxu0
      %v2901 = vadd.f32 %v2812, %v2900
      %2902 = vmatmul.bf16.gmra.mxu0 %v2289
      %v2903 = vpop.f32.mrf.mxu0
      %v2904 = vadd.f32 %v2815, %v2903
      %v2905 = vpop.f32.mrf.mxu0
      %v2906 = vadd.f32 %v2817, %v2905
      %2907 = vmatmul.bf16.gmra.mxu0 %v2297
      %v2908 = vpop.f32.mrf.mxu0
      %v2909 = vadd.f32 %v2820, %v2908
      %v2910 = vpop.f32.mrf.mxu0
      %v2911 = vadd.f32 %v2822, %v2910
      %2912 = vmatmul.bf16.gmra.mxu0 %v2305
      %v2913 = vpop.f32.mrf.mxu0
      %v2914 = vadd.f32 %v2825, %v2913
      %v2915 = vpop.f32.mrf.mxu0
      %v2916 = vadd.f32 %v2827, %v2915
      %2917 = vmatmul.bf16.gmra.mxu0 %v2313
      %v2918 = vpop.f32.mrf.mxu0
      %v2919 = vadd.f32 %v2830, %v2918
      %v2920 = vpop.f32.mrf.mxu0
      %v2921 = vadd.f32 %v2832, %v2920
      %2922 = vmatmul.bf16.gmra.mxu0 %v2321
      %v2923 = vpop.f32.mrf.mxu0
      %v2924 = vadd.f32 %v2835, %v2923
      %v2925 = vpop.f32.mrf.mxu0
      %v2926 = vadd.f32 %v2837, %v2925
      %2927 = vmatmul.bf16.gmra.mxu0 %v2329
      %v2928 = vpop.f32.mrf.mxu0
      %v2929 = vadd.f32 %v2840, %v2928
      %v2930 = vpop.f32.mrf.mxu0
      %v2931 = vadd.f32 %v2842, %v2930
      %2932 = vmatmul.bf16.gmra.mxu0 %v2337
      %v2933 = vpop.f32.mrf.mxu0
      %v2934 = vadd.f32 %v2845, %v2933
      %v2935 = vpop.f32.mrf.mxu0
      %v2936 = vadd.f32 %v2847, %v2935
      %2937 = vmatmul.bf16.gmra.mxu0 %v2345
      %v2938 = vpop.f32.mrf.mxu0
      %v2939 = vadd.f32 %v2850, %v2938
      %v2940 = vpop.f32.mrf.mxu0
      %v2941 = vadd.f32 %v2852, %v2940
      %2942 = vmatmul.bf16.gmra.mxu0 %v2353
      %v2943 = vpop.f32.mrf.mxu0
      %v2944 = vadd.f32 %v2855, %v2943
      %v2945 = vpop.f32.mrf.mxu0
      %v2946 = vadd.f32 %v2857, %v2945
      %2947 = vmatmul.bf16.gmra.mxu0 %v2361
      %v2948 = vpop.f32.mrf.mxu0
      %v2949 = vadd.f32 %v2860, %v2948
      %v2950 = vpop.f32.mrf.mxu0
      %v2951 = vadd.f32 %v2862, %v2950
      %2952 = vmatmul.bf16.gmra.mxu0 %v2369
      %v2953 = vpop.f32.mrf.mxu0
      %v2954 = vadd.f32 %v2865, %v2953
      %v2955 = vpop.f32.mrf.mxu0
      %v2956 = vadd.f32 %v2867, %v2955
      %2957 = vmatmul.bf16.gmra.mxu0 %v2377
      %v2958 = vpop.f32.mrf.mxu0
      %v2959 = vadd.f32 %v2870, %v2958
      %v2960 = vpop.f32.mrf.mxu0
      %v2961 = vadd.f32 %v2872, %v2960
      %2962 = vmatmul.bf16.gmra.mxu0 %v2385
      %v2963 = vpop.f32.mrf.mxu0
      %v2964 = vadd.f32 %v2875, %v2963
      %v2965 = vpop.f32.mrf.mxu0
      %v2966 = vadd.f32 %v2877, %v2965
      %2967 = vmatmul.bf16.gmra.mxu0 %v2393
      %v2968 = vpop.f32.mrf.mxu0
      %v2969 = vadd.f32 %v2880, %v2968
      %v2970 = vpop.f32.mrf.mxu0
      %v2971 = vadd.f32 %v2882, %v2970
      %2972 = vmatmul.bf16.gmra.mxu0 %v2401
      %v2973 = vpop.f32.mrf.mxu0
      %v2974 = vadd.f32 %v2885, %v2973
      %v2975 = vpop.f32.mrf.mxu0
      %v2976 = vadd.f32 %v2887, %v2975
      %2977 = vdwg.mxu0
      %2978 = vmatpush.bf16.msra.mxu0 %v1748
      %2979 = vmatpush.bf16.msra.mxu0 %v1747
      %2980 = vmatpush.bf16.msra.mxu0 %v1746
      %2981 = vmatpush.bf16.msra.mxu0 %v1745
      %2982 = vmatpush.bf16.msra.mxu0 %v1744
      %2983 = vmatpush.bf16.msra.mxu0 %v1743
      %2984 = vmatpush.bf16.msra.mxu0 %v1742
      %2985 = vmatpush.bf16.msra.mxu0 %v1741
      %2986 = vmatmul.bf16.gmra.mxu0 %v2282
      %v2987 = vpop.f32.mrf.mxu0
      %v2988 = vadd.f32 %v2899, %v2987
      %v2989 = vpop.f32.mrf.mxu0
      %v2990 = vadd.f32 %v2901, %v2989
      %2991 = vmatmul.bf16.gmra.mxu0 %v2290
      %v2992 = vpop.f32.mrf.mxu0
      %v2993 = vadd.f32 %v2904, %v2992
      %v2994 = vpop.f32.mrf.mxu0
      %v2995 = vadd.f32 %v2906, %v2994
      %2996 = vmatmul.bf16.gmra.mxu0 %v2298
      %v2997 = vpop.f32.mrf.mxu0
      %v2998 = vadd.f32 %v2909, %v2997
      %v2999 = vpop.f32.mrf.mxu0
      %v3000 = vadd.f32 %v2911, %v2999
      %3001 = vmatmul.bf16.gmra.mxu0 %v2306
      %v3002 = vpop.f32.mrf.mxu0
      %v3003 = vadd.f32 %v2914, %v3002
      %v3004 = vpop.f32.mrf.mxu0
      %v3005 = vadd.f32 %v2916, %v3004
      %3006 = vmatmul.bf16.gmra.mxu0 %v2314
      %v3007 = vpop.f32.mrf.mxu0
      %v3008 = vadd.f32 %v2919, %v3007
      %v3009 = vpop.f32.mrf.mxu0
      %v3010 = vadd.f32 %v2921, %v3009
      %3011 = vmatmul.bf16.gmra.mxu0 %v2322
      %v3012 = vpop.f32.mrf.mxu0
      %v3013 = vadd.f32 %v2924, %v3012
      %v3014 = vpop.f32.mrf.mxu0
      %v3015 = vadd.f32 %v2926, %v3014
      %3016 = vmatmul.bf16.gmra.mxu0 %v2330
      %v3017 = vpop.f32.mrf.mxu0
      %v3018 = vadd.f32 %v2929, %v3017
      %v3019 = vpop.f32.mrf.mxu0
      %v3020 = vadd.f32 %v2931, %v3019
      %3021 = vmatmul.bf16.gmra.mxu0 %v2338
      %v3022 = vpop.f32.mrf.mxu0
      %v3023 = vadd.f32 %v2934, %v3022
      %v3024 = vpop.f32.mrf.mxu0
      %v3025 = vadd.f32 %v2936, %v3024
      %3026 = vmatmul.bf16.gmra.mxu0 %v2346
      %v3027 = vpop.f32.mrf.mxu0
      %v3028 = vadd.f32 %v2939, %v3027
      %v3029 = vpop.f32.mrf.mxu0
      %v3030 = vadd.f32 %v2941, %v3029
      %3031 = vmatmul.bf16.gmra.mxu0 %v2354
      %v3032 = vpop.f32.mrf.mxu0
      %v3033 = vadd.f32 %v2944, %v3032
      %v3034 = vpop.f32.mrf.mxu0
      %v3035 = vadd.f32 %v2946, %v3034
      %3036 = vmatmul.bf16.gmra.mxu0 %v2362
      %v3037 = vpop.f32.mrf.mxu0
      %v3038 = vadd.f32 %v2949, %v3037
      %v3039 = vpop.f32.mrf.mxu0
      %v3040 = vadd.f32 %v2951, %v3039
      %3041 = vmatmul.bf16.gmra.mxu0 %v2370
      %v3042 = vpop.f32.mrf.mxu0
      %v3043 = vadd.f32 %v2954, %v3042
      %v3044 = vpop.f32.mrf.mxu0
      %v3045 = vadd.f32 %v2956, %v3044
      %3046 = vmatmul.bf16.gmra.mxu0 %v2378
      %v3047 = vpop.f32.mrf.mxu0
      %v3048 = vadd.f32 %v2959, %v3047
      %v3049 = vpop.f32.mrf.mxu0
      %v3050 = vadd.f32 %v2961, %v3049
      %3051 = vmatmul.bf16.gmra.mxu0 %v2386
      %v3052 = vpop.f32.mrf.mxu0
      %v3053 = vadd.f32 %v2964, %v3052
      %v3054 = vpop.f32.mrf.mxu0
      %v3055 = vadd.f32 %v2966, %v3054
      %3056 = vmatmul.bf16.gmra.mxu0 %v2394
      %v3057 = vpop.f32.mrf.mxu0
      %v3058 = vadd.f32 %v2969, %v3057
      %v3059 = vpop.f32.mrf.mxu0
      %v3060 = vadd.f32 %v2971, %v3059
      %3061 = vmatmul.bf16.gmra.mxu0 %v2402
      %v3062 = vpop.f32.mrf.mxu0
      %v3063 = vadd.f32 %v2974, %v3062
      %v3064 = vpop.f32.mrf.mxu0
      %v3065 = vadd.f32 %v2976, %v3064
      %3066 = vdwg.mxu0
      %3067 = vmatpush.bf16.msra.mxu0 %v1756
      %3068 = vmatpush.bf16.msra.mxu0 %v1755
      %3069 = vmatpush.bf16.msra.mxu0 %v1754
      %3070 = vmatpush.bf16.msra.mxu0 %v1753
      %3071 = vmatpush.bf16.msra.mxu0 %v1752
      %3072 = vmatpush.bf16.msra.mxu0 %v1751
      %3073 = vmatpush.bf16.msra.mxu0 %v1750
      %3074 = vmatpush.bf16.msra.mxu0 %v1749
      %3075 = vmatmul.bf16.gmra.mxu0 %v2283
      %v3076 = vpop.f32.mrf.mxu0
      %v3077 = vadd.f32 %v2988, %v3076
      %v3078 = vpop.f32.mrf.mxu0
      %v3079 = vadd.f32 %v2990, %v3078
      %3080 = vmatmul.bf16.gmra.mxu0 %v2291
      %v3081 = vpop.f32.mrf.mxu0
      %v3082 = vadd.f32 %v2993, %v3081
      %v3083 = vpop.f32.mrf.mxu0
      %v3084 = vadd.f32 %v2995, %v3083
      %3085 = vmatmul.bf16.gmra.mxu0 %v2299
      %v3086 = vpop.f32.mrf.mxu0
      %v3087 = vadd.f32 %v2998, %v3086
      %v3088 = vpop.f32.mrf.mxu0
      %v3089 = vadd.f32 %v3000, %v3088
      %3090 = vmatmul.bf16.gmra.mxu0 %v2307
      %v3091 = vpop.f32.mrf.mxu0
      %v3092 = vadd.f32 %v3003, %v3091
      %v3093 = vpop.f32.mrf.mxu0
      %v3094 = vadd.f32 %v3005, %v3093
      %3095 = vmatmul.bf16.gmra.mxu0 %v2315
      %v3096 = vpop.f32.mrf.mxu0
      %v3097 = vadd.f32 %v3008, %v3096
      %v3098 = vpop.f32.mrf.mxu0
      %v3099 = vadd.f32 %v3010, %v3098
      %3100 = vmatmul.bf16.gmra.mxu0 %v2323
      %v3101 = vpop.f32.mrf.mxu0
      %v3102 = vadd.f32 %v3013, %v3101
      %v3103 = vpop.f32.mrf.mxu0
      %v3104 = vadd.f32 %v3015, %v3103
      %3105 = vmatmul.bf16.gmra.mxu0 %v2331
      %v3106 = vpop.f32.mrf.mxu0
      %v3107 = vadd.f32 %v3018, %v3106
      %v3108 = vpop.f32.mrf.mxu0
      %v3109 = vadd.f32 %v3020, %v3108
      %3110 = vmatmul.bf16.gmra.mxu0 %v2339
      %v3111 = vpop.f32.mrf.mxu0
      %v3112 = vadd.f32 %v3023, %v3111
      %v3113 = vpop.f32.mrf.mxu0
      %v3114 = vadd.f32 %v3025, %v3113
      %3115 = vmatmul.bf16.gmra.mxu0 %v2347
      %v3116 = vpop.f32.mrf.mxu0
      %v3117 = vadd.f32 %v3028, %v3116
      %v3118 = vpop.f32.mrf.mxu0
      %v3119 = vadd.f32 %v3030, %v3118
      %3120 = vmatmul.bf16.gmra.mxu0 %v2355
      %v3121 = vpop.f32.mrf.mxu0
      %v3122 = vadd.f32 %v3033, %v3121
      %v3123 = vpop.f32.mrf.mxu0
      %v3124 = vadd.f32 %v3035, %v3123
      %3125 = vmatmul.bf16.gmra.mxu0 %v2363
      %v3126 = vpop.f32.mrf.mxu0
      %v3127 = vadd.f32 %v3038, %v3126
      %v3128 = vpop.f32.mrf.mxu0
      %v3129 = vadd.f32 %v3040, %v3128
      %3130 = vmatmul.bf16.gmra.mxu0 %v2371
      %v3131 = vpop.f32.mrf.mxu0
      %v3132 = vadd.f32 %v3043, %v3131
      %v3133 = vpop.f32.mrf.mxu0
      %v3134 = vadd.f32 %v3045, %v3133
      %3135 = vmatmul.bf16.gmra.mxu0 %v2379
      %v3136 = vpop.f32.mrf.mxu0
      %v3137 = vadd.f32 %v3048, %v3136
      %v3138 = vpop.f32.mrf.mxu0
      %v3139 = vadd.f32 %v3050, %v3138
      %3140 = vmatmul.bf16.gmra.mxu0 %v2387
      %v3141 = vpop.f32.mrf.mxu0
      %v3142 = vadd.f32 %v3053, %v3141
      %v3143 = vpop.f32.mrf.mxu0
      %v3144 = vadd.f32 %v3055, %v3143
      %3145 = vmatmul.bf16.gmra.mxu0 %v2395
      %v3146 = vpop.f32.mrf.mxu0
      %v3147 = vadd.f32 %v3058, %v3146
      %v3148 = vpop.f32.mrf.mxu0
      %v3149 = vadd.f32 %v3060, %v3148
      %3150 = vmatmul.bf16.gmra.mxu0 %v2403
      %v3151 = vpop.f32.mrf.mxu0
      %v3152 = vadd.f32 %v3063, %v3151
      %v3153 = vpop.f32.mrf.mxu0
      %v3154 = vadd.f32 %v3065, %v3153
      %3155 = vdwg.mxu0
      %3156 = vmatpush.bf16.msra.mxu0 %v1764
      %3157 = vmatpush.bf16.msra.mxu0 %v1763
      %3158 = vmatpush.bf16.msra.mxu0 %v1762
      %3159 = vmatpush.bf16.msra.mxu0 %v1761
      %3160 = vmatpush.bf16.msra.mxu0 %v1760
      %3161 = vmatpush.bf16.msra.mxu0 %v1759
      %3162 = vmatpush.bf16.msra.mxu0 %v1758
      %3163 = vmatpush.bf16.msra.mxu0 %v1757
      %3164 = vmatmul.bf16.gmra.mxu0 %v2284
      %v3165 = vpop.f32.mrf.mxu0
      %v3166 = vadd.f32 %v3077, %v3165
      %v3167 = vpop.f32.mrf.mxu0
      %v3168 = vadd.f32 %v3079, %v3167
      %3169 = vmatmul.bf16.gmra.mxu0 %v2292
      %v3170 = vpop.f32.mrf.mxu0
      %v3171 = vadd.f32 %v3082, %v3170
      %v3172 = vpop.f32.mrf.mxu0
      %v3173 = vadd.f32 %v3084, %v3172
      %3174 = vmatmul.bf16.gmra.mxu0 %v2300
      %v3175 = vpop.f32.mrf.mxu0
      %v3176 = vadd.f32 %v3087, %v3175
      %v3177 = vpop.f32.mrf.mxu0
      %v3178 = vadd.f32 %v3089, %v3177
      %3179 = vmatmul.bf16.gmra.mxu0 %v2308
      %v3180 = vpop.f32.mrf.mxu0
      %v3181 = vadd.f32 %v3092, %v3180
      %v3182 = vpop.f32.mrf.mxu0
      %v3183 = vadd.f32 %v3094, %v3182
      %3184 = vmatmul.bf16.gmra.mxu0 %v2316
      %v3185 = vpop.f32.mrf.mxu0
      %v3186 = vadd.f32 %v3097, %v3185
      %v3187 = vpop.f32.mrf.mxu0
      %v3188 = vadd.f32 %v3099, %v3187
      %3189 = vmatmul.bf16.gmra.mxu0 %v2324
      %v3190 = vpop.f32.mrf.mxu0
      %v3191 = vadd.f32 %v3102, %v3190
      %v3192 = vpop.f32.mrf.mxu0
      %v3193 = vadd.f32 %v3104, %v3192
      %3194 = vmatmul.bf16.gmra.mxu0 %v2332
      %v3195 = vpop.f32.mrf.mxu0
      %v3196 = vadd.f32 %v3107, %v3195
      %v3197 = vpop.f32.mrf.mxu0
      %v3198 = vadd.f32 %v3109, %v3197
      %3199 = vmatmul.bf16.gmra.mxu0 %v2340
      %v3200 = vpop.f32.mrf.mxu0
      %v3201 = vadd.f32 %v3112, %v3200
      %v3202 = vpop.f32.mrf.mxu0
      %v3203 = vadd.f32 %v3114, %v3202
      %3204 = vmatmul.bf16.gmra.mxu0 %v2348
      %v3205 = vpop.f32.mrf.mxu0
      %v3206 = vadd.f32 %v3117, %v3205
      %v3207 = vpop.f32.mrf.mxu0
      %v3208 = vadd.f32 %v3119, %v3207
      %3209 = vmatmul.bf16.gmra.mxu0 %v2356
      %v3210 = vpop.f32.mrf.mxu0
      %v3211 = vadd.f32 %v3122, %v3210
      %v3212 = vpop.f32.mrf.mxu0
      %v3213 = vadd.f32 %v3124, %v3212
      %3214 = vmatmul.bf16.gmra.mxu0 %v2364
      %v3215 = vpop.f32.mrf.mxu0
      %v3216 = vadd.f32 %v3127, %v3215
      %v3217 = vpop.f32.mrf.mxu0
      %v3218 = vadd.f32 %v3129, %v3217
      %3219 = vmatmul.bf16.gmra.mxu0 %v2372
      %v3220 = vpop.f32.mrf.mxu0
      %v3221 = vadd.f32 %v3132, %v3220
      %v3222 = vpop.f32.mrf.mxu0
      %v3223 = vadd.f32 %v3134, %v3222
      %3224 = vmatmul.bf16.gmra.mxu0 %v2380
      %v3225 = vpop.f32.mrf.mxu0
      %v3226 = vadd.f32 %v3137, %v3225
      %v3227 = vpop.f32.mrf.mxu0
      %v3228 = vadd.f32 %v3139, %v3227
      %3229 = vmatmul.bf16.gmra.mxu0 %v2388
      %v3230 = vpop.f32.mrf.mxu0
      %v3231 = vadd.f32 %v3142, %v3230
      %v3232 = vpop.f32.mrf.mxu0
      %v3233 = vadd.f32 %v3144, %v3232
      %3234 = vmatmul.bf16.gmra.mxu0 %v2396
      %v3235 = vpop.f32.mrf.mxu0
      %v3236 = vadd.f32 %v3147, %v3235
      %v3237 = vpop.f32.mrf.mxu0
      %v3238 = vadd.f32 %v3149, %v3237
      %3239 = vmatmul.bf16.gmra.mxu0 %v2404
      %v3240 = vpop.f32.mrf.mxu0
      %v3241 = vadd.f32 %v3152, %v3240
      %v3242 = vpop.f32.mrf.mxu0
      %v3243 = vadd.f32 %v3154, %v3242
      %3244 = vdwg.mxu0
      %v3245 = vpack.c.bf16 %v3168, %v3166
      %v3246 = vpack.c.bf16 %v3173, %v3171
      %v3247 = vpack.c.bf16 %v3178, %v3176
      %v3248 = vpack.c.bf16 %v3183, %v3181
      %v3249 = vpack.c.bf16 %v3188, %v3186
      %v3250 = vpack.c.bf16 %v3193, %v3191
      %v3251 = vpack.c.bf16 %v3198, %v3196
      %v3252 = vpack.c.bf16 %v3203, %v3201
      %v3253 = vpack.c.bf16 %v3208, %v3206
      %v3254 = vpack.c.bf16 %v3213, %v3211
      %v3255 = vpack.c.bf16 %v3218, %v3216
      %v3256 = vpack.c.bf16 %v3223, %v3221
      %v3257 = vpack.c.bf16 %v3228, %v3226
      %v3258 = vpack.c.bf16 %v3233, %v3231
      %v3259 = vpack.c.bf16 %v3238, %v3236
      %v3260 = vpack.c.bf16 %v3243, %v3241
      %v3261 = vld [vmem:[%s1] sm:$0xf]
      %v3262 = vld [vmem:[%s1 + $0x4] sm:$0xf]
      %v3263 = vld [vmem:[%s1 + $0x8] sm:$0xf]
      %v3264 = vld [vmem:[%s1 + $0xc] sm:$0xf]
      %v3265 = vld [vmem:[%s2] sm:$0x1]
      %v3267 = vperm.slane %v3265, 0
      %v3273 = vunpack.c.l.b16 %v3261
      %v3274 = vunpack.c.l.b16 %v3262
      %v3275 = vunpack.c.l.b16 %v3263
      %v3276 = vunpack.c.l.b16 %v3264
      %v3277 = vpack.c.b16 %v3274, %v3273
      %v3278 = vpack.c.b16 %v3276, %v3275
      %vm3281 = vcmask 261120
      %v3283 = vsel %vm3281, %v3245, 0
      %v3286 = vsel %vm3281, %v3246, 0
      %v3289 = vsel %vm3281, %v3247, 0
      %v3292 = vsel %vm3281, %v3248, 0
      %v3295 = vsel %vm3281, %v3249, 0
      %v3298 = vsel %vm3281, %v3250, 0
      %v3301 = vsel %vm3281, %v3251, 0
      %v3304 = vsel %vm3281, %v3252, 0
      %v3307 = vsel %vm3281, %v3253, 0
      %v3310 = vsel %vm3281, %v3254, 0
      %v3313 = vsel %vm3281, %v3255, 0
      %v3316 = vsel %vm3281, %v3256, 0
      %v3319 = vsel %vm3281, %v3257, 0
      %v3322 = vsel %vm3281, %v3258, 0
      %v3325 = vsel %vm3281, %v3259, 0
      %v3328 = vsel %vm3281, %v3260, 0
      %3330 = vmatpush.bf16.msra.mxu0 0
      %3331 = vmatpush.bf16.msra.mxu0 0
      %3332 = vmatpush.bf16.msra.mxu0 0
      %3333 = vmatpush.bf16.msra.mxu0 0
      %3334 = vmatpush.bf16.msra.mxu0 0
      %3335 = vmatpush.bf16.msra.mxu0 0
      %3336 = vmatpush.bf16.msra.mxu0 %v3278
      %3337 = vmatpush.bf16.msra.mxu0 %v3277
      %3338 = vmatmul.bf16.gmra.mxu0 %v3283
      %v3339 = vpop.f32.mrf.mxu0
      %v3340 = vadd.f32 %v3267, %v3339
      %v3341 = vpop.f32.mrf.mxu0
      %v3342 = vadd.f32 %v3267, %v3341
      %3343 = vmatmul.bf16.gmra.mxu0 %v3286
      %v3344 = vpop.f32.mrf.mxu0
      %v3345 = vadd.f32 %v3267, %v3344
      %v3346 = vpop.f32.mrf.mxu0
      %v3347 = vadd.f32 %v3267, %v3346
      %3348 = vmatmul.bf16.gmra.mxu0 %v3289
      %v3349 = vpop.f32.mrf.mxu0
      %v3350 = vadd.f32 %v3267, %v3349
      %v3351 = vpop.f32.mrf.mxu0
      %v3352 = vadd.f32 %v3267, %v3351
      %3353 = vmatmul.bf16.gmra.mxu0 %v3292
      %v3354 = vpop.f32.mrf.mxu0
      %v3355 = vadd.f32 %v3267, %v3354
      %v3356 = vpop.f32.mrf.mxu0
      %v3357 = vadd.f32 %v3267, %v3356
      %3358 = vmatmul.bf16.gmra.mxu0 %v3295
      %v3359 = vpop.f32.mrf.mxu0
      %v3360 = vadd.f32 %v3267, %v3359
      %v3361 = vpop.f32.mrf.mxu0
      %v3362 = vadd.f32 %v3267, %v3361
      %3363 = vmatmul.bf16.gmra.mxu0 %v3298
      %v3364 = vpop.f32.mrf.mxu0
      %v3365 = vadd.f32 %v3267, %v3364
      %v3366 = vpop.f32.mrf.mxu0
      %v3367 = vadd.f32 %v3267, %v3366
      %3368 = vmatmul.bf16.gmra.mxu0 %v3301
      %v3369 = vpop.f32.mrf.mxu0
      %v3370 = vadd.f32 %v3267, %v3369
      %v3371 = vpop.f32.mrf.mxu0
      %v3372 = vadd.f32 %v3267, %v3371
      %3373 = vmatmul.bf16.gmra.mxu0 %v3304
      %v3374 = vpop.f32.mrf.mxu0
      %v3375 = vadd.f32 %v3267, %v3374
      %v3376 = vpop.f32.mrf.mxu0
      %v3377 = vadd.f32 %v3267, %v3376
      %3378 = vmatmul.bf16.gmra.mxu0 %v3307
      %v3379 = vpop.f32.mrf.mxu0
      %v3380 = vadd.f32 %v3267, %v3379
      %v3381 = vpop.f32.mrf.mxu0
      %v3382 = vadd.f32 %v3267, %v3381
      %3383 = vmatmul.bf16.gmra.mxu0 %v3310
      %v3384 = vpop.f32.mrf.mxu0
      %v3385 = vadd.f32 %v3267, %v3384
      %v3386 = vpop.f32.mrf.mxu0
      %v3387 = vadd.f32 %v3267, %v3386
      %3388 = vmatmul.bf16.gmra.mxu0 %v3313
      %v3389 = vpop.f32.mrf.mxu0
      %v3390 = vadd.f32 %v3267, %v3389
      %v3391 = vpop.f32.mrf.mxu0
      %v3392 = vadd.f32 %v3267, %v3391
      %3393 = vmatmul.bf16.gmra.mxu0 %v3316
      %v3394 = vpop.f32.mrf.mxu0
      %v3395 = vadd.f32 %v3267, %v3394
      %v3396 = vpop.f32.mrf.mxu0
      %v3397 = vadd.f32 %v3267, %v3396
      %3398 = vmatmul.bf16.gmra.mxu0 %v3319
      %v3399 = vpop.f32.mrf.mxu0
      %v3400 = vadd.f32 %v3267, %v3399
      %v3401 = vpop.f32.mrf.mxu0
      %v3402 = vadd.f32 %v3267, %v3401
      %3403 = vmatmul.bf16.gmra.mxu0 %v3322
      %v3404 = vpop.f32.mrf.mxu0
      %v3405 = vadd.f32 %v3267, %v3404
      %v3406 = vpop.f32.mrf.mxu0
      %v3407 = vadd.f32 %v3267, %v3406
      %3408 = vmatmul.bf16.gmra.mxu0 %v3325
      %v3409 = vpop.f32.mrf.mxu0
      %v3410 = vadd.f32 %v3267, %v3409
      %v3411 = vpop.f32.mrf.mxu0
      %v3412 = vadd.f32 %v3267, %v3411
      %3413 = vmatmul.bf16.gmra.mxu0 %v3328
      %v3414 = vpop.f32.mrf.mxu0
      %v3415 = vadd.f32 %v3267, %v3414
      %v3416 = vpop.f32.mrf.mxu0
      %v3417 = vadd.f32 %v3267, %v3416
      %3418 = vdwg.mxu0
      %v3419 = vsub.f32 0.0, %v3340
      %v3420 = vsub.f32 0.0, %v3342
      %v3421 = vsub.f32 0.0, %v3345
      %v3422 = vsub.f32 0.0, %v3347
      %v3423 = vsub.f32 0.0, %v3350
      %v3424 = vsub.f32 0.0, %v3352
      %v3425 = vsub.f32 0.0, %v3355
      %v3426 = vsub.f32 0.0, %v3357
      %v3427 = vsub.f32 0.0, %v3360
      %v3428 = vsub.f32 0.0, %v3362
      %v3429 = vsub.f32 0.0, %v3365
      %v3430 = vsub.f32 0.0, %v3367
      %v3431 = vsub.f32 0.0, %v3370
      %v3432 = vsub.f32 0.0, %v3372
      %v3433 = vsub.f32 0.0, %v3375
      %v3434 = vsub.f32 0.0, %v3377
      %v3435 = vsub.f32 0.0, %v3380
      %v3436 = vsub.f32 0.0, %v3382
      %v3437 = vsub.f32 0.0, %v3385
      %v3438 = vsub.f32 0.0, %v3387
      %v3439 = vsub.f32 0.0, %v3390
      %v3440 = vsub.f32 0.0, %v3392
      %v3441 = vsub.f32 0.0, %v3395
      %v3442 = vsub.f32 0.0, %v3397
      %v3443 = vsub.f32 0.0, %v3400
      %v3444 = vsub.f32 0.0, %v3402
      %v3445 = vsub.f32 0.0, %v3405
      %v3446 = vsub.f32 0.0, %v3407
      %v3447 = vsub.f32 0.0, %v3410
      %v3448 = vsub.f32 0.0, %v3412
      %v3449 = vsub.f32 0.0, %v3415
      %v3450 = vsub.f32 0.0, %v3417
      %v3451 = vmul.f32 %v3419, 1.442695
      %v3452 = vpow.pop %v3451
      %v3453 = vmul.f32 %v3420, 1.442695
      %v3454 = vpow.pop %v3453
      %v3455 = vmul.f32 %v3421, 1.442695
      %v3456 = vpow.pop %v3455
      %v3457 = vmul.f32 %v3422, 1.442695
      %v3458 = vpow.pop %v3457
      %v3459 = vmul.f32 %v3423, 1.442695
      %v3460 = vpow.pop %v3459
      %v3461 = vmul.f32 %v3424, 1.442695
      %v3462 = vpow.pop %v3461
      %v3463 = vmul.f32 %v3425, 1.442695
      %v3464 = vpow.pop %v3463
      %v3465 = vmul.f32 %v3426, 1.442695
      %v3466 = vpow.pop %v3465
      %v3467 = vmul.f32 %v3427, 1.442695
      %v3468 = vpow.pop %v3467
      %v3469 = vmul.f32 %v3428, 1.442695
      %v3470 = vpow.pop %v3469
      %v3471 = vmul.f32 %v3429, 1.442695
      %v3472 = vpow.pop %v3471
      %v3473 = vmul.f32 %v3430, 1.442695
      %v3474 = vpow.pop %v3473
      %v3475 = vmul.f32 %v3431, 1.442695
      %v3476 = vpow.pop %v3475
      %v3477 = vmul.f32 %v3432, 1.442695
      %v3478 = vpow.pop %v3477
      %v3479 = vmul.f32 %v3433, 1.442695
      %v3480 = vpow.pop %v3479
      %v3481 = vmul.f32 %v3434, 1.442695
      %v3482 = vpow.pop %v3481
      %v3483 = vmul.f32 %v3435, 1.442695
      %v3484 = vpow.pop %v3483
      %v3485 = vmul.f32 %v3436, 1.442695
      %v3486 = vpow.pop %v3485
      %v3487 = vmul.f32 %v3437, 1.442695
      %v3488 = vpow.pop %v3487
      %v3489 = vmul.f32 %v3438, 1.442695
      %v3490 = vpow.pop %v3489
      %v3491 = vmul.f32 %v3439, 1.442695
      %v3492 = vpow.pop %v3491
      %v3493 = vmul.f32 %v3440, 1.442695
      %v3494 = vpow.pop %v3493
      %v3495 = vmul.f32 %v3441, 1.442695
      %v3496 = vpow.pop %v3495
      %v3497 = vmul.f32 %v3442, 1.442695
      %v3498 = vpow.pop %v3497
      %v3499 = vmul.f32 %v3443, 1.442695
      %v3500 = vpow.pop %v3499
      %v3501 = vmul.f32 %v3444, 1.442695
      %v3502 = vpow.pop %v3501
      %v3503 = vmul.f32 %v3445, 1.442695
      %v3504 = vpow.pop %v3503
      %v3505 = vmul.f32 %v3446, 1.442695
      %v3506 = vpow.pop %v3505
      %v3507 = vmul.f32 %v3447, 1.442695
      %v3508 = vpow.pop %v3507
      %v3509 = vmul.f32 %v3448, 1.442695
      %v3510 = vpow.pop %v3509
      %v3511 = vmul.f32 %v3449, 1.442695
      %v3512 = vpow.pop %v3511
      %v3513 = vmul.f32 %v3450, 1.442695
      %v3514 = vpow.pop %v3513
      %v3515 = vadd.f32 %v3452, 1.0
      %v3516 = vadd.f32 %v3454, 1.0
      %v3517 = vadd.f32 %v3456, 1.0
      %v3518 = vadd.f32 %v3458, 1.0
      %v3519 = vadd.f32 %v3460, 1.0
      %v3520 = vadd.f32 %v3462, 1.0
      %v3521 = vadd.f32 %v3464, 1.0
      %v3522 = vadd.f32 %v3466, 1.0
      %v3523 = vadd.f32 %v3468, 1.0
      %v3524 = vadd.f32 %v3470, 1.0
      %v3525 = vadd.f32 %v3472, 1.0
      %v3526 = vadd.f32 %v3474, 1.0
      %v3527 = vadd.f32 %v3476, 1.0
      %v3528 = vadd.f32 %v3478, 1.0
      %v3529 = vadd.f32 %v3480, 1.0
      %v3530 = vadd.f32 %v3482, 1.0
      %v3531 = vadd.f32 %v3484, 1.0
      %v3532 = vadd.f32 %v3486, 1.0
      %v3533 = vadd.f32 %v3488, 1.0
      %v3534 = vadd.f32 %v3490, 1.0
      %v3535 = vadd.f32 %v3492, 1.0
      %v3536 = vadd.f32 %v3494, 1.0
      %v3537 = vadd.f32 %v3496, 1.0
      %v3538 = vadd.f32 %v3498, 1.0
      %v3539 = vadd.f32 %v3500, 1.0
      %v3540 = vadd.f32 %v3502, 1.0
      %v3541 = vadd.f32 %v3504, 1.0
      %v3542 = vadd.f32 %v3506, 1.0
      %v3543 = vadd.f32 %v3508, 1.0
      %v3544 = vadd.f32 %v3510, 1.0
      %v3545 = vadd.f32 %v3512, 1.0
      %v3546 = vadd.f32 %v3514, 1.0
      %v3547 = vrcp.pop %v3515
      %v3548 = vrcp.pop %v3516
      %v3549 = vrcp.pop %v3517
      %v3550 = vrcp.pop %v3518
      %v3551 = vrcp.pop %v3519
      %v3552 = vrcp.pop %v3520
      %v3553 = vrcp.pop %v3521
      %v3554 = vrcp.pop %v3522
      %v3555 = vrcp.pop %v3523
      %v3556 = vrcp.pop %v3524
      %v3557 = vrcp.pop %v3525
      %v3558 = vrcp.pop %v3526
      %v3559 = vrcp.pop %v3527
      %v3560 = vrcp.pop %v3528
      %v3561 = vrcp.pop %v3529
      %v3562 = vrcp.pop %v3530
      %v3563 = vrcp.pop %v3531
      %v3564 = vrcp.pop %v3532
      %v3565 = vrcp.pop %v3533
      %v3566 = vrcp.pop %v3534
      %v3567 = vrcp.pop %v3535
      %v3568 = vrcp.pop %v3536
      %v3569 = vrcp.pop %v3537
      %v3570 = vrcp.pop %v3538
      %v3571 = vrcp.pop %v3539
      %v3572 = vrcp.pop %v3540
      %v3573 = vrcp.pop %v3541
      %v3574 = vrcp.pop %v3542
      %v3575 = vrcp.pop %v3543
      %v3576 = vrcp.pop %v3544
      %v3577 = vrcp.pop %v3545
      %v3578 = vrcp.pop %v3546
      %v3579 = vmul.f32 %v3340, %v3547
      %v3580 = vmul.f32 %v3342, %v3548
      %v3581 = vmul.f32 %v3345, %v3549
      %v3582 = vmul.f32 %v3347, %v3550
      %v3583 = vmul.f32 %v3350, %v3551
      %v3584 = vmul.f32 %v3352, %v3552
      %v3585 = vmul.f32 %v3355, %v3553
      %v3586 = vmul.f32 %v3357, %v3554
      %v3587 = vmul.f32 %v3360, %v3555
      %v3588 = vmul.f32 %v3362, %v3556
      %v3589 = vmul.f32 %v3365, %v3557
      %v3590 = vmul.f32 %v3367, %v3558
      %v3591 = vmul.f32 %v3370, %v3559
      %v3592 = vmul.f32 %v3372, %v3560
      %v3593 = vmul.f32 %v3375, %v3561
      %v3594 = vmul.f32 %v3377, %v3562
      %v3595 = vmul.f32 %v3380, %v3563
      %v3596 = vmul.f32 %v3382, %v3564
      %v3597 = vmul.f32 %v3385, %v3565
      %v3598 = vmul.f32 %v3387, %v3566
      %v3599 = vmul.f32 %v3390, %v3567
      %v3600 = vmul.f32 %v3392, %v3568
      %v3601 = vmul.f32 %v3395, %v3569
      %v3602 = vmul.f32 %v3397, %v3570
      %v3603 = vmul.f32 %v3400, %v3571
      %v3604 = vmul.f32 %v3402, %v3572
      %v3605 = vmul.f32 %v3405, %v3573
      %v3606 = vmul.f32 %v3407, %v3574
      %v3607 = vmul.f32 %v3410, %v3575
      %v3608 = vmul.f32 %v3412, %v3576
      %v3609 = vmul.f32 %v3415, %v3577
      %v3610 = vmul.f32 %v3417, %v3578
      %v3611 = vpack.c.bf16 %v3580, %v3579
      %v3612 = vpack.c.bf16 %v3582, %v3581
      %v3613 = vpack.c.bf16 %v3584, %v3583
      %v3614 = vpack.c.bf16 %v3586, %v3585
      %v3615 = vpack.c.bf16 %v3588, %v3587
      %v3616 = vpack.c.bf16 %v3590, %v3589
      %v3617 = vpack.c.bf16 %v3592, %v3591
      %v3618 = vpack.c.bf16 %v3594, %v3593
      %v3619 = vpack.c.bf16 %v3596, %v3595
      %v3620 = vpack.c.bf16 %v3598, %v3597
      %v3621 = vpack.c.bf16 %v3600, %v3599
      %v3622 = vpack.c.bf16 %v3602, %v3601
      %v3623 = vpack.c.bf16 %v3604, %v3603
      %v3624 = vpack.c.bf16 %v3606, %v3605
      %v3625 = vpack.c.bf16 %v3608, %v3607
      %v3626 = vpack.c.bf16 %v3610, %v3609
      %v3627 = vld [vmem:[%s6] sm:$0xff]
      %v3628 = vld [vmem:[%s6 + $0x8] sm:$0xff]
      %v3629 = vld [vmem:[%s6 + $0x10] sm:$0xff]
      %v3630 = vld [vmem:[%s6 + $0x18] sm:$0xff]
      %v3631 = vld [vmem:[%s6 + $0x20] sm:$0xff]
      %v3632 = vld [vmem:[%s6 + $0x28] sm:$0xff]
      %v3633 = vld [vmem:[%s6 + $0x30] sm:$0xff]
      %v3634 = vld [vmem:[%s6 + $0x38] sm:$0xff]
      %v3643 = vunpack.c.l.b16 %v3627
      %v3644 = vunpack.c.h.b16 %v3627
      %v3645 = vunpack.c.l.b16 %v3628
      %v3646 = vunpack.c.h.b16 %v3628
      %v3647 = vunpack.c.l.b16 %v3629
      %v3648 = vunpack.c.h.b16 %v3629
      %v3649 = vunpack.c.l.b16 %v3630
      %v3650 = vunpack.c.h.b16 %v3630
      %v3651 = vunpack.c.l.b16 %v3631
      %v3652 = vunpack.c.h.b16 %v3631
      %v3653 = vunpack.c.l.b16 %v3632
      %v3654 = vunpack.c.h.b16 %v3632
      %v3655 = vunpack.c.l.b16 %v3633
      %v3656 = vunpack.c.h.b16 %v3633
      %v3657 = vunpack.c.l.b16 %v3634
      %v3658 = vunpack.c.h.b16 %v3634
      %v3659 = vpack.c.b16 %v3645, %v3643
      %v3660 = vpack.c.b16 %v3646, %v3644
      %v3661 = vpack.c.b16 %v3649, %v3647
      %v3662 = vpack.c.b16 %v3650, %v3648
      %v3663 = vpack.c.b16 %v3653, %v3651
      %v3664 = vpack.c.b16 %v3654, %v3652
      %v3665 = vpack.c.b16 %v3657, %v3655
      %v3666 = vpack.c.b16 %v3658, %v3656
      %3675 = vmatpush.bf16.msra.mxu0 %v3618
      %3676 = vmatpush.bf16.msra.mxu0 %v3617
      %3677 = vmatpush.bf16.msra.mxu0 %v3616
      %3678 = vmatpush.bf16.msra.mxu0 %v3615
      %3679 = vmatpush.bf16.msra.mxu0 %v3614
      %3680 = vmatpush.bf16.msra.mxu0 %v3613
      %3681 = vmatpush.bf16.msra.mxu0 %v3612
      %3682 = vmatpush.bf16.msra.mxu0 %v3611
      %3683 = vmatmul.bf16.gmra.mxu0 %v3659
      %v3684 = vpop.f32.mrf.mxu0
      %v3685 = vadd.f32 0.0, %v3684
      %v3686 = vpop.f32.mrf.mxu0
      %v3687 = vadd.f32 0.0, %v3686
      %3688 = vmatmul.bf16.gmra.mxu0 %v3661
      %v3689 = vpop.f32.mrf.mxu0
      %v3690 = vadd.f32 0.0, %v3689
      %v3691 = vpop.f32.mrf.mxu0
      %v3692 = vadd.f32 0.0, %v3691
      %3693 = vmatmul.bf16.gmra.mxu0 %v3663
      %v3694 = vpop.f32.mrf.mxu0
      %v3695 = vadd.f32 0.0, %v3694
      %v3696 = vpop.f32.mrf.mxu0
      %v3697 = vadd.f32 0.0, %v3696
      %3698 = vmatmul.bf16.gmra.mxu0 %v3665
      %v3699 = vpop.f32.mrf.mxu0
      %v3700 = vadd.f32 0.0, %v3699
      %v3701 = vpop.f32.mrf.mxu0
      %v3702 = vadd.f32 0.0, %v3701
      %3703 = vdwg.mxu0
      %3704 = vmatpush.bf16.msra.mxu0 %v3626
      %3705 = vmatpush.bf16.msra.mxu0 %v3625
      %3706 = vmatpush.bf16.msra.mxu0 %v3624
      %3707 = vmatpush.bf16.msra.mxu0 %v3623
      %3708 = vmatpush.bf16.msra.mxu0 %v3622
      %3709 = vmatpush.bf16.msra.mxu0 %v3621
      %3710 = vmatpush.bf16.msra.mxu0 %v3620
      %3711 = vmatpush.bf16.msra.mxu0 %v3619
      %3712 = vmatmul.bf16.gmra.mxu0 %v3660
      %v3713 = vpop.f32.mrf.mxu0
      %v3714 = vadd.f32 %v3685, %v3713
      %v3715 = vpop.f32.mrf.mxu0
      %v3716 = vadd.f32 %v3687, %v3715
      %3717 = vmatmul.bf16.gmra.mxu0 %v3662
      %v3718 = vpop.f32.mrf.mxu0
      %v3719 = vadd.f32 %v3690, %v3718
      %v3720 = vpop.f32.mrf.mxu0
      %v3721 = vadd.f32 %v3692, %v3720
      %3722 = vmatmul.bf16.gmra.mxu0 %v3664
      %v3723 = vpop.f32.mrf.mxu0
      %v3724 = vadd.f32 %v3695, %v3723
      %v3725 = vpop.f32.mrf.mxu0
      %v3726 = vadd.f32 %v3697, %v3725
      %3727 = vmatmul.bf16.gmra.mxu0 %v3666
      %v3728 = vpop.f32.mrf.mxu0
      %v3729 = vadd.f32 %v3700, %v3728
      %v3730 = vpop.f32.mrf.mxu0
      %v3731 = vadd.f32 %v3702, %v3730
      %3732 = vdwg.mxu0
      %v3733 = vpack.c.bf16 %v3716, %v3714
      %v3734 = vpack.c.bf16 %v3721, %v3719
      %v3735 = vpack.c.bf16 %v3726, %v3724
      %v3736 = vpack.c.bf16 %v3731, %v3729
      %v3737 = vld [vmem:[%s3] sm:$0xf]
      %v3738 = vld [vmem:[%s3 + $0x4] sm:$0xf]
      %v3739 = vld [vmem:[%s3 + $0x8] sm:$0xf]
      %v3740 = vld [vmem:[%s3 + $0xc] sm:$0xf]
      %v3741 = vld [vmem:[%s3 + $0x10] sm:$0xf]
      %v3742 = vld [vmem:[%s3 + $0x14] sm:$0xf]
      %v3743 = vld [vmem:[%s3 + $0x18] sm:$0xf]
      %v3744 = vld [vmem:[%s3 + $0x1c] sm:$0xf]
      %v3745 = vld [vmem:[%s4] sm:$0x1]
      %v3747 = vperm.slane %v3745, 0
      %v3757 = vunpack.c.l.b16 %v3737
      %v3758 = vunpack.c.l.b16 %v3738
      %v3759 = vunpack.c.l.b16 %v3739
      %v3760 = vunpack.c.l.b16 %v3740
      %v3761 = vunpack.c.l.b16 %v3741
      %v3762 = vunpack.c.l.b16 %v3742
      %v3763 = vunpack.c.l.b16 %v3743
      %v3764 = vunpack.c.l.b16 %v3744
      %v3765 = vpack.c.b16 %v3758, %v3757
      %v3766 = vpack.c.b16 %v3760, %v3759
      %v3767 = vpack.c.b16 %v3762, %v3761
      %v3768 = vpack.c.b16 %v3764, %v3763
      %vm3773 = vcmask 523264
      %v3775 = vsel %vm3773, %v3733, 0
      %v3778 = vsel %vm3773, %v3734, 0
      %v3781 = vsel %vm3773, %v3735, 0
      %v3784 = vsel %vm3773, %v3736, 0
      %3786 = vmatpush.bf16.msra.mxu0 0
      %3787 = vmatpush.bf16.msra.mxu0 0
      %3788 = vmatpush.bf16.msra.mxu0 0
      %3789 = vmatpush.bf16.msra.mxu0 0
      %3790 = vmatpush.bf16.msra.mxu0 %v3768
      %3791 = vmatpush.bf16.msra.mxu0 %v3767
      %3792 = vmatpush.bf16.msra.mxu0 %v3766
      %3793 = vmatpush.bf16.msra.mxu0 %v3765
      %3794 = vmatmul.bf16.gmra.mxu0 %v3775
      %v3795 = vpop.f32.mrf.mxu0
      %v3796 = vadd.f32 %v3747, %v3795
      %v3797 = vpop.f32.mrf.mxu0
      %v3798 = vadd.f32 %v3747, %v3797
      %3799 = vmatmul.bf16.gmra.mxu0 %v3778
      %v3800 = vpop.f32.mrf.mxu0
      %v3801 = vadd.f32 %v3747, %v3800
      %v3802 = vpop.f32.mrf.mxu0
      %v3803 = vadd.f32 %v3747, %v3802
      %3804 = vmatmul.bf16.gmra.mxu0 %v3781
      %v3805 = vpop.f32.mrf.mxu0
      %v3806 = vadd.f32 %v3747, %v3805
      %v3807 = vpop.f32.mrf.mxu0
      %v3808 = vadd.f32 %v3747, %v3807
      %3809 = vmatmul.bf16.gmra.mxu0 %v3784
      %v3810 = vpop.f32.mrf.mxu0
      %v3811 = vadd.f32 %v3747, %v3810
      %v3812 = vpop.f32.mrf.mxu0
      %v3813 = vadd.f32 %v3747, %v3812
      %3814 = vdwg.mxu0
      %v3815 = vsub.f32 0.0, %v3796
      %v3816 = vsub.f32 0.0, %v3798
      %v3817 = vsub.f32 0.0, %v3801
      %v3818 = vsub.f32 0.0, %v3803
      %v3819 = vsub.f32 0.0, %v3806
      %v3820 = vsub.f32 0.0, %v3808
      %v3821 = vsub.f32 0.0, %v3811
      %v3822 = vsub.f32 0.0, %v3813
      %v3823 = vmul.f32 %v3815, 1.442695
      %v3824 = vpow.pop %v3823
      %v3825 = vmul.f32 %v3816, 1.442695
      %v3826 = vpow.pop %v3825
      %v3827 = vmul.f32 %v3817, 1.442695
      %v3828 = vpow.pop %v3827
      %v3829 = vmul.f32 %v3818, 1.442695
      %v3830 = vpow.pop %v3829
      %v3831 = vmul.f32 %v3819, 1.442695
      %v3832 = vpow.pop %v3831
      %v3833 = vmul.f32 %v3820, 1.442695
      %v3834 = vpow.pop %v3833
      %v3835 = vmul.f32 %v3821, 1.442695
      %v3836 = vpow.pop %v3835
      %v3837 = vmul.f32 %v3822, 1.442695
      %v3838 = vpow.pop %v3837
      %v3839 = vadd.f32 %v3824, 1.0
      %v3840 = vadd.f32 %v3826, 1.0
      %v3841 = vadd.f32 %v3828, 1.0
      %v3842 = vadd.f32 %v3830, 1.0
      %v3843 = vadd.f32 %v3832, 1.0
      %v3844 = vadd.f32 %v3834, 1.0
      %v3845 = vadd.f32 %v3836, 1.0
      %v3846 = vadd.f32 %v3838, 1.0
      %v3847 = vrcp.pop %v3839
      %v3848 = vrcp.pop %v3840
      %v3849 = vrcp.pop %v3841
      %v3850 = vrcp.pop %v3842
      %v3851 = vrcp.pop %v3843
      %v3852 = vrcp.pop %v3844
      %v3853 = vrcp.pop %v3845
      %v3854 = vrcp.pop %v3846
      %v3855 = vmul.f32 %v3796, %v3847
      %v3856 = vmul.f32 %v3798, %v3848
      %v3857 = vmul.f32 %v3801, %v3849
      %v3858 = vmul.f32 %v3803, %v3850
      %v3859 = vmul.f32 %v3806, %v3851
      %v3860 = vmul.f32 %v3808, %v3852
      %v3861 = vmul.f32 %v3811, %v3853
      %v3862 = vmul.f32 %v3813, %v3854
      %v3863 = vpack.c.bf16 %v3856, %v3855
      %v3864 = vpack.c.bf16 %v3858, %v3857
      %v3865 = vpack.c.bf16 %v3860, %v3859
      %v3866 = vpack.c.bf16 %v3862, %v3861
      %v3867 = vld [vmem:[%s8] sm:$0xff]
      %v3868 = vld [vmem:[%s8 + $0x8] sm:$0xff]
      %v3869 = vld [vmem:[%s7] sm:$0xff]
      %v3870 = vld [vmem:[%s7 + $0x8] sm:$0xff]
      %v3871 = vld [vmem:[%s7 + $0x10] sm:$0xff]
      %v3872 = vld [vmem:[%s7 + $0x18] sm:$0xff]
      %v3873 = vperm.slane %v3867, 0
      %v3874 = vperm.slane %v3868, 0
      %v3879 = vunpack.c.l.b16 %v3869
      %v3880 = vunpack.c.h.b16 %v3869
      %v3881 = vunpack.c.l.b16 %v3870
      %v3882 = vunpack.c.h.b16 %v3870
      %v3883 = vunpack.c.l.b16 %v3871
      %v3884 = vunpack.c.h.b16 %v3871
      %v3885 = vunpack.c.l.b16 %v3872
      %v3886 = vunpack.c.h.b16 %v3872
      %v3887 = vpack.c.b16 %v3881, %v3879
      %v3888 = vpack.c.b16 %v3882, %v3880
      %v3889 = vpack.c.b16 %v3885, %v3883
      %v3890 = vpack.c.b16 %v3886, %v3884
      %v3896 = vsel %vm3281, %v1701, 0
      %v3899 = vsel %vm3281, %v1702, 0
      %v3902 = vsel %vm3281, %v1703, 0
      %v3905 = vsel %vm3281, %v1704, 0
      %v3908 = vsel %vm3281, %v1705, 0
      %v3911 = vsel %vm3281, %v1706, 0
      %v3914 = vsel %vm3281, %v1707, 0
      %v3917 = vsel %vm3281, %v1708, 0
      %v3920 = vsel %vm3281, %v1709, 0
      %v3923 = vsel %vm3281, %v1710, 0
      %v3926 = vsel %vm3281, %v1711, 0
      %v3929 = vsel %vm3281, %v1712, 0
      %v3932 = vsel %vm3281, %v1713, 0
      %v3935 = vsel %vm3281, %v1714, 0
      %v3938 = vsel %vm3281, %v1715, 0
      %v3941 = vsel %vm3281, %v1716, 0
      %v3944 = vsel %vm3281, %v1717, 0
      %v3947 = vsel %vm3281, %v1718, 0
      %v3950 = vsel %vm3281, %v1719, 0
      %v3953 = vsel %vm3281, %v1720, 0
      %v3956 = vsel %vm3281, %v1721, 0
      %v3959 = vsel %vm3281, %v1722, 0
      %v3962 = vsel %vm3281, %v1723, 0
      %v3965 = vsel %vm3281, %v1724, 0
      %v3968 = vsel %vm3281, %v1725, 0
      %v3971 = vsel %vm3281, %v1726, 0
      %v3974 = vsel %vm3281, %v1727, 0
      %v3977 = vsel %vm3281, %v1728, 0
      %v3980 = vsel %vm3281, %v1729, 0
      %v3983 = vsel %vm3281, %v1730, 0
      %v3986 = vsel %vm3281, %v1731, 0
      %v3989 = vsel %vm3281, %v1732, 0
      %v3992 = vsel %vm3281, %v1733, 0
      %v3995 = vsel %vm3281, %v1734, 0
      %v3998 = vsel %vm3281, %v1735, 0
      %v4001 = vsel %vm3281, %v1736, 0
      %v4004 = vsel %vm3281, %v1737, 0
      %v4007 = vsel %vm3281, %v1738, 0
      %v4010 = vsel %vm3281, %v1739, 0
      %v4013 = vsel %vm3281, %v1740, 0
      %v4016 = vsel %vm3281, %v1741, 0
      %v4019 = vsel %vm3281, %v1742, 0
      %v4022 = vsel %vm3281, %v1743, 0
      %v4025 = vsel %vm3281, %v1744, 0
      %v4028 = vsel %vm3281, %v1745, 0
      %v4031 = vsel %vm3281, %v1746, 0
      %v4034 = vsel %vm3281, %v1747, 0
      %v4037 = vsel %vm3281, %v1748, 0
      %v4040 = vsel %vm3281, %v1749, 0
      %v4043 = vsel %vm3281, %v1750, 0
      %v4046 = vsel %vm3281, %v1751, 0
      %v4049 = vsel %vm3281, %v1752, 0
      %v4052 = vsel %vm3281, %v1753, 0
      %v4055 = vsel %vm3281, %v1754, 0
      %v4058 = vsel %vm3281, %v1755, 0
      %v4061 = vsel %vm3281, %v1756, 0
      %v4064 = vsel %vm3281, %v1757, 0
      %v4067 = vsel %vm3281, %v1758, 0
      %v4070 = vsel %vm3281, %v1759, 0
      %v4073 = vsel %vm3281, %v1760, 0
      %v4076 = vsel %vm3281, %v1761, 0
      %v4079 = vsel %vm3281, %v1762, 0
      %v4082 = vsel %vm3281, %v1763, 0
      %v4085 = vsel %vm3281, %v1764, 0
      %4087 = vmatpush.bf16.msra.mxu0 0
      %4088 = vmatpush.bf16.msra.mxu0 0
      %4089 = vmatpush.bf16.msra.mxu0 0
      %4090 = vmatpush.bf16.msra.mxu0 0
      %4091 = vmatpush.bf16.msra.mxu0 0
      %4092 = vmatpush.bf16.msra.mxu0 0
      %4093 = vmatpush.bf16.msra.mxu0 %v3889
      %4094 = vmatpush.bf16.msra.mxu0 %v3887
      %4095 = vmatmul.bf16.gmra.mxu0 %v3896
      %v4096 = vpop.f32.mrf.mxu0
      %v4097 = vadd.f32 %v3873, %v4096
      %v4098 = vpop.f32.mrf.mxu0
      %v4099 = vadd.f32 %v3873, %v4098
      %4100 = vmatmul.bf16.gmra.mxu0 %v3899
      %v4101 = vpop.f32.mrf.mxu0
      %v4102 = vadd.f32 %v3873, %v4101
      %v4103 = vpop.f32.mrf.mxu0
      %v4104 = vadd.f32 %v3873, %v4103
      %4105 = vmatmul.bf16.gmra.mxu0 %v3902
      %v4106 = vpop.f32.mrf.mxu0
      %v4107 = vadd.f32 %v3873, %v4106
      %v4108 = vpop.f32.mrf.mxu0
      %v4109 = vadd.f32 %v3873, %v4108
      %4110 = vmatmul.bf16.gmra.mxu0 %v3905
      %v4111 = vpop.f32.mrf.mxu0
      %v4112 = vadd.f32 %v3873, %v4111
      %v4113 = vpop.f32.mrf.mxu0
      %v4114 = vadd.f32 %v3873, %v4113
      %4115 = vmatmul.bf16.gmra.mxu0 %v3908
      %v4116 = vpop.f32.mrf.mxu0
      %v4117 = vadd.f32 %v3873, %v4116
      %v4118 = vpop.f32.mrf.mxu0
      %v4119 = vadd.f32 %v3873, %v4118
      %4120 = vmatmul.bf16.gmra.mxu0 %v3911
      %v4121 = vpop.f32.mrf.mxu0
      %v4122 = vadd.f32 %v3873, %v4121
      %v4123 = vpop.f32.mrf.mxu0
      %v4124 = vadd.f32 %v3873, %v4123
      %4125 = vmatmul.bf16.gmra.mxu0 %v3914
      %v4126 = vpop.f32.mrf.mxu0
      %v4127 = vadd.f32 %v3873, %v4126
      %v4128 = vpop.f32.mrf.mxu0
      %v4129 = vadd.f32 %v3873, %v4128
      %4130 = vmatmul.bf16.gmra.mxu0 %v3917
      %v4131 = vpop.f32.mrf.mxu0
      %v4132 = vadd.f32 %v3873, %v4131
      %v4133 = vpop.f32.mrf.mxu0
      %v4134 = vadd.f32 %v3873, %v4133
      %4135 = vmatmul.bf16.gmra.mxu0 %v3920
      %v4136 = vpop.f32.mrf.mxu0
      %v4137 = vadd.f32 %v3873, %v4136
      %v4138 = vpop.f32.mrf.mxu0
      %v4139 = vadd.f32 %v3873, %v4138
      %4140 = vmatmul.bf16.gmra.mxu0 %v3923
      %v4141 = vpop.f32.mrf.mxu0
      %v4142 = vadd.f32 %v3873, %v4141
      %v4143 = vpop.f32.mrf.mxu0
      %v4144 = vadd.f32 %v3873, %v4143
      %4145 = vmatmul.bf16.gmra.mxu0 %v3926
      %v4146 = vpop.f32.mrf.mxu0
      %v4147 = vadd.f32 %v3873, %v4146
      %v4148 = vpop.f32.mrf.mxu0
      %v4149 = vadd.f32 %v3873, %v4148
      %4150 = vmatmul.bf16.gmra.mxu0 %v3929
      %v4151 = vpop.f32.mrf.mxu0
      %v4152 = vadd.f32 %v3873, %v4151
      %v4153 = vpop.f32.mrf.mxu0
      %v4154 = vadd.f32 %v3873, %v4153
      %4155 = vmatmul.bf16.gmra.mxu0 %v3932
      %v4156 = vpop.f32.mrf.mxu0
      %v4157 = vadd.f32 %v3873, %v4156
      %v4158 = vpop.f32.mrf.mxu0
      %v4159 = vadd.f32 %v3873, %v4158
      %4160 = vmatmul.bf16.gmra.mxu0 %v3935
      %v4161 = vpop.f32.mrf.mxu0
      %v4162 = vadd.f32 %v3873, %v4161
      %v4163 = vpop.f32.mrf.mxu0
      %v4164 = vadd.f32 %v3873, %v4163
      %4165 = vmatmul.bf16.gmra.mxu0 %v3938
      %v4166 = vpop.f32.mrf.mxu0
      %v4167 = vadd.f32 %v3873, %v4166
      %v4168 = vpop.f32.mrf.mxu0
      %v4169 = vadd.f32 %v3873, %v4168
      %4170 = vmatmul.bf16.gmra.mxu0 %v3941
      %v4171 = vpop.f32.mrf.mxu0
      %v4172 = vadd.f32 %v3873, %v4171
      %v4173 = vpop.f32.mrf.mxu0
      %v4174 = vadd.f32 %v3873, %v4173
      %4175 = vmatmul.bf16.gmra.mxu0 %v3944
      %v4176 = vpop.f32.mrf.mxu0
      %v4177 = vadd.f32 %v3873, %v4176
      %v4178 = vpop.f32.mrf.mxu0
      %v4179 = vadd.f32 %v3873, %v4178
      %4180 = vmatmul.bf16.gmra.mxu0 %v3947
      %v4181 = vpop.f32.mrf.mxu0
      %v4182 = vadd.f32 %v3873, %v4181
      %v4183 = vpop.f32.mrf.mxu0
      %v4184 = vadd.f32 %v3873, %v4183
      %4185 = vmatmul.bf16.gmra.mxu0 %v3950
      %v4186 = vpop.f32.mrf.mxu0
      %v4187 = vadd.f32 %v3873, %v4186
      %v4188 = vpop.f32.mrf.mxu0
      %v4189 = vadd.f32 %v3873, %v4188
      %4190 = vmatmul.bf16.gmra.mxu0 %v3953
      %v4191 = vpop.f32.mrf.mxu0
      %v4192 = vadd.f32 %v3873, %v4191
      %v4193 = vpop.f32.mrf.mxu0
      %v4194 = vadd.f32 %v3873, %v4193
      %4195 = vmatmul.bf16.gmra.mxu0 %v3956
      %v4196 = vpop.f32.mrf.mxu0
      %v4197 = vadd.f32 %v3873, %v4196
      %v4198 = vpop.f32.mrf.mxu0
      %v4199 = vadd.f32 %v3873, %v4198
      %4200 = vmatmul.bf16.gmra.mxu0 %v3959
      %v4201 = vpop.f32.mrf.mxu0
      %v4202 = vadd.f32 %v3873, %v4201
      %v4203 = vpop.f32.mrf.mxu0
      %v4204 = vadd.f32 %v3873, %v4203
      %4205 = vmatmul.bf16.gmra.mxu0 %v3962
      %v4206 = vpop.f32.mrf.mxu0
      %v4207 = vadd.f32 %v3873, %v4206
      %v4208 = vpop.f32.mrf.mxu0
      %v4209 = vadd.f32 %v3873, %v4208
      %4210 = vmatmul.bf16.gmra.mxu0 %v3965
      %v4211 = vpop.f32.mrf.mxu0
      %v4212 = vadd.f32 %v3873, %v4211
      %v4213 = vpop.f32.mrf.mxu0
      %v4214 = vadd.f32 %v3873, %v4213
      %4215 = vmatmul.bf16.gmra.mxu0 %v3968
      %v4216 = vpop.f32.mrf.mxu0
      %v4217 = vadd.f32 %v3873, %v4216
      %v4218 = vpop.f32.mrf.mxu0
      %v4219 = vadd.f32 %v3873, %v4218
      %4220 = vmatmul.bf16.gmra.mxu0 %v3971
      %v4221 = vpop.f32.mrf.mxu0
      %v4222 = vadd.f32 %v3873, %v4221
      %v4223 = vpop.f32.mrf.mxu0
      %v4224 = vadd.f32 %v3873, %v4223
      %4225 = vmatmul.bf16.gmra.mxu0 %v3974
      %v4226 = vpop.f32.mrf.mxu0
      %v4227 = vadd.f32 %v3873, %v4226
      %v4228 = vpop.f32.mrf.mxu0
      %v4229 = vadd.f32 %v3873, %v4228
      %4230 = vmatmul.bf16.gmra.mxu0 %v3977
      %v4231 = vpop.f32.mrf.mxu0
      %v4232 = vadd.f32 %v3873, %v4231
      %v4233 = vpop.f32.mrf.mxu0
      %v4234 = vadd.f32 %v3873, %v4233
      %4235 = vmatmul.bf16.gmra.mxu0 %v3980
      %v4236 = vpop.f32.mrf.mxu0
      %v4237 = vadd.f32 %v3873, %v4236
      %v4238 = vpop.f32.mrf.mxu0
      %v4239 = vadd.f32 %v3873, %v4238
      %4240 = vmatmul.bf16.gmra.mxu0 %v3983
      %v4241 = vpop.f32.mrf.mxu0
      %v4242 = vadd.f32 %v3873, %v4241
      %v4243 = vpop.f32.mrf.mxu0
      %v4244 = vadd.f32 %v3873, %v4243
      %4245 = vmatmul.bf16.gmra.mxu0 %v3986
      %v4246 = vpop.f32.mrf.mxu0
      %v4247 = vadd.f32 %v3873, %v4246
      %v4248 = vpop.f32.mrf.mxu0
      %v4249 = vadd.f32 %v3873, %v4248
      %4250 = vmatmul.bf16.gmra.mxu0 %v3989
      %v4251 = vpop.f32.mrf.mxu0
      %v4252 = vadd.f32 %v3873, %v4251
      %v4253 = vpop.f32.mrf.mxu0
      %v4254 = vadd.f32 %v3873, %v4253
      %4255 = vmatmul.bf16.gmra.mxu0 %v3992
      %v4256 = vpop.f32.mrf.mxu0
      %v4257 = vadd.f32 %v3873, %v4256
      %v4258 = vpop.f32.mrf.mxu0
      %v4259 = vadd.f32 %v3873, %v4258
      %4260 = vmatmul.bf16.gmra.mxu0 %v3995
      %v4261 = vpop.f32.mrf.mxu0
      %v4262 = vadd.f32 %v3873, %v4261
      %v4263 = vpop.f32.mrf.mxu0
      %v4264 = vadd.f32 %v3873, %v4263
      %4265 = vmatmul.bf16.gmra.mxu0 %v3998
      %v4266 = vpop.f32.mrf.mxu0
      %v4267 = vadd.f32 %v3873, %v4266
      %v4268 = vpop.f32.mrf.mxu0
      %v4269 = vadd.f32 %v3873, %v4268
      %4270 = vmatmul.bf16.gmra.mxu0 %v4001
      %v4271 = vpop.f32.mrf.mxu0
      %v4272 = vadd.f32 %v3873, %v4271
      %v4273 = vpop.f32.mrf.mxu0
      %v4274 = vadd.f32 %v3873, %v4273
      %4275 = vmatmul.bf16.gmra.mxu0 %v4004
      %v4276 = vpop.f32.mrf.mxu0
      %v4277 = vadd.f32 %v3873, %v4276
      %v4278 = vpop.f32.mrf.mxu0
      %v4279 = vadd.f32 %v3873, %v4278
      %4280 = vmatmul.bf16.gmra.mxu0 %v4007
      %v4281 = vpop.f32.mrf.mxu0
      %v4282 = vadd.f32 %v3873, %v4281
      %v4283 = vpop.f32.mrf.mxu0
      %v4284 = vadd.f32 %v3873, %v4283
      %4285 = vmatmul.bf16.gmra.mxu0 %v4010
      %v4286 = vpop.f32.mrf.mxu0
      %v4287 = vadd.f32 %v3873, %v4286
      %v4288 = vpop.f32.mrf.mxu0
      %v4289 = vadd.f32 %v3873, %v4288
      %4290 = vmatmul.bf16.gmra.mxu0 %v4013
      %v4291 = vpop.f32.mrf.mxu0
      %v4292 = vadd.f32 %v3873, %v4291
      %v4293 = vpop.f32.mrf.mxu0
      %v4294 = vadd.f32 %v3873, %v4293
      %4295 = vmatmul.bf16.gmra.mxu0 %v4016
      %v4296 = vpop.f32.mrf.mxu0
      %v4297 = vadd.f32 %v3873, %v4296
      %v4298 = vpop.f32.mrf.mxu0
      %v4299 = vadd.f32 %v3873, %v4298
      %4300 = vmatmul.bf16.gmra.mxu0 %v4019
      %v4301 = vpop.f32.mrf.mxu0
      %v4302 = vadd.f32 %v3873, %v4301
      %v4303 = vpop.f32.mrf.mxu0
      %v4304 = vadd.f32 %v3873, %v4303
      %4305 = vmatmul.bf16.gmra.mxu0 %v4022
      %v4306 = vpop.f32.mrf.mxu0
      %v4307 = vadd.f32 %v3873, %v4306
      %v4308 = vpop.f32.mrf.mxu0
      %v4309 = vadd.f32 %v3873, %v4308
      %4310 = vmatmul.bf16.gmra.mxu0 %v4025
      %v4311 = vpop.f32.mrf.mxu0
      %v4312 = vadd.f32 %v3873, %v4311
      %v4313 = vpop.f32.mrf.mxu0
      %v4314 = vadd.f32 %v3873, %v4313
      %4315 = vmatmul.bf16.gmra.mxu0 %v4028
      %v4316 = vpop.f32.mrf.mxu0
      %v4317 = vadd.f32 %v3873, %v4316
      %v4318 = vpop.f32.mrf.mxu0
      %v4319 = vadd.f32 %v3873, %v4318
      %4320 = vmatmul.bf16.gmra.mxu0 %v4031
      %v4321 = vpop.f32.mrf.mxu0
      %v4322 = vadd.f32 %v3873, %v4321
      %v4323 = vpop.f32.mrf.mxu0
      %v4324 = vadd.f32 %v3873, %v4323
      %4325 = vmatmul.bf16.gmra.mxu0 %v4034
      %v4326 = vpop.f32.mrf.mxu0
      %v4327 = vadd.f32 %v3873, %v4326
      %v4328 = vpop.f32.mrf.mxu0
      %v4329 = vadd.f32 %v3873, %v4328
      %4330 = vmatmul.bf16.gmra.mxu0 %v4037
      %v4331 = vpop.f32.mrf.mxu0
      %v4332 = vadd.f32 %v3873, %v4331
      %v4333 = vpop.f32.mrf.mxu0
      %v4334 = vadd.f32 %v3873, %v4333
      %4335 = vmatmul.bf16.gmra.mxu0 %v4040
      %v4336 = vpop.f32.mrf.mxu0
      %v4337 = vadd.f32 %v3873, %v4336
      %v4338 = vpop.f32.mrf.mxu0
      %v4339 = vadd.f32 %v3873, %v4338
      %4340 = vmatmul.bf16.gmra.mxu0 %v4043
      %v4341 = vpop.f32.mrf.mxu0
      %v4342 = vadd.f32 %v3873, %v4341
      %v4343 = vpop.f32.mrf.mxu0
      %v4344 = vadd.f32 %v3873, %v4343
      %4345 = vmatmul.bf16.gmra.mxu0 %v4046
      %v4346 = vpop.f32.mrf.mxu0
      %v4347 = vadd.f32 %v3873, %v4346
      %v4348 = vpop.f32.mrf.mxu0
      %v4349 = vadd.f32 %v3873, %v4348
      %4350 = vmatmul.bf16.gmra.mxu0 %v4049
      %v4351 = vpop.f32.mrf.mxu0
      %v4352 = vadd.f32 %v3873, %v4351
      %v4353 = vpop.f32.mrf.mxu0
      %v4354 = vadd.f32 %v3873, %v4353
      %4355 = vmatmul.bf16.gmra.mxu0 %v4052
      %v4356 = vpop.f32.mrf.mxu0
      %v4357 = vadd.f32 %v3873, %v4356
      %v4358 = vpop.f32.mrf.mxu0
      %v4359 = vadd.f32 %v3873, %v4358
      %4360 = vmatmul.bf16.gmra.mxu0 %v4055
      %v4361 = vpop.f32.mrf.mxu0
      %v4362 = vadd.f32 %v3873, %v4361
      %v4363 = vpop.f32.mrf.mxu0
      %v4364 = vadd.f32 %v3873, %v4363
      %4365 = vmatmul.bf16.gmra.mxu0 %v4058
      %v4366 = vpop.f32.mrf.mxu0
      %v4367 = vadd.f32 %v3873, %v4366
      %v4368 = vpop.f32.mrf.mxu0
      %v4369 = vadd.f32 %v3873, %v4368
      %4370 = vmatmul.bf16.gmra.mxu0 %v4061
      %v4371 = vpop.f32.mrf.mxu0
      %v4372 = vadd.f32 %v3873, %v4371
      %v4373 = vpop.f32.mrf.mxu0
      %v4374 = vadd.f32 %v3873, %v4373
      %4375 = vmatmul.bf16.gmra.mxu0 %v4064
      %v4376 = vpop.f32.mrf.mxu0
      %v4377 = vadd.f32 %v3873, %v4376
      %v4378 = vpop.f32.mrf.mxu0
      %v4379 = vadd.f32 %v3873, %v4378
      %4380 = vmatmul.bf16.gmra.mxu0 %v4067
      %v4381 = vpop.f32.mrf.mxu0
      %v4382 = vadd.f32 %v3873, %v4381
      %v4383 = vpop.f32.mrf.mxu0
      %v4384 = vadd.f32 %v3873, %v4383
      %4385 = vmatmul.bf16.gmra.mxu0 %v4070
      %v4386 = vpop.f32.mrf.mxu0
      %v4387 = vadd.f32 %v3873, %v4386
      %v4388 = vpop.f32.mrf.mxu0
      %v4389 = vadd.f32 %v3873, %v4388
      %4390 = vmatmul.bf16.gmra.mxu0 %v4073
      %v4391 = vpop.f32.mrf.mxu0
      %v4392 = vadd.f32 %v3873, %v4391
      %v4393 = vpop.f32.mrf.mxu0
      %v4394 = vadd.f32 %v3873, %v4393
      %4395 = vmatmul.bf16.gmra.mxu0 %v4076
      %v4396 = vpop.f32.mrf.mxu0
      %v4397 = vadd.f32 %v3873, %v4396
      %v4398 = vpop.f32.mrf.mxu0
      %v4399 = vadd.f32 %v3873, %v4398
      %4400 = vmatmul.bf16.gmra.mxu0 %v4079
      %v4401 = vpop.f32.mrf.mxu0
      %v4402 = vadd.f32 %v3873, %v4401
      %v4403 = vpop.f32.mrf.mxu0
      %v4404 = vadd.f32 %v3873, %v4403
      %4405 = vmatmul.bf16.gmra.mxu0 %v4082
      %v4406 = vpop.f32.mrf.mxu0
      %v4407 = vadd.f32 %v3873, %v4406
      %v4408 = vpop.f32.mrf.mxu0
      %v4409 = vadd.f32 %v3873, %v4408
      %4410 = vmatmul.bf16.gmra.mxu0 %v4085
      %v4411 = vpop.f32.mrf.mxu0
      %v4412 = vadd.f32 %v3873, %v4411
      %v4413 = vpop.f32.mrf.mxu0
      %v4414 = vadd.f32 %v3873, %v4413
      %4415 = vdwg.mxu0
      %4416 = vmatpush.bf16.msra.mxu0 0
      %4417 = vmatpush.bf16.msra.mxu0 0
      %4418 = vmatpush.bf16.msra.mxu0 0
      %4419 = vmatpush.bf16.msra.mxu0 0
      %4420 = vmatpush.bf16.msra.mxu0 0
      %4421 = vmatpush.bf16.msra.mxu0 0
      %4422 = vmatpush.bf16.msra.mxu0 %v3890
      %4423 = vmatpush.bf16.msra.mxu0 %v3888
      %4424 = vmatmul.bf16.gmra.mxu0 %v3896
      %v4425 = vpop.f32.mrf.mxu0
      %v4426 = vadd.f32 %v3874, %v4425
      %v4427 = vpop.f32.mrf.mxu0
      %v4428 = vadd.f32 %v3874, %v4427
      %4429 = vmatmul.bf16.gmra.mxu0 %v3899
      %v4430 = vpop.f32.mrf.mxu0
      %v4431 = vadd.f32 %v3874, %v4430
      %v4432 = vpop.f32.mrf.mxu0
      %v4433 = vadd.f32 %v3874, %v4432
      %4434 = vmatmul.bf16.gmra.mxu0 %v3902
      %v4435 = vpop.f32.mrf.mxu0
      %v4436 = vadd.f32 %v3874, %v4435
      %v4437 = vpop.f32.mrf.mxu0
      %v4438 = vadd.f32 %v3874, %v4437
      %4439 = vmatmul.bf16.gmra.mxu0 %v3905
      %v4440 = vpop.f32.mrf.mxu0
      %v4441 = vadd.f32 %v3874, %v4440
      %v4442 = vpop.f32.mrf.mxu0
      %v4443 = vadd.f32 %v3874, %v4442
      %4444 = vmatmul.bf16.gmra.mxu0 %v3908
      %v4445 = vpop.f32.mrf.mxu0
      %v4446 = vadd.f32 %v3874, %v4445
      %v4447 = vpop.f32.mrf.mxu0
      %v4448 = vadd.f32 %v3874, %v4447
      %4449 = vmatmul.bf16.gmra.mxu0 %v3911
      %v4450 = vpop.f32.mrf.mxu0
      %v4451 = vadd.f32 %v3874, %v4450
      %v4452 = vpop.f32.mrf.mxu0
      %v4453 = vadd.f32 %v3874, %v4452
      %4454 = vmatmul.bf16.gmra.mxu0 %v3914
      %v4455 = vpop.f32.mrf.mxu0
      %v4456 = vadd.f32 %v3874, %v4455
      %v4457 = vpop.f32.mrf.mxu0
      %v4458 = vadd.f32 %v3874, %v4457
      %4459 = vmatmul.bf16.gmra.mxu0 %v3917
      %v4460 = vpop.f32.mrf.mxu0
      %v4461 = vadd.f32 %v3874, %v4460
      %v4462 = vpop.f32.mrf.mxu0
      %v4463 = vadd.f32 %v3874, %v4462
      %4464 = vmatmul.bf16.gmra.mxu0 %v3920
      %v4465 = vpop.f32.mrf.mxu0
      %v4466 = vadd.f32 %v3874, %v4465
      %v4467 = vpop.f32.mrf.mxu0
      %v4468 = vadd.f32 %v3874, %v4467
      %4469 = vmatmul.bf16.gmra.mxu0 %v3923
      %v4470 = vpop.f32.mrf.mxu0
      %v4471 = vadd.f32 %v3874, %v4470
      %v4472 = vpop.f32.mrf.mxu0
      %v4473 = vadd.f32 %v3874, %v4472
      %4474 = vmatmul.bf16.gmra.mxu0 %v3926
      %v4475 = vpop.f32.mrf.mxu0
      %v4476 = vadd.f32 %v3874, %v4475
      %v4477 = vpop.f32.mrf.mxu0
      %v4478 = vadd.f32 %v3874, %v4477
      %4479 = vmatmul.bf16.gmra.mxu0 %v3929
      %v4480 = vpop.f32.mrf.mxu0
      %v4481 = vadd.f32 %v3874, %v4480
      %v4482 = vpop.f32.mrf.mxu0
      %v4483 = vadd.f32 %v3874, %v4482
      %4484 = vmatmul.bf16.gmra.mxu0 %v3932
      %v4485 = vpop.f32.mrf.mxu0
      %v4486 = vadd.f32 %v3874, %v4485
      %v4487 = vpop.f32.mrf.mxu0
      %v4488 = vadd.f32 %v3874, %v4487
      %4489 = vmatmul.bf16.gmra.mxu0 %v3935
      %v4490 = vpop.f32.mrf.mxu0
      %v4491 = vadd.f32 %v3874, %v4490
      %v4492 = vpop.f32.mrf.mxu0
      %v4493 = vadd.f32 %v3874, %v4492
      %4494 = vmatmul.bf16.gmra.mxu0 %v3938
      %v4495 = vpop.f32.mrf.mxu0
      %v4496 = vadd.f32 %v3874, %v4495
      %v4497 = vpop.f32.mrf.mxu0
      %v4498 = vadd.f32 %v3874, %v4497
      %4499 = vmatmul.bf16.gmra.mxu0 %v3941
      %v4500 = vpop.f32.mrf.mxu0
      %v4501 = vadd.f32 %v3874, %v4500
      %v4502 = vpop.f32.mrf.mxu0
      %v4503 = vadd.f32 %v3874, %v4502
      %4504 = vmatmul.bf16.gmra.mxu0 %v3944
      %v4505 = vpop.f32.mrf.mxu0
      %v4506 = vadd.f32 %v3874, %v4505
      %v4507 = vpop.f32.mrf.mxu0
      %v4508 = vadd.f32 %v3874, %v4507
      %4509 = vmatmul.bf16.gmra.mxu0 %v3947
      %v4510 = vpop.f32.mrf.mxu0
      %v4511 = vadd.f32 %v3874, %v4510
      %v4512 = vpop.f32.mrf.mxu0
      %v4513 = vadd.f32 %v3874, %v4512
      %4514 = vmatmul.bf16.gmra.mxu0 %v3950
      %v4515 = vpop.f32.mrf.mxu0
      %v4516 = vadd.f32 %v3874, %v4515
      %v4517 = vpop.f32.mrf.mxu0
      %v4518 = vadd.f32 %v3874, %v4517
      %4519 = vmatmul.bf16.gmra.mxu0 %v3953
      %v4520 = vpop.f32.mrf.mxu0
      %v4521 = vadd.f32 %v3874, %v4520
      %v4522 = vpop.f32.mrf.mxu0
      %v4523 = vadd.f32 %v3874, %v4522
      %4524 = vmatmul.bf16.gmra.mxu0 %v3956
      %v4525 = vpop.f32.mrf.mxu0
      %v4526 = vadd.f32 %v3874, %v4525
      %v4527 = vpop.f32.mrf.mxu0
      %v4528 = vadd.f32 %v3874, %v4527
      %4529 = vmatmul.bf16.gmra.mxu0 %v3959
      %v4530 = vpop.f32.mrf.mxu0
      %v4531 = vadd.f32 %v3874, %v4530
      %v4532 = vpop.f32.mrf.mxu0
      %v4533 = vadd.f32 %v3874, %v4532
      %4534 = vmatmul.bf16.gmra.mxu0 %v3962
      %v4535 = vpop.f32.mrf.mxu0
      %v4536 = vadd.f32 %v3874, %v4535
      %v4537 = vpop.f32.mrf.mxu0
      %v4538 = vadd.f32 %v3874, %v4537
      %4539 = vmatmul.bf16.gmra.mxu0 %v3965
      %v4540 = vpop.f32.mrf.mxu0
      %v4541 = vadd.f32 %v3874, %v4540
      %v4542 = vpop.f32.mrf.mxu0
      %v4543 = vadd.f32 %v3874, %v4542
      %4544 = vmatmul.bf16.gmra.mxu0 %v3968
      %v4545 = vpop.f32.mrf.mxu0
      %v4546 = vadd.f32 %v3874, %v4545
      %v4547 = vpop.f32.mrf.mxu0
      %v4548 = vadd.f32 %v3874, %v4547
      %4549 = vmatmul.bf16.gmra.mxu0 %v3971
      %v4550 = vpop.f32.mrf.mxu0
      %v4551 = vadd.f32 %v3874, %v4550
      %v4552 = vpop.f32.mrf.mxu0
      %v4553 = vadd.f32 %v3874, %v4552
      %4554 = vmatmul.bf16.gmra.mxu0 %v3974
      %v4555 = vpop.f32.mrf.mxu0
      %v4556 = vadd.f32 %v3874, %v4555
      %v4557 = vpop.f32.mrf.mxu0
      %v4558 = vadd.f32 %v3874, %v4557
      %4559 = vmatmul.bf16.gmra.mxu0 %v3977
      %v4560 = vpop.f32.mrf.mxu0
      %v4561 = vadd.f32 %v3874, %v4560
      %v4562 = vpop.f32.mrf.mxu0
      %v4563 = vadd.f32 %v3874, %v4562
      %4564 = vmatmul.bf16.gmra.mxu0 %v3980
      %v4565 = vpop.f32.mrf.mxu0
      %v4566 = vadd.f32 %v3874, %v4565
      %v4567 = vpop.f32.mrf.mxu0
      %v4568 = vadd.f32 %v3874, %v4567
      %4569 = vmatmul.bf16.gmra.mxu0 %v3983
      %v4570 = vpop.f32.mrf.mxu0
      %v4571 = vadd.f32 %v3874, %v4570
      %v4572 = vpop.f32.mrf.mxu0
      %v4573 = vadd.f32 %v3874, %v4572
      %4574 = vmatmul.bf16.gmra.mxu0 %v3986
      %v4575 = vpop.f32.mrf.mxu0
      %v4576 = vadd.f32 %v3874, %v4575
      %v4577 = vpop.f32.mrf.mxu0
      %v4578 = vadd.f32 %v3874, %v4577
      %4579 = vmatmul.bf16.gmra.mxu0 %v3989
      %v4580 = vpop.f32.mrf.mxu0
      %v4581 = vadd.f32 %v3874, %v4580
      %v4582 = vpop.f32.mrf.mxu0
      %v4583 = vadd.f32 %v3874, %v4582
      %4584 = vmatmul.bf16.gmra.mxu0 %v3992
      %v4585 = vpop.f32.mrf.mxu0
      %v4586 = vadd.f32 %v3874, %v4585
      %v4587 = vpop.f32.mrf.mxu0
      %v4588 = vadd.f32 %v3874, %v4587
      %4589 = vmatmul.bf16.gmra.mxu0 %v3995
      %v4590 = vpop.f32.mrf.mxu0
      %v4591 = vadd.f32 %v3874, %v4590
      %v4592 = vpop.f32.mrf.mxu0
      %v4593 = vadd.f32 %v3874, %v4592
      %4594 = vmatmul.bf16.gmra.mxu0 %v3998
      %v4595 = vpop.f32.mrf.mxu0
      %v4596 = vadd.f32 %v3874, %v4595
      %v4597 = vpop.f32.mrf.mxu0
      %v4598 = vadd.f32 %v3874, %v4597
      %4599 = vmatmul.bf16.gmra.mxu0 %v4001
      %v4600 = vpop.f32.mrf.mxu0
      %v4601 = vadd.f32 %v3874, %v4600
      %v4602 = vpop.f32.mrf.mxu0
      %v4603 = vadd.f32 %v3874, %v4602
      %4604 = vmatmul.bf16.gmra.mxu0 %v4004
      %v4605 = vpop.f32.mrf.mxu0
      %v4606 = vadd.f32 %v3874, %v4605
      %v4607 = vpop.f32.mrf.mxu0
      %v4608 = vadd.f32 %v3874, %v4607
      %4609 = vmatmul.bf16.gmra.mxu0 %v4007
      %v4610 = vpop.f32.mrf.mxu0
      %v4611 = vadd.f32 %v3874, %v4610
      %v4612 = vpop.f32.mrf.mxu0
      %v4613 = vadd.f32 %v3874, %v4612
      %4614 = vmatmul.bf16.gmra.mxu0 %v4010
      %v4615 = vpop.f32.mrf.mxu0
      %v4616 = vadd.f32 %v3874, %v4615
      %v4617 = vpop.f32.mrf.mxu0
      %v4618 = vadd.f32 %v3874, %v4617
      %4619 = vmatmul.bf16.gmra.mxu0 %v4013
      %v4620 = vpop.f32.mrf.mxu0
      %v4621 = vadd.f32 %v3874, %v4620
      %v4622 = vpop.f32.mrf.mxu0
      %v4623 = vadd.f32 %v3874, %v4622
      %4624 = vmatmul.bf16.gmra.mxu0 %v4016
      %v4625 = vpop.f32.mrf.mxu0
      %v4626 = vadd.f32 %v3874, %v4625
      %v4627 = vpop.f32.mrf.mxu0
      %v4628 = vadd.f32 %v3874, %v4627
      %4629 = vmatmul.bf16.gmra.mxu0 %v4019
      %v4630 = vpop.f32.mrf.mxu0
      %v4631 = vadd.f32 %v3874, %v4630
      %v4632 = vpop.f32.mrf.mxu0
      %v4633 = vadd.f32 %v3874, %v4632
      %4634 = vmatmul.bf16.gmra.mxu0 %v4022
      %v4635 = vpop.f32.mrf.mxu0
      %v4636 = vadd.f32 %v3874, %v4635
      %v4637 = vpop.f32.mrf.mxu0
      %v4638 = vadd.f32 %v3874, %v4637
      %4639 = vmatmul.bf16.gmra.mxu0 %v4025
      %v4640 = vpop.f32.mrf.mxu0
      %v4641 = vadd.f32 %v3874, %v4640
      %v4642 = vpop.f32.mrf.mxu0
      %v4643 = vadd.f32 %v3874, %v4642
      %4644 = vmatmul.bf16.gmra.mxu0 %v4028
      %v4645 = vpop.f32.mrf.mxu0
      %v4646 = vadd.f32 %v3874, %v4645
      %v4647 = vpop.f32.mrf.mxu0
      %v4648 = vadd.f32 %v3874, %v4647
      %4649 = vmatmul.bf16.gmra.mxu0 %v4031
      %v4650 = vpop.f32.mrf.mxu0
      %v4651 = vadd.f32 %v3874, %v4650
      %v4652 = vpop.f32.mrf.mxu0
      %v4653 = vadd.f32 %v3874, %v4652
      %4654 = vmatmul.bf16.gmra.mxu0 %v4034
      %v4655 = vpop.f32.mrf.mxu0
      %v4656 = vadd.f32 %v3874, %v4655
      %v4657 = vpop.f32.mrf.mxu0
      %v4658 = vadd.f32 %v3874, %v4657
      %4659 = vmatmul.bf16.gmra.mxu0 %v4037
      %v4660 = vpop.f32.mrf.mxu0
      %v4661 = vadd.f32 %v3874, %v4660
      %v4662 = vpop.f32.mrf.mxu0
      %v4663 = vadd.f32 %v3874, %v4662
      %4664 = vmatmul.bf16.gmra.mxu0 %v4040
      %v4665 = vpop.f32.mrf.mxu0
      %v4666 = vadd.f32 %v3874, %v4665
      %v4667 = vpop.f32.mrf.mxu0
      %v4668 = vadd.f32 %v3874, %v4667
      %4669 = vmatmul.bf16.gmra.mxu0 %v4043
      %v4670 = vpop.f32.mrf.mxu0
      %v4671 = vadd.f32 %v3874, %v4670
      %v4672 = vpop.f32.mrf.mxu0
      %v4673 = vadd.f32 %v3874, %v4672
      %4674 = vmatmul.bf16.gmra.mxu0 %v4046
      %v4675 = vpop.f32.mrf.mxu0
      %v4676 = vadd.f32 %v3874, %v4675
      %v4677 = vpop.f32.mrf.mxu0
      %v4678 = vadd.f32 %v3874, %v4677
      %4679 = vmatmul.bf16.gmra.mxu0 %v4049
      %v4680 = vpop.f32.mrf.mxu0
      %v4681 = vadd.f32 %v3874, %v4680
      %v4682 = vpop.f32.mrf.mxu0
      %v4683 = vadd.f32 %v3874, %v4682
      %4684 = vmatmul.bf16.gmra.mxu0 %v4052
      %v4685 = vpop.f32.mrf.mxu0
      %v4686 = vadd.f32 %v3874, %v4685
      %v4687 = vpop.f32.mrf.mxu0
      %v4688 = vadd.f32 %v3874, %v4687
      %4689 = vmatmul.bf16.gmra.mxu0 %v4055
      %v4690 = vpop.f32.mrf.mxu0
      %v4691 = vadd.f32 %v3874, %v4690
      %v4692 = vpop.f32.mrf.mxu0
      %v4693 = vadd.f32 %v3874, %v4692
      %4694 = vmatmul.bf16.gmra.mxu0 %v4058
      %v4695 = vpop.f32.mrf.mxu0
      %v4696 = vadd.f32 %v3874, %v4695
      %v4697 = vpop.f32.mrf.mxu0
      %v4698 = vadd.f32 %v3874, %v4697
      %4699 = vmatmul.bf16.gmra.mxu0 %v4061
      %v4700 = vpop.f32.mrf.mxu0
      %v4701 = vadd.f32 %v3874, %v4700
      %v4702 = vpop.f32.mrf.mxu0
      %v4703 = vadd.f32 %v3874, %v4702
      %4704 = vmatmul.bf16.gmra.mxu0 %v4064
      %v4705 = vpop.f32.mrf.mxu0
      %v4706 = vadd.f32 %v3874, %v4705
      %v4707 = vpop.f32.mrf.mxu0
      %v4708 = vadd.f32 %v3874, %v4707
      %4709 = vmatmul.bf16.gmra.mxu0 %v4067
      %v4710 = vpop.f32.mrf.mxu0
      %v4711 = vadd.f32 %v3874, %v4710
      %v4712 = vpop.f32.mrf.mxu0
      %v4713 = vadd.f32 %v3874, %v4712
      %4714 = vmatmul.bf16.gmra.mxu0 %v4070
      %v4715 = vpop.f32.mrf.mxu0
      %v4716 = vadd.f32 %v3874, %v4715
      %v4717 = vpop.f32.mrf.mxu0
      %v4718 = vadd.f32 %v3874, %v4717
      %4719 = vmatmul.bf16.gmra.mxu0 %v4073
      %v4720 = vpop.f32.mrf.mxu0
      %v4721 = vadd.f32 %v3874, %v4720
      %v4722 = vpop.f32.mrf.mxu0
      %v4723 = vadd.f32 %v3874, %v4722
      %4724 = vmatmul.bf16.gmra.mxu0 %v4076
      %v4725 = vpop.f32.mrf.mxu0
      %v4726 = vadd.f32 %v3874, %v4725
      %v4727 = vpop.f32.mrf.mxu0
      %v4728 = vadd.f32 %v3874, %v4727
      %4729 = vmatmul.bf16.gmra.mxu0 %v4079
      %v4730 = vpop.f32.mrf.mxu0
      %v4731 = vadd.f32 %v3874, %v4730
      %v4732 = vpop.f32.mrf.mxu0
      %v4733 = vadd.f32 %v3874, %v4732
      %4734 = vmatmul.bf16.gmra.mxu0 %v4082
      %v4735 = vpop.f32.mrf.mxu0
      %v4736 = vadd.f32 %v3874, %v4735
      %v4737 = vpop.f32.mrf.mxu0
      %v4738 = vadd.f32 %v3874, %v4737
      %4739 = vmatmul.bf16.gmra.mxu0 %v4085
      %v4740 = vpop.f32.mrf.mxu0
      %v4741 = vadd.f32 %v3874, %v4740
      %v4742 = vpop.f32.mrf.mxu0
      %v4743 = vadd.f32 %v3874, %v4742
      %4744 = vdwg.mxu0
      %4745 = vst [vmem:[%s767] sm:$0xff] %v4097
      %4746 = vst [vmem:[%s767 + $0x8] sm:$0xff] %v4426
      %4747 = vst [vmem:[%s767 + $0x10] sm:$0xff] %v4099
      %4748 = vst [vmem:[%s767 + $0x18] sm:$0xff] %v4428
      %4749 = vst [vmem:[%s767 + $0x20] sm:$0xff] %v4102
      %4750 = vst [vmem:[%s767 + $0x28] sm:$0xff] %v4431
      %4751 = vst [vmem:[%s767 + $0x30] sm:$0xff] %v4104
      %4752 = vst [vmem:[%s767 + $0x38] sm:$0xff] %v4433
      %4753 = vst [vmem:[%s767 + $0x40] sm:$0xff] %v4107
      %4754 = vst [vmem:[%s767 + $0x48] sm:$0xff] %v4436
      %4755 = vst [vmem:[%s767 + $0x50] sm:$0xff] %v4109
      %4756 = vst [vmem:[%s767 + $0x58] sm:$0xff] %v4438
      %4757 = vst [vmem:[%s767 + $0x60] sm:$0xff] %v4112
      %4758 = vst [vmem:[%s767 + $0x68] sm:$0xff] %v4441
      %4759 = vst [vmem:[%s767 + $0x70] sm:$0xff] %v4114
      %4760 = vst [vmem:[%s767 + $0x78] sm:$0xff] %v4443
      %4761 = vst [vmem:[%s767 + $0x80] sm:$0xff] %v4117
      %4762 = vst [vmem:[%s767 + $0x88] sm:$0xff] %v4446
      %4763 = vst [vmem:[%s767 + $0x90] sm:$0xff] %v4119
      %4764 = vst [vmem:[%s767 + $0x98] sm:$0xff] %v4448
      %4765 = vst [vmem:[%s767 + $0xa0] sm:$0xff] %v4122
      %4766 = vst [vmem:[%s767 + $0xa8] sm:$0xff] %v4451
      %4767 = vst [vmem:[%s767 + $0xb0] sm:$0xff] %v4124
      %4768 = vst [vmem:[%s767 + $0xb8] sm:$0xff] %v4453
      %4769 = vst [vmem:[%s767 + $0xc0] sm:$0xff] %v4127
      %4770 = vst [vmem:[%s767 + $0xc8] sm:$0xff] %v4456
      %4771 = vst [vmem:[%s767 + $0xd0] sm:$0xff] %v4129
      %4772 = vst [vmem:[%s767 + $0xd8] sm:$0xff] %v4458
      %4773 = vst [vmem:[%s767 + $0xe0] sm:$0xff] %v4132
      %4774 = vst [vmem:[%s767 + $0xe8] sm:$0xff] %v4461
      %4775 = vst [vmem:[%s767 + $0xf0] sm:$0xff] %v4134
      %4776 = vst [vmem:[%s767 + $0xf8] sm:$0xff] %v4463
      %4777 = vst [vmem:[%s767 + $0x100] sm:$0xff] %v4137
      %4778 = vst [vmem:[%s767 + $0x108] sm:$0xff] %v4466
      %4779 = vst [vmem:[%s767 + $0x110] sm:$0xff] %v4139
      %4780 = vst [vmem:[%s767 + $0x118] sm:$0xff] %v4468
      %4781 = vst [vmem:[%s767 + $0x120] sm:$0xff] %v4142
      %4782 = vst [vmem:[%s767 + $0x128] sm:$0xff] %v4471
      %4783 = vst [vmem:[%s767 + $0x130] sm:$0xff] %v4144
      %4784 = vst [vmem:[%s767 + $0x138] sm:$0xff] %v4473
      %4785 = vst [vmem:[%s767 + $0x140] sm:$0xff] %v4147
      %4786 = vst [vmem:[%s767 + $0x148] sm:$0xff] %v4476
      %4787 = vst [vmem:[%s767 + $0x150] sm:$0xff] %v4149
      %4788 = vst [vmem:[%s767 + $0x158] sm:$0xff] %v4478
      %4789 = vst [vmem:[%s767 + $0x160] sm:$0xff] %v4152
      %4790 = vst [vmem:[%s767 + $0x168] sm:$0xff] %v4481
      %4791 = vst [vmem:[%s767 + $0x170] sm:$0xff] %v4154
      %4792 = vst [vmem:[%s767 + $0x178] sm:$0xff] %v4483
      %4793 = vst [vmem:[%s767 + $0x180] sm:$0xff] %v4157
      %4794 = vst [vmem:[%s767 + $0x188] sm:$0xff] %v4486
      %4795 = vst [vmem:[%s767 + $0x190] sm:$0xff] %v4159
      %4796 = vst [vmem:[%s767 + $0x198] sm:$0xff] %v4488
      %4797 = vst [vmem:[%s767 + $0x1a0] sm:$0xff] %v4162
      %4798 = vst [vmem:[%s767 + $0x1a8] sm:$0xff] %v4491
      %4799 = vst [vmem:[%s767 + $0x1b0] sm:$0xff] %v4164
      %4800 = vst [vmem:[%s767 + $0x1b8] sm:$0xff] %v4493
      %4801 = vst [vmem:[%s767 + $0x1c0] sm:$0xff] %v4167
      %4802 = vst [vmem:[%s767 + $0x1c8] sm:$0xff] %v4496
      %4803 = vst [vmem:[%s767 + $0x1d0] sm:$0xff] %v4169
      %4804 = vst [vmem:[%s767 + $0x1d8] sm:$0xff] %v4498
      %4805 = vst [vmem:[%s767 + $0x1e0] sm:$0xff] %v4172
      %4806 = vst [vmem:[%s767 + $0x1e8] sm:$0xff] %v4501
      %4807 = vst [vmem:[%s767 + $0x1f0] sm:$0xff] %v4174
      %4808 = vst [vmem:[%s767 + $0x1f8] sm:$0xff] %v4503
      %4809 = vst [vmem:[%s767 + $0x200] sm:$0xff] %v4177
      %4810 = vst [vmem:[%s767 + $0x208] sm:$0xff] %v4506
      %4811 = vst [vmem:[%s767 + $0x210] sm:$0xff] %v4179
      %4812 = vst [vmem:[%s767 + $0x218] sm:$0xff] %v4508
      %4813 = vst [vmem:[%s767 + $0x220] sm:$0xff] %v4182
      %4814 = vst [vmem:[%s767 + $0x228] sm:$0xff] %v4511
      %4815 = vst [vmem:[%s767 + $0x230] sm:$0xff] %v4184
      %4816 = vst [vmem:[%s767 + $0x238] sm:$0xff] %v4513
      %4817 = vst [vmem:[%s767 + $0x240] sm:$0xff] %v4187
      %4818 = vst [vmem:[%s767 + $0x248] sm:$0xff] %v4516
      %4819 = vst [vmem:[%s767 + $0x250] sm:$0xff] %v4189
      %4820 = vst [vmem:[%s767 + $0x258] sm:$0xff] %v4518
      %4821 = vst [vmem:[%s767 + $0x260] sm:$0xff] %v4192
      %4822 = vst [vmem:[%s767 + $0x268] sm:$0xff] %v4521
      %4823 = vst [vmem:[%s767 + $0x270] sm:$0xff] %v4194
      %4824 = vst [vmem:[%s767 + $0x278] sm:$0xff] %v4523
      %4825 = vst [vmem:[%s767 + $0x280] sm:$0xff] %v4197
      %4826 = vst [vmem:[%s767 + $0x288] sm:$0xff] %v4526
      %4827 = vst [vmem:[%s767 + $0x290] sm:$0xff] %v4199
      %4828 = vst [vmem:[%s767 + $0x298] sm:$0xff] %v4528
      %4829 = vst [vmem:[%s767 + $0x2a0] sm:$0xff] %v4202
      %4830 = vst [vmem:[%s767 + $0x2a8] sm:$0xff] %v4531
      %4831 = vst [vmem:[%s767 + $0x2b0] sm:$0xff] %v4204
      %4832 = vst [vmem:[%s767 + $0x2b8] sm:$0xff] %v4533
      %4833 = vst [vmem:[%s767 + $0x2c0] sm:$0xff] %v4207
      %4834 = vst [vmem:[%s767 + $0x2c8] sm:$0xff] %v4536
      %4835 = vst [vmem:[%s767 + $0x2d0] sm:$0xff] %v4209
      %4836 = vst [vmem:[%s767 + $0x2d8] sm:$0xff] %v4538
      %4837 = vst [vmem:[%s767 + $0x2e0] sm:$0xff] %v4212
      %4838 = vst [vmem:[%s767 + $0x2e8] sm:$0xff] %v4541
      %4839 = vst [vmem:[%s767 + $0x2f0] sm:$0xff] %v4214
      %4840 = vst [vmem:[%s767 + $0x2f8] sm:$0xff] %v4543
      %4841 = vst [vmem:[%s767 + $0x300] sm:$0xff] %v4217
      %4842 = vst [vmem:[%s767 + $0x308] sm:$0xff] %v4546
      %4843 = vst [vmem:[%s767 + $0x310] sm:$0xff] %v4219
      %4844 = vst [vmem:[%s767 + $0x318] sm:$0xff] %v4548
      %4845 = vst [vmem:[%s767 + $0x320] sm:$0xff] %v4222
      %4846 = vst [vmem:[%s767 + $0x328] sm:$0xff] %v4551
      %4847 = vst [vmem:[%s767 + $0x330] sm:$0xff] %v4224
      %4848 = vst [vmem:[%s767 + $0x338] sm:$0xff] %v4553
      %4849 = vst [vmem:[%s767 + $0x340] sm:$0xff] %v4227
      %4850 = vst [vmem:[%s767 + $0x348] sm:$0xff] %v4556
      %4851 = vst [vmem:[%s767 + $0x350] sm:$0xff] %v4229
      %4852 = vst [vmem:[%s767 + $0x358] sm:$0xff] %v4558
      %4853 = vst [vmem:[%s767 + $0x360] sm:$0xff] %v4232
      %4854 = vst [vmem:[%s767 + $0x368] sm:$0xff] %v4561
      %4855 = vst [vmem:[%s767 + $0x370] sm:$0xff] %v4234
      %4856 = vst [vmem:[%s767 + $0x378] sm:$0xff] %v4563
      %4857 = vst [vmem:[%s767 + $0x380] sm:$0xff] %v4237
      %4858 = vst [vmem:[%s767 + $0x388] sm:$0xff] %v4566
      %4859 = vst [vmem:[%s767 + $0x390] sm:$0xff] %v4239
      %4860 = vst [vmem:[%s767 + $0x398] sm:$0xff] %v4568
      %4861 = vst [vmem:[%s767 + $0x3a0] sm:$0xff] %v4242
      %4862 = vst [vmem:[%s767 + $0x3a8] sm:$0xff] %v4571
      %4863 = vst [vmem:[%s767 + $0x3b0] sm:$0xff] %v4244
      %4864 = vst [vmem:[%s767 + $0x3b8] sm:$0xff] %v4573
      %4865 = vst [vmem:[%s767 + $0x3c0] sm:$0xff] %v4247
      %4866 = vst [vmem:[%s767 + $0x3c8] sm:$0xff] %v4576
      %4867 = vst [vmem:[%s767 + $0x3d0] sm:$0xff] %v4249
      %4868 = vst [vmem:[%s767 + $0x3d8] sm:$0xff] %v4578
      %4869 = vst [vmem:[%s767 + $0x3e0] sm:$0xff] %v4252
      %4870 = vst [vmem:[%s767 + $0x3e8] sm:$0xff] %v4581
      %4871 = vst [vmem:[%s767 + $0x3f0] sm:$0xff] %v4254
      %4872 = vst [vmem:[%s767 + $0x3f8] sm:$0xff] %v4583
      %4873 = vst [vmem:[%s767 + $0x400] sm:$0xff] %v4257
      %4874 = vst [vmem:[%s767 + $0x408] sm:$0xff] %v4586
      %4875 = vst [vmem:[%s767 + $0x410] sm:$0xff] %v4259
      %4876 = vst [vmem:[%s767 + $0x418] sm:$0xff] %v4588
      %4877 = vst [vmem:[%s767 + $0x420] sm:$0xff] %v4262
      %4878 = vst [vmem:[%s767 + $0x428] sm:$0xff] %v4591
      %4879 = vst [vmem:[%s767 + $0x430] sm:$0xff] %v4264
      %4880 = vst [vmem:[%s767 + $0x438] sm:$0xff] %v4593
      %4881 = vst [vmem:[%s767 + $0x440] sm:$0xff] %v4267
      %4882 = vst [vmem:[%s767 + $0x448] sm:$0xff] %v4596
      %4883 = vst [vmem:[%s767 + $0x450] sm:$0xff] %v4269
      %4884 = vst [vmem:[%s767 + $0x458] sm:$0xff] %v4598
      %4885 = vst [vmem:[%s767 + $0x460] sm:$0xff] %v4272
      %4886 = vst [vmem:[%s767 + $0x468] sm:$0xff] %v4601
      %4887 = vst [vmem:[%s767 + $0x470] sm:$0xff] %v4274
      %4888 = vst [vmem:[%s767 + $0x478] sm:$0xff] %v4603
      %4889 = vst [vmem:[%s767 + $0x480] sm:$0xff] %v4277
      %4890 = vst [vmem:[%s767 + $0x488] sm:$0xff] %v4606
      %4891 = vst [vmem:[%s767 + $0x490] sm:$0xff] %v4279
      %4892 = vst [vmem:[%s767 + $0x498] sm:$0xff] %v4608
      %4893 = vst [vmem:[%s767 + $0x4a0] sm:$0xff] %v4282
      %4894 = vst [vmem:[%s767 + $0x4a8] sm:$0xff] %v4611
      %4895 = vst [vmem:[%s767 + $0x4b0] sm:$0xff] %v4284
      %4896 = vst [vmem:[%s767 + $0x4b8] sm:$0xff] %v4613
      %4897 = vst [vmem:[%s767 + $0x4c0] sm:$0xff] %v4287
      %4898 = vst [vmem:[%s767 + $0x4c8] sm:$0xff] %v4616
      %4899 = vst [vmem:[%s767 + $0x4d0] sm:$0xff] %v4289
      %4900 = vst [vmem:[%s767 + $0x4d8] sm:$0xff] %v4618
      %4901 = vst [vmem:[%s767 + $0x4e0] sm:$0xff] %v4292
      %4902 = vst [vmem:[%s767 + $0x4e8] sm:$0xff] %v4621
      %4903 = vst [vmem:[%s767 + $0x4f0] sm:$0xff] %v4294
      %4904 = vst [vmem:[%s767 + $0x4f8] sm:$0xff] %v4623
      %4905 = vst [vmem:[%s767 + $0x500] sm:$0xff] %v4297
      %4906 = vst [vmem:[%s767 + $0x508] sm:$0xff] %v4626
      %4907 = vst [vmem:[%s767 + $0x510] sm:$0xff] %v4299
      %4908 = vst [vmem:[%s767 + $0x518] sm:$0xff] %v4628
      %4909 = vst [vmem:[%s767 + $0x520] sm:$0xff] %v4302
      %4910 = vst [vmem:[%s767 + $0x528] sm:$0xff] %v4631
      %4911 = vst [vmem:[%s767 + $0x530] sm:$0xff] %v4304
      %4912 = vst [vmem:[%s767 + $0x538] sm:$0xff] %v4633
      %4913 = vst [vmem:[%s767 + $0x540] sm:$0xff] %v4307
      %4914 = vst [vmem:[%s767 + $0x548] sm:$0xff] %v4636
      %4915 = vst [vmem:[%s767 + $0x550] sm:$0xff] %v4309
      %4916 = vst [vmem:[%s767 + $0x558] sm:$0xff] %v4638
      %4917 = vst [vmem:[%s767 + $0x560] sm:$0xff] %v4312
      %4918 = vst [vmem:[%s767 + $0x568] sm:$0xff] %v4641
      %4919 = vst [vmem:[%s767 + $0x570] sm:$0xff] %v4314
      %4920 = vst [vmem:[%s767 + $0x578] sm:$0xff] %v4643
      %4921 = vst [vmem:[%s767 + $0x580] sm:$0xff] %v4317
      %4922 = vst [vmem:[%s767 + $0x588] sm:$0xff] %v4646
      %4923 = vst [vmem:[%s767 + $0x590] sm:$0xff] %v4319
      %4924 = vst [vmem:[%s767 + $0x598] sm:$0xff] %v4648
      %4925 = vst [vmem:[%s767 + $0x5a0] sm:$0xff] %v4322
      %4926 = vst [vmem:[%s767 + $0x5a8] sm:$0xff] %v4651
      %4927 = vst [vmem:[%s767 + $0x5b0] sm:$0xff] %v4324
      %4928 = vst [vmem:[%s767 + $0x5b8] sm:$0xff] %v4653
      %4929 = vst [vmem:[%s767 + $0x5c0] sm:$0xff] %v4327
      %4930 = vst [vmem:[%s767 + $0x5c8] sm:$0xff] %v4656
      %4931 = vst [vmem:[%s767 + $0x5d0] sm:$0xff] %v4329
      %4932 = vst [vmem:[%s767 + $0x5d8] sm:$0xff] %v4658
      %4933 = vst [vmem:[%s767 + $0x5e0] sm:$0xff] %v4332
      %4934 = vst [vmem:[%s767 + $0x5e8] sm:$0xff] %v4661
      %4935 = vst [vmem:[%s767 + $0x5f0] sm:$0xff] %v4334
      %4936 = vst [vmem:[%s767 + $0x5f8] sm:$0xff] %v4663
      %4937 = vst [vmem:[%s767 + $0x600] sm:$0xff] %v4337
      %4938 = vst [vmem:[%s767 + $0x608] sm:$0xff] %v4666
      %4939 = vst [vmem:[%s767 + $0x610] sm:$0xff] %v4339
      %4940 = vst [vmem:[%s767 + $0x618] sm:$0xff] %v4668
      %4941 = vst [vmem:[%s767 + $0x620] sm:$0xff] %v4342
      %4942 = vst [vmem:[%s767 + $0x628] sm:$0xff] %v4671
      %4943 = vst [vmem:[%s767 + $0x630] sm:$0xff] %v4344
      %4944 = vst [vmem:[%s767 + $0x638] sm:$0xff] %v4673
      %4945 = vst [vmem:[%s767 + $0x640] sm:$0xff] %v4347
      %4946 = vst [vmem:[%s767 + $0x648] sm:$0xff] %v4676
      %4947 = vst [vmem:[%s767 + $0x650] sm:$0xff] %v4349
      %4948 = vst [vmem:[%s767 + $0x658] sm:$0xff] %v4678
      %4949 = vst [vmem:[%s767 + $0x660] sm:$0xff] %v4352
      %4950 = vst [vmem:[%s767 + $0x668] sm:$0xff] %v4681
      %4951 = vst [vmem:[%s767 + $0x670] sm:$0xff] %v4354
      %4952 = vst [vmem:[%s767 + $0x678] sm:$0xff] %v4683
      %4953 = vst [vmem:[%s767 + $0x680] sm:$0xff] %v4357
      %4954 = vst [vmem:[%s767 + $0x688] sm:$0xff] %v4686
      %4955 = vst [vmem:[%s767 + $0x690] sm:$0xff] %v4359
      %4956 = vst [vmem:[%s767 + $0x698] sm:$0xff] %v4688
      %4957 = vst [vmem:[%s767 + $0x6a0] sm:$0xff] %v4362
      %4958 = vst [vmem:[%s767 + $0x6a8] sm:$0xff] %v4691
      %4959 = vst [vmem:[%s767 + $0x6b0] sm:$0xff] %v4364
      %4960 = vst [vmem:[%s767 + $0x6b8] sm:$0xff] %v4693
      %4961 = vst [vmem:[%s767 + $0x6c0] sm:$0xff] %v4367
      %4962 = vst [vmem:[%s767 + $0x6c8] sm:$0xff] %v4696
      %4963 = vst [vmem:[%s767 + $0x6d0] sm:$0xff] %v4369
      %4964 = vst [vmem:[%s767 + $0x6d8] sm:$0xff] %v4698
      %4965 = vst [vmem:[%s767 + $0x6e0] sm:$0xff] %v4372
      %4966 = vst [vmem:[%s767 + $0x6e8] sm:$0xff] %v4701
      %4967 = vst [vmem:[%s767 + $0x6f0] sm:$0xff] %v4374
      %4968 = vst [vmem:[%s767 + $0x6f8] sm:$0xff] %v4703
      %4969 = vst [vmem:[%s767 + $0x700] sm:$0xff] %v4377
      %4970 = vst [vmem:[%s767 + $0x708] sm:$0xff] %v4706
      %4971 = vst [vmem:[%s767 + $0x710] sm:$0xff] %v4379
      %4972 = vst [vmem:[%s767 + $0x718] sm:$0xff] %v4708
      %4973 = vst [vmem:[%s767 + $0x720] sm:$0xff] %v4382
      %4974 = vst [vmem:[%s767 + $0x728] sm:$0xff] %v4711
      %4975 = vst [vmem:[%s767 + $0x730] sm:$0xff] %v4384
      %4976 = vst [vmem:[%s767 + $0x738] sm:$0xff] %v4713
      %4977 = vst [vmem:[%s767 + $0x740] sm:$0xff] %v4387
      %4978 = vst [vmem:[%s767 + $0x748] sm:$0xff] %v4716
      %4979 = vst [vmem:[%s767 + $0x750] sm:$0xff] %v4389
      %4980 = vst [vmem:[%s767 + $0x758] sm:$0xff] %v4718
      %4981 = vst [vmem:[%s767 + $0x760] sm:$0xff] %v4392
      %4982 = vst [vmem:[%s767 + $0x768] sm:$0xff] %v4721
      %4983 = vst [vmem:[%s767 + $0x770] sm:$0xff] %v4394
      %4984 = vst [vmem:[%s767 + $0x778] sm:$0xff] %v4723
      %4985 = vst [vmem:[%s767 + $0x780] sm:$0xff] %v4397
      %4986 = vst [vmem:[%s767 + $0x788] sm:$0xff] %v4726
      %4987 = vst [vmem:[%s767 + $0x790] sm:$0xff] %v4399
      %4988 = vst [vmem:[%s767 + $0x798] sm:$0xff] %v4728
      %4989 = vst [vmem:[%s767 + $0x7a0] sm:$0xff] %v4402
      %4990 = vst [vmem:[%s767 + $0x7a8] sm:$0xff] %v4731
      %4991 = vst [vmem:[%s767 + $0x7b0] sm:$0xff] %v4404
      %4992 = vst [vmem:[%s767 + $0x7b8] sm:$0xff] %v4733
      %4993 = vst [vmem:[%s767 + $0x7c0] sm:$0xff] %v4407
      %4994 = vst [vmem:[%s767 + $0x7c8] sm:$0xff] %v4736
      %4995 = vst [vmem:[%s767 + $0x7d0] sm:$0xff] %v4409
      %4996 = vst [vmem:[%s767 + $0x7d8] sm:$0xff] %v4738
      %4997 = vst [vmem:[%s767 + $0x7e0] sm:$0xff] %v4412
      %4998 = vst [vmem:[%s767 + $0x7e8] sm:$0xff] %v4741
      %4999 = vst [vmem:[%s767 + $0x7f0] sm:$0xff] %v4414
      %5000 = vst [vmem:[%s767 + $0x7f8] sm:$0xff] %v4743
      %v5001 = vsub.f32 0.0, %v4097
      %v5002 = vsub.f32 0.0, %v4426
      %v5003 = vsub.f32 0.0, %v4099
      %v5004 = vsub.f32 0.0, %v4428
      %v5005 = vsub.f32 0.0, %v4102
      %v5006 = vsub.f32 0.0, %v4431
      %v5007 = vsub.f32 0.0, %v4104
      %v5008 = vsub.f32 0.0, %v4433
      %v5009 = vsub.f32 0.0, %v4107
      %v5010 = vsub.f32 0.0, %v4436
      %v5011 = vsub.f32 0.0, %v4109
      %v5012 = vsub.f32 0.0, %v4438
      %v5013 = vsub.f32 0.0, %v4112
      %v5014 = vsub.f32 0.0, %v4441
      %v5015 = vsub.f32 0.0, %v4114
      %v5016 = vsub.f32 0.0, %v4443
      %v5017 = vsub.f32 0.0, %v4117
      %v5018 = vsub.f32 0.0, %v4446
      %v5019 = vsub.f32 0.0, %v4119
      %v5020 = vsub.f32 0.0, %v4448
      %v5021 = vsub.f32 0.0, %v4122
      %v5022 = vsub.f32 0.0, %v4451
      %v5023 = vsub.f32 0.0, %v4124
      %v5024 = vsub.f32 0.0, %v4453
      %v5025 = vsub.f32 0.0, %v4127
      %v5026 = vsub.f32 0.0, %v4456
      %v5027 = vsub.f32 0.0, %v4129
      %v5028 = vsub.f32 0.0, %v4458
      %v5029 = vsub.f32 0.0, %v4132
      %v5030 = vsub.f32 0.0, %v4461
      %v5031 = vsub.f32 0.0, %v4134
      %v5032 = vsub.f32 0.0, %v4463
      %v5033 = vsub.f32 0.0, %v4137
      %v5034 = vsub.f32 0.0, %v4466
      %v5035 = vsub.f32 0.0, %v4139
      %v5036 = vsub.f32 0.0, %v4468
      %v5037 = vsub.f32 0.0, %v4142
      %v5038 = vsub.f32 0.0, %v4471
      %v5039 = vsub.f32 0.0, %v4144
      %v5040 = vsub.f32 0.0, %v4473
      %v5041 = vsub.f32 0.0, %v4147
      %v5042 = vsub.f32 0.0, %v4476
      %v5043 = vsub.f32 0.0, %v4149
      %v5044 = vsub.f32 0.0, %v4478
      %v5045 = vsub.f32 0.0, %v4152
      %v5046 = vsub.f32 0.0, %v4481
      %v5047 = vsub.f32 0.0, %v4154
      %v5048 = vsub.f32 0.0, %v4483
      %v5049 = vsub.f32 0.0, %v4157
      %v5050 = vsub.f32 0.0, %v4486
      %v5051 = vsub.f32 0.0, %v4159
      %v5052 = vsub.f32 0.0, %v4488
      %v5053 = vsub.f32 0.0, %v4162
      %v5054 = vsub.f32 0.0, %v4491
      %v5055 = vsub.f32 0.0, %v4164
      %v5056 = vsub.f32 0.0, %v4493
      %v5057 = vsub.f32 0.0, %v4167
      %v5058 = vsub.f32 0.0, %v4496
      %v5059 = vsub.f32 0.0, %v4169
      %v5060 = vsub.f32 0.0, %v4498
      %v5061 = vsub.f32 0.0, %v4172
      %v5062 = vsub.f32 0.0, %v4501
      %v5063 = vsub.f32 0.0, %v4174
      %v5064 = vsub.f32 0.0, %v4503
      %v5065 = vsub.f32 0.0, %v4177
      %v5066 = vsub.f32 0.0, %v4506
      %v5067 = vsub.f32 0.0, %v4179
      %v5068 = vsub.f32 0.0, %v4508
      %v5069 = vsub.f32 0.0, %v4182
      %v5070 = vsub.f32 0.0, %v4511
      %v5071 = vsub.f32 0.0, %v4184
      %v5072 = vsub.f32 0.0, %v4513
      %v5073 = vsub.f32 0.0, %v4187
      %v5074 = vsub.f32 0.0, %v4516
      %v5075 = vsub.f32 0.0, %v4189
      %v5076 = vsub.f32 0.0, %v4518
      %v5077 = vsub.f32 0.0, %v4192
      %v5078 = vsub.f32 0.0, %v4521
      %v5079 = vsub.f32 0.0, %v4194
      %v5080 = vsub.f32 0.0, %v4523
      %v5081 = vsub.f32 0.0, %v4197
      %v5082 = vsub.f32 0.0, %v4526
      %v5083 = vsub.f32 0.0, %v4199
      %v5084 = vsub.f32 0.0, %v4528
      %v5085 = vsub.f32 0.0, %v4202
      %v5086 = vsub.f32 0.0, %v4531
      %v5087 = vsub.f32 0.0, %v4204
      %v5088 = vsub.f32 0.0, %v4533
      %v5089 = vsub.f32 0.0, %v4207
      %v5090 = vsub.f32 0.0, %v4536
      %v5091 = vsub.f32 0.0, %v4209
      %v5092 = vsub.f32 0.0, %v4538
      %v5093 = vsub.f32 0.0, %v4212
      %v5094 = vsub.f32 0.0, %v4541
      %v5095 = vsub.f32 0.0, %v4214
      %v5096 = vsub.f32 0.0, %v4543
      %v5097 = vsub.f32 0.0, %v4217
      %v5098 = vsub.f32 0.0, %v4546
      %v5099 = vsub.f32 0.0, %v4219
      %v5100 = vsub.f32 0.0, %v4548
      %v5101 = vsub.f32 0.0, %v4222
      %v5102 = vsub.f32 0.0, %v4551
      %v5103 = vsub.f32 0.0, %v4224
      %v5104 = vsub.f32 0.0, %v4553
      %v5105 = vsub.f32 0.0, %v4227
      %v5106 = vsub.f32 0.0, %v4556
      %v5107 = vsub.f32 0.0, %v4229
      %v5108 = vsub.f32 0.0, %v4558
      %v5109 = vsub.f32 0.0, %v4232
      %v5110 = vsub.f32 0.0, %v4561
      %v5111 = vsub.f32 0.0, %v4234
      %v5112 = vsub.f32 0.0, %v4563
      %v5113 = vsub.f32 0.0, %v4237
      %v5114 = vsub.f32 0.0, %v4566
      %v5115 = vsub.f32 0.0, %v4239
      %v5116 = vsub.f32 0.0, %v4568
      %v5117 = vsub.f32 0.0, %v4242
      %v5118 = vsub.f32 0.0, %v4571
      %v5119 = vsub.f32 0.0, %v4244
      %v5120 = vsub.f32 0.0, %v4573
      %v5121 = vsub.f32 0.0, %v4247
      %v5122 = vsub.f32 0.0, %v4576
      %v5123 = vsub.f32 0.0, %v4249
      %v5124 = vsub.f32 0.0, %v4578
      %v5125 = vsub.f32 0.0, %v4252
      %v5126 = vsub.f32 0.0, %v4581
      %v5127 = vsub.f32 0.0, %v4254
      %v5128 = vsub.f32 0.0, %v4583
      %v5129 = vsub.f32 0.0, %v4257
      %v5130 = vsub.f32 0.0, %v4586
      %v5131 = vsub.f32 0.0, %v4259
      %v5132 = vsub.f32 0.0, %v4588
      %v5133 = vsub.f32 0.0, %v4262
      %v5134 = vsub.f32 0.0, %v4591
      %v5135 = vsub.f32 0.0, %v4264
      %v5136 = vsub.f32 0.0, %v4593
      %v5137 = vsub.f32 0.0, %v4267
      %v5138 = vsub.f32 0.0, %v4596
      %v5139 = vsub.f32 0.0, %v4269
      %v5140 = vsub.f32 0.0, %v4598
      %v5141 = vsub.f32 0.0, %v4272
      %v5142 = vsub.f32 0.0, %v4601
      %v5143 = vsub.f32 0.0, %v4274
      %v5144 = vsub.f32 0.0, %v4603
      %v5145 = vsub.f32 0.0, %v4277
      %v5146 = vsub.f32 0.0, %v4606
      %v5147 = vsub.f32 0.0, %v4279
      %v5148 = vsub.f32 0.0, %v4608
      %v5149 = vsub.f32 0.0, %v4282
      %v5150 = vsub.f32 0.0, %v4611
      %v5151 = vsub.f32 0.0, %v4284
      %v5152 = vsub.f32 0.0, %v4613
      %v5153 = vsub.f32 0.0, %v4287
      %v5154 = vsub.f32 0.0, %v4616
      %v5155 = vsub.f32 0.0, %v4289
      %v5156 = vsub.f32 0.0, %v4618
      %v5157 = vsub.f32 0.0, %v4292
      %v5158 = vsub.f32 0.0, %v4621
      %v5159 = vsub.f32 0.0, %v4294
      %v5160 = vsub.f32 0.0, %v4623
      %v5161 = vsub.f32 0.0, %v4297
      %v5162 = vsub.f32 0.0, %v4626
      %v5163 = vsub.f32 0.0, %v4299
      %v5164 = vsub.f32 0.0, %v4628
      %v5165 = vsub.f32 0.0, %v4302
      %v5166 = vsub.f32 0.0, %v4631
      %v5167 = vsub.f32 0.0, %v4304
      %v5168 = vsub.f32 0.0, %v4633
      %v5169 = vsub.f32 0.0, %v4307
      %v5170 = vsub.f32 0.0, %v4636
      %v5171 = vsub.f32 0.0, %v4309
      %v5172 = vsub.f32 0.0, %v4638
      %v5173 = vsub.f32 0.0, %v4312
      %v5174 = vsub.f32 0.0, %v4641
      %v5175 = vsub.f32 0.0, %v4314
      %v5176 = vsub.f32 0.0, %v4643
      %v5177 = vsub.f32 0.0, %v4317
      %v5178 = vsub.f32 0.0, %v4646
      %v5179 = vsub.f32 0.0, %v4319
      %v5180 = vsub.f32 0.0, %v4648
      %v5181 = vsub.f32 0.0, %v4322
      %v5182 = vsub.f32 0.0, %v4651
      %v5183 = vsub.f32 0.0, %v4324
      %v5184 = vsub.f32 0.0, %v4653
      %v5185 = vsub.f32 0.0, %v4327
      %v5186 = vsub.f32 0.0, %v4656
      %v5187 = vsub.f32 0.0, %v4329
      %v5188 = vsub.f32 0.0, %v4658
      %v5189 = vsub.f32 0.0, %v4332
      %v5190 = vsub.f32 0.0, %v4661
      %v5191 = vsub.f32 0.0, %v4334
      %v5192 = vsub.f32 0.0, %v4663
      %v5193 = vsub.f32 0.0, %v4337
      %v5194 = vsub.f32 0.0, %v4666
      %v5195 = vsub.f32 0.0, %v4339
      %v5196 = vsub.f32 0.0, %v4668
      %v5197 = vsub.f32 0.0, %v4342
      %v5198 = vsub.f32 0.0, %v4671
      %v5199 = vsub.f32 0.0, %v4344
      %v5200 = vsub.f32 0.0, %v4673
      %v5201 = vsub.f32 0.0, %v4347
      %v5202 = vsub.f32 0.0, %v4676
      %v5203 = vsub.f32 0.0, %v4349
      %v5204 = vsub.f32 0.0, %v4678
      %v5205 = vsub.f32 0.0, %v4352
      %v5206 = vsub.f32 0.0, %v4681
      %v5207 = vsub.f32 0.0, %v4354
      %v5208 = vsub.f32 0.0, %v4683
      %v5209 = vsub.f32 0.0, %v4357
      %v5210 = vsub.f32 0.0, %v4686
      %v5211 = vsub.f32 0.0, %v4359
      %v5212 = vsub.f32 0.0, %v4688
      %v5213 = vsub.f32 0.0, %v4362
      %v5214 = vsub.f32 0.0, %v4691
      %v5215 = vsub.f32 0.0, %v4364
      %v5216 = vsub.f32 0.0, %v4693
      %v5217 = vsub.f32 0.0, %v4367
      %v5218 = vsub.f32 0.0, %v4696
      %v5219 = vsub.f32 0.0, %v4369
      %v5220 = vsub.f32 0.0, %v4698
      %v5221 = vsub.f32 0.0, %v4372
      %v5222 = vsub.f32 0.0, %v4701
      %v5223 = vsub.f32 0.0, %v4374
      %v5224 = vsub.f32 0.0, %v4703
      %v5225 = vsub.f32 0.0, %v4377
      %v5226 = vsub.f32 0.0, %v4706
      %v5227 = vsub.f32 0.0, %v4379
      %v5228 = vsub.f32 0.0, %v4708
      %v5229 = vsub.f32 0.0, %v4382
      %v5230 = vsub.f32 0.0, %v4711
      %v5231 = vsub.f32 0.0, %v4384
      %v5232 = vsub.f32 0.0, %v4713
      %v5233 = vsub.f32 0.0, %v4387
      %v5234 = vsub.f32 0.0, %v4716
      %v5235 = vsub.f32 0.0, %v4389
      %v5236 = vsub.f32 0.0, %v4718
      %v5237 = vsub.f32 0.0, %v4392
      %v5238 = vsub.f32 0.0, %v4721
      %v5239 = vsub.f32 0.0, %v4394
      %v5240 = vsub.f32 0.0, %v4723
      %v5241 = vsub.f32 0.0, %v4397
      %v5242 = vsub.f32 0.0, %v4726
      %v5243 = vsub.f32 0.0, %v4399
      %v5244 = vsub.f32 0.0, %v4728
      %v5245 = vsub.f32 0.0, %v4402
      %v5246 = vsub.f32 0.0, %v4731
      %v5247 = vsub.f32 0.0, %v4404
      %v5248 = vsub.f32 0.0, %v4733
      %v5249 = vsub.f32 0.0, %v4407
      %v5250 = vsub.f32 0.0, %v4736
      %v5251 = vsub.f32 0.0, %v4409
      %v5252 = vsub.f32 0.0, %v4738
      %v5253 = vsub.f32 0.0, %v4412
      %v5254 = vsub.f32 0.0, %v4741
      %v5255 = vsub.f32 0.0, %v4414
      %v5256 = vsub.f32 0.0, %v4743
      %v5257 = vmul.f32 %v5001, 1.442695
      %v5258 = vpow.pop %v5257
      %v5259 = vmul.f32 %v5002, 1.442695
      %v5260 = vpow.pop %v5259
      %v5261 = vmul.f32 %v5003, 1.442695
      %v5262 = vpow.pop %v5261
      %v5263 = vmul.f32 %v5004, 1.442695
      %v5264 = vpow.pop %v5263
      %v5265 = vmul.f32 %v5005, 1.442695
      %v5266 = vpow.pop %v5265
      %v5267 = vmul.f32 %v5006, 1.442695
      %v5268 = vpow.pop %v5267
      %v5269 = vmul.f32 %v5007, 1.442695
      %v5270 = vpow.pop %v5269
      %v5271 = vmul.f32 %v5008, 1.442695
      %v5272 = vpow.pop %v5271
      %v5273 = vmul.f32 %v5009, 1.442695
      %v5274 = vpow.pop %v5273
      %v5275 = vmul.f32 %v5010, 1.442695
      %v5276 = vpow.pop %v5275
      %v5277 = vmul.f32 %v5011, 1.442695
      %v5278 = vpow.pop %v5277
      %v5279 = vmul.f32 %v5012, 1.442695
      %v5280 = vpow.pop %v5279
      %v5281 = vmul.f32 %v5013, 1.442695
      %v5282 = vpow.pop %v5281
      %v5283 = vmul.f32 %v5014, 1.442695
      %v5284 = vpow.pop %v5283
      %v5285 = vmul.f32 %v5015, 1.442695
      %v5286 = vpow.pop %v5285
      %v5287 = vmul.f32 %v5016, 1.442695
      %v5288 = vpow.pop %v5287
      %v5289 = vmul.f32 %v5017, 1.442695
      %v5290 = vpow.pop %v5289
      %v5291 = vmul.f32 %v5018, 1.442695
      %v5292 = vpow.pop %v5291
      %v5293 = vmul.f32 %v5019, 1.442695
      %v5294 = vpow.pop %v5293
      %v5295 = vmul.f32 %v5020, 1.442695
      %v5296 = vpow.pop %v5295
      %v5297 = vmul.f32 %v5021, 1.442695
      %v5298 = vpow.pop %v5297
      %v5299 = vmul.f32 %v5022, 1.442695
      %v5300 = vpow.pop %v5299
      %v5301 = vmul.f32 %v5023, 1.442695
      %v5302 = vpow.pop %v5301
      %v5303 = vmul.f32 %v5024, 1.442695
      %v5304 = vpow.pop %v5303
      %v5305 = vmul.f32 %v5025, 1.442695
      %v5306 = vpow.pop %v5305
      %v5307 = vmul.f32 %v5026, 1.442695
      %v5308 = vpow.pop %v5307
      %v5309 = vmul.f32 %v5027, 1.442695
      %v5310 = vpow.pop %v5309
      %v5311 = vmul.f32 %v5028, 1.442695
      %v5312 = vpow.pop %v5311
      %v5313 = vmul.f32 %v5029, 1.442695
      %v5314 = vpow.pop %v5313
      %v5315 = vmul.f32 %v5030, 1.442695
      %v5316 = vpow.pop %v5315
      %v5317 = vmul.f32 %v5031, 1.442695
      %v5318 = vpow.pop %v5317
      %v5319 = vmul.f32 %v5032, 1.442695
      %v5320 = vpow.pop %v5319
      %v5321 = vmul.f32 %v5033, 1.442695
      %v5322 = vpow.pop %v5321
      %v5323 = vmul.f32 %v5034, 1.442695
      %v5324 = vpow.pop %v5323
      %v5325 = vmul.f32 %v5035, 1.442695
      %v5326 = vpow.pop %v5325
      %v5327 = vmul.f32 %v5036, 1.442695
      %v5328 = vpow.pop %v5327
      %v5329 = vmul.f32 %v5037, 1.442695
      %v5330 = vpow.pop %v5329
      %v5331 = vmul.f32 %v5038, 1.442695
      %v5332 = vpow.pop %v5331
      %v5333 = vmul.f32 %v5039, 1.442695
      %v5334 = vpow.pop %v5333
      %v5335 = vmul.f32 %v5040, 1.442695
      %v5336 = vpow.pop %v5335
      %v5337 = vmul.f32 %v5041, 1.442695
      %v5338 = vpow.pop %v5337
      %v5339 = vmul.f32 %v5042, 1.442695
      %v5340 = vpow.pop %v5339
      %v5341 = vmul.f32 %v5043, 1.442695
      %v5342 = vpow.pop %v5341
      %v5343 = vmul.f32 %v5044, 1.442695
      %v5344 = vpow.pop %v5343
      %v5345 = vmul.f32 %v5045, 1.442695
      %v5346 = vpow.pop %v5345
      %v5347 = vmul.f32 %v5046, 1.442695
      %v5348 = vpow.pop %v5347
      %v5349 = vmul.f32 %v5047, 1.442695
      %v5350 = vpow.pop %v5349
      %v5351 = vmul.f32 %v5048, 1.442695
      %v5352 = vpow.pop %v5351
      %v5353 = vmul.f32 %v5049, 1.442695
      %v5354 = vpow.pop %v5353
      %v5355 = vmul.f32 %v5050, 1.442695
      %v5356 = vpow.pop %v5355
      %v5357 = vmul.f32 %v5051, 1.442695
      %v5358 = vpow.pop %v5357
      %v5359 = vmul.f32 %v5052, 1.442695
      %v5360 = vpow.pop %v5359
      %v5361 = vmul.f32 %v5053, 1.442695
      %v5362 = vpow.pop %v5361
      %v5363 = vmul.f32 %v5054, 1.442695
      %v5364 = vpow.pop %v5363
      %v5365 = vmul.f32 %v5055, 1.442695
      %v5366 = vpow.pop %v5365
      %v5367 = vmul.f32 %v5056, 1.442695
      %v5368 = vpow.pop %v5367
      %v5369 = vmul.f32 %v5057, 1.442695
      %v5370 = vpow.pop %v5369
      %v5371 = vmul.f32 %v5058, 1.442695
      %v5372 = vpow.pop %v5371
      %v5373 = vmul.f32 %v5059, 1.442695
      %v5374 = vpow.pop %v5373
      %v5375 = vmul.f32 %v5060, 1.442695
      %v5376 = vpow.pop %v5375
      %v5377 = vmul.f32 %v5061, 1.442695
      %v5378 = vpow.pop %v5377
      %v5379 = vmul.f32 %v5062, 1.442695
      %v5380 = vpow.pop %v5379
      %v5381 = vmul.f32 %v5063, 1.442695
      %v5382 = vpow.pop %v5381
      %v5383 = vmul.f32 %v5064, 1.442695
      %v5384 = vpow.pop %v5383
      %v5385 = vmul.f32 %v5065, 1.442695
      %v5386 = vpow.pop %v5385
      %v5387 = vmul.f32 %v5066, 1.442695
      %v5388 = vpow.pop %v5387
      %v5389 = vmul.f32 %v5067, 1.442695
      %v5390 = vpow.pop %v5389
      %v5391 = vmul.f32 %v5068, 1.442695
      %v5392 = vpow.pop %v5391
      %v5393 = vmul.f32 %v5069, 1.442695
      %v5394 = vpow.pop %v5393
      %v5395 = vmul.f32 %v5070, 1.442695
      %v5396 = vpow.pop %v5395
      %v5397 = vmul.f32 %v5071, 1.442695
      %v5398 = vpow.pop %v5397
      %v5399 = vmul.f32 %v5072, 1.442695
      %v5400 = vpow.pop %v5399
      %v5401 = vmul.f32 %v5073, 1.442695
      %v5402 = vpow.pop %v5401
      %v5403 = vmul.f32 %v5074, 1.442695
      %v5404 = vpow.pop %v5403
      %v5405 = vmul.f32 %v5075, 1.442695
      %v5406 = vpow.pop %v5405
      %v5407 = vmul.f32 %v5076, 1.442695
      %v5408 = vpow.pop %v5407
      %v5409 = vmul.f32 %v5077, 1.442695
      %v5410 = vpow.pop %v5409
      %v5411 = vmul.f32 %v5078, 1.442695
      %v5412 = vpow.pop %v5411
      %v5413 = vmul.f32 %v5079, 1.442695
      %v5414 = vpow.pop %v5413
      %v5415 = vmul.f32 %v5080, 1.442695
      %v5416 = vpow.pop %v5415
      %v5417 = vmul.f32 %v5081, 1.442695
      %v5418 = vpow.pop %v5417
      %v5419 = vmul.f32 %v5082, 1.442695
      %v5420 = vpow.pop %v5419
      %v5421 = vmul.f32 %v5083, 1.442695
      %v5422 = vpow.pop %v5421
      %v5423 = vmul.f32 %v5084, 1.442695
      %v5424 = vpow.pop %v5423
      %v5425 = vmul.f32 %v5085, 1.442695
      %v5426 = vpow.pop %v5425
      %v5427 = vmul.f32 %v5086, 1.442695
      %v5428 = vpow.pop %v5427
      %v5429 = vmul.f32 %v5087, 1.442695
      %v5430 = vpow.pop %v5429
      %v5431 = vmul.f32 %v5088, 1.442695
      %v5432 = vpow.pop %v5431
      %v5433 = vmul.f32 %v5089, 1.442695
      %v5434 = vpow.pop %v5433
      %v5435 = vmul.f32 %v5090, 1.442695
      %v5436 = vpow.pop %v5435
      %v5437 = vmul.f32 %v5091, 1.442695
      %v5438 = vpow.pop %v5437
      %v5439 = vmul.f32 %v5092, 1.442695
      %v5440 = vpow.pop %v5439
      %v5441 = vmul.f32 %v5093, 1.442695
      %v5442 = vpow.pop %v5441
      %v5443 = vmul.f32 %v5094, 1.442695
      %v5444 = vpow.pop %v5443
      %v5445 = vmul.f32 %v5095, 1.442695
      %v5446 = vpow.pop %v5445
      %v5447 = vmul.f32 %v5096, 1.442695
      %v5448 = vpow.pop %v5447
      %v5449 = vmul.f32 %v5097, 1.442695
      %v5450 = vpow.pop %v5449
      %v5451 = vmul.f32 %v5098, 1.442695
      %v5452 = vpow.pop %v5451
      %v5453 = vmul.f32 %v5099, 1.442695
      %v5454 = vpow.pop %v5453
      %v5455 = vmul.f32 %v5100, 1.442695
      %v5456 = vpow.pop %v5455
      %v5457 = vmul.f32 %v5101, 1.442695
      %v5458 = vpow.pop %v5457
      %v5459 = vmul.f32 %v5102, 1.442695
      %v5460 = vpow.pop %v5459
      %v5461 = vmul.f32 %v5103, 1.442695
      %v5462 = vpow.pop %v5461
      %v5463 = vmul.f32 %v5104, 1.442695
      %v5464 = vpow.pop %v5463
      %v5465 = vmul.f32 %v5105, 1.442695
      %v5466 = vpow.pop %v5465
      %v5467 = vmul.f32 %v5106, 1.442695
      %v5468 = vpow.pop %v5467
      %v5469 = vmul.f32 %v5107, 1.442695
      %v5470 = vpow.pop %v5469
      %v5471 = vmul.f32 %v5108, 1.442695
      %v5472 = vpow.pop %v5471
      %v5473 = vmul.f32 %v5109, 1.442695
      %v5474 = vpow.pop %v5473
      %v5475 = vmul.f32 %v5110, 1.442695
      %v5476 = vpow.pop %v5475
      %v5477 = vmul.f32 %v5111, 1.442695
      %v5478 = vpow.pop %v5477
      %v5479 = vmul.f32 %v5112, 1.442695
      %v5480 = vpow.pop %v5479
      %v5481 = vmul.f32 %v5113, 1.442695
      %v5482 = vpow.pop %v5481
      %v5483 = vmul.f32 %v5114, 1.442695
      %v5484 = vpow.pop %v5483
      %v5485 = vmul.f32 %v5115, 1.442695
      %v5486 = vpow.pop %v5485
      %v5487 = vmul.f32 %v5116, 1.442695
      %v5488 = vpow.pop %v5487
      %v5489 = vmul.f32 %v5117, 1.442695
      %v5490 = vpow.pop %v5489
      %v5491 = vmul.f32 %v5118, 1.442695
      %v5492 = vpow.pop %v5491
      %v5493 = vmul.f32 %v5119, 1.442695
      %v5494 = vpow.pop %v5493
      %v5495 = vmul.f32 %v5120, 1.442695
      %v5496 = vpow.pop %v5495
      %v5497 = vmul.f32 %v5121, 1.442695
      %v5498 = vpow.pop %v5497
      %v5499 = vmul.f32 %v5122, 1.442695
      %v5500 = vpow.pop %v5499
      %v5501 = vmul.f32 %v5123, 1.442695
      %v5502 = vpow.pop %v5501
      %v5503 = vmul.f32 %v5124, 1.442695
      %v5504 = vpow.pop %v5503
      %v5505 = vmul.f32 %v5125, 1.442695
      %v5506 = vpow.pop %v5505
      %v5507 = vmul.f32 %v5126, 1.442695
      %v5508 = vpow.pop %v5507
      %v5509 = vmul.f32 %v5127, 1.442695
      %v5510 = vpow.pop %v5509
      %v5511 = vmul.f32 %v5128, 1.442695
      %v5512 = vpow.pop %v5511
      %v5513 = vmul.f32 %v5129, 1.442695
      %v5514 = vpow.pop %v5513
      %v5515 = vmul.f32 %v5130, 1.442695
      %v5516 = vpow.pop %v5515
      %v5517 = vmul.f32 %v5131, 1.442695
      %v5518 = vpow.pop %v5517
      %v5519 = vmul.f32 %v5132, 1.442695
      %v5520 = vpow.pop %v5519
      %v5521 = vmul.f32 %v5133, 1.442695
      %v5522 = vpow.pop %v5521
      %v5523 = vmul.f32 %v5134, 1.442695
      %v5524 = vpow.pop %v5523
      %v5525 = vmul.f32 %v5135, 1.442695
      %v5526 = vpow.pop %v5525
      %v5527 = vmul.f32 %v5136, 1.442695
      %v5528 = vpow.pop %v5527
      %v5529 = vmul.f32 %v5137, 1.442695
      %v5530 = vpow.pop %v5529
      %v5531 = vmul.f32 %v5138, 1.442695
      %v5532 = vpow.pop %v5531
      %v5533 = vmul.f32 %v5139, 1.442695
      %v5534 = vpow.pop %v5533
      %v5535 = vmul.f32 %v5140, 1.442695
      %v5536 = vpow.pop %v5535
      %v5537 = vmul.f32 %v5141, 1.442695
      %v5538 = vpow.pop %v5537
      %v5539 = vmul.f32 %v5142, 1.442695
      %v5540 = vpow.pop %v5539
      %v5541 = vmul.f32 %v5143, 1.442695
      %v5542 = vpow.pop %v5541
      %v5543 = vmul.f32 %v5144, 1.442695
      %v5544 = vpow.pop %v5543
      %v5545 = vmul.f32 %v5145, 1.442695
      %v5546 = vpow.pop %v5545
      %v5547 = vmul.f32 %v5146, 1.442695
      %v5548 = vpow.pop %v5547
      %v5549 = vmul.f32 %v5147, 1.442695
      %v5550 = vpow.pop %v5549
      %v5551 = vmul.f32 %v5148, 1.442695
      %v5552 = vpow.pop %v5551
      %v5553 = vmul.f32 %v5149, 1.442695
      %v5554 = vpow.pop %v5553
      %v5555 = vmul.f32 %v5150, 1.442695
      %v5556 = vpow.pop %v5555
      %v5557 = vmul.f32 %v5151, 1.442695
      %v5558 = vpow.pop %v5557
      %v5559 = vmul.f32 %v5152, 1.442695
      %v5560 = vpow.pop %v5559
      %v5561 = vmul.f32 %v5153, 1.442695
      %v5562 = vpow.pop %v5561
      %v5563 = vmul.f32 %v5154, 1.442695
      %v5564 = vpow.pop %v5563
      %v5565 = vmul.f32 %v5155, 1.442695
      %v5566 = vpow.pop %v5565
      %v5567 = vmul.f32 %v5156, 1.442695
      %v5568 = vpow.pop %v5567
      %v5569 = vmul.f32 %v5157, 1.442695
      %v5570 = vpow.pop %v5569
      %v5571 = vmul.f32 %v5158, 1.442695
      %v5572 = vpow.pop %v5571
      %v5573 = vmul.f32 %v5159, 1.442695
      %v5574 = vpow.pop %v5573
      %v5575 = vmul.f32 %v5160, 1.442695
      %v5576 = vpow.pop %v5575
      %v5577 = vmul.f32 %v5161, 1.442695
      %v5578 = vpow.pop %v5577
      %v5579 = vmul.f32 %v5162, 1.442695
      %v5580 = vpow.pop %v5579
      %v5581 = vmul.f32 %v5163, 1.442695
      %v5582 = vpow.pop %v5581
      %v5583 = vmul.f32 %v5164, 1.442695
      %v5584 = vpow.pop %v5583
      %v5585 = vmul.f32 %v5165, 1.442695
      %v5586 = vpow.pop %v5585
      %v5587 = vmul.f32 %v5166, 1.442695
      %v5588 = vpow.pop %v5587
      %v5589 = vmul.f32 %v5167, 1.442695
      %v5590 = vpow.pop %v5589
      %v5591 = vmul.f32 %v5168, 1.442695
      %v5592 = vpow.pop %v5591
      %v5593 = vmul.f32 %v5169, 1.442695
      %v5594 = vpow.pop %v5593
      %v5595 = vmul.f32 %v5170, 1.442695
      %v5596 = vpow.pop %v5595
      %v5597 = vmul.f32 %v5171, 1.442695
      %v5598 = vpow.pop %v5597
      %v5599 = vmul.f32 %v5172, 1.442695
      %v5600 = vpow.pop %v5599
      %v5601 = vmul.f32 %v5173, 1.442695
      %v5602 = vpow.pop %v5601
      %v5603 = vmul.f32 %v5174, 1.442695
      %v5604 = vpow.pop %v5603
      %v5605 = vmul.f32 %v5175, 1.442695
      %v5606 = vpow.pop %v5605
      %v5607 = vmul.f32 %v5176, 1.442695
      %v5608 = vpow.pop %v5607
      %v5609 = vmul.f32 %v5177, 1.442695
      %v5610 = vpow.pop %v5609
      %v5611 = vmul.f32 %v5178, 1.442695
      %v5612 = vpow.pop %v5611
      %v5613 = vmul.f32 %v5179, 1.442695
      %v5614 = vpow.pop %v5613
      %v5615 = vmul.f32 %v5180, 1.442695
      %v5616 = vpow.pop %v5615
      %v5617 = vmul.f32 %v5181, 1.442695
      %v5618 = vpow.pop %v5617
      %v5619 = vmul.f32 %v5182, 1.442695
      %v5620 = vpow.pop %v5619
      %v5621 = vmul.f32 %v5183, 1.442695
      %v5622 = vpow.pop %v5621
      %v5623 = vmul.f32 %v5184, 1.442695
      %v5624 = vpow.pop %v5623
      %v5625 = vmul.f32 %v5185, 1.442695
      %v5626 = vpow.pop %v5625
      %v5627 = vmul.f32 %v5186, 1.442695
      %v5628 = vpow.pop %v5627
      %v5629 = vmul.f32 %v5187, 1.442695
      %v5630 = vpow.pop %v5629
      %v5631 = vmul.f32 %v5188, 1.442695
      %v5632 = vpow.pop %v5631
      %v5633 = vmul.f32 %v5189, 1.442695
      %v5634 = vpow.pop %v5633
      %v5635 = vmul.f32 %v5190, 1.442695
      %v5636 = vpow.pop %v5635
      %v5637 = vmul.f32 %v5191, 1.442695
      %v5638 = vpow.pop %v5637
      %v5639 = vmul.f32 %v5192, 1.442695
      %v5640 = vpow.pop %v5639
      %v5641 = vmul.f32 %v5193, 1.442695
      %v5642 = vpow.pop %v5641
      %v5643 = vmul.f32 %v5194, 1.442695
      %v5644 = vpow.pop %v5643
      %v5645 = vmul.f32 %v5195, 1.442695
      %v5646 = vpow.pop %v5645
      %v5647 = vmul.f32 %v5196, 1.442695
      %v5648 = vpow.pop %v5647
      %v5649 = vmul.f32 %v5197, 1.442695
      %v5650 = vpow.pop %v5649
      %v5651 = vmul.f32 %v5198, 1.442695
      %v5652 = vpow.pop %v5651
      %v5653 = vmul.f32 %v5199, 1.442695
      %v5654 = vpow.pop %v5653
      %v5655 = vmul.f32 %v5200, 1.442695
      %v5656 = vpow.pop %v5655
      %v5657 = vmul.f32 %v5201, 1.442695
      %v5658 = vpow.pop %v5657
      %v5659 = vmul.f32 %v5202, 1.442695
      %v5660 = vpow.pop %v5659
      %v5661 = vmul.f32 %v5203, 1.442695
      %v5662 = vpow.pop %v5661
      %v5663 = vmul.f32 %v5204, 1.442695
      %v5664 = vpow.pop %v5663
      %v5665 = vmul.f32 %v5205, 1.442695
      %v5666 = vpow.pop %v5665
      %v5667 = vmul.f32 %v5206, 1.442695
      %v5668 = vpow.pop %v5667
      %v5669 = vmul.f32 %v5207, 1.442695
      %v5670 = vpow.pop %v5669
      %v5671 = vmul.f32 %v5208, 1.442695
      %v5672 = vpow.pop %v5671
      %v5673 = vmul.f32 %v5209, 1.442695
      %v5674 = vpow.pop %v5673
      %v5675 = vmul.f32 %v5210, 1.442695
      %v5676 = vpow.pop %v5675
      %v5677 = vmul.f32 %v5211, 1.442695
      %v5678 = vpow.pop %v5677
      %v5679 = vmul.f32 %v5212, 1.442695
      %v5680 = vpow.pop %v5679
      %v5681 = vmul.f32 %v5213, 1.442695
      %v5682 = vpow.pop %v5681
      %v5683 = vmul.f32 %v5214, 1.442695
      %v5684 = vpow.pop %v5683
      %v5685 = vmul.f32 %v5215, 1.442695
      %v5686 = vpow.pop %v5685
      %v5687 = vmul.f32 %v5216, 1.442695
      %v5688 = vpow.pop %v5687
      %v5689 = vmul.f32 %v5217, 1.442695
      %v5690 = vpow.pop %v5689
      %v5691 = vmul.f32 %v5218, 1.442695
      %v5692 = vpow.pop %v5691
      %v5693 = vmul.f32 %v5219, 1.442695
      %v5694 = vpow.pop %v5693
      %v5695 = vmul.f32 %v5220, 1.442695
      %v5696 = vpow.pop %v5695
      %v5697 = vmul.f32 %v5221, 1.442695
      %v5698 = vpow.pop %v5697
      %v5699 = vmul.f32 %v5222, 1.442695
      %v5700 = vpow.pop %v5699
      %v5701 = vmul.f32 %v5223, 1.442695
      %v5702 = vpow.pop %v5701
      %v5703 = vmul.f32 %v5224, 1.442695
      %v5704 = vpow.pop %v5703
      %v5705 = vmul.f32 %v5225, 1.442695
      %v5706 = vpow.pop %v5705
      %v5707 = vmul.f32 %v5226, 1.442695
      %v5708 = vpow.pop %v5707
      %v5709 = vmul.f32 %v5227, 1.442695
      %v5710 = vpow.pop %v5709
      %v5711 = vmul.f32 %v5228, 1.442695
      %v5712 = vpow.pop %v5711
      %v5713 = vmul.f32 %v5229, 1.442695
      %v5714 = vpow.pop %v5713
      %v5715 = vmul.f32 %v5230, 1.442695
      %v5716 = vpow.pop %v5715
      %v5717 = vmul.f32 %v5231, 1.442695
      %v5718 = vpow.pop %v5717
      %v5719 = vmul.f32 %v5232, 1.442695
      %v5720 = vpow.pop %v5719
      %v5721 = vmul.f32 %v5233, 1.442695
      %v5722 = vpow.pop %v5721
      %v5723 = vmul.f32 %v5234, 1.442695
      %v5724 = vpow.pop %v5723
      %v5725 = vmul.f32 %v5235, 1.442695
      %v5726 = vpow.pop %v5725
      %v5727 = vmul.f32 %v5236, 1.442695
      %v5728 = vpow.pop %v5727
      %v5729 = vmul.f32 %v5237, 1.442695
      %v5730 = vpow.pop %v5729
      %v5731 = vmul.f32 %v5238, 1.442695
      %v5732 = vpow.pop %v5731
      %v5733 = vmul.f32 %v5239, 1.442695
      %v5734 = vpow.pop %v5733
      %v5735 = vmul.f32 %v5240, 1.442695
      %v5736 = vpow.pop %v5735
      %v5737 = vmul.f32 %v5241, 1.442695
      %v5738 = vpow.pop %v5737
      %v5739 = vmul.f32 %v5242, 1.442695
      %v5740 = vpow.pop %v5739
      %v5741 = vmul.f32 %v5243, 1.442695
      %v5742 = vpow.pop %v5741
      %v5743 = vmul.f32 %v5244, 1.442695
      %v5744 = vpow.pop %v5743
      %v5745 = vmul.f32 %v5245, 1.442695
      %v5746 = vpow.pop %v5745
      %v5747 = vmul.f32 %v5246, 1.442695
      %v5748 = vpow.pop %v5747
      %v5749 = vmul.f32 %v5247, 1.442695
      %v5750 = vpow.pop %v5749
      %v5751 = vmul.f32 %v5248, 1.442695
      %v5752 = vpow.pop %v5751
      %v5753 = vmul.f32 %v5249, 1.442695
      %v5754 = vpow.pop %v5753
      %v5755 = vmul.f32 %v5250, 1.442695
      %v5756 = vpow.pop %v5755
      %v5757 = vmul.f32 %v5251, 1.442695
      %v5758 = vpow.pop %v5757
      %v5759 = vmul.f32 %v5252, 1.442695
      %v5760 = vpow.pop %v5759
      %v5761 = vmul.f32 %v5253, 1.442695
      %v5762 = vpow.pop %v5761
      %v5763 = vmul.f32 %v5254, 1.442695
      %v5764 = vpow.pop %v5763
      %v5765 = vmul.f32 %v5255, 1.442695
      %v5766 = vpow.pop %v5765
      %v5767 = vmul.f32 %v5256, 1.442695
      %v5768 = vpow.pop %v5767
      %v5769 = vadd.f32 %v5258, 1.0
      %v5770 = vadd.f32 %v5260, 1.0
      %v5771 = vadd.f32 %v5262, 1.0
      %v5772 = vadd.f32 %v5264, 1.0
      %v5773 = vadd.f32 %v5266, 1.0
      %v5774 = vadd.f32 %v5268, 1.0
      %v5775 = vadd.f32 %v5270, 1.0
      %v5776 = vadd.f32 %v5272, 1.0
      %v5777 = vadd.f32 %v5274, 1.0
      %v5778 = vadd.f32 %v5276, 1.0
      %v5779 = vadd.f32 %v5278, 1.0
      %v5780 = vadd.f32 %v5280, 1.0
      %v5781 = vadd.f32 %v5282, 1.0
      %v5782 = vadd.f32 %v5284, 1.0
      %v5783 = vadd.f32 %v5286, 1.0
      %v5784 = vadd.f32 %v5288, 1.0
      %v5785 = vadd.f32 %v5290, 1.0
      %v5786 = vadd.f32 %v5292, 1.0
      %v5787 = vadd.f32 %v5294, 1.0
      %v5788 = vadd.f32 %v5296, 1.0
      %v5789 = vadd.f32 %v5298, 1.0
      %v5790 = vadd.f32 %v5300, 1.0
      %v5791 = vadd.f32 %v5302, 1.0
      %v5792 = vadd.f32 %v5304, 1.0
      %v5793 = vadd.f32 %v5306, 1.0
      %v5794 = vadd.f32 %v5308, 1.0
      %v5795 = vadd.f32 %v5310, 1.0
      %v5796 = vadd.f32 %v5312, 1.0
      %v5797 = vadd.f32 %v5314, 1.0
      %v5798 = vadd.f32 %v5316, 1.0
      %v5799 = vadd.f32 %v5318, 1.0
      %v5800 = vadd.f32 %v5320, 1.0
      %v5801 = vadd.f32 %v5322, 1.0
      %v5802 = vadd.f32 %v5324, 1.0
      %v5803 = vadd.f32 %v5326, 1.0
      %v5804 = vadd.f32 %v5328, 1.0
      %v5805 = vadd.f32 %v5330, 1.0
      %v5806 = vadd.f32 %v5332, 1.0
      %v5807 = vadd.f32 %v5334, 1.0
      %v5808 = vadd.f32 %v5336, 1.0
      %v5809 = vadd.f32 %v5338, 1.0
      %v5810 = vadd.f32 %v5340, 1.0
      %v5811 = vadd.f32 %v5342, 1.0
      %v5812 = vadd.f32 %v5344, 1.0
      %v5813 = vadd.f32 %v5346, 1.0
      %v5814 = vadd.f32 %v5348, 1.0
      %v5815 = vadd.f32 %v5350, 1.0
      %v5816 = vadd.f32 %v5352, 1.0
      %v5817 = vadd.f32 %v5354, 1.0
      %v5818 = vadd.f32 %v5356, 1.0
      %v5819 = vadd.f32 %v5358, 1.0
      %v5820 = vadd.f32 %v5360, 1.0
      %v5821 = vadd.f32 %v5362, 1.0
      %v5822 = vadd.f32 %v5364, 1.0
      %v5823 = vadd.f32 %v5366, 1.0
      %v5824 = vadd.f32 %v5368, 1.0
      %v5825 = vadd.f32 %v5370, 1.0
      %v5826 = vadd.f32 %v5372, 1.0
      %v5827 = vadd.f32 %v5374, 1.0
      %v5828 = vadd.f32 %v5376, 1.0
      %v5829 = vadd.f32 %v5378, 1.0
      %v5830 = vadd.f32 %v5380, 1.0
      %v5831 = vadd.f32 %v5382, 1.0
      %v5832 = vadd.f32 %v5384, 1.0
      %v5833 = vadd.f32 %v5386, 1.0
      %v5834 = vadd.f32 %v5388, 1.0
      %v5835 = vadd.f32 %v5390, 1.0
      %v5836 = vadd.f32 %v5392, 1.0
      %v5837 = vadd.f32 %v5394, 1.0
      %v5838 = vadd.f32 %v5396, 1.0
      %v5839 = vadd.f32 %v5398, 1.0
      %v5840 = vadd.f32 %v5400, 1.0
      %v5841 = vadd.f32 %v5402, 1.0
      %v5842 = vadd.f32 %v5404, 1.0
      %v5843 = vadd.f32 %v5406, 1.0
      %v5844 = vadd.f32 %v5408, 1.0
      %v5845 = vadd.f32 %v5410, 1.0
      %v5846 = vadd.f32 %v5412, 1.0
      %v5847 = vadd.f32 %v5414, 1.0
      %v5848 = vadd.f32 %v5416, 1.0
      %v5849 = vadd.f32 %v5418, 1.0
      %v5850 = vadd.f32 %v5420, 1.0
      %v5851 = vadd.f32 %v5422, 1.0
      %v5852 = vadd.f32 %v5424, 1.0
      %v5853 = vadd.f32 %v5426, 1.0
      %v5854 = vadd.f32 %v5428, 1.0
      %v5855 = vadd.f32 %v5430, 1.0
      %v5856 = vadd.f32 %v5432, 1.0
      %v5857 = vadd.f32 %v5434, 1.0
      %v5858 = vadd.f32 %v5436, 1.0
      %v5859 = vadd.f32 %v5438, 1.0
      %v5860 = vadd.f32 %v5440, 1.0
      %v5861 = vadd.f32 %v5442, 1.0
      %v5862 = vadd.f32 %v5444, 1.0
      %v5863 = vadd.f32 %v5446, 1.0
      %v5864 = vadd.f32 %v5448, 1.0
      %v5865 = vadd.f32 %v5450, 1.0
      %v5866 = vadd.f32 %v5452, 1.0
      %v5867 = vadd.f32 %v5454, 1.0
      %v5868 = vadd.f32 %v5456, 1.0
      %v5869 = vadd.f32 %v5458, 1.0
      %v5870 = vadd.f32 %v5460, 1.0
      %v5871 = vadd.f32 %v5462, 1.0
      %v5872 = vadd.f32 %v5464, 1.0
      %v5873 = vadd.f32 %v5466, 1.0
      %v5874 = vadd.f32 %v5468, 1.0
      %v5875 = vadd.f32 %v5470, 1.0
      %v5876 = vadd.f32 %v5472, 1.0
      %v5877 = vadd.f32 %v5474, 1.0
      %v5878 = vadd.f32 %v5476, 1.0
      %v5879 = vadd.f32 %v5478, 1.0
      %v5880 = vadd.f32 %v5480, 1.0
      %v5881 = vadd.f32 %v5482, 1.0
      %v5882 = vadd.f32 %v5484, 1.0
      %v5883 = vadd.f32 %v5486, 1.0
      %v5884 = vadd.f32 %v5488, 1.0
      %v5885 = vadd.f32 %v5490, 1.0
      %v5886 = vadd.f32 %v5492, 1.0
      %v5887 = vadd.f32 %v5494, 1.0
      %v5888 = vadd.f32 %v5496, 1.0
      %v5889 = vadd.f32 %v5498, 1.0
      %v5890 = vadd.f32 %v5500, 1.0
      %v5891 = vadd.f32 %v5502, 1.0
      %v5892 = vadd.f32 %v5504, 1.0
      %v5893 = vadd.f32 %v5506, 1.0
      %v5894 = vadd.f32 %v5508, 1.0
      %v5895 = vadd.f32 %v5510, 1.0
      %v5896 = vadd.f32 %v5512, 1.0
      %v5897 = vadd.f32 %v5514, 1.0
      %v5898 = vadd.f32 %v5516, 1.0
      %v5899 = vadd.f32 %v5518, 1.0
      %v5900 = vadd.f32 %v5520, 1.0
      %v5901 = vadd.f32 %v5522, 1.0
      %v5902 = vadd.f32 %v5524, 1.0
      %v5903 = vadd.f32 %v5526, 1.0
      %v5904 = vadd.f32 %v5528, 1.0
      %v5905 = vadd.f32 %v5530, 1.0
      %v5906 = vadd.f32 %v5532, 1.0
      %v5907 = vadd.f32 %v5534, 1.0
      %v5908 = vadd.f32 %v5536, 1.0
      %v5909 = vadd.f32 %v5538, 1.0
      %v5910 = vadd.f32 %v5540, 1.0
      %v5911 = vadd.f32 %v5542, 1.0
      %v5912 = vadd.f32 %v5544, 1.0
      %v5913 = vadd.f32 %v5546, 1.0
      %v5914 = vadd.f32 %v5548, 1.0
      %v5915 = vadd.f32 %v5550, 1.0
      %v5916 = vadd.f32 %v5552, 1.0
      %v5917 = vadd.f32 %v5554, 1.0
      %v5918 = vadd.f32 %v5556, 1.0
      %v5919 = vadd.f32 %v5558, 1.0
      %v5920 = vadd.f32 %v5560, 1.0
      %v5921 = vadd.f32 %v5562, 1.0
      %v5922 = vadd.f32 %v5564, 1.0
      %v5923 = vadd.f32 %v5566, 1.0
      %v5924 = vadd.f32 %v5568, 1.0
      %v5925 = vadd.f32 %v5570, 1.0
      %v5926 = vadd.f32 %v5572, 1.0
      %v5927 = vadd.f32 %v5574, 1.0
      %v5928 = vadd.f32 %v5576, 1.0
      %v5929 = vadd.f32 %v5578, 1.0
      %v5930 = vadd.f32 %v5580, 1.0
      %v5931 = vadd.f32 %v5582, 1.0
      %v5932 = vadd.f32 %v5584, 1.0
      %v5933 = vadd.f32 %v5586, 1.0
      %v5934 = vadd.f32 %v5588, 1.0
      %v5935 = vadd.f32 %v5590, 1.0
      %v5936 = vadd.f32 %v5592, 1.0
      %v5937 = vadd.f32 %v5594, 1.0
      %v5938 = vadd.f32 %v5596, 1.0
      %v5939 = vadd.f32 %v5598, 1.0
      %v5940 = vadd.f32 %v5600, 1.0
      %v5941 = vadd.f32 %v5602, 1.0
      %v5942 = vadd.f32 %v5604, 1.0
      %v5943 = vadd.f32 %v5606, 1.0
      %v5944 = vadd.f32 %v5608, 1.0
      %v5945 = vadd.f32 %v5610, 1.0
      %v5946 = vadd.f32 %v5612, 1.0
      %v5947 = vadd.f32 %v5614, 1.0
      %v5948 = vadd.f32 %v5616, 1.0
      %v5949 = vadd.f32 %v5618, 1.0
      %v5950 = vadd.f32 %v5620, 1.0
      %v5951 = vadd.f32 %v5622, 1.0
      %v5952 = vadd.f32 %v5624, 1.0
      %v5953 = vadd.f32 %v5626, 1.0
      %v5954 = vadd.f32 %v5628, 1.0
      %v5955 = vadd.f32 %v5630, 1.0
      %v5956 = vadd.f32 %v5632, 1.0
      %v5957 = vadd.f32 %v5634, 1.0
      %v5958 = vadd.f32 %v5636, 1.0
      %v5959 = vadd.f32 %v5638, 1.0
      %v5960 = vadd.f32 %v5640, 1.0
      %v5961 = vadd.f32 %v5642, 1.0
      %v5962 = vadd.f32 %v5644, 1.0
      %v5963 = vadd.f32 %v5646, 1.0
      %v5964 = vadd.f32 %v5648, 1.0
      %v5965 = vadd.f32 %v5650, 1.0
      %v5966 = vadd.f32 %v5652, 1.0
      %v5967 = vadd.f32 %v5654, 1.0
      %v5968 = vadd.f32 %v5656, 1.0
      %v5969 = vadd.f32 %v5658, 1.0
      %v5970 = vadd.f32 %v5660, 1.0
      %v5971 = vadd.f32 %v5662, 1.0
      %v5972 = vadd.f32 %v5664, 1.0
      %v5973 = vadd.f32 %v5666, 1.0
      %v5974 = vadd.f32 %v5668, 1.0
      %v5975 = vadd.f32 %v5670, 1.0
      %v5976 = vadd.f32 %v5672, 1.0
      %v5977 = vadd.f32 %v5674, 1.0
      %v5978 = vadd.f32 %v5676, 1.0
      %v5979 = vadd.f32 %v5678, 1.0
      %v5980 = vadd.f32 %v5680, 1.0
      %v5981 = vadd.f32 %v5682, 1.0
      %v5982 = vadd.f32 %v5684, 1.0
      %v5983 = vadd.f32 %v5686, 1.0
      %v5984 = vadd.f32 %v5688, 1.0
      %v5985 = vadd.f32 %v5690, 1.0
      %v5986 = vadd.f32 %v5692, 1.0
      %v5987 = vadd.f32 %v5694, 1.0
      %v5988 = vadd.f32 %v5696, 1.0
      %v5989 = vadd.f32 %v5698, 1.0
      %v5990 = vadd.f32 %v5700, 1.0
      %v5991 = vadd.f32 %v5702, 1.0
      %v5992 = vadd.f32 %v5704, 1.0
      %v5993 = vadd.f32 %v5706, 1.0
      %v5994 = vadd.f32 %v5708, 1.0
      %v5995 = vadd.f32 %v5710, 1.0
      %v5996 = vadd.f32 %v5712, 1.0
      %v5997 = vadd.f32 %v5714, 1.0
      %v5998 = vadd.f32 %v5716, 1.0
      %v5999 = vadd.f32 %v5718, 1.0
      %v6000 = vadd.f32 %v5720, 1.0
      %v6001 = vadd.f32 %v5722, 1.0
      %v6002 = vadd.f32 %v5724, 1.0
      %v6003 = vadd.f32 %v5726, 1.0
      %v6004 = vadd.f32 %v5728, 1.0
      %v6005 = vadd.f32 %v5730, 1.0
      %v6006 = vadd.f32 %v5732, 1.0
      %v6007 = vadd.f32 %v5734, 1.0
      %v6008 = vadd.f32 %v5736, 1.0
      %v6009 = vadd.f32 %v5738, 1.0
      %v6010 = vadd.f32 %v5740, 1.0
      %v6011 = vadd.f32 %v5742, 1.0
      %v6012 = vadd.f32 %v5744, 1.0
      %v6013 = vadd.f32 %v5746, 1.0
      %v6014 = vadd.f32 %v5748, 1.0
      %v6015 = vadd.f32 %v5750, 1.0
      %v6016 = vadd.f32 %v5752, 1.0
      %v6017 = vadd.f32 %v5754, 1.0
      %v6018 = vadd.f32 %v5756, 1.0
      %v6019 = vadd.f32 %v5758, 1.0
      %v6020 = vadd.f32 %v5760, 1.0
      %v6021 = vadd.f32 %v5762, 1.0
      %v6022 = vadd.f32 %v5764, 1.0
      %v6023 = vadd.f32 %v5766, 1.0
      %v6024 = vadd.f32 %v5768, 1.0
      %v6025 = vrcp.pop %v5769
      %v6026 = vrcp.pop %v5770
      %v6027 = vrcp.pop %v5771
      %v6028 = vrcp.pop %v5772
      %v6029 = vrcp.pop %v5773
      %v6030 = vrcp.pop %v5774
      %v6031 = vrcp.pop %v5775
      %v6032 = vrcp.pop %v5776
      %v6033 = vrcp.pop %v5777
      %v6034 = vrcp.pop %v5778
      %v6035 = vrcp.pop %v5779
      %v6036 = vrcp.pop %v5780
      %v6037 = vrcp.pop %v5781
      %v6038 = vrcp.pop %v5782
      %v6039 = vrcp.pop %v5783
      %v6040 = vrcp.pop %v5784
      %v6041 = vrcp.pop %v5785
      %v6042 = vrcp.pop %v5786
      %v6043 = vrcp.pop %v5787
      %v6044 = vrcp.pop %v5788
      %v6045 = vrcp.pop %v5789
      %v6046 = vrcp.pop %v5790
      %v6047 = vrcp.pop %v5791
      %v6048 = vrcp.pop %v5792
      %v6049 = vrcp.pop %v5793
      %v6050 = vrcp.pop %v5794
      %v6051 = vrcp.pop %v5795
      %v6052 = vrcp.pop %v5796
      %v6053 = vrcp.pop %v5797
      %v6054 = vrcp.pop %v5798
      %v6055 = vrcp.pop %v5799
      %v6056 = vrcp.pop %v5800
      %v6057 = vrcp.pop %v5801
      %v6058 = vrcp.pop %v5802
      %v6059 = vrcp.pop %v5803
      %v6060 = vrcp.pop %v5804
      %v6061 = vrcp.pop %v5805
      %v6062 = vrcp.pop %v5806
      %v6063 = vrcp.pop %v5807
      %v6064 = vrcp.pop %v5808
      %v6065 = vrcp.pop %v5809
      %v6066 = vrcp.pop %v5810
      %v6067 = vrcp.pop %v5811
      %v6068 = vrcp.pop %v5812
      %v6069 = vrcp.pop %v5813
      %v6070 = vrcp.pop %v5814
      %v6071 = vrcp.pop %v5815
      %v6072 = vrcp.pop %v5816
      %v6073 = vrcp.pop %v5817
      %v6074 = vrcp.pop %v5818
      %v6075 = vrcp.pop %v5819
      %v6076 = vrcp.pop %v5820
      %v6077 = vrcp.pop %v5821
      %v6078 = vrcp.pop %v5822
      %v6079 = vrcp.pop %v5823
      %v6080 = vrcp.pop %v5824
      %v6081 = vrcp.pop %v5825
      %v6082 = vrcp.pop %v5826
      %v6083 = vrcp.pop %v5827
      %v6084 = vrcp.pop %v5828
      %v6085 = vrcp.pop %v5829
      %v6086 = vrcp.pop %v5830
      %v6087 = vrcp.pop %v5831
      %v6088 = vrcp.pop %v5832
      %v6089 = vrcp.pop %v5833
      %v6090 = vrcp.pop %v5834
      %v6091 = vrcp.pop %v5835
      %v6092 = vrcp.pop %v5836
      %v6093 = vrcp.pop %v5837
      %v6094 = vrcp.pop %v5838
      %v6095 = vrcp.pop %v5839
      %v6096 = vrcp.pop %v5840
      %v6097 = vrcp.pop %v5841
      %v6098 = vrcp.pop %v5842
      %v6099 = vrcp.pop %v5843
      %v6100 = vrcp.pop %v5844
      %v6101 = vrcp.pop %v5845
      %v6102 = vrcp.pop %v5846
      %v6103 = vrcp.pop %v5847
      %v6104 = vrcp.pop %v5848
      %v6105 = vrcp.pop %v5849
      %v6106 = vrcp.pop %v5850
      %v6107 = vrcp.pop %v5851
      %v6108 = vrcp.pop %v5852
      %v6109 = vrcp.pop %v5853
      %v6110 = vrcp.pop %v5854
      %v6111 = vrcp.pop %v5855
      %v6112 = vrcp.pop %v5856
      %v6113 = vrcp.pop %v5857
      %v6114 = vrcp.pop %v5858
      %v6115 = vrcp.pop %v5859
      %v6116 = vrcp.pop %v5860
      %v6117 = vrcp.pop %v5861
      %v6118 = vrcp.pop %v5862
      %v6119 = vrcp.pop %v5863
      %v6120 = vrcp.pop %v5864
      %v6121 = vrcp.pop %v5865
      %v6122 = vrcp.pop %v5866
      %v6123 = vrcp.pop %v5867
      %v6124 = vrcp.pop %v5868
      %v6125 = vrcp.pop %v5869
      %v6126 = vrcp.pop %v5870
      %v6127 = vrcp.pop %v5871
      %v6128 = vrcp.pop %v5872
      %v6129 = vrcp.pop %v5873
      %v6130 = vrcp.pop %v5874
      %v6131 = vrcp.pop %v5875
      %v6132 = vrcp.pop %v5876
      %v6133 = vrcp.pop %v5877
      %v6134 = vrcp.pop %v5878
      %v6135 = vrcp.pop %v5879
      %v6136 = vrcp.pop %v5880
      %v6137 = vrcp.pop %v5881
      %v6138 = vrcp.pop %v5882
      %v6139 = vrcp.pop %v5883
      %v6140 = vrcp.pop %v5884
      %v6141 = vrcp.pop %v5885
      %v6142 = vrcp.pop %v5886
      %v6143 = vrcp.pop %v5887
      %v6144 = vrcp.pop %v5888
      %v6145 = vrcp.pop %v5889
      %v6146 = vrcp.pop %v5890
      %v6147 = vrcp.pop %v5891
      %v6148 = vrcp.pop %v5892
      %v6149 = vrcp.pop %v5893
      %v6150 = vrcp.pop %v5894
      %v6151 = vrcp.pop %v5895
      %v6152 = vrcp.pop %v5896
      %v6153 = vrcp.pop %v5897
      %v6154 = vrcp.pop %v5898
      %v6155 = vrcp.pop %v5899
      %v6156 = vrcp.pop %v5900
      %v6157 = vrcp.pop %v5901
      %v6158 = vrcp.pop %v5902
      %v6159 = vrcp.pop %v5903
      %v6160 = vrcp.pop %v5904
      %v6161 = vrcp.pop %v5905
      %v6162 = vrcp.pop %v5906
      %v6163 = vrcp.pop %v5907
      %v6164 = vrcp.pop %v5908
      %v6165 = vrcp.pop %v5909
      %v6166 = vrcp.pop %v5910
      %v6167 = vrcp.pop %v5911
      %v6168 = vrcp.pop %v5912
      %v6169 = vrcp.pop %v5913
      %v6170 = vrcp.pop %v5914
      %v6171 = vrcp.pop %v5915
      %v6172 = vrcp.pop %v5916
      %v6173 = vrcp.pop %v5917
      %v6174 = vrcp.pop %v5918
      %v6175 = vrcp.pop %v5919
      %v6176 = vrcp.pop %v5920
      %v6177 = vrcp.pop %v5921
      %v6178 = vrcp.pop %v5922
      %v6179 = vrcp.pop %v5923
      %v6180 = vrcp.pop %v5924
      %v6181 = vrcp.pop %v5925
      %v6182 = vrcp.pop %v5926
      %v6183 = vrcp.pop %v5927
      %v6184 = vrcp.pop %v5928
      %v6185 = vrcp.pop %v5929
      %v6186 = vrcp.pop %v5930
      %v6187 = vrcp.pop %v5931
      %v6188 = vrcp.pop %v5932
      %v6189 = vrcp.pop %v5933
      %v6190 = vrcp.pop %v5934
      %v6191 = vrcp.pop %v5935
      %v6192 = vrcp.pop %v5936
      %v6193 = vrcp.pop %v5937
      %v6194 = vrcp.pop %v5938
      %v6195 = vrcp.pop %v5939
      %v6196 = vrcp.pop %v5940
      %v6197 = vrcp.pop %v5941
      %v6198 = vrcp.pop %v5942
      %v6199 = vrcp.pop %v5943
      %v6200 = vrcp.pop %v5944
      %v6201 = vrcp.pop %v5945
      %v6202 = vrcp.pop %v5946
      %v6203 = vrcp.pop %v5947
      %v6204 = vrcp.pop %v5948
      %v6205 = vrcp.pop %v5949
      %v6206 = vrcp.pop %v5950
      %v6207 = vrcp.pop %v5951
      %v6208 = vrcp.pop %v5952
      %v6209 = vrcp.pop %v5953
      %v6210 = vrcp.pop %v5954
      %v6211 = vrcp.pop %v5955
      %v6212 = vrcp.pop %v5956
      %v6213 = vrcp.pop %v5957
      %v6214 = vrcp.pop %v5958
      %v6215 = vrcp.pop %v5959
      %v6216 = vrcp.pop %v5960
      %v6217 = vrcp.pop %v5961
      %v6218 = vrcp.pop %v5962
      %v6219 = vrcp.pop %v5963
      %v6220 = vrcp.pop %v5964
      %v6221 = vrcp.pop %v5965
      %v6222 = vrcp.pop %v5966
      %v6223 = vrcp.pop %v5967
      %v6224 = vrcp.pop %v5968
      %v6225 = vrcp.pop %v5969
      %v6226 = vrcp.pop %v5970
      %v6227 = vrcp.pop %v5971
      %v6228 = vrcp.pop %v5972
      %v6229 = vrcp.pop %v5973
      %v6230 = vrcp.pop %v5974
      %v6231 = vrcp.pop %v5975
      %v6232 = vrcp.pop %v5976
      %v6233 = vrcp.pop %v5977
      %v6234 = vrcp.pop %v5978
      %v6235 = vrcp.pop %v5979
      %v6236 = vrcp.pop %v5980
      %v6237 = vrcp.pop %v5981
      %v6238 = vrcp.pop %v5982
      %v6239 = vrcp.pop %v5983
      %v6240 = vrcp.pop %v5984
      %v6241 = vrcp.pop %v5985
      %v6242 = vrcp.pop %v5986
      %v6243 = vrcp.pop %v5987
      %v6244 = vrcp.pop %v5988
      %v6245 = vrcp.pop %v5989
      %v6246 = vrcp.pop %v5990
      %v6247 = vrcp.pop %v5991
      %v6248 = vrcp.pop %v5992
      %v6249 = vrcp.pop %v5993
      %v6250 = vrcp.pop %v5994
      %v6251 = vrcp.pop %v5995
      %v6252 = vrcp.pop %v5996
      %v6253 = vrcp.pop %v5997
      %v6254 = vrcp.pop %v5998
      %v6255 = vrcp.pop %v5999
      %v6256 = vrcp.pop %v6000
      %v6257 = vrcp.pop %v6001
      %v6258 = vrcp.pop %v6002
      %v6259 = vrcp.pop %v6003
      %v6260 = vrcp.pop %v6004
      %v6261 = vrcp.pop %v6005
      %v6262 = vrcp.pop %v6006
      %v6263 = vrcp.pop %v6007
      %v6264 = vrcp.pop %v6008
      %v6265 = vrcp.pop %v6009
      %v6266 = vrcp.pop %v6010
      %v6267 = vrcp.pop %v6011
      %v6268 = vrcp.pop %v6012
      %v6269 = vrcp.pop %v6013
      %v6270 = vrcp.pop %v6014
      %v6271 = vrcp.pop %v6015
      %v6272 = vrcp.pop %v6016
      %v6273 = vrcp.pop %v6017
      %v6274 = vrcp.pop %v6018
      %v6275 = vrcp.pop %v6019
      %v6276 = vrcp.pop %v6020
      %v6277 = vrcp.pop %v6021
      %v6278 = vrcp.pop %v6022
      %v6279 = vrcp.pop %v6023
      %v6280 = vrcp.pop %v6024
      %v6281 = vld [vmem:[%s748] sm:$0xff]
      %v6282 = vld [vmem:[%s748 + $0x8] sm:$0xff]
      %v6283 = vld [vmem:[%s748 + $0x10] sm:$0xff]
      %v6284 = vld [vmem:[%s748 + $0x18] sm:$0xff]
      %v6285 = vld [vmem:[%s748 + $0x20] sm:$0xff]
      %v6286 = vld [vmem:[%s748 + $0x28] sm:$0xff]
      %v6287 = vld [vmem:[%s748 + $0x30] sm:$0xff]
      %v6288 = vld [vmem:[%s748 + $0x38] sm:$0xff]
      %v6289 = vld [vmem:[%s748 + $0x40] sm:$0xff]
      %v6290 = vld [vmem:[%s748 + $0x48] sm:$0xff]
      %v6291 = vld [vmem:[%s748 + $0x50] sm:$0xff]
      %v6292 = vld [vmem:[%s748 + $0x58] sm:$0xff]
      %v6293 = vld [vmem:[%s748 + $0x60] sm:$0xff]
      %v6294 = vld [vmem:[%s748 + $0x68] sm:$0xff]
      %v6295 = vld [vmem:[%s748 + $0x70] sm:$0xff]
      %v6296 = vld [vmem:[%s748 + $0x78] sm:$0xff]
      %v6297 = vld [vmem:[%s748 + $0x80] sm:$0xff]
      %v6298 = vld [vmem:[%s748 + $0x88] sm:$0xff]
      %v6299 = vld [vmem:[%s748 + $0x90] sm:$0xff]
      %v6300 = vld [vmem:[%s748 + $0x98] sm:$0xff]
      %v6301 = vld [vmem:[%s748 + $0xa0] sm:$0xff]
      %v6302 = vld [vmem:[%s748 + $0xa8] sm:$0xff]
      %v6303 = vld [vmem:[%s748 + $0xb0] sm:$0xff]
      %v6304 = vld [vmem:[%s748 + $0xb8] sm:$0xff]
      %v6305 = vld [vmem:[%s748 + $0xc0] sm:$0xff]
      %v6306 = vld [vmem:[%s748 + $0xc8] sm:$0xff]
      %v6307 = vld [vmem:[%s748 + $0xd0] sm:$0xff]
      %v6308 = vld [vmem:[%s748 + $0xd8] sm:$0xff]
      %v6309 = vld [vmem:[%s748 + $0xe0] sm:$0xff]
      %v6310 = vld [vmem:[%s748 + $0xe8] sm:$0xff]
      %v6311 = vld [vmem:[%s748 + $0xf0] sm:$0xff]
      %v6312 = vld [vmem:[%s748 + $0xf8] sm:$0xff]
      %v6313 = vld [vmem:[%s748 + $0x100] sm:$0xff]
      %v6314 = vld [vmem:[%s748 + $0x108] sm:$0xff]
      %v6315 = vld [vmem:[%s748 + $0x110] sm:$0xff]
      %v6316 = vld [vmem:[%s748 + $0x118] sm:$0xff]
      %v6317 = vld [vmem:[%s748 + $0x120] sm:$0xff]
      %v6318 = vld [vmem:[%s748 + $0x128] sm:$0xff]
      %v6319 = vld [vmem:[%s748 + $0x130] sm:$0xff]
      %v6320 = vld [vmem:[%s748 + $0x138] sm:$0xff]
      %v6321 = vld [vmem:[%s748 + $0x140] sm:$0xff]
      %v6322 = vld [vmem:[%s748 + $0x148] sm:$0xff]
      %v6323 = vld [vmem:[%s748 + $0x150] sm:$0xff]
      %v6324 = vld [vmem:[%s748 + $0x158] sm:$0xff]
      %v6325 = vld [vmem:[%s748 + $0x160] sm:$0xff]
      %v6326 = vld [vmem:[%s748 + $0x168] sm:$0xff]
      %v6327 = vld [vmem:[%s748 + $0x170] sm:$0xff]
      %v6328 = vld [vmem:[%s748 + $0x178] sm:$0xff]
      %v6329 = vld [vmem:[%s748 + $0x180] sm:$0xff]
      %v6330 = vld [vmem:[%s748 + $0x188] sm:$0xff]
      %v6331 = vld [vmem:[%s748 + $0x190] sm:$0xff]
      %v6332 = vld [vmem:[%s748 + $0x198] sm:$0xff]
      %v6333 = vld [vmem:[%s748 + $0x1a0] sm:$0xff]
      %v6334 = vld [vmem:[%s748 + $0x1a8] sm:$0xff]
      %v6335 = vld [vmem:[%s748 + $0x1b0] sm:$0xff]
      %v6336 = vld [vmem:[%s748 + $0x1b8] sm:$0xff]
      %v6337 = vld [vmem:[%s748 + $0x1c0] sm:$0xff]
      %v6338 = vld [vmem:[%s748 + $0x1c8] sm:$0xff]
      %v6339 = vld [vmem:[%s748 + $0x1d0] sm:$0xff]
      %v6340 = vld [vmem:[%s748 + $0x1d8] sm:$0xff]
      %v6341 = vld [vmem:[%s748 + $0x1e0] sm:$0xff]
      %v6342 = vld [vmem:[%s748 + $0x1e8] sm:$0xff]
      %v6343 = vld [vmem:[%s748 + $0x1f0] sm:$0xff]
      %v6344 = vld [vmem:[%s748 + $0x1f8] sm:$0xff]
      %v6345 = vld [vmem:[%s748 + $0x200] sm:$0xff]
      %v6346 = vld [vmem:[%s748 + $0x208] sm:$0xff]
      %v6347 = vld [vmem:[%s748 + $0x210] sm:$0xff]
      %v6348 = vld [vmem:[%s748 + $0x218] sm:$0xff]
      %v6349 = vld [vmem:[%s748 + $0x220] sm:$0xff]
      %v6350 = vld [vmem:[%s748 + $0x228] sm:$0xff]
      %v6351 = vld [vmem:[%s748 + $0x230] sm:$0xff]
      %v6352 = vld [vmem:[%s748 + $0x238] sm:$0xff]
      %v6353 = vld [vmem:[%s748 + $0x240] sm:$0xff]
      %v6354 = vld [vmem:[%s748 + $0x248] sm:$0xff]
      %v6355 = vld [vmem:[%s748 + $0x250] sm:$0xff]
      %v6356 = vld [vmem:[%s748 + $0x258] sm:$0xff]
      %v6357 = vld [vmem:[%s748 + $0x260] sm:$0xff]
      %v6358 = vld [vmem:[%s748 + $0x268] sm:$0xff]
      %v6359 = vld [vmem:[%s748 + $0x270] sm:$0xff]
      %v6360 = vld [vmem:[%s748 + $0x278] sm:$0xff]
      %v6361 = vld [vmem:[%s748 + $0x280] sm:$0xff]
      %v6362 = vld [vmem:[%s748 + $0x288] sm:$0xff]
      %v6363 = vld [vmem:[%s748 + $0x290] sm:$0xff]
      %v6364 = vld [vmem:[%s748 + $0x298] sm:$0xff]
      %v6365 = vld [vmem:[%s748 + $0x2a0] sm:$0xff]
      %v6366 = vld [vmem:[%s748 + $0x2a8] sm:$0xff]
      %v6367 = vld [vmem:[%s748 + $0x2b0] sm:$0xff]
      %v6368 = vld [vmem:[%s748 + $0x2b8] sm:$0xff]
      %v6369 = vld [vmem:[%s748 + $0x2c0] sm:$0xff]
      %v6370 = vld [vmem:[%s748 + $0x2c8] sm:$0xff]
      %v6371 = vld [vmem:[%s748 + $0x2d0] sm:$0xff]
      %v6372 = vld [vmem:[%s748 + $0x2d8] sm:$0xff]
      %v6373 = vld [vmem:[%s748 + $0x2e0] sm:$0xff]
      %v6374 = vld [vmem:[%s748 + $0x2e8] sm:$0xff]
      %v6375 = vld [vmem:[%s748 + $0x2f0] sm:$0xff]
      %v6376 = vld [vmem:[%s748 + $0x2f8] sm:$0xff]
      %v6377 = vld [vmem:[%s748 + $0x300] sm:$0xff]
      %v6378 = vld [vmem:[%s748 + $0x308] sm:$0xff]
      %v6379 = vld [vmem:[%s748 + $0x310] sm:$0xff]
      %v6380 = vld [vmem:[%s748 + $0x318] sm:$0xff]
      %v6381 = vld [vmem:[%s748 + $0x320] sm:$0xff]
      %v6382 = vld [vmem:[%s748 + $0x328] sm:$0xff]
      %v6383 = vld [vmem:[%s748 + $0x330] sm:$0xff]
      %v6384 = vld [vmem:[%s748 + $0x338] sm:$0xff]
      %v6385 = vld [vmem:[%s748 + $0x340] sm:$0xff]
      %v6386 = vld [vmem:[%s748 + $0x348] sm:$0xff]
      %v6387 = vld [vmem:[%s748 + $0x350] sm:$0xff]
      %v6388 = vld [vmem:[%s748 + $0x358] sm:$0xff]
      %v6389 = vld [vmem:[%s748 + $0x360] sm:$0xff]
      %v6390 = vld [vmem:[%s748 + $0x368] sm:$0xff]
      %v6391 = vld [vmem:[%s748 + $0x370] sm:$0xff]
      %v6392 = vld [vmem:[%s748 + $0x378] sm:$0xff]
      %v6393 = vld [vmem:[%s748 + $0x380] sm:$0xff]
      %v6394 = vld [vmem:[%s748 + $0x388] sm:$0xff]
      %v6395 = vld [vmem:[%s748 + $0x390] sm:$0xff]
      %v6396 = vld [vmem:[%s748 + $0x398] sm:$0xff]
      %v6397 = vld [vmem:[%s748 + $0x3a0] sm:$0xff]
      %v6398 = vld [vmem:[%s748 + $0x3a8] sm:$0xff]
      %v6399 = vld [vmem:[%s748 + $0x3b0] sm:$0xff]
      %v6400 = vld [vmem:[%s748 + $0x3b8] sm:$0xff]
      %v6401 = vld [vmem:[%s748 + $0x3c0] sm:$0xff]
      %v6402 = vld [vmem:[%s748 + $0x3c8] sm:$0xff]
      %v6403 = vld [vmem:[%s748 + $0x3d0] sm:$0xff]
      %v6404 = vld [vmem:[%s748 + $0x3d8] sm:$0xff]
      %v6405 = vld [vmem:[%s748 + $0x3e0] sm:$0xff]
      %v6406 = vld [vmem:[%s748 + $0x3e8] sm:$0xff]
      %v6407 = vld [vmem:[%s748 + $0x3f0] sm:$0xff]
      %v6408 = vld [vmem:[%s748 + $0x3f8] sm:$0xff]
      %v6409 = vperm.slane %v3867, 1
      %v6410 = vperm.slane %v3868, 1
      %v6411 = vmul.f32 %v6409, %v6025
      %v6412 = vmul.f32 %v6410, %v6026
      %v6413 = vmul.f32 %v6409, %v6027
      %v6414 = vmul.f32 %v6410, %v6028
      %v6415 = vmul.f32 %v6409, %v6029
      %v6416 = vmul.f32 %v6410, %v6030
      %v6417 = vmul.f32 %v6409, %v6031
      %v6418 = vmul.f32 %v6410, %v6032
      %v6419 = vmul.f32 %v6409, %v6033
      %v6420 = vmul.f32 %v6410, %v6034
      %v6421 = vmul.f32 %v6409, %v6035
      %v6422 = vmul.f32 %v6410, %v6036
      %v6423 = vmul.f32 %v6409, %v6037
      %v6424 = vmul.f32 %v6410, %v6038
      %v6425 = vmul.f32 %v6409, %v6039
      %v6426 = vmul.f32 %v6410, %v6040
      %v6427 = vmul.f32 %v6409, %v6041
      %v6428 = vmul.f32 %v6410, %v6042
      %v6429 = vmul.f32 %v6409, %v6043
      %v6430 = vmul.f32 %v6410, %v6044
      %v6431 = vmul.f32 %v6409, %v6045
      %v6432 = vmul.f32 %v6410, %v6046
      %v6433 = vmul.f32 %v6409, %v6047
      %v6434 = vmul.f32 %v6410, %v6048
      %v6435 = vmul.f32 %v6409, %v6049
      %v6436 = vmul.f32 %v6410, %v6050
      %v6437 = vmul.f32 %v6409, %v6051
      %v6438 = vmul.f32 %v6410, %v6052
      %v6439 = vmul.f32 %v6409, %v6053
      %v6440 = vmul.f32 %v6410, %v6054
      %v6441 = vmul.f32 %v6409, %v6055
      %v6442 = vmul.f32 %v6410, %v6056
      %v6443 = vmul.f32 %v6409, %v6057
      %v6444 = vmul.f32 %v6410, %v6058
      %v6445 = vmul.f32 %v6409, %v6059
      %v6446 = vmul.f32 %v6410, %v6060
      %v6447 = vmul.f32 %v6409, %v6061
      %v6448 = vmul.f32 %v6410, %v6062
      %v6449 = vmul.f32 %v6409, %v6063
      %v6450 = vmul.f32 %v6410, %v6064
      %v6451 = vmul.f32 %v6409, %v6065
      %v6452 = vmul.f32 %v6410, %v6066
      %v6453 = vmul.f32 %v6409, %v6067
      %v6454 = vmul.f32 %v6410, %v6068
      %v6455 = vmul.f32 %v6409, %v6069
      %v6456 = vmul.f32 %v6410, %v6070
      %v6457 = vmul.f32 %v6409, %v6071
      %v6458 = vmul.f32 %v6410, %v6072
      %v6459 = vmul.f32 %v6409, %v6073
      %v6460 = vmul.f32 %v6410, %v6074
      %v6461 = vmul.f32 %v6409, %v6075
      %v6462 = vmul.f32 %v6410, %v6076
      %v6463 = vmul.f32 %v6409, %v6077
      %v6464 = vmul.f32 %v6410, %v6078
      %v6465 = vmul.f32 %v6409, %v6079
      %v6466 = vmul.f32 %v6410, %v6080
      %v6467 = vmul.f32 %v6409, %v6081
      %v6468 = vmul.f32 %v6410, %v6082
      %v6469 = vmul.f32 %v6409, %v6083
      %v6470 = vmul.f32 %v6410, %v6084
      %v6471 = vmul.f32 %v6409, %v6085
      %v6472 = vmul.f32 %v6410, %v6086
      %v6473 = vmul.f32 %v6409, %v6087
      %v6474 = vmul.f32 %v6410, %v6088
      %v6475 = vmul.f32 %v6409, %v6089
      %v6476 = vmul.f32 %v6410, %v6090
      %v6477 = vmul.f32 %v6409, %v6091
      %v6478 = vmul.f32 %v6410, %v6092
      %v6479 = vmul.f32 %v6409, %v6093
      %v6480 = vmul.f32 %v6410, %v6094
      %v6481 = vmul.f32 %v6409, %v6095
      %v6482 = vmul.f32 %v6410, %v6096
      %v6483 = vmul.f32 %v6409, %v6097
      %v6484 = vmul.f32 %v6410, %v6098
      %v6485 = vmul.f32 %v6409, %v6099
      %v6486 = vmul.f32 %v6410, %v6100
      %v6487 = vmul.f32 %v6409, %v6101
      %v6488 = vmul.f32 %v6410, %v6102
      %v6489 = vmul.f32 %v6409, %v6103
      %v6490 = vmul.f32 %v6410, %v6104
      %v6491 = vmul.f32 %v6409, %v6105
      %v6492 = vmul.f32 %v6410, %v6106
      %v6493 = vmul.f32 %v6409, %v6107
      %v6494 = vmul.f32 %v6410, %v6108
      %v6495 = vmul.f32 %v6409, %v6109
      %v6496 = vmul.f32 %v6410, %v6110
      %v6497 = vmul.f32 %v6409, %v6111
      %v6498 = vmul.f32 %v6410, %v6112
      %v6499 = vmul.f32 %v6409, %v6113
      %v6500 = vmul.f32 %v6410, %v6114
      %v6501 = vmul.f32 %v6409, %v6115
      %v6502 = vmul.f32 %v6410, %v6116
      %v6503 = vmul.f32 %v6409, %v6117
      %v6504 = vmul.f32 %v6410, %v6118
      %v6505 = vmul.f32 %v6409, %v6119
      %v6506 = vmul.f32 %v6410, %v6120
      %v6507 = vmul.f32 %v6409, %v6121
      %v6508 = vmul.f32 %v6410, %v6122
      %v6509 = vmul.f32 %v6409, %v6123
      %v6510 = vmul.f32 %v6410, %v6124
      %v6511 = vmul.f32 %v6409, %v6125
      %v6512 = vmul.f32 %v6410, %v6126
      %v6513 = vmul.f32 %v6409, %v6127
      %v6514 = vmul.f32 %v6410, %v6128
      %v6515 = vmul.f32 %v6409, %v6129
      %v6516 = vmul.f32 %v6410, %v6130
      %v6517 = vmul.f32 %v6409, %v6131
      %v6518 = vmul.f32 %v6410, %v6132
      %v6519 = vmul.f32 %v6409, %v6133
      %v6520 = vmul.f32 %v6410, %v6134
      %v6521 = vmul.f32 %v6409, %v6135
      %v6522 = vmul.f32 %v6410, %v6136
      %v6523 = vmul.f32 %v6409, %v6137
      %v6524 = vmul.f32 %v6410, %v6138
      %v6525 = vmul.f32 %v6409, %v6139
      %v6526 = vmul.f32 %v6410, %v6140
      %v6527 = vmul.f32 %v6409, %v6141
      %v6528 = vmul.f32 %v6410, %v6142
      %v6529 = vmul.f32 %v6409, %v6143
      %v6530 = vmul.f32 %v6410, %v6144
      %v6531 = vmul.f32 %v6409, %v6145
      %v6532 = vmul.f32 %v6410, %v6146
      %v6533 = vmul.f32 %v6409, %v6147
      %v6534 = vmul.f32 %v6410, %v6148
      %v6535 = vmul.f32 %v6409, %v6149
      %v6536 = vmul.f32 %v6410, %v6150
      %v6537 = vmul.f32 %v6409, %v6151
      %v6538 = vmul.f32 %v6410, %v6152
      %v6539 = vmul.f32 %v6409, %v6153
      %v6540 = vmul.f32 %v6410, %v6154
      %v6541 = vmul.f32 %v6409, %v6155
      %v6542 = vmul.f32 %v6410, %v6156
      %v6543 = vmul.f32 %v6409, %v6157
      %v6544 = vmul.f32 %v6410, %v6158
      %v6545 = vmul.f32 %v6409, %v6159
      %v6546 = vmul.f32 %v6410, %v6160
      %v6547 = vmul.f32 %v6409, %v6161
      %v6548 = vmul.f32 %v6410, %v6162
      %v6549 = vmul.f32 %v6409, %v6163
      %v6550 = vmul.f32 %v6410, %v6164
      %v6551 = vmul.f32 %v6409, %v6165
      %v6552 = vmul.f32 %v6410, %v6166
      %v6553 = vmul.f32 %v6409, %v6167
      %v6554 = vmul.f32 %v6410, %v6168
      %v6555 = vmul.f32 %v6409, %v6169
      %v6556 = vmul.f32 %v6410, %v6170
      %v6557 = vmul.f32 %v6409, %v6171
      %v6558 = vmul.f32 %v6410, %v6172
      %v6559 = vmul.f32 %v6409, %v6173
      %v6560 = vmul.f32 %v6410, %v6174
      %v6561 = vmul.f32 %v6409, %v6175
      %v6562 = vmul.f32 %v6410, %v6176
      %v6563 = vmul.f32 %v6409, %v6177
      %v6564 = vmul.f32 %v6410, %v6178
      %v6565 = vmul.f32 %v6409, %v6179
      %v6566 = vmul.f32 %v6410, %v6180
      %v6567 = vmul.f32 %v6409, %v6181
      %v6568 = vmul.f32 %v6410, %v6182
      %v6569 = vmul.f32 %v6409, %v6183
      %v6570 = vmul.f32 %v6410, %v6184
      %v6571 = vmul.f32 %v6409, %v6185
      %v6572 = vmul.f32 %v6410, %v6186
      %v6573 = vmul.f32 %v6409, %v6187
      %v6574 = vmul.f32 %v6410, %v6188
      %v6575 = vmul.f32 %v6409, %v6189
      %v6576 = vmul.f32 %v6410, %v6190
      %v6577 = vmul.f32 %v6409, %v6191
      %v6578 = vmul.f32 %v6410, %v6192
      %v6579 = vmul.f32 %v6409, %v6193
      %v6580 = vmul.f32 %v6410, %v6194
      %v6581 = vmul.f32 %v6409, %v6195
      %v6582 = vmul.f32 %v6410, %v6196
      %v6583 = vmul.f32 %v6409, %v6197
      %v6584 = vmul.f32 %v6410, %v6198
      %v6585 = vmul.f32 %v6409, %v6199
      %v6586 = vmul.f32 %v6410, %v6200
      %v6587 = vmul.f32 %v6409, %v6201
      %v6588 = vmul.f32 %v6410, %v6202
      %v6589 = vmul.f32 %v6409, %v6203
      %v6590 = vmul.f32 %v6410, %v6204
      %v6591 = vmul.f32 %v6409, %v6205
      %v6592 = vmul.f32 %v6410, %v6206
      %v6593 = vmul.f32 %v6409, %v6207
      %v6594 = vmul.f32 %v6410, %v6208
      %v6595 = vmul.f32 %v6409, %v6209
      %v6596 = vmul.f32 %v6410, %v6210
      %v6597 = vmul.f32 %v6409, %v6211
      %v6598 = vmul.f32 %v6410, %v6212
      %v6599 = vmul.f32 %v6409, %v6213
      %v6600 = vmul.f32 %v6410, %v6214
      %v6601 = vmul.f32 %v6409, %v6215
      %v6602 = vmul.f32 %v6410, %v6216
      %v6603 = vmul.f32 %v6409, %v6217
      %v6604 = vmul.f32 %v6410, %v6218
      %v6605 = vmul.f32 %v6409, %v6219
      %v6606 = vmul.f32 %v6410, %v6220
      %v6607 = vmul.f32 %v6409, %v6221
      %v6608 = vmul.f32 %v6410, %v6222
      %v6609 = vmul.f32 %v6409, %v6223
      %v6610 = vmul.f32 %v6410, %v6224
      %v6611 = vmul.f32 %v6409, %v6225
      %v6612 = vmul.f32 %v6410, %v6226
      %v6613 = vmul.f32 %v6409, %v6227
      %v6614 = vmul.f32 %v6410, %v6228
      %v6615 = vmul.f32 %v6409, %v6229
      %v6616 = vmul.f32 %v6410, %v6230
      %v6617 = vmul.f32 %v6409, %v6231
      %v6618 = vmul.f32 %v6410, %v6232
      %v6619 = vmul.f32 %v6409, %v6233
      %v6620 = vmul.f32 %v6410, %v6234
      %v6621 = vmul.f32 %v6409, %v6235
      %v6622 = vmul.f32 %v6410, %v6236
      %v6623 = vmul.f32 %v6409, %v6237
      %v6624 = vmul.f32 %v6410, %v6238
      %v6625 = vmul.f32 %v6409, %v6239
      %v6626 = vmul.f32 %v6410, %v6240
      %v6627 = vmul.f32 %v6409, %v6241
      %v6628 = vmul.f32 %v6410, %v6242
      %v6629 = vmul.f32 %v6409, %v6243
      %v6630 = vmul.f32 %v6410, %v6244
      %v6631 = vmul.f32 %v6409, %v6245
      %v6632 = vmul.f32 %v6410, %v6246
      %v6633 = vmul.f32 %v6409, %v6247
      %v6634 = vmul.f32 %v6410, %v6248
      %v6635 = vmul.f32 %v6409, %v6249
      %v6636 = vmul.f32 %v6410, %v6250
      %v6637 = vmul.f32 %v6409, %v6251
      %v6638 = vmul.f32 %v6410, %v6252
      %v6639 = vmul.f32 %v6409, %v6253
      %v6640 = vmul.f32 %v6410, %v6254
      %v6641 = vmul.f32 %v6409, %v6255
      %v6642 = vmul.f32 %v6410, %v6256
      %v6643 = vmul.f32 %v6409, %v6257
      %v6644 = vmul.f32 %v6410, %v6258
      %v6645 = vmul.f32 %v6409, %v6259
      %v6646 = vmul.f32 %v6410, %v6260
      %v6647 = vmul.f32 %v6409, %v6261
      %v6648 = vmul.f32 %v6410, %v6262
      %v6649 = vmul.f32 %v6409, %v6263
      %v6650 = vmul.f32 %v6410, %v6264
      %v6651 = vmul.f32 %v6409, %v6265
      %v6652 = vmul.f32 %v6410, %v6266
      %v6653 = vmul.f32 %v6409, %v6267
      %v6654 = vmul.f32 %v6410, %v6268
      %v6655 = vmul.f32 %v6409, %v6269
      %v6656 = vmul.f32 %v6410, %v6270
      %v6657 = vmul.f32 %v6409, %v6271
      %v6658 = vmul.f32 %v6410, %v6272
      %v6659 = vmul.f32 %v6409, %v6273
      %v6660 = vmul.f32 %v6410, %v6274
      %v6661 = vmul.f32 %v6409, %v6275
      %v6662 = vmul.f32 %v6410, %v6276
      %v6663 = vmul.f32 %v6409, %v6277
      %v6664 = vmul.f32 %v6410, %v6278
      %v6665 = vmul.f32 %v6409, %v6279
      %v6666 = vmul.f32 %v6410, %v6280
      %v6667 = vperm.slane %v3867, 2
      %v6668 = vperm.slane %v3868, 2
      %v6669 = vadd.f32 %v6411, %v6667
      %v6670 = vadd.f32 %v6412, %v6668
      %v6671 = vadd.f32 %v6413, %v6667
      %v6672 = vadd.f32 %v6414, %v6668
      %v6673 = vadd.f32 %v6415, %v6667
      %v6674 = vadd.f32 %v6416, %v6668
      %v6675 = vadd.f32 %v6417, %v6667
      %v6676 = vadd.f32 %v6418, %v6668
      %v6677 = vadd.f32 %v6419, %v6667
      %v6678 = vadd.f32 %v6420, %v6668
      %v6679 = vadd.f32 %v6421, %v6667
      %v6680 = vadd.f32 %v6422, %v6668
      %v6681 = vadd.f32 %v6423, %v6667
      %v6682 = vadd.f32 %v6424, %v6668
      %v6683 = vadd.f32 %v6425, %v6667
      %v6684 = vadd.f32 %v6426, %v6668
      %v6685 = vadd.f32 %v6427, %v6667
      %v6686 = vadd.f32 %v6428, %v6668
      %v6687 = vadd.f32 %v6429, %v6667
      %v6688 = vadd.f32 %v6430, %v6668
      %v6689 = vadd.f32 %v6431, %v6667
      %v6690 = vadd.f32 %v6432, %v6668
      %v6691 = vadd.f32 %v6433, %v6667
      %v6692 = vadd.f32 %v6434, %v6668
      %v6693 = vadd.f32 %v6435, %v6667
      %v6694 = vadd.f32 %v6436, %v6668
      %v6695 = vadd.f32 %v6437, %v6667
      %v6696 = vadd.f32 %v6438, %v6668
      %v6697 = vadd.f32 %v6439, %v6667
      %v6698 = vadd.f32 %v6440, %v6668
      %v6699 = vadd.f32 %v6441, %v6667
      %v6700 = vadd.f32 %v6442, %v6668
      %v6701 = vadd.f32 %v6443, %v6667
      %v6702 = vadd.f32 %v6444, %v6668
      %v6703 = vadd.f32 %v6445, %v6667
      %v6704 = vadd.f32 %v6446, %v6668
      %v6705 = vadd.f32 %v6447, %v6667
      %v6706 = vadd.f32 %v6448, %v6668
      %v6707 = vadd.f32 %v6449, %v6667
      %v6708 = vadd.f32 %v6450, %v6668
      %v6709 = vadd.f32 %v6451, %v6667
      %v6710 = vadd.f32 %v6452, %v6668
      %v6711 = vadd.f32 %v6453, %v6667
      %v6712 = vadd.f32 %v6454, %v6668
      %v6713 = vadd.f32 %v6455, %v6667
      %v6714 = vadd.f32 %v6456, %v6668
      %v6715 = vadd.f32 %v6457, %v6667
      %v6716 = vadd.f32 %v6458, %v6668
      %v6717 = vadd.f32 %v6459, %v6667
      %v6718 = vadd.f32 %v6460, %v6668
      %v6719 = vadd.f32 %v6461, %v6667
      %v6720 = vadd.f32 %v6462, %v6668
      %v6721 = vadd.f32 %v6463, %v6667
      %v6722 = vadd.f32 %v6464, %v6668
      %v6723 = vadd.f32 %v6465, %v6667
      %v6724 = vadd.f32 %v6466, %v6668
      %v6725 = vadd.f32 %v6467, %v6667
      %v6726 = vadd.f32 %v6468, %v6668
      %v6727 = vadd.f32 %v6469, %v6667
      %v6728 = vadd.f32 %v6470, %v6668
      %v6729 = vadd.f32 %v6471, %v6667
      %v6730 = vadd.f32 %v6472, %v6668
      %v6731 = vadd.f32 %v6473, %v6667
      %v6732 = vadd.f32 %v6474, %v6668
      %v6733 = vadd.f32 %v6475, %v6667
      %v6734 = vadd.f32 %v6476, %v6668
      %v6735 = vadd.f32 %v6477, %v6667
      %v6736 = vadd.f32 %v6478, %v6668
      %v6737 = vadd.f32 %v6479, %v6667
      %v6738 = vadd.f32 %v6480, %v6668
      %v6739 = vadd.f32 %v6481, %v6667
      %v6740 = vadd.f32 %v6482, %v6668
      %v6741 = vadd.f32 %v6483, %v6667
      %v6742 = vadd.f32 %v6484, %v6668
      %v6743 = vadd.f32 %v6485, %v6667
      %v6744 = vadd.f32 %v6486, %v6668
      %v6745 = vadd.f32 %v6487, %v6667
      %v6746 = vadd.f32 %v6488, %v6668
      %v6747 = vadd.f32 %v6489, %v6667
      %v6748 = vadd.f32 %v6490, %v6668
      %v6749 = vadd.f32 %v6491, %v6667
      %v6750 = vadd.f32 %v6492, %v6668
      %v6751 = vadd.f32 %v6493, %v6667
      %v6752 = vadd.f32 %v6494, %v6668
      %v6753 = vadd.f32 %v6495, %v6667
      %v6754 = vadd.f32 %v6496, %v6668
      %v6755 = vadd.f32 %v6497, %v6667
      %v6756 = vadd.f32 %v6498, %v6668
      %v6757 = vadd.f32 %v6499, %v6667
      %v6758 = vadd.f32 %v6500, %v6668
      %v6759 = vadd.f32 %v6501, %v6667
      %v6760 = vadd.f32 %v6502, %v6668
      %v6761 = vadd.f32 %v6503, %v6667
      %v6762 = vadd.f32 %v6504, %v6668
      %v6763 = vadd.f32 %v6505, %v6667
      %v6764 = vadd.f32 %v6506, %v6668
      %v6765 = vadd.f32 %v6507, %v6667
      %v6766 = vadd.f32 %v6508, %v6668
      %v6767 = vadd.f32 %v6509, %v6667
      %v6768 = vadd.f32 %v6510, %v6668
      %v6769 = vadd.f32 %v6511, %v6667
      %v6770 = vadd.f32 %v6512, %v6668
      %v6771 = vadd.f32 %v6513, %v6667
      %v6772 = vadd.f32 %v6514, %v6668
      %v6773 = vadd.f32 %v6515, %v6667
      %v6774 = vadd.f32 %v6516, %v6668
      %v6775 = vadd.f32 %v6517, %v6667
      %v6776 = vadd.f32 %v6518, %v6668
      %v6777 = vadd.f32 %v6519, %v6667
      %v6778 = vadd.f32 %v6520, %v6668
      %v6779 = vadd.f32 %v6521, %v6667
      %v6780 = vadd.f32 %v6522, %v6668
      %v6781 = vadd.f32 %v6523, %v6667
      %v6782 = vadd.f32 %v6524, %v6668
      %v6783 = vadd.f32 %v6525, %v6667
      %v6784 = vadd.f32 %v6526, %v6668
      %v6785 = vadd.f32 %v6527, %v6667
      %v6786 = vadd.f32 %v6528, %v6668
      %v6787 = vadd.f32 %v6529, %v6667
      %v6788 = vadd.f32 %v6530, %v6668
      %v6789 = vadd.f32 %v6531, %v6667
      %v6790 = vadd.f32 %v6532, %v6668
      %v6791 = vadd.f32 %v6533, %v6667
      %v6792 = vadd.f32 %v6534, %v6668
      %v6793 = vadd.f32 %v6535, %v6667
      %v6794 = vadd.f32 %v6536, %v6668
      %v6795 = vadd.f32 %v6537, %v6667
      %v6796 = vadd.f32 %v6538, %v6668
      %v6797 = vadd.f32 %v6539, %v6667
      %v6798 = vadd.f32 %v6540, %v6668
      %v6799 = vadd.f32 %v6541, %v6667
      %v6800 = vadd.f32 %v6542, %v6668
      %v6801 = vadd.f32 %v6543, %v6667
      %v6802 = vadd.f32 %v6544, %v6668
      %v6803 = vadd.f32 %v6545, %v6667
      %v6804 = vadd.f32 %v6546, %v6668
      %v6805 = vadd.f32 %v6547, %v6667
      %v6806 = vadd.f32 %v6548, %v6668
      %v6807 = vadd.f32 %v6549, %v6667
      %v6808 = vadd.f32 %v6550, %v6668
      %v6809 = vadd.f32 %v6551, %v6667
      %v6810 = vadd.f32 %v6552, %v6668
      %v6811 = vadd.f32 %v6553, %v6667
      %v6812 = vadd.f32 %v6554, %v6668
      %v6813 = vadd.f32 %v6555, %v6667
      %v6814 = vadd.f32 %v6556, %v6668
      %v6815 = vadd.f32 %v6557, %v6667
      %v6816 = vadd.f32 %v6558, %v6668
      %v6817 = vadd.f32 %v6559, %v6667
      %v6818 = vadd.f32 %v6560, %v6668
      %v6819 = vadd.f32 %v6561, %v6667
      %v6820 = vadd.f32 %v6562, %v6668
      %v6821 = vadd.f32 %v6563, %v6667
      %v6822 = vadd.f32 %v6564, %v6668
      %v6823 = vadd.f32 %v6565, %v6667
      %v6824 = vadd.f32 %v6566, %v6668
      %v6825 = vadd.f32 %v6567, %v6667
      %v6826 = vadd.f32 %v6568, %v6668
      %v6827 = vadd.f32 %v6569, %v6667
      %v6828 = vadd.f32 %v6570, %v6668
      %v6829 = vadd.f32 %v6571, %v6667
      %v6830 = vadd.f32 %v6572, %v6668
      %v6831 = vadd.f32 %v6573, %v6667
      %v6832 = vadd.f32 %v6574, %v6668
      %v6833 = vadd.f32 %v6575, %v6667
      %v6834 = vadd.f32 %v6576, %v6668
      %v6835 = vadd.f32 %v6577, %v6667
      %v6836 = vadd.f32 %v6578, %v6668
      %v6837 = vadd.f32 %v6579, %v6667
      %v6838 = vadd.f32 %v6580, %v6668
      %v6839 = vadd.f32 %v6581, %v6667
      %v6840 = vadd.f32 %v6582, %v6668
      %v6841 = vadd.f32 %v6583, %v6667
      %v6842 = vadd.f32 %v6584, %v6668
      %v6843 = vadd.f32 %v6585, %v6667
      %v6844 = vadd.f32 %v6586, %v6668
      %v6845 = vadd.f32 %v6587, %v6667
      %v6846 = vadd.f32 %v6588, %v6668
      %v6847 = vadd.f32 %v6589, %v6667
      %v6848 = vadd.f32 %v6590, %v6668
      %v6849 = vadd.f32 %v6591, %v6667
      %v6850 = vadd.f32 %v6592, %v6668
      %v6851 = vadd.f32 %v6593, %v6667
      %v6852 = vadd.f32 %v6594, %v6668
      %v6853 = vadd.f32 %v6595, %v6667
      %v6854 = vadd.f32 %v6596, %v6668
      %v6855 = vadd.f32 %v6597, %v6667
      %v6856 = vadd.f32 %v6598, %v6668
      %v6857 = vadd.f32 %v6599, %v6667
      %v6858 = vadd.f32 %v6600, %v6668
      %v6859 = vadd.f32 %v6601, %v6667
      %v6860 = vadd.f32 %v6602, %v6668
      %v6861 = vadd.f32 %v6603, %v6667
      %v6862 = vadd.f32 %v6604, %v6668
      %v6863 = vadd.f32 %v6605, %v6667
      %v6864 = vadd.f32 %v6606, %v6668
      %v6865 = vadd.f32 %v6607, %v6667
      %v6866 = vadd.f32 %v6608, %v6668
      %v6867 = vadd.f32 %v6609, %v6667
      %v6868 = vadd.f32 %v6610, %v6668
      %v6869 = vadd.f32 %v6611, %v6667
      %v6870 = vadd.f32 %v6612, %v6668
      %v6871 = vadd.f32 %v6613, %v6667
      %v6872 = vadd.f32 %v6614, %v6668
      %v6873 = vadd.f32 %v6615, %v6667
      %v6874 = vadd.f32 %v6616, %v6668
      %v6875 = vadd.f32 %v6617, %v6667
      %v6876 = vadd.f32 %v6618, %v6668
      %v6877 = vadd.f32 %v6619, %v6667
      %v6878 = vadd.f32 %v6620, %v6668
      %v6879 = vadd.f32 %v6621, %v6667
      %v6880 = vadd.f32 %v6622, %v6668
      %v6881 = vadd.f32 %v6623, %v6667
      %v6882 = vadd.f32 %v6624, %v6668
      %v6883 = vadd.f32 %v6625, %v6667
      %v6884 = vadd.f32 %v6626, %v6668
      %v6885 = vadd.f32 %v6627, %v6667
      %v6886 = vadd.f32 %v6628, %v6668
      %v6887 = vadd.f32 %v6629, %v6667
      %v6888 = vadd.f32 %v6630, %v6668
      %v6889 = vadd.f32 %v6631, %v6667
      %v6890 = vadd.f32 %v6632, %v6668
      %v6891 = vadd.f32 %v6633, %v6667
      %v6892 = vadd.f32 %v6634, %v6668
      %v6893 = vadd.f32 %v6635, %v6667
      %v6894 = vadd.f32 %v6636, %v6668
      %v6895 = vadd.f32 %v6637, %v6667
      %v6896 = vadd.f32 %v6638, %v6668
      %v6897 = vadd.f32 %v6639, %v6667
      %v6898 = vadd.f32 %v6640, %v6668
      %v6899 = vadd.f32 %v6641, %v6667
      %v6900 = vadd.f32 %v6642, %v6668
      %v6901 = vadd.f32 %v6643, %v6667
      %v6902 = vadd.f32 %v6644, %v6668
      %v6903 = vadd.f32 %v6645, %v6667
      %v6904 = vadd.f32 %v6646, %v6668
      %v6905 = vadd.f32 %v6647, %v6667
      %v6906 = vadd.f32 %v6648, %v6668
      %v6907 = vadd.f32 %v6649, %v6667
      %v6908 = vadd.f32 %v6650, %v6668
      %v6909 = vadd.f32 %v6651, %v6667
      %v6910 = vadd.f32 %v6652, %v6668
      %v6911 = vadd.f32 %v6653, %v6667
      %v6912 = vadd.f32 %v6654, %v6668
      %v6913 = vadd.f32 %v6655, %v6667
      %v6914 = vadd.f32 %v6656, %v6668
      %v6915 = vadd.f32 %v6657, %v6667
      %v6916 = vadd.f32 %v6658, %v6668
      %v6917 = vadd.f32 %v6659, %v6667
      %v6918 = vadd.f32 %v6660, %v6668
      %v6919 = vadd.f32 %v6661, %v6667
      %v6920 = vadd.f32 %v6662, %v6668
      %v6921 = vadd.f32 %v6663, %v6667
      %v6922 = vadd.f32 %v6664, %v6668
      %v6923 = vadd.f32 %v6665, %v6667
      %v6924 = vadd.f32 %v6666, %v6668
      %v6925 = vmul.f32 %v6025, %v6669
      %v6926 = vmul.f32 %v6026, %v6670
      %v6927 = vmul.f32 %v6027, %v6671
      %v6928 = vmul.f32 %v6028, %v6672
      %v6929 = vmul.f32 %v6029, %v6673
      %v6930 = vmul.f32 %v6030, %v6674
      %v6931 = vmul.f32 %v6031, %v6675
      %v6932 = vmul.f32 %v6032, %v6676
      %v6933 = vmul.f32 %v6033, %v6677
      %v6934 = vmul.f32 %v6034, %v6678
      %v6935 = vmul.f32 %v6035, %v6679
      %v6936 = vmul.f32 %v6036, %v6680
      %v6937 = vmul.f32 %v6037, %v6681
      %v6938 = vmul.f32 %v6038, %v6682
      %v6939 = vmul.f32 %v6039, %v6683
      %v6940 = vmul.f32 %v6040, %v6684
      %v6941 = vmul.f32 %v6041, %v6685
      %v6942 = vmul.f32 %v6042, %v6686
      %v6943 = vmul.f32 %v6043, %v6687
      %v6944 = vmul.f32 %v6044, %v6688
      %v6945 = vmul.f32 %v6045, %v6689
      %v6946 = vmul.f32 %v6046, %v6690
      %v6947 = vmul.f32 %v6047, %v6691
      %v6948 = vmul.f32 %v6048, %v6692
      %v6949 = vmul.f32 %v6049, %v6693
      %v6950 = vmul.f32 %v6050, %v6694
      %v6951 = vmul.f32 %v6051, %v6695
      %v6952 = vmul.f32 %v6052, %v6696
      %v6953 = vmul.f32 %v6053, %v6697
      %v6954 = vmul.f32 %v6054, %v6698
      %v6955 = vmul.f32 %v6055, %v6699
      %v6956 = vmul.f32 %v6056, %v6700
      %v6957 = vmul.f32 %v6057, %v6701
      %v6958 = vmul.f32 %v6058, %v6702
      %v6959 = vmul.f32 %v6059, %v6703
      %v6960 = vmul.f32 %v6060, %v6704
      %v6961 = vmul.f32 %v6061, %v6705
      %v6962 = vmul.f32 %v6062, %v6706
      %v6963 = vmul.f32 %v6063, %v6707
      %v6964 = vmul.f32 %v6064, %v6708
      %v6965 = vmul.f32 %v6065, %v6709
      %v6966 = vmul.f32 %v6066, %v6710
      %v6967 = vmul.f32 %v6067, %v6711
      %v6968 = vmul.f32 %v6068, %v6712
      %v6969 = vmul.f32 %v6069, %v6713
      %v6970 = vmul.f32 %v6070, %v6714
      %v6971 = vmul.f32 %v6071, %v6715
      %v6972 = vmul.f32 %v6072, %v6716
      %v6973 = vmul.f32 %v6073, %v6717
      %v6974 = vmul.f32 %v6074, %v6718
      %v6975 = vmul.f32 %v6075, %v6719
      %v6976 = vmul.f32 %v6076, %v6720
      %v6977 = vmul.f32 %v6077, %v6721
      %v6978 = vmul.f32 %v6078, %v6722
      %v6979 = vmul.f32 %v6079, %v6723
      %v6980 = vmul.f32 %v6080, %v6724
      %v6981 = vmul.f32 %v6081, %v6725
      %v6982 = vmul.f32 %v6082, %v6726
      %v6983 = vmul.f32 %v6083, %v6727
      %v6984 = vmul.f32 %v6084, %v6728
      %v6985 = vmul.f32 %v6085, %v6729
      %v6986 = vmul.f32 %v6086, %v6730
      %v6987 = vmul.f32 %v6087, %v6731
      %v6988 = vmul.f32 %v6088, %v6732
      %v6989 = vmul.f32 %v6089, %v6733
      %v6990 = vmul.f32 %v6090, %v6734
      %v6991 = vmul.f32 %v6091, %v6735
      %v6992 = vmul.f32 %v6092, %v6736
      %v6993 = vmul.f32 %v6093, %v6737
      %v6994 = vmul.f32 %v6094, %v6738
      %v6995 = vmul.f32 %v6095, %v6739
      %v6996 = vmul.f32 %v6096, %v6740
      %v6997 = vmul.f32 %v6097, %v6741
      %v6998 = vmul.f32 %v6098, %v6742
      %v6999 = vmul.f32 %v6099, %v6743
      %v7000 = vmul.f32 %v6100, %v6744
      %v7001 = vmul.f32 %v6101, %v6745
      %v7002 = vmul.f32 %v6102, %v6746
      %v7003 = vmul.f32 %v6103, %v6747
      %v7004 = vmul.f32 %v6104, %v6748
      %v7005 = vmul.f32 %v6105, %v6749
      %v7006 = vmul.f32 %v6106, %v6750
      %v7007 = vmul.f32 %v6107, %v6751
      %v7008 = vmul.f32 %v6108, %v6752
      %v7009 = vmul.f32 %v6109, %v6753
      %v7010 = vmul.f32 %v6110, %v6754
      %v7011 = vmul.f32 %v6111, %v6755
      %v7012 = vmul.f32 %v6112, %v6756
      %v7013 = vmul.f32 %v6113, %v6757
      %v7014 = vmul.f32 %v6114, %v6758
      %v7015 = vmul.f32 %v6115, %v6759
      %v7016 = vmul.f32 %v6116, %v6760
      %v7017 = vmul.f32 %v6117, %v6761
      %v7018 = vmul.f32 %v6118, %v6762
      %v7019 = vmul.f32 %v6119, %v6763
      %v7020 = vmul.f32 %v6120, %v6764
      %v7021 = vmul.f32 %v6121, %v6765
      %v7022 = vmul.f32 %v6122, %v6766
      %v7023 = vmul.f32 %v6123, %v6767
      %v7024 = vmul.f32 %v6124, %v6768
      %v7025 = vmul.f32 %v6125, %v6769
      %v7026 = vmul.f32 %v6126, %v6770
      %v7027 = vmul.f32 %v6127, %v6771
      %v7028 = vmul.f32 %v6128, %v6772
      %v7029 = vmul.f32 %v6129, %v6773
      %v7030 = vmul.f32 %v6130, %v6774
      %v7031 = vmul.f32 %v6131, %v6775
      %v7032 = vmul.f32 %v6132, %v6776
      %v7033 = vmul.f32 %v6133, %v6777
      %v7034 = vmul.f32 %v6134, %v6778
      %v7035 = vmul.f32 %v6135, %v6779
      %v7036 = vmul.f32 %v6136, %v6780
      %v7037 = vmul.f32 %v6137, %v6781
      %v7038 = vmul.f32 %v6138, %v6782
      %v7039 = vmul.f32 %v6139, %v6783
      %v7040 = vmul.f32 %v6140, %v6784
      %v7041 = vmul.f32 %v6141, %v6785
      %v7042 = vmul.f32 %v6142, %v6786
      %v7043 = vmul.f32 %v6143, %v6787
      %v7044 = vmul.f32 %v6144, %v6788
      %v7045 = vmul.f32 %v6145, %v6789
      %v7046 = vmul.f32 %v6146, %v6790
      %v7047 = vmul.f32 %v6147, %v6791
      %v7048 = vmul.f32 %v6148, %v6792
      %v7049 = vmul.f32 %v6149, %v6793
      %v7050 = vmul.f32 %v6150, %v6794
      %v7051 = vmul.f32 %v6151, %v6795
      %v7052 = vmul.f32 %v6152, %v6796
      %v7053 = vmul.f32 %v6153, %v6797
      %v7054 = vmul.f32 %v6154, %v6798
      %v7055 = vmul.f32 %v6155, %v6799
      %v7056 = vmul.f32 %v6156, %v6800
      %v7057 = vmul.f32 %v6157, %v6801
      %v7058 = vmul.f32 %v6158, %v6802
      %v7059 = vmul.f32 %v6159, %v6803
      %v7060 = vmul.f32 %v6160, %v6804
      %v7061 = vmul.f32 %v6161, %v6805
      %v7062 = vmul.f32 %v6162, %v6806
      %v7063 = vmul.f32 %v6163, %v6807
      %v7064 = vmul.f32 %v6164, %v6808
      %v7065 = vmul.f32 %v6165, %v6809
      %v7066 = vmul.f32 %v6166, %v6810
      %v7067 = vmul.f32 %v6167, %v6811
      %v7068 = vmul.f32 %v6168, %v6812
      %v7069 = vmul.f32 %v6169, %v6813
      %v7070 = vmul.f32 %v6170, %v6814
      %v7071 = vmul.f32 %v6171, %v6815
      %v7072 = vmul.f32 %v6172, %v6816
      %v7073 = vmul.f32 %v6173, %v6817
      %v7074 = vmul.f32 %v6174, %v6818
      %v7075 = vmul.f32 %v6175, %v6819
      %v7076 = vmul.f32 %v6176, %v6820
      %v7077 = vmul.f32 %v6177, %v6821
      %v7078 = vmul.f32 %v6178, %v6822
      %v7079 = vmul.f32 %v6179, %v6823
      %v7080 = vmul.f32 %v6180, %v6824
      %v7081 = vmul.f32 %v6181, %v6825
      %v7082 = vmul.f32 %v6182, %v6826
      %v7083 = vmul.f32 %v6183, %v6827
      %v7084 = vmul.f32 %v6184, %v6828
      %v7085 = vmul.f32 %v6185, %v6829
      %v7086 = vmul.f32 %v6186, %v6830
      %v7087 = vmul.f32 %v6187, %v6831
      %v7088 = vmul.f32 %v6188, %v6832
      %v7089 = vmul.f32 %v6189, %v6833
      %v7090 = vmul.f32 %v6190, %v6834
      %v7091 = vmul.f32 %v6191, %v6835
      %v7092 = vmul.f32 %v6192, %v6836
      %v7093 = vmul.f32 %v6193, %v6837
      %v7094 = vmul.f32 %v6194, %v6838
      %v7095 = vmul.f32 %v6195, %v6839
      %v7096 = vmul.f32 %v6196, %v6840
      %v7097 = vmul.f32 %v6197, %v6841
      %v7098 = vmul.f32 %v6198, %v6842
      %v7099 = vmul.f32 %v6199, %v6843
      %v7100 = vmul.f32 %v6200, %v6844
      %v7101 = vmul.f32 %v6201, %v6845
      %v7102 = vmul.f32 %v6202, %v6846
      %v7103 = vmul.f32 %v6203, %v6847
      %v7104 = vmul.f32 %v6204, %v6848
      %v7105 = vmul.f32 %v6205, %v6849
      %v7106 = vmul.f32 %v6206, %v6850
      %v7107 = vmul.f32 %v6207, %v6851
      %v7108 = vmul.f32 %v6208, %v6852
      %v7109 = vmul.f32 %v6209, %v6853
      %v7110 = vmul.f32 %v6210, %v6854
      %v7111 = vmul.f32 %v6211, %v6855
      %v7112 = vmul.f32 %v6212, %v6856
      %v7113 = vmul.f32 %v6213, %v6857
      %v7114 = vmul.f32 %v6214, %v6858
      %v7115 = vmul.f32 %v6215, %v6859
      %v7116 = vmul.f32 %v6216, %v6860
      %v7117 = vmul.f32 %v6217, %v6861
      %v7118 = vmul.f32 %v6218, %v6862
      %v7119 = vmul.f32 %v6219, %v6863
      %v7120 = vmul.f32 %v6220, %v6864
      %v7121 = vmul.f32 %v6221, %v6865
      %v7122 = vmul.f32 %v6222, %v6866
      %v7123 = vmul.f32 %v6223, %v6867
      %v7124 = vmul.f32 %v6224, %v6868
      %v7125 = vmul.f32 %v6225, %v6869
      %v7126 = vmul.f32 %v6226, %v6870
      %v7127 = vmul.f32 %v6227, %v6871
      %v7128 = vmul.f32 %v6228, %v6872
      %v7129 = vmul.f32 %v6229, %v6873
      %v7130 = vmul.f32 %v6230, %v6874
      %v7131 = vmul.f32 %v6231, %v6875
      %v7132 = vmul.f32 %v6232, %v6876
      %v7133 = vmul.f32 %v6233, %v6877
      %v7134 = vmul.f32 %v6234, %v6878
      %v7135 = vmul.f32 %v6235, %v6879
      %v7136 = vmul.f32 %v6236, %v6880
      %v7137 = vmul.f32 %v6237, %v6881
      %v7138 = vmul.f32 %v6238, %v6882
      %v7139 = vmul.f32 %v6239, %v6883
      %v7140 = vmul.f32 %v6240, %v6884
      %v7141 = vmul.f32 %v6241, %v6885
      %v7142 = vmul.f32 %v6242, %v6886
      %v7143 = vmul.f32 %v6243, %v6887
      %v7144 = vmul.f32 %v6244, %v6888
      %v7145 = vmul.f32 %v6245, %v6889
      %v7146 = vmul.f32 %v6246, %v6890
      %v7147 = vmul.f32 %v6247, %v6891
      %v7148 = vmul.f32 %v6248, %v6892
      %v7149 = vmul.f32 %v6249, %v6893
      %v7150 = vmul.f32 %v6250, %v6894
      %v7151 = vmul.f32 %v6251, %v6895
      %v7152 = vmul.f32 %v6252, %v6896
      %v7153 = vmul.f32 %v6253, %v6897
      %v7154 = vmul.f32 %v6254, %v6898
      %v7155 = vmul.f32 %v6255, %v6899
      %v7156 = vmul.f32 %v6256, %v6900
      %v7157 = vmul.f32 %v6257, %v6901
      %v7158 = vmul.f32 %v6258, %v6902
      %v7159 = vmul.f32 %v6259, %v6903
      %v7160 = vmul.f32 %v6260, %v6904
      %v7161 = vmul.f32 %v6261, %v6905
      %v7162 = vmul.f32 %v6262, %v6906
      %v7163 = vmul.f32 %v6263, %v6907
      %v7164 = vmul.f32 %v6264, %v6908
      %v7165 = vmul.f32 %v6265, %v6909
      %v7166 = vmul.f32 %v6266, %v6910
      %v7167 = vmul.f32 %v6267, %v6911
      %v7168 = vmul.f32 %v6268, %v6912
      %v7169 = vmul.f32 %v6269, %v6913
      %v7170 = vmul.f32 %v6270, %v6914
      %v7171 = vmul.f32 %v6271, %v6915
      %v7172 = vmul.f32 %v6272, %v6916
      %v7173 = vmul.f32 %v6273, %v6917
      %v7174 = vmul.f32 %v6274, %v6918
      %v7175 = vmul.f32 %v6275, %v6919
      %v7176 = vmul.f32 %v6276, %v6920
      %v7177 = vmul.f32 %v6277, %v6921
      %v7178 = vmul.f32 %v6278, %v6922
      %v7179 = vmul.f32 %v6279, %v6923
      %v7180 = vmul.f32 %v6280, %v6924
      %7182 = vset.pattern.permute.xlu0 0
      %7183 = vperm.xlu0 %7182, %v6281
      %v7184 = vpop.permute.xlu0 %7183
      %7187 = vset.pattern.permute.xlu0 0
      %7188 = vperm.xlu0 %7187, %v6282
      %v7189 = vpop.permute.xlu0 %7188
      %7192 = vset.pattern.permute.xlu0 0
      %7193 = vperm.xlu0 %7192, %v6283
      %v7194 = vpop.permute.xlu0 %7193
      %7197 = vset.pattern.permute.xlu0 0
      %7198 = vperm.xlu0 %7197, %v6284
      %v7199 = vpop.permute.xlu0 %7198
      %7202 = vset.pattern.permute.xlu0 0
      %7203 = vperm.xlu0 %7202, %v6285
      %v7204 = vpop.permute.xlu0 %7203
      %7207 = vset.pattern.permute.xlu0 0
      %7208 = vperm.xlu0 %7207, %v6286
      %v7209 = vpop.permute.xlu0 %7208
      %7212 = vset.pattern.permute.xlu0 0
      %7213 = vperm.xlu0 %7212, %v6287
      %v7214 = vpop.permute.xlu0 %7213
      %7217 = vset.pattern.permute.xlu0 0
      %7218 = vperm.xlu0 %7217, %v6288
      %v7219 = vpop.permute.xlu0 %7218
      %7222 = vset.pattern.permute.xlu0 0
      %7223 = vperm.xlu0 %7222, %v6289
      %v7224 = vpop.permute.xlu0 %7223
      %7227 = vset.pattern.permute.xlu0 0
      %7228 = vperm.xlu0 %7227, %v6290
      %v7229 = vpop.permute.xlu0 %7228
      %7232 = vset.pattern.permute.xlu0 0
      %7233 = vperm.xlu0 %7232, %v6291
      %v7234 = vpop.permute.xlu0 %7233
      %7237 = vset.pattern.permute.xlu0 0
      %7238 = vperm.xlu0 %7237, %v6292
      %v7239 = vpop.permute.xlu0 %7238
      %7242 = vset.pattern.permute.xlu0 0
      %7243 = vperm.xlu0 %7242, %v6293
      %v7244 = vpop.permute.xlu0 %7243
      %7247 = vset.pattern.permute.xlu0 0
      %7248 = vperm.xlu0 %7247, %v6294
      %v7249 = vpop.permute.xlu0 %7248
      %7252 = vset.pattern.permute.xlu0 0
      %7253 = vperm.xlu0 %7252, %v6295
      %v7254 = vpop.permute.xlu0 %7253
      %7257 = vset.pattern.permute.xlu0 0
      %7258 = vperm.xlu0 %7257, %v6296
      %v7259 = vpop.permute.xlu0 %7258
      %7262 = vset.pattern.permute.xlu0 0
      %7263 = vperm.xlu0 %7262, %v6297
      %v7264 = vpop.permute.xlu0 %7263
      %7267 = vset.pattern.permute.xlu0 0
      %7268 = vperm.xlu0 %7267, %v6298
      %v7269 = vpop.permute.xlu0 %7268
      %7272 = vset.pattern.permute.xlu0 0
      %7273 = vperm.xlu0 %7272, %v6299
      %v7274 = vpop.permute.xlu0 %7273
      %7277 = vset.pattern.permute.xlu0 0
      %7278 = vperm.xlu0 %7277, %v6300
      %v7279 = vpop.permute.xlu0 %7278
      %7282 = vset.pattern.permute.xlu0 0
      %7283 = vperm.xlu0 %7282, %v6301
      %v7284 = vpop.permute.xlu0 %7283
      %7287 = vset.pattern.permute.xlu0 0
      %7288 = vperm.xlu0 %7287, %v6302
      %v7289 = vpop.permute.xlu0 %7288
      %7292 = vset.pattern.permute.xlu0 0
      %7293 = vperm.xlu0 %7292, %v6303
      %v7294 = vpop.permute.xlu0 %7293
      %7297 = vset.pattern.permute.xlu0 0
      %7298 = vperm.xlu0 %7297, %v6304
      %v7299 = vpop.permute.xlu0 %7298
      %7302 = vset.pattern.permute.xlu0 0
      %7303 = vperm.xlu0 %7302, %v6305
      %v7304 = vpop.permute.xlu0 %7303
      %7307 = vset.pattern.permute.xlu0 0
      %7308 = vperm.xlu0 %7307, %v6306
      %v7309 = vpop.permute.xlu0 %7308
      %7312 = vset.pattern.permute.xlu0 0
      %7313 = vperm.xlu0 %7312, %v6307
      %v7314 = vpop.permute.xlu0 %7313
      %7317 = vset.pattern.permute.xlu0 0
      %7318 = vperm.xlu0 %7317, %v6308
      %v7319 = vpop.permute.xlu0 %7318
      %7322 = vset.pattern.permute.xlu0 0
      %7323 = vperm.xlu0 %7322, %v6309
      %v7324 = vpop.permute.xlu0 %7323
      %7327 = vset.pattern.permute.xlu0 0
      %7328 = vperm.xlu0 %7327, %v6310
      %v7329 = vpop.permute.xlu0 %7328
      %7332 = vset.pattern.permute.xlu0 0
      %7333 = vperm.xlu0 %7332, %v6311
      %v7334 = vpop.permute.xlu0 %7333
      %7337 = vset.pattern.permute.xlu0 0
      %7338 = vperm.xlu0 %7337, %v6312
      %v7339 = vpop.permute.xlu0 %7338
      %7342 = vset.pattern.permute.xlu0 0
      %7343 = vperm.xlu0 %7342, %v6313
      %v7344 = vpop.permute.xlu0 %7343
      %7347 = vset.pattern.permute.xlu0 0
      %7348 = vperm.xlu0 %7347, %v6314
      %v7349 = vpop.permute.xlu0 %7348
      %7352 = vset.pattern.permute.xlu0 0
      %7353 = vperm.xlu0 %7352, %v6315
      %v7354 = vpop.permute.xlu0 %7353
      %7357 = vset.pattern.permute.xlu0 0
      %7358 = vperm.xlu0 %7357, %v6316
      %v7359 = vpop.permute.xlu0 %7358
      %7362 = vset.pattern.permute.xlu0 0
      %7363 = vperm.xlu0 %7362, %v6317
      %v7364 = vpop.permute.xlu0 %7363
      %7367 = vset.pattern.permute.xlu0 0
      %7368 = vperm.xlu0 %7367, %v6318
      %v7369 = vpop.permute.xlu0 %7368
      %7372 = vset.pattern.permute.xlu0 0
      %7373 = vperm.xlu0 %7372, %v6319
      %v7374 = vpop.permute.xlu0 %7373
      %7377 = vset.pattern.permute.xlu0 0
      %7378 = vperm.xlu0 %7377, %v6320
      %v7379 = vpop.permute.xlu0 %7378
      %7382 = vset.pattern.permute.xlu0 0
      %7383 = vperm.xlu0 %7382, %v6321
      %v7384 = vpop.permute.xlu0 %7383
      %7387 = vset.pattern.permute.xlu0 0
      %7388 = vperm.xlu0 %7387, %v6322
      %v7389 = vpop.permute.xlu0 %7388
      %7392 = vset.pattern.permute.xlu0 0
      %7393 = vperm.xlu0 %7392, %v6323
      %v7394 = vpop.permute.xlu0 %7393
      %7397 = vset.pattern.permute.xlu0 0
      %7398 = vperm.xlu0 %7397, %v6324
      %v7399 = vpop.permute.xlu0 %7398
      %7402 = vset.pattern.permute.xlu0 0
      %7403 = vperm.xlu0 %7402, %v6325
      %v7404 = vpop.permute.xlu0 %7403
      %7407 = vset.pattern.permute.xlu0 0
      %7408 = vperm.xlu0 %7407, %v6326
      %v7409 = vpop.permute.xlu0 %7408
      %7412 = vset.pattern.permute.xlu0 0
      %7413 = vperm.xlu0 %7412, %v6327
      %v7414 = vpop.permute.xlu0 %7413
      %7417 = vset.pattern.permute.xlu0 0
      %7418 = vperm.xlu0 %7417, %v6328
      %v7419 = vpop.permute.xlu0 %7418
      %7422 = vset.pattern.permute.xlu0 0
      %7423 = vperm.xlu0 %7422, %v6329
      %v7424 = vpop.permute.xlu0 %7423
      %7427 = vset.pattern.permute.xlu0 0
      %7428 = vperm.xlu0 %7427, %v6330
      %v7429 = vpop.permute.xlu0 %7428
      %7432 = vset.pattern.permute.xlu0 0
      %7433 = vperm.xlu0 %7432, %v6331
      %v7434 = vpop.permute.xlu0 %7433
      %7437 = vset.pattern.permute.xlu0 0
      %7438 = vperm.xlu0 %7437, %v6332
      %v7439 = vpop.permute.xlu0 %7438
      %7442 = vset.pattern.permute.xlu0 0
      %7443 = vperm.xlu0 %7442, %v6333
      %v7444 = vpop.permute.xlu0 %7443
      %7447 = vset.pattern.permute.xlu0 0
      %7448 = vperm.xlu0 %7447, %v6334
      %v7449 = vpop.permute.xlu0 %7448
      %7452 = vset.pattern.permute.xlu0 0
      %7453 = vperm.xlu0 %7452, %v6335
      %v7454 = vpop.permute.xlu0 %7453
      %7457 = vset.pattern.permute.xlu0 0
      %7458 = vperm.xlu0 %7457, %v6336
      %v7459 = vpop.permute.xlu0 %7458
      %7462 = vset.pattern.permute.xlu0 0
      %7463 = vperm.xlu0 %7462, %v6337
      %v7464 = vpop.permute.xlu0 %7463
      %7467 = vset.pattern.permute.xlu0 0
      %7468 = vperm.xlu0 %7467, %v6338
      %v7469 = vpop.permute.xlu0 %7468
      %7472 = vset.pattern.permute.xlu0 0
      %7473 = vperm.xlu0 %7472, %v6339
      %v7474 = vpop.permute.xlu0 %7473
      %7477 = vset.pattern.permute.xlu0 0
      %7478 = vperm.xlu0 %7477, %v6340
      %v7479 = vpop.permute.xlu0 %7478
      %7482 = vset.pattern.permute.xlu0 0
      %7483 = vperm.xlu0 %7482, %v6341
      %v7484 = vpop.permute.xlu0 %7483
      %7487 = vset.pattern.permute.xlu0 0
      %7488 = vperm.xlu0 %7487, %v6342
      %v7489 = vpop.permute.xlu0 %7488
      %7492 = vset.pattern.permute.xlu0 0
      %7493 = vperm.xlu0 %7492, %v6343
      %v7494 = vpop.permute.xlu0 %7493
      %7497 = vset.pattern.permute.xlu0 0
      %7498 = vperm.xlu0 %7497, %v6344
      %v7499 = vpop.permute.xlu0 %7498
      %7502 = vset.pattern.permute.xlu0 0
      %7503 = vperm.xlu0 %7502, %v6345
      %v7504 = vpop.permute.xlu0 %7503
      %7507 = vset.pattern.permute.xlu0 0
      %7508 = vperm.xlu0 %7507, %v6346
      %v7509 = vpop.permute.xlu0 %7508
      %7512 = vset.pattern.permute.xlu0 0
      %7513 = vperm.xlu0 %7512, %v6347
      %v7514 = vpop.permute.xlu0 %7513
      %7517 = vset.pattern.permute.xlu0 0
      %7518 = vperm.xlu0 %7517, %v6348
      %v7519 = vpop.permute.xlu0 %7518
      %7522 = vset.pattern.permute.xlu0 0
      %7523 = vperm.xlu0 %7522, %v6349
      %v7524 = vpop.permute.xlu0 %7523
      %7527 = vset.pattern.permute.xlu0 0
      %7528 = vperm.xlu0 %7527, %v6350
      %v7529 = vpop.permute.xlu0 %7528
      %7532 = vset.pattern.permute.xlu0 0
      %7533 = vperm.xlu0 %7532, %v6351
      %v7534 = vpop.permute.xlu0 %7533
      %7537 = vset.pattern.permute.xlu0 0
      %7538 = vperm.xlu0 %7537, %v6352
      %v7539 = vpop.permute.xlu0 %7538
      %7542 = vset.pattern.permute.xlu0 0
      %7543 = vperm.xlu0 %7542, %v6353
      %v7544 = vpop.permute.xlu0 %7543
      %7547 = vset.pattern.permute.xlu0 0
      %7548 = vperm.xlu0 %7547, %v6354
      %v7549 = vpop.permute.xlu0 %7548
      %7552 = vset.pattern.permute.xlu0 0
      %7553 = vperm.xlu0 %7552, %v6355
      %v7554 = vpop.permute.xlu0 %7553
      %7557 = vset.pattern.permute.xlu0 0
      %7558 = vperm.xlu0 %7557, %v6356
      %v7559 = vpop.permute.xlu0 %7558
      %7562 = vset.pattern.permute.xlu0 0
      %7563 = vperm.xlu0 %7562, %v6357
      %v7564 = vpop.permute.xlu0 %7563
      %7567 = vset.pattern.permute.xlu0 0
      %7568 = vperm.xlu0 %7567, %v6358
      %v7569 = vpop.permute.xlu0 %7568
      %7572 = vset.pattern.permute.xlu0 0
      %7573 = vperm.xlu0 %7572, %v6359
      %v7574 = vpop.permute.xlu0 %7573
      %7577 = vset.pattern.permute.xlu0 0
      %7578 = vperm.xlu0 %7577, %v6360
      %v7579 = vpop.permute.xlu0 %7578
      %7582 = vset.pattern.permute.xlu0 0
      %7583 = vperm.xlu0 %7582, %v6361
      %v7584 = vpop.permute.xlu0 %7583
      %7587 = vset.pattern.permute.xlu0 0
      %7588 = vperm.xlu0 %7587, %v6362
      %v7589 = vpop.permute.xlu0 %7588
      %7592 = vset.pattern.permute.xlu0 0
      %7593 = vperm.xlu0 %7592, %v6363
      %v7594 = vpop.permute.xlu0 %7593
      %7597 = vset.pattern.permute.xlu0 0
      %7598 = vperm.xlu0 %7597, %v6364
      %v7599 = vpop.permute.xlu0 %7598
      %7602 = vset.pattern.permute.xlu0 0
      %7603 = vperm.xlu0 %7602, %v6365
      %v7604 = vpop.permute.xlu0 %7603
      %7607 = vset.pattern.permute.xlu0 0
      %7608 = vperm.xlu0 %7607, %v6366
      %v7609 = vpop.permute.xlu0 %7608
      %7612 = vset.pattern.permute.xlu0 0
      %7613 = vperm.xlu0 %7612, %v6367
      %v7614 = vpop.permute.xlu0 %7613
      %7617 = vset.pattern.permute.xlu0 0
      %7618 = vperm.xlu0 %7617, %v6368
      %v7619 = vpop.permute.xlu0 %7618
      %7622 = vset.pattern.permute.xlu0 0
      %7623 = vperm.xlu0 %7622, %v6369
      %v7624 = vpop.permute.xlu0 %7623
      %7627 = vset.pattern.permute.xlu0 0
      %7628 = vperm.xlu0 %7627, %v6370
      %v7629 = vpop.permute.xlu0 %7628
      %7632 = vset.pattern.permute.xlu0 0
      %7633 = vperm.xlu0 %7632, %v6371
      %v7634 = vpop.permute.xlu0 %7633
      %7637 = vset.pattern.permute.xlu0 0
      %7638 = vperm.xlu0 %7637, %v6372
      %v7639 = vpop.permute.xlu0 %7638
      %7642 = vset.pattern.permute.xlu0 0
      %7643 = vperm.xlu0 %7642, %v6373
      %v7644 = vpop.permute.xlu0 %7643
      %7647 = vset.pattern.permute.xlu0 0
      %7648 = vperm.xlu0 %7647, %v6374
      %v7649 = vpop.permute.xlu0 %7648
      %7652 = vset.pattern.permute.xlu0 0
      %7653 = vperm.xlu0 %7652, %v6375
      %v7654 = vpop.permute.xlu0 %7653
      %7657 = vset.pattern.permute.xlu0 0
      %7658 = vperm.xlu0 %7657, %v6376
      %v7659 = vpop.permute.xlu0 %7658
      %7662 = vset.pattern.permute.xlu0 0
      %7663 = vperm.xlu0 %7662, %v6377
      %v7664 = vpop.permute.xlu0 %7663
      %7667 = vset.pattern.permute.xlu0 0
      %7668 = vperm.xlu0 %7667, %v6378
      %v7669 = vpop.permute.xlu0 %7668
      %7672 = vset.pattern.permute.xlu0 0
      %7673 = vperm.xlu0 %7672, %v6379
      %v7674 = vpop.permute.xlu0 %7673
      %7677 = vset.pattern.permute.xlu0 0
      %7678 = vperm.xlu0 %7677, %v6380
      %v7679 = vpop.permute.xlu0 %7678
      %7682 = vset.pattern.permute.xlu0 0
      %7683 = vperm.xlu0 %7682, %v6381
      %v7684 = vpop.permute.xlu0 %7683
      %7687 = vset.pattern.permute.xlu0 0
      %7688 = vperm.xlu0 %7687, %v6382
      %v7689 = vpop.permute.xlu0 %7688
      %7692 = vset.pattern.permute.xlu0 0
      %7693 = vperm.xlu0 %7692, %v6383
      %v7694 = vpop.permute.xlu0 %7693
      %7697 = vset.pattern.permute.xlu0 0
      %7698 = vperm.xlu0 %7697, %v6384
      %v7699 = vpop.permute.xlu0 %7698
      %7702 = vset.pattern.permute.xlu0 0
      %7703 = vperm.xlu0 %7702, %v6385
      %v7704 = vpop.permute.xlu0 %7703
      %7707 = vset.pattern.permute.xlu0 0
      %7708 = vperm.xlu0 %7707, %v6386
      %v7709 = vpop.permute.xlu0 %7708
      %7712 = vset.pattern.permute.xlu0 0
      %7713 = vperm.xlu0 %7712, %v6387
      %v7714 = vpop.permute.xlu0 %7713
      %7717 = vset.pattern.permute.xlu0 0
      %7718 = vperm.xlu0 %7717, %v6388
      %v7719 = vpop.permute.xlu0 %7718
      %7722 = vset.pattern.permute.xlu0 0
      %7723 = vperm.xlu0 %7722, %v6389
      %v7724 = vpop.permute.xlu0 %7723
      %7727 = vset.pattern.permute.xlu0 0
      %7728 = vperm.xlu0 %7727, %v6390
      %v7729 = vpop.permute.xlu0 %7728
      %7732 = vset.pattern.permute.xlu0 0
      %7733 = vperm.xlu0 %7732, %v6391
      %v7734 = vpop.permute.xlu0 %7733
      %7737 = vset.pattern.permute.xlu0 0
      %7738 = vperm.xlu0 %7737, %v6392
      %v7739 = vpop.permute.xlu0 %7738
      %7742 = vset.pattern.permute.xlu0 0
      %7743 = vperm.xlu0 %7742, %v6393
      %v7744 = vpop.permute.xlu0 %7743
      %7747 = vset.pattern.permute.xlu0 0
      %7748 = vperm.xlu0 %7747, %v6394
      %v7749 = vpop.permute.xlu0 %7748
      %7752 = vset.pattern.permute.xlu0 0
      %7753 = vperm.xlu0 %7752, %v6395
      %v7754 = vpop.permute.xlu0 %7753
      %7757 = vset.pattern.permute.xlu0 0
      %7758 = vperm.xlu0 %7757, %v6396
      %v7759 = vpop.permute.xlu0 %7758
      %7762 = vset.pattern.permute.xlu0 0
      %7763 = vperm.xlu0 %7762, %v6397
      %v7764 = vpop.permute.xlu0 %7763
      %7767 = vset.pattern.permute.xlu0 0
      %7768 = vperm.xlu0 %7767, %v6398
      %v7769 = vpop.permute.xlu0 %7768
      %7772 = vset.pattern.permute.xlu0 0
      %7773 = vperm.xlu0 %7772, %v6399
      %v7774 = vpop.permute.xlu0 %7773
      %7777 = vset.pattern.permute.xlu0 0
      %7778 = vperm.xlu0 %7777, %v6400
      %v7779 = vpop.permute.xlu0 %7778
      %7782 = vset.pattern.permute.xlu0 0
      %7783 = vperm.xlu0 %7782, %v6401
      %v7784 = vpop.permute.xlu0 %7783
      %7787 = vset.pattern.permute.xlu0 0
      %7788 = vperm.xlu0 %7787, %v6402
      %v7789 = vpop.permute.xlu0 %7788
      %7792 = vset.pattern.permute.xlu0 0
      %7793 = vperm.xlu0 %7792, %v6403
      %v7794 = vpop.permute.xlu0 %7793
      %7797 = vset.pattern.permute.xlu0 0
      %7798 = vperm.xlu0 %7797, %v6404
      %v7799 = vpop.permute.xlu0 %7798
      %7802 = vset.pattern.permute.xlu0 0
      %7803 = vperm.xlu0 %7802, %v6405
      %v7804 = vpop.permute.xlu0 %7803
      %7807 = vset.pattern.permute.xlu0 0
      %7808 = vperm.xlu0 %7807, %v6406
      %v7809 = vpop.permute.xlu0 %7808
      %7812 = vset.pattern.permute.xlu0 0
      %7813 = vperm.xlu0 %7812, %v6407
      %v7814 = vpop.permute.xlu0 %7813
      %7817 = vset.pattern.permute.xlu0 0
      %7818 = vperm.xlu0 %7817, %v6408
      %v7819 = vpop.permute.xlu0 %7818
      %v7821 = vperm.slane %v3867, 3
      %v7822 = vperm.slane %v3868, 3
      %v7823 = vmul.f32 %v7184, %v7821
      %v7824 = vmul.f32 %v7184, %v7822
      %v7825 = vmul.f32 %v7189, %v7821
      %v7826 = vmul.f32 %v7189, %v7822
      %v7827 = vmul.f32 %v7194, %v7821
      %v7828 = vmul.f32 %v7194, %v7822
      %v7829 = vmul.f32 %v7199, %v7821
      %v7830 = vmul.f32 %v7199, %v7822
      %v7831 = vmul.f32 %v7204, %v7821
      %v7832 = vmul.f32 %v7204, %v7822
      %v7833 = vmul.f32 %v7209, %v7821
      %v7834 = vmul.f32 %v7209, %v7822
      %v7835 = vmul.f32 %v7214, %v7821
      %v7836 = vmul.f32 %v7214, %v7822
      %v7837 = vmul.f32 %v7219, %v7821
      %v7838 = vmul.f32 %v7219, %v7822
      %v7839 = vmul.f32 %v7224, %v7821
      %v7840 = vmul.f32 %v7224, %v7822
      %v7841 = vmul.f32 %v7229, %v7821
      %v7842 = vmul.f32 %v7229, %v7822
      %v7843 = vmul.f32 %v7234, %v7821
      %v7844 = vmul.f32 %v7234, %v7822
      %v7845 = vmul.f32 %v7239, %v7821
      %v7846 = vmul.f32 %v7239, %v7822
      %v7847 = vmul.f32 %v7244, %v7821
      %v7848 = vmul.f32 %v7244, %v7822
      %v7849 = vmul.f32 %v7249, %v7821
      %v7850 = vmul.f32 %v7249, %v7822
      %v7851 = vmul.f32 %v7254, %v7821
      %v7852 = vmul.f32 %v7254, %v7822
      %v7853 = vmul.f32 %v7259, %v7821
      %v7854 = vmul.f32 %v7259, %v7822
      %v7855 = vmul.f32 %v7264, %v7821
      %v7856 = vmul.f32 %v7264, %v7822
      %v7857 = vmul.f32 %v7269, %v7821
      %v7858 = vmul.f32 %v7269, %v7822
      %v7859 = vmul.f32 %v7274, %v7821
      %v7860 = vmul.f32 %v7274, %v7822
      %v7861 = vmul.f32 %v7279, %v7821
      %v7862 = vmul.f32 %v7279, %v7822
      %v7863 = vmul.f32 %v7284, %v7821
      %v7864 = vmul.f32 %v7284, %v7822
      %v7865 = vmul.f32 %v7289, %v7821
      %v7866 = vmul.f32 %v7289, %v7822
      %v7867 = vmul.f32 %v7294, %v7821
      %v7868 = vmul.f32 %v7294, %v7822
      %v7869 = vmul.f32 %v7299, %v7821
      %v7870 = vmul.f32 %v7299, %v7822
      %v7871 = vmul.f32 %v7304, %v7821
      %v7872 = vmul.f32 %v7304, %v7822
      %v7873 = vmul.f32 %v7309, %v7821
      %v7874 = vmul.f32 %v7309, %v7822
      %v7875 = vmul.f32 %v7314, %v7821
      %v7876 = vmul.f32 %v7314, %v7822
      %v7877 = vmul.f32 %v7319, %v7821
      %v7878 = vmul.f32 %v7319, %v7822
      %v7879 = vmul.f32 %v7324, %v7821
      %v7880 = vmul.f32 %v7324, %v7822
      %v7881 = vmul.f32 %v7329, %v7821
      %v7882 = vmul.f32 %v7329, %v7822
      %v7883 = vmul.f32 %v7334, %v7821
      %v7884 = vmul.f32 %v7334, %v7822
      %v7885 = vmul.f32 %v7339, %v7821
      %v7886 = vmul.f32 %v7339, %v7822
      %v7887 = vmul.f32 %v7344, %v7821
      %v7888 = vmul.f32 %v7344, %v7822
      %v7889 = vmul.f32 %v7349, %v7821
      %v7890 = vmul.f32 %v7349, %v7822
      %v7891 = vmul.f32 %v7354, %v7821
      %v7892 = vmul.f32 %v7354, %v7822
      %v7893 = vmul.f32 %v7359, %v7821
      %v7894 = vmul.f32 %v7359, %v7822
      %v7895 = vmul.f32 %v7364, %v7821
      %v7896 = vmul.f32 %v7364, %v7822
      %v7897 = vmul.f32 %v7369, %v7821
      %v7898 = vmul.f32 %v7369, %v7822
      %v7899 = vmul.f32 %v7374, %v7821
      %v7900 = vmul.f32 %v7374, %v7822
      %v7901 = vmul.f32 %v7379, %v7821
      %v7902 = vmul.f32 %v7379, %v7822
      %v7903 = vmul.f32 %v7384, %v7821
      %v7904 = vmul.f32 %v7384, %v7822
      %v7905 = vmul.f32 %v7389, %v7821
      %v7906 = vmul.f32 %v7389, %v7822
      %v7907 = vmul.f32 %v7394, %v7821
      %v7908 = vmul.f32 %v7394, %v7822
      %v7909 = vmul.f32 %v7399, %v7821
      %v7910 = vmul.f32 %v7399, %v7822
      %v7911 = vmul.f32 %v7404, %v7821
      %v7912 = vmul.f32 %v7404, %v7822
      %v7913 = vmul.f32 %v7409, %v7821
      %v7914 = vmul.f32 %v7409, %v7822
      %v7915 = vmul.f32 %v7414, %v7821
      %v7916 = vmul.f32 %v7414, %v7822
      %v7917 = vmul.f32 %v7419, %v7821
      %v7918 = vmul.f32 %v7419, %v7822
      %v7919 = vmul.f32 %v7424, %v7821
      %v7920 = vmul.f32 %v7424, %v7822
      %v7921 = vmul.f32 %v7429, %v7821
      %v7922 = vmul.f32 %v7429, %v7822
      %v7923 = vmul.f32 %v7434, %v7821
      %v7924 = vmul.f32 %v7434, %v7822
      %v7925 = vmul.f32 %v7439, %v7821
      %v7926 = vmul.f32 %v7439, %v7822
      %v7927 = vmul.f32 %v7444, %v7821
      %v7928 = vmul.f32 %v7444, %v7822
      %v7929 = vmul.f32 %v7449, %v7821
      %v7930 = vmul.f32 %v7449, %v7822
      %v7931 = vmul.f32 %v7454, %v7821
      %v7932 = vmul.f32 %v7454, %v7822
      %v7933 = vmul.f32 %v7459, %v7821
      %v7934 = vmul.f32 %v7459, %v7822
      %v7935 = vmul.f32 %v7464, %v7821
      %v7936 = vmul.f32 %v7464, %v7822
      %v7937 = vmul.f32 %v7469, %v7821
      %v7938 = vmul.f32 %v7469, %v7822
      %v7939 = vmul.f32 %v7474, %v7821
      %v7940 = vmul.f32 %v7474, %v7822
      %v7941 = vmul.f32 %v7479, %v7821
      %v7942 = vmul.f32 %v7479, %v7822
      %v7943 = vmul.f32 %v7484, %v7821
      %v7944 = vmul.f32 %v7484, %v7822
      %v7945 = vmul.f32 %v7489, %v7821
      %v7946 = vmul.f32 %v7489, %v7822
      %v7947 = vmul.f32 %v7494, %v7821
      %v7948 = vmul.f32 %v7494, %v7822
      %v7949 = vmul.f32 %v7499, %v7821
      %v7950 = vmul.f32 %v7499, %v7822
      %v7951 = vmul.f32 %v7504, %v7821
      %v7952 = vmul.f32 %v7504, %v7822
      %v7953 = vmul.f32 %v7509, %v7821
      %v7954 = vmul.f32 %v7509, %v7822
      %v7955 = vmul.f32 %v7514, %v7821
      %v7956 = vmul.f32 %v7514, %v7822
      %v7957 = vmul.f32 %v7519, %v7821
      %v7958 = vmul.f32 %v7519, %v7822
      %v7959 = vmul.f32 %v7524, %v7821
      %v7960 = vmul.f32 %v7524, %v7822
      %v7961 = vmul.f32 %v7529, %v7821
      %v7962 = vmul.f32 %v7529, %v7822
      %v7963 = vmul.f32 %v7534, %v7821
      %v7964 = vmul.f32 %v7534, %v7822
      %v7965 = vmul.f32 %v7539, %v7821
      %v7966 = vmul.f32 %v7539, %v7822
      %v7967 = vmul.f32 %v7544, %v7821
      %v7968 = vmul.f32 %v7544, %v7822
      %v7969 = vmul.f32 %v7549, %v7821
      %v7970 = vmul.f32 %v7549, %v7822
      %v7971 = vmul.f32 %v7554, %v7821
      %v7972 = vmul.f32 %v7554, %v7822
      %v7973 = vmul.f32 %v7559, %v7821
      %v7974 = vmul.f32 %v7559, %v7822
      %v7975 = vmul.f32 %v7564, %v7821
      %v7976 = vmul.f32 %v7564, %v7822
      %v7977 = vmul.f32 %v7569, %v7821
      %v7978 = vmul.f32 %v7569, %v7822
      %v7979 = vmul.f32 %v7574, %v7821
      %v7980 = vmul.f32 %v7574, %v7822
      %v7981 = vmul.f32 %v7579, %v7821
      %v7982 = vmul.f32 %v7579, %v7822
      %v7983 = vmul.f32 %v7584, %v7821
      %v7984 = vmul.f32 %v7584, %v7822
      %v7985 = vmul.f32 %v7589, %v7821
      %v7986 = vmul.f32 %v7589, %v7822
      %v7987 = vmul.f32 %v7594, %v7821
      %v7988 = vmul.f32 %v7594, %v7822
      %v7989 = vmul.f32 %v7599, %v7821
      %v7990 = vmul.f32 %v7599, %v7822
      %v7991 = vmul.f32 %v7604, %v7821
      %v7992 = vmul.f32 %v7604, %v7822
      %v7993 = vmul.f32 %v7609, %v7821
      %v7994 = vmul.f32 %v7609, %v7822
      %v7995 = vmul.f32 %v7614, %v7821
      %v7996 = vmul.f32 %v7614, %v7822
      %v7997 = vmul.f32 %v7619, %v7821
      %v7998 = vmul.f32 %v7619, %v7822
      %v7999 = vmul.f32 %v7624, %v7821
      %v8000 = vmul.f32 %v7624, %v7822
      %v8001 = vmul.f32 %v7629, %v7821
      %v8002 = vmul.f32 %v7629, %v7822
      %v8003 = vmul.f32 %v7634, %v7821
      %v8004 = vmul.f32 %v7634, %v7822
      %v8005 = vmul.f32 %v7639, %v7821
      %v8006 = vmul.f32 %v7639, %v7822
      %v8007 = vmul.f32 %v7644, %v7821
      %v8008 = vmul.f32 %v7644, %v7822
      %v8009 = vmul.f32 %v7649, %v7821
      %v8010 = vmul.f32 %v7649, %v7822
      %v8011 = vmul.f32 %v7654, %v7821
      %v8012 = vmul.f32 %v7654, %v7822
      %v8013 = vmul.f32 %v7659, %v7821
      %v8014 = vmul.f32 %v7659, %v7822
      %v8015 = vmul.f32 %v7664, %v7821
      %v8016 = vmul.f32 %v7664, %v7822
      %v8017 = vmul.f32 %v7669, %v7821
      %v8018 = vmul.f32 %v7669, %v7822
      %v8019 = vmul.f32 %v7674, %v7821
      %v8020 = vmul.f32 %v7674, %v7822
      %v8021 = vmul.f32 %v7679, %v7821
      %v8022 = vmul.f32 %v7679, %v7822
      %v8023 = vmul.f32 %v7684, %v7821
      %v8024 = vmul.f32 %v7684, %v7822
      %v8025 = vmul.f32 %v7689, %v7821
      %v8026 = vmul.f32 %v7689, %v7822
      %v8027 = vmul.f32 %v7694, %v7821
      %v8028 = vmul.f32 %v7694, %v7822
      %v8029 = vmul.f32 %v7699, %v7821
      %v8030 = vmul.f32 %v7699, %v7822
      %v8031 = vmul.f32 %v7704, %v7821
      %v8032 = vmul.f32 %v7704, %v7822
      %v8033 = vmul.f32 %v7709, %v7821
      %v8034 = vmul.f32 %v7709, %v7822
      %v8035 = vmul.f32 %v7714, %v7821
      %v8036 = vmul.f32 %v7714, %v7822
      %v8037 = vmul.f32 %v7719, %v7821
      %v8038 = vmul.f32 %v7719, %v7822
      %v8039 = vmul.f32 %v7724, %v7821
      %v8040 = vmul.f32 %v7724, %v7822
      %v8041 = vmul.f32 %v7729, %v7821
      %v8042 = vmul.f32 %v7729, %v7822
      %v8043 = vmul.f32 %v7734, %v7821
      %v8044 = vmul.f32 %v7734, %v7822
      %v8045 = vmul.f32 %v7739, %v7821
      %v8046 = vmul.f32 %v7739, %v7822
      %v8047 = vmul.f32 %v7744, %v7821
      %v8048 = vmul.f32 %v7744, %v7822
      %v8049 = vmul.f32 %v7749, %v7821
      %v8050 = vmul.f32 %v7749, %v7822
      %v8051 = vmul.f32 %v7754, %v7821
      %v8052 = vmul.f32 %v7754, %v7822
      %v8053 = vmul.f32 %v7759, %v7821
      %v8054 = vmul.f32 %v7759, %v7822
      %v8055 = vmul.f32 %v7764, %v7821
      %v8056 = vmul.f32 %v7764, %v7822
      %v8057 = vmul.f32 %v7769, %v7821
      %v8058 = vmul.f32 %v7769, %v7822
      %v8059 = vmul.f32 %v7774, %v7821
      %v8060 = vmul.f32 %v7774, %v7822
      %v8061 = vmul.f32 %v7779, %v7821
      %v8062 = vmul.f32 %v7779, %v7822
      %v8063 = vmul.f32 %v7784, %v7821
      %v8064 = vmul.f32 %v7784, %v7822
      %v8065 = vmul.f32 %v7789, %v7821
      %v8066 = vmul.f32 %v7789, %v7822
      %v8067 = vmul.f32 %v7794, %v7821
      %v8068 = vmul.f32 %v7794, %v7822
      %v8069 = vmul.f32 %v7799, %v7821
      %v8070 = vmul.f32 %v7799, %v7822
      %v8071 = vmul.f32 %v7804, %v7821
      %v8072 = vmul.f32 %v7804, %v7822
      %v8073 = vmul.f32 %v7809, %v7821
      %v8074 = vmul.f32 %v7809, %v7822
      %v8075 = vmul.f32 %v7814, %v7821
      %v8076 = vmul.f32 %v7814, %v7822
      %v8077 = vmul.f32 %v7819, %v7821
      %v8078 = vmul.f32 %v7819, %v7822
      %v8079 = vadd.f32 %v6925, %v7823
      %v8080 = vadd.f32 %v6926, %v7824
      %v8081 = vadd.f32 %v6927, %v7825
      %v8082 = vadd.f32 %v6928, %v7826
      %v8083 = vadd.f32 %v6929, %v7827
      %v8084 = vadd.f32 %v6930, %v7828
      %v8085 = vadd.f32 %v6931, %v7829
      %v8086 = vadd.f32 %v6932, %v7830
      %v8087 = vadd.f32 %v6933, %v7831
      %v8088 = vadd.f32 %v6934, %v7832
      %v8089 = vadd.f32 %v6935, %v7833
      %v8090 = vadd.f32 %v6936, %v7834
      %v8091 = vadd.f32 %v6937, %v7835
      %v8092 = vadd.f32 %v6938, %v7836
      %v8093 = vadd.f32 %v6939, %v7837
      %v8094 = vadd.f32 %v6940, %v7838
      %v8095 = vadd.f32 %v6941, %v7839
      %v8096 = vadd.f32 %v6942, %v7840
      %v8097 = vadd.f32 %v6943, %v7841
      %v8098 = vadd.f32 %v6944, %v7842
      %v8099 = vadd.f32 %v6945, %v7843
      %v8100 = vadd.f32 %v6946, %v7844
      %v8101 = vadd.f32 %v6947, %v7845
      %v8102 = vadd.f32 %v6948, %v7846
      %v8103 = vadd.f32 %v6949, %v7847
      %v8104 = vadd.f32 %v6950, %v7848
      %v8105 = vadd.f32 %v6951, %v7849
      %v8106 = vadd.f32 %v6952, %v7850
      %v8107 = vadd.f32 %v6953, %v7851
      %v8108 = vadd.f32 %v6954, %v7852
      %v8109 = vadd.f32 %v6955, %v7853
      %v8110 = vadd.f32 %v6956, %v7854
      %v8111 = vadd.f32 %v6957, %v7855
      %v8112 = vadd.f32 %v6958, %v7856
      %v8113 = vadd.f32 %v6959, %v7857
      %v8114 = vadd.f32 %v6960, %v7858
      %v8115 = vadd.f32 %v6961, %v7859
      %v8116 = vadd.f32 %v6962, %v7860
      %v8117 = vadd.f32 %v6963, %v7861
      %v8118 = vadd.f32 %v6964, %v7862
      %v8119 = vadd.f32 %v6965, %v7863
      %v8120 = vadd.f32 %v6966, %v7864
      %v8121 = vadd.f32 %v6967, %v7865
      %v8122 = vadd.f32 %v6968, %v7866
      %v8123 = vadd.f32 %v6969, %v7867
      %v8124 = vadd.f32 %v6970, %v7868
      %v8125 = vadd.f32 %v6971, %v7869
      %v8126 = vadd.f32 %v6972, %v7870
      %v8127 = vadd.f32 %v6973, %v7871
      %v8128 = vadd.f32 %v6974, %v7872
      %v8129 = vadd.f32 %v6975, %v7873
      %v8130 = vadd.f32 %v6976, %v7874
      %v8131 = vadd.f32 %v6977, %v7875
      %v8132 = vadd.f32 %v6978, %v7876
      %v8133 = vadd.f32 %v6979, %v7877
      %v8134 = vadd.f32 %v6980, %v7878
      %v8135 = vadd.f32 %v6981, %v7879
      %v8136 = vadd.f32 %v6982, %v7880
      %v8137 = vadd.f32 %v6983, %v7881
      %v8138 = vadd.f32 %v6984, %v7882
      %v8139 = vadd.f32 %v6985, %v7883
      %v8140 = vadd.f32 %v6986, %v7884
      %v8141 = vadd.f32 %v6987, %v7885
      %v8142 = vadd.f32 %v6988, %v7886
      %v8143 = vadd.f32 %v6989, %v7887
      %v8144 = vadd.f32 %v6990, %v7888
      %v8145 = vadd.f32 %v6991, %v7889
      %v8146 = vadd.f32 %v6992, %v7890
      %v8147 = vadd.f32 %v6993, %v7891
      %v8148 = vadd.f32 %v6994, %v7892
      %v8149 = vadd.f32 %v6995, %v7893
      %v8150 = vadd.f32 %v6996, %v7894
      %v8151 = vadd.f32 %v6997, %v7895
      %v8152 = vadd.f32 %v6998, %v7896
      %v8153 = vadd.f32 %v6999, %v7897
      %v8154 = vadd.f32 %v7000, %v7898
      %v8155 = vadd.f32 %v7001, %v7899
      %v8156 = vadd.f32 %v7002, %v7900
      %v8157 = vadd.f32 %v7003, %v7901
      %v8158 = vadd.f32 %v7004, %v7902
      %v8159 = vadd.f32 %v7005, %v7903
      %v8160 = vadd.f32 %v7006, %v7904
      %v8161 = vadd.f32 %v7007, %v7905
      %v8162 = vadd.f32 %v7008, %v7906
      %v8163 = vadd.f32 %v7009, %v7907
      %v8164 = vadd.f32 %v7010, %v7908
      %v8165 = vadd.f32 %v7011, %v7909
      %v8166 = vadd.f32 %v7012, %v7910
      %v8167 = vadd.f32 %v7013, %v7911
      %v8168 = vadd.f32 %v7014, %v7912
      %v8169 = vadd.f32 %v7015, %v7913
      %v8170 = vadd.f32 %v7016, %v7914
      %v8171 = vadd.f32 %v7017, %v7915
      %v8172 = vadd.f32 %v7018, %v7916
      %v8173 = vadd.f32 %v7019, %v7917
      %v8174 = vadd.f32 %v7020, %v7918
      %v8175 = vadd.f32 %v7021, %v7919
      %v8176 = vadd.f32 %v7022, %v7920
      %v8177 = vadd.f32 %v7023, %v7921
      %v8178 = vadd.f32 %v7024, %v7922
      %v8179 = vadd.f32 %v7025, %v7923
      %v8180 = vadd.f32 %v7026, %v7924
      %v8181 = vadd.f32 %v7027, %v7925
      %v8182 = vadd.f32 %v7028, %v7926
      %v8183 = vadd.f32 %v7029, %v7927
      %v8184 = vadd.f32 %v7030, %v7928
      %v8185 = vadd.f32 %v7031, %v7929
      %v8186 = vadd.f32 %v7032, %v7930
      %v8187 = vadd.f32 %v7033, %v7931
      %v8188 = vadd.f32 %v7034, %v7932
      %v8189 = vadd.f32 %v7035, %v7933
      %v8190 = vadd.f32 %v7036, %v7934
      %v8191 = vadd.f32 %v7037, %v7935
      %v8192 = vadd.f32 %v7038, %v7936
      %v8193 = vadd.f32 %v7039, %v7937
      %v8194 = vadd.f32 %v7040, %v7938
      %v8195 = vadd.f32 %v7041, %v7939
      %v8196 = vadd.f32 %v7042, %v7940
      %v8197 = vadd.f32 %v7043, %v7941
      %v8198 = vadd.f32 %v7044, %v7942
      %v8199 = vadd.f32 %v7045, %v7943
      %v8200 = vadd.f32 %v7046, %v7944
      %v8201 = vadd.f32 %v7047, %v7945
      %v8202 = vadd.f32 %v7048, %v7946
      %v8203 = vadd.f32 %v7049, %v7947
      %v8204 = vadd.f32 %v7050, %v7948
      %v8205 = vadd.f32 %v7051, %v7949
      %v8206 = vadd.f32 %v7052, %v7950
      %v8207 = vadd.f32 %v7053, %v7951
      %v8208 = vadd.f32 %v7054, %v7952
      %v8209 = vadd.f32 %v7055, %v7953
      %v8210 = vadd.f32 %v7056, %v7954
      %v8211 = vadd.f32 %v7057, %v7955
      %v8212 = vadd.f32 %v7058, %v7956
      %v8213 = vadd.f32 %v7059, %v7957
      %v8214 = vadd.f32 %v7060, %v7958
      %v8215 = vadd.f32 %v7061, %v7959
      %v8216 = vadd.f32 %v7062, %v7960
      %v8217 = vadd.f32 %v7063, %v7961
      %v8218 = vadd.f32 %v7064, %v7962
      %v8219 = vadd.f32 %v7065, %v7963
      %v8220 = vadd.f32 %v7066, %v7964
      %v8221 = vadd.f32 %v7067, %v7965
      %v8222 = vadd.f32 %v7068, %v7966
      %v8223 = vadd.f32 %v7069, %v7967
      %v8224 = vadd.f32 %v7070, %v7968
      %v8225 = vadd.f32 %v7071, %v7969
      %v8226 = vadd.f32 %v7072, %v7970
      %v8227 = vadd.f32 %v7073, %v7971
      %v8228 = vadd.f32 %v7074, %v7972
      %v8229 = vadd.f32 %v7075, %v7973
      %v8230 = vadd.f32 %v7076, %v7974
      %v8231 = vadd.f32 %v7077, %v7975
      %v8232 = vadd.f32 %v7078, %v7976
      %v8233 = vadd.f32 %v7079, %v7977
      %v8234 = vadd.f32 %v7080, %v7978
      %v8235 = vadd.f32 %v7081, %v7979
      %v8236 = vadd.f32 %v7082, %v7980
      %v8237 = vadd.f32 %v7083, %v7981
      %v8238 = vadd.f32 %v7084, %v7982
      %v8239 = vadd.f32 %v7085, %v7983
      %v8240 = vadd.f32 %v7086, %v7984
      %v8241 = vadd.f32 %v7087, %v7985
      %v8242 = vadd.f32 %v7088, %v7986
      %v8243 = vadd.f32 %v7089, %v7987
      %v8244 = vadd.f32 %v7090, %v7988
      %v8245 = vadd.f32 %v7091, %v7989
      %v8246 = vadd.f32 %v7092, %v7990
      %v8247 = vadd.f32 %v7093, %v7991
      %v8248 = vadd.f32 %v7094, %v7992
      %v8249 = vadd.f32 %v7095, %v7993
      %v8250 = vadd.f32 %v7096, %v7994
      %v8251 = vadd.f32 %v7097, %v7995
      %v8252 = vadd.f32 %v7098, %v7996
      %v8253 = vadd.f32 %v7099, %v7997
      %v8254 = vadd.f32 %v7100, %v7998
      %v8255 = vadd.f32 %v7101, %v7999
      %v8256 = vadd.f32 %v7102, %v8000
      %v8257 = vadd.f32 %v7103, %v8001
      %v8258 = vadd.f32 %v7104, %v8002
      %v8259 = vadd.f32 %v7105, %v8003
      %v8260 = vadd.f32 %v7106, %v8004
      %v8261 = vadd.f32 %v7107, %v8005
      %v8262 = vadd.f32 %v7108, %v8006
      %v8263 = vadd.f32 %v7109, %v8007
      %v8264 = vadd.f32 %v7110, %v8008
      %v8265 = vadd.f32 %v7111, %v8009
      %v8266 = vadd.f32 %v7112, %v8010
      %v8267 = vadd.f32 %v7113, %v8011
      %v8268 = vadd.f32 %v7114, %v8012
      %v8269 = vadd.f32 %v7115, %v8013
      %v8270 = vadd.f32 %v7116, %v8014
      %v8271 = vadd.f32 %v7117, %v8015
      %v8272 = vadd.f32 %v7118, %v8016
      %v8273 = vadd.f32 %v7119, %v8017
      %v8274 = vadd.f32 %v7120, %v8018
      %v8275 = vadd.f32 %v7121, %v8019
      %v8276 = vadd.f32 %v7122, %v8020
      %v8277 = vadd.f32 %v7123, %v8021
      %v8278 = vadd.f32 %v7124, %v8022
      %v8279 = vadd.f32 %v7125, %v8023
      %v8280 = vadd.f32 %v7126, %v8024
      %v8281 = vadd.f32 %v7127, %v8025
      %v8282 = vadd.f32 %v7128, %v8026
      %v8283 = vadd.f32 %v7129, %v8027
      %v8284 = vadd.f32 %v7130, %v8028
      %v8285 = vadd.f32 %v7131, %v8029
      %v8286 = vadd.f32 %v7132, %v8030
      %v8287 = vadd.f32 %v7133, %v8031
      %v8288 = vadd.f32 %v7134, %v8032
      %v8289 = vadd.f32 %v7135, %v8033
      %v8290 = vadd.f32 %v7136, %v8034
      %v8291 = vadd.f32 %v7137, %v8035
      %v8292 = vadd.f32 %v7138, %v8036
      %v8293 = vadd.f32 %v7139, %v8037
      %v8294 = vadd.f32 %v7140, %v8038
      %v8295 = vadd.f32 %v7141, %v8039
      %v8296 = vadd.f32 %v7142, %v8040
      %v8297 = vadd.f32 %v7143, %v8041
      %v8298 = vadd.f32 %v7144, %v8042
      %v8299 = vadd.f32 %v7145, %v8043
      %v8300 = vadd.f32 %v7146, %v8044
      %v8301 = vadd.f32 %v7147, %v8045
      %v8302 = vadd.f32 %v7148, %v8046
      %v8303 = vadd.f32 %v7149, %v8047
      %v8304 = vadd.f32 %v7150, %v8048
      %v8305 = vadd.f32 %v7151, %v8049
      %v8306 = vadd.f32 %v7152, %v8050
      %v8307 = vadd.f32 %v7153, %v8051
      %v8308 = vadd.f32 %v7154, %v8052
      %v8309 = vadd.f32 %v7155, %v8053
      %v8310 = vadd.f32 %v7156, %v8054
      %v8311 = vadd.f32 %v7157, %v8055
      %v8312 = vadd.f32 %v7158, %v8056
      %v8313 = vadd.f32 %v7159, %v8057
      %v8314 = vadd.f32 %v7160, %v8058
      %v8315 = vadd.f32 %v7161, %v8059
      %v8316 = vadd.f32 %v7162, %v8060
      %v8317 = vadd.f32 %v7163, %v8061
      %v8318 = vadd.f32 %v7164, %v8062
      %v8319 = vadd.f32 %v7165, %v8063
      %v8320 = vadd.f32 %v7166, %v8064
      %v8321 = vadd.f32 %v7167, %v8065
      %v8322 = vadd.f32 %v7168, %v8066
      %v8323 = vadd.f32 %v7169, %v8067
      %v8324 = vadd.f32 %v7170, %v8068
      %v8325 = vadd.f32 %v7171, %v8069
      %v8326 = vadd.f32 %v7172, %v8070
      %v8327 = vadd.f32 %v7173, %v8071
      %v8328 = vadd.f32 %v7174, %v8072
      %v8329 = vadd.f32 %v7175, %v8073
      %v8330 = vadd.f32 %v7176, %v8074
      %v8331 = vadd.f32 %v7177, %v8075
      %v8332 = vadd.f32 %v7178, %v8076
      %v8333 = vadd.f32 %v7179, %v8077
      %v8334 = vadd.f32 %v7180, %v8078
      %8335 = vset.pattern.permute.xlu0 1
      %8336 = vperm.xlu0 %8335, %v6281
      %v8337 = vpop.permute.xlu0 %8336
      %8339 = vset.pattern.permute.xlu0 1
      %8340 = vperm.xlu0 %8339, %v6282
      %v8341 = vpop.permute.xlu0 %8340
      %8343 = vset.pattern.permute.xlu0 1
      %8344 = vperm.xlu0 %8343, %v6283
      %v8345 = vpop.permute.xlu0 %8344
      %8347 = vset.pattern.permute.xlu0 1
      %8348 = vperm.xlu0 %8347, %v6284
      %v8349 = vpop.permute.xlu0 %8348
      %8351 = vset.pattern.permute.xlu0 1
      %8352 = vperm.xlu0 %8351, %v6285
      %v8353 = vpop.permute.xlu0 %8352
      %8355 = vset.pattern.permute.xlu0 1
      %8356 = vperm.xlu0 %8355, %v6286
      %v8357 = vpop.permute.xlu0 %8356
      %8359 = vset.pattern.permute.xlu0 1
      %8360 = vperm.xlu0 %8359, %v6287
      %v8361 = vpop.permute.xlu0 %8360
      %8363 = vset.pattern.permute.xlu0 1
      %8364 = vperm.xlu0 %8363, %v6288
      %v8365 = vpop.permute.xlu0 %8364
      %8367 = vset.pattern.permute.xlu0 1
      %8368 = vperm.xlu0 %8367, %v6289
      %v8369 = vpop.permute.xlu0 %8368
      %8371 = vset.pattern.permute.xlu0 1
      %8372 = vperm.xlu0 %8371, %v6290
      %v8373 = vpop.permute.xlu0 %8372
      %8375 = vset.pattern.permute.xlu0 1
      %8376 = vperm.xlu0 %8375, %v6291
      %v8377 = vpop.permute.xlu0 %8376
      %8379 = vset.pattern.permute.xlu0 1
      %8380 = vperm.xlu0 %8379, %v6292
      %v8381 = vpop.permute.xlu0 %8380
      %8383 = vset.pattern.permute.xlu0 1
      %8384 = vperm.xlu0 %8383, %v6293
      %v8385 = vpop.permute.xlu0 %8384
      %8387 = vset.pattern.permute.xlu0 1
      %8388 = vperm.xlu0 %8387, %v6294
      %v8389 = vpop.permute.xlu0 %8388
      %8391 = vset.pattern.permute.xlu0 1
      %8392 = vperm.xlu0 %8391, %v6295
      %v8393 = vpop.permute.xlu0 %8392
      %8395 = vset.pattern.permute.xlu0 1
      %8396 = vperm.xlu0 %8395, %v6296
      %v8397 = vpop.permute.xlu0 %8396
      %8399 = vset.pattern.permute.xlu0 1
      %8400 = vperm.xlu0 %8399, %v6297
      %v8401 = vpop.permute.xlu0 %8400
      %8403 = vset.pattern.permute.xlu0 1
      %8404 = vperm.xlu0 %8403, %v6298
      %v8405 = vpop.permute.xlu0 %8404
      %8407 = vset.pattern.permute.xlu0 1
      %8408 = vperm.xlu0 %8407, %v6299
      %v8409 = vpop.permute.xlu0 %8408
      %8411 = vset.pattern.permute.xlu0 1
      %8412 = vperm.xlu0 %8411, %v6300
      %v8413 = vpop.permute.xlu0 %8412
      %8415 = vset.pattern.permute.xlu0 1
      %8416 = vperm.xlu0 %8415, %v6301
      %v8417 = vpop.permute.xlu0 %8416
      %8419 = vset.pattern.permute.xlu0 1
      %8420 = vperm.xlu0 %8419, %v6302
      %v8421 = vpop.permute.xlu0 %8420
      %8423 = vset.pattern.permute.xlu0 1
      %8424 = vperm.xlu0 %8423, %v6303
      %v8425 = vpop.permute.xlu0 %8424
      %8427 = vset.pattern.permute.xlu0 1
      %8428 = vperm.xlu0 %8427, %v6304
      %v8429 = vpop.permute.xlu0 %8428
      %8431 = vset.pattern.permute.xlu0 1
      %8432 = vperm.xlu0 %8431, %v6305
      %v8433 = vpop.permute.xlu0 %8432
      %8435 = vset.pattern.permute.xlu0 1
      %8436 = vperm.xlu0 %8435, %v6306
      %v8437 = vpop.permute.xlu0 %8436
      %8439 = vset.pattern.permute.xlu0 1
      %8440 = vperm.xlu0 %8439, %v6307
      %v8441 = vpop.permute.xlu0 %8440
      %8443 = vset.pattern.permute.xlu0 1
      %8444 = vperm.xlu0 %8443, %v6308
      %v8445 = vpop.permute.xlu0 %8444
      %8447 = vset.pattern.permute.xlu0 1
      %8448 = vperm.xlu0 %8447, %v6309
      %v8449 = vpop.permute.xlu0 %8448
      %8451 = vset.pattern.permute.xlu0 1
      %8452 = vperm.xlu0 %8451, %v6310
      %v8453 = vpop.permute.xlu0 %8452
      %8455 = vset.pattern.permute.xlu0 1
      %8456 = vperm.xlu0 %8455, %v6311
      %v8457 = vpop.permute.xlu0 %8456
      %8459 = vset.pattern.permute.xlu0 1
      %8460 = vperm.xlu0 %8459, %v6312
      %v8461 = vpop.permute.xlu0 %8460
      %8463 = vset.pattern.permute.xlu0 1
      %8464 = vperm.xlu0 %8463, %v6313
      %v8465 = vpop.permute.xlu0 %8464
      %8467 = vset.pattern.permute.xlu0 1
      %8468 = vperm.xlu0 %8467, %v6314
      %v8469 = vpop.permute.xlu0 %8468
      %8471 = vset.pattern.permute.xlu0 1
      %8472 = vperm.xlu0 %8471, %v6315
      %v8473 = vpop.permute.xlu0 %8472
      %8475 = vset.pattern.permute.xlu0 1
      %8476 = vperm.xlu0 %8475, %v6316
      %v8477 = vpop.permute.xlu0 %8476
      %8479 = vset.pattern.permute.xlu0 1
      %8480 = vperm.xlu0 %8479, %v6317
      %v8481 = vpop.permute.xlu0 %8480
      %8483 = vset.pattern.permute.xlu0 1
      %8484 = vperm.xlu0 %8483, %v6318
      %v8485 = vpop.permute.xlu0 %8484
      %8487 = vset.pattern.permute.xlu0 1
      %8488 = vperm.xlu0 %8487, %v6319
      %v8489 = vpop.permute.xlu0 %8488
      %8491 = vset.pattern.permute.xlu0 1
      %8492 = vperm.xlu0 %8491, %v6320
      %v8493 = vpop.permute.xlu0 %8492
      %8495 = vset.pattern.permute.xlu0 1
      %8496 = vperm.xlu0 %8495, %v6321
      %v8497 = vpop.permute.xlu0 %8496
      %8499 = vset.pattern.permute.xlu0 1
      %8500 = vperm.xlu0 %8499, %v6322
      %v8501 = vpop.permute.xlu0 %8500
      %8503 = vset.pattern.permute.xlu0 1
      %8504 = vperm.xlu0 %8503, %v6323
      %v8505 = vpop.permute.xlu0 %8504
      %8507 = vset.pattern.permute.xlu0 1
      %8508 = vperm.xlu0 %8507, %v6324
      %v8509 = vpop.permute.xlu0 %8508
      %8511 = vset.pattern.permute.xlu0 1
      %8512 = vperm.xlu0 %8511, %v6325
      %v8513 = vpop.permute.xlu0 %8512
      %8515 = vset.pattern.permute.xlu0 1
      %8516 = vperm.xlu0 %8515, %v6326
      %v8517 = vpop.permute.xlu0 %8516
      %8519 = vset.pattern.permute.xlu0 1
      %8520 = vperm.xlu0 %8519, %v6327
      %v8521 = vpop.permute.xlu0 %8520
      %8523 = vset.pattern.permute.xlu0 1
      %8524 = vperm.xlu0 %8523, %v6328
      %v8525 = vpop.permute.xlu0 %8524
      %8527 = vset.pattern.permute.xlu0 1
      %8528 = vperm.xlu0 %8527, %v6329
      %v8529 = vpop.permute.xlu0 %8528
      %8531 = vset.pattern.permute.xlu0 1
      %8532 = vperm.xlu0 %8531, %v6330
      %v8533 = vpop.permute.xlu0 %8532
      %8535 = vset.pattern.permute.xlu0 1
      %8536 = vperm.xlu0 %8535, %v6331
      %v8537 = vpop.permute.xlu0 %8536
      %8539 = vset.pattern.permute.xlu0 1
      %8540 = vperm.xlu0 %8539, %v6332
      %v8541 = vpop.permute.xlu0 %8540
      %8543 = vset.pattern.permute.xlu0 1
      %8544 = vperm.xlu0 %8543, %v6333
      %v8545 = vpop.permute.xlu0 %8544
      %8547 = vset.pattern.permute.xlu0 1
      %8548 = vperm.xlu0 %8547, %v6334
      %v8549 = vpop.permute.xlu0 %8548
      %8551 = vset.pattern.permute.xlu0 1
      %8552 = vperm.xlu0 %8551, %v6335
      %v8553 = vpop.permute.xlu0 %8552
      %8555 = vset.pattern.permute.xlu0 1
      %8556 = vperm.xlu0 %8555, %v6336
      %v8557 = vpop.permute.xlu0 %8556
      %8559 = vset.pattern.permute.xlu0 1
      %8560 = vperm.xlu0 %8559, %v6337
      %v8561 = vpop.permute.xlu0 %8560
      %8563 = vset.pattern.permute.xlu0 1
      %8564 = vperm.xlu0 %8563, %v6338
      %v8565 = vpop.permute.xlu0 %8564
      %8567 = vset.pattern.permute.xlu0 1
      %8568 = vperm.xlu0 %8567, %v6339
      %v8569 = vpop.permute.xlu0 %8568
      %8571 = vset.pattern.permute.xlu0 1
      %8572 = vperm.xlu0 %8571, %v6340
      %v8573 = vpop.permute.xlu0 %8572
      %8575 = vset.pattern.permute.xlu0 1
      %8576 = vperm.xlu0 %8575, %v6341
      %v8577 = vpop.permute.xlu0 %8576
      %8579 = vset.pattern.permute.xlu0 1
      %8580 = vperm.xlu0 %8579, %v6342
      %v8581 = vpop.permute.xlu0 %8580
      %8583 = vset.pattern.permute.xlu0 1
      %8584 = vperm.xlu0 %8583, %v6343
      %v8585 = vpop.permute.xlu0 %8584
      %8587 = vset.pattern.permute.xlu0 1
      %8588 = vperm.xlu0 %8587, %v6344
      %v8589 = vpop.permute.xlu0 %8588
      %8591 = vset.pattern.permute.xlu0 1
      %8592 = vperm.xlu0 %8591, %v6345
      %v8593 = vpop.permute.xlu0 %8592
      %8595 = vset.pattern.permute.xlu0 1
      %8596 = vperm.xlu0 %8595, %v6346
      %v8597 = vpop.permute.xlu0 %8596
      %8599 = vset.pattern.permute.xlu0 1
      %8600 = vperm.xlu0 %8599, %v6347
      %v8601 = vpop.permute.xlu0 %8600
      %8603 = vset.pattern.permute.xlu0 1
      %8604 = vperm.xlu0 %8603, %v6348
      %v8605 = vpop.permute.xlu0 %8604
      %8607 = vset.pattern.permute.xlu0 1
      %8608 = vperm.xlu0 %8607, %v6349
      %v8609 = vpop.permute.xlu0 %8608
      %8611 = vset.pattern.permute.xlu0 1
      %8612 = vperm.xlu0 %8611, %v6350
      %v8613 = vpop.permute.xlu0 %8612
      %8615 = vset.pattern.permute.xlu0 1
      %8616 = vperm.xlu0 %8615, %v6351
      %v8617 = vpop.permute.xlu0 %8616
      %8619 = vset.pattern.permute.xlu0 1
      %8620 = vperm.xlu0 %8619, %v6352
      %v8621 = vpop.permute.xlu0 %8620
      %8623 = vset.pattern.permute.xlu0 1
      %8624 = vperm.xlu0 %8623, %v6353
      %v8625 = vpop.permute.xlu0 %8624
      %8627 = vset.pattern.permute.xlu0 1
      %8628 = vperm.xlu0 %8627, %v6354
      %v8629 = vpop.permute.xlu0 %8628
      %8631 = vset.pattern.permute.xlu0 1
      %8632 = vperm.xlu0 %8631, %v6355
      %v8633 = vpop.permute.xlu0 %8632
      %8635 = vset.pattern.permute.xlu0 1
      %8636 = vperm.xlu0 %8635, %v6356
      %v8637 = vpop.permute.xlu0 %8636
      %8639 = vset.pattern.permute.xlu0 1
      %8640 = vperm.xlu0 %8639, %v6357
      %v8641 = vpop.permute.xlu0 %8640
      %8643 = vset.pattern.permute.xlu0 1
      %8644 = vperm.xlu0 %8643, %v6358
      %v8645 = vpop.permute.xlu0 %8644
      %8647 = vset.pattern.permute.xlu0 1
      %8648 = vperm.xlu0 %8647, %v6359
      %v8649 = vpop.permute.xlu0 %8648
      %8651 = vset.pattern.permute.xlu0 1
      %8652 = vperm.xlu0 %8651, %v6360
      %v8653 = vpop.permute.xlu0 %8652
      %8655 = vset.pattern.permute.xlu0 1
      %8656 = vperm.xlu0 %8655, %v6361
      %v8657 = vpop.permute.xlu0 %8656
      %8659 = vset.pattern.permute.xlu0 1
      %8660 = vperm.xlu0 %8659, %v6362
      %v8661 = vpop.permute.xlu0 %8660
      %8663 = vset.pattern.permute.xlu0 1
      %8664 = vperm.xlu0 %8663, %v6363
      %v8665 = vpop.permute.xlu0 %8664
      %8667 = vset.pattern.permute.xlu0 1
      %8668 = vperm.xlu0 %8667, %v6364
      %v8669 = vpop.permute.xlu0 %8668
      %8671 = vset.pattern.permute.xlu0 1
      %8672 = vperm.xlu0 %8671, %v6365
      %v8673 = vpop.permute.xlu0 %8672
      %8675 = vset.pattern.permute.xlu0 1
      %8676 = vperm.xlu0 %8675, %v6366
      %v8677 = vpop.permute.xlu0 %8676
      %8679 = vset.pattern.permute.xlu0 1
      %8680 = vperm.xlu0 %8679, %v6367
      %v8681 = vpop.permute.xlu0 %8680
      %8683 = vset.pattern.permute.xlu0 1
      %8684 = vperm.xlu0 %8683, %v6368
      %v8685 = vpop.permute.xlu0 %8684
      %8687 = vset.pattern.permute.xlu0 1
      %8688 = vperm.xlu0 %8687, %v6369
      %v8689 = vpop.permute.xlu0 %8688
      %8691 = vset.pattern.permute.xlu0 1
      %8692 = vperm.xlu0 %8691, %v6370
      %v8693 = vpop.permute.xlu0 %8692
      %8695 = vset.pattern.permute.xlu0 1
      %8696 = vperm.xlu0 %8695, %v6371
      %v8697 = vpop.permute.xlu0 %8696
      %8699 = vset.pattern.permute.xlu0 1
      %8700 = vperm.xlu0 %8699, %v6372
      %v8701 = vpop.permute.xlu0 %8700
      %8703 = vset.pattern.permute.xlu0 1
      %8704 = vperm.xlu0 %8703, %v6373
      %v8705 = vpop.permute.xlu0 %8704
      %8707 = vset.pattern.permute.xlu0 1
      %8708 = vperm.xlu0 %8707, %v6374
      %v8709 = vpop.permute.xlu0 %8708
      %8711 = vset.pattern.permute.xlu0 1
      %8712 = vperm.xlu0 %8711, %v6375
      %v8713 = vpop.permute.xlu0 %8712
      %8715 = vset.pattern.permute.xlu0 1
      %8716 = vperm.xlu0 %8715, %v6376
      %v8717 = vpop.permute.xlu0 %8716
      %8719 = vset.pattern.permute.xlu0 1
      %8720 = vperm.xlu0 %8719, %v6377
      %v8721 = vpop.permute.xlu0 %8720
      %8723 = vset.pattern.permute.xlu0 1
      %8724 = vperm.xlu0 %8723, %v6378
      %v8725 = vpop.permute.xlu0 %8724
      %8727 = vset.pattern.permute.xlu0 1
      %8728 = vperm.xlu0 %8727, %v6379
      %v8729 = vpop.permute.xlu0 %8728
      %8731 = vset.pattern.permute.xlu0 1
      %8732 = vperm.xlu0 %8731, %v6380
      %v8733 = vpop.permute.xlu0 %8732
      %8735 = vset.pattern.permute.xlu0 1
      %8736 = vperm.xlu0 %8735, %v6381
      %v8737 = vpop.permute.xlu0 %8736
      %8739 = vset.pattern.permute.xlu0 1
      %8740 = vperm.xlu0 %8739, %v6382
      %v8741 = vpop.permute.xlu0 %8740
      %8743 = vset.pattern.permute.xlu0 1
      %8744 = vperm.xlu0 %8743, %v6383
      %v8745 = vpop.permute.xlu0 %8744
      %8747 = vset.pattern.permute.xlu0 1
      %8748 = vperm.xlu0 %8747, %v6384
      %v8749 = vpop.permute.xlu0 %8748
      %8751 = vset.pattern.permute.xlu0 1
      %8752 = vperm.xlu0 %8751, %v6385
      %v8753 = vpop.permute.xlu0 %8752
      %8755 = vset.pattern.permute.xlu0 1
      %8756 = vperm.xlu0 %8755, %v6386
      %v8757 = vpop.permute.xlu0 %8756
      %8759 = vset.pattern.permute.xlu0 1
      %8760 = vperm.xlu0 %8759, %v6387
      %v8761 = vpop.permute.xlu0 %8760
      %8763 = vset.pattern.permute.xlu0 1
      %8764 = vperm.xlu0 %8763, %v6388
      %v8765 = vpop.permute.xlu0 %8764
      %8767 = vset.pattern.permute.xlu0 1
      %8768 = vperm.xlu0 %8767, %v6389
      %v8769 = vpop.permute.xlu0 %8768
      %8771 = vset.pattern.permute.xlu0 1
      %8772 = vperm.xlu0 %8771, %v6390
      %v8773 = vpop.permute.xlu0 %8772
      %8775 = vset.pattern.permute.xlu0 1
      %8776 = vperm.xlu0 %8775, %v6391
      %v8777 = vpop.permute.xlu0 %8776
      %8779 = vset.pattern.permute.xlu0 1
      %8780 = vperm.xlu0 %8779, %v6392
      %v8781 = vpop.permute.xlu0 %8780
      %8783 = vset.pattern.permute.xlu0 1
      %8784 = vperm.xlu0 %8783, %v6393
      %v8785 = vpop.permute.xlu0 %8784
      %8787 = vset.pattern.permute.xlu0 1
      %8788 = vperm.xlu0 %8787, %v6394
      %v8789 = vpop.permute.xlu0 %8788
      %8791 = vset.pattern.permute.xlu0 1
      %8792 = vperm.xlu0 %8791, %v6395
      %v8793 = vpop.permute.xlu0 %8792
      %8795 = vset.pattern.permute.xlu0 1
      %8796 = vperm.xlu0 %8795, %v6396
      %v8797 = vpop.permute.xlu0 %8796
      %8799 = vset.pattern.permute.xlu0 1
      %8800 = vperm.xlu0 %8799, %v6397
      %v8801 = vpop.permute.xlu0 %8800
      %8803 = vset.pattern.permute.xlu0 1
      %8804 = vperm.xlu0 %8803, %v6398
      %v8805 = vpop.permute.xlu0 %8804
      %8807 = vset.pattern.permute.xlu0 1
      %8808 = vperm.xlu0 %8807, %v6399
      %v8809 = vpop.permute.xlu0 %8808
      %8811 = vset.pattern.permute.xlu0 1
      %8812 = vperm.xlu0 %8811, %v6400
      %v8813 = vpop.permute.xlu0 %8812
      %8815 = vset.pattern.permute.xlu0 1
      %8816 = vperm.xlu0 %8815, %v6401
      %v8817 = vpop.permute.xlu0 %8816
      %8819 = vset.pattern.permute.xlu0 1
      %8820 = vperm.xlu0 %8819, %v6402
      %v8821 = vpop.permute.xlu0 %8820
      %8823 = vset.pattern.permute.xlu0 1
      %8824 = vperm.xlu0 %8823, %v6403
      %v8825 = vpop.permute.xlu0 %8824
      %8827 = vset.pattern.permute.xlu0 1
      %8828 = vperm.xlu0 %8827, %v6404
      %v8829 = vpop.permute.xlu0 %8828
      %8831 = vset.pattern.permute.xlu0 1
      %8832 = vperm.xlu0 %8831, %v6405
      %v8833 = vpop.permute.xlu0 %8832
      %8835 = vset.pattern.permute.xlu0 1
      %8836 = vperm.xlu0 %8835, %v6406
      %v8837 = vpop.permute.xlu0 %8836
      %8839 = vset.pattern.permute.xlu0 1
      %8840 = vperm.xlu0 %8839, %v6407
      %v8841 = vpop.permute.xlu0 %8840
      %8843 = vset.pattern.permute.xlu0 1
      %8844 = vperm.xlu0 %8843, %v6408
      %v8845 = vpop.permute.xlu0 %8844
      %v8847 = vperm.slane %v3867, 4
      %v8848 = vperm.slane %v3868, 4
      %v8849 = vmul.f32 %v8337, %v8847
      %v8850 = vmul.f32 %v8337, %v8848
      %v8851 = vmul.f32 %v8341, %v8847
      %v8852 = vmul.f32 %v8341, %v8848
      %v8853 = vmul.f32 %v8345, %v8847
      %v8854 = vmul.f32 %v8345, %v8848
      %v8855 = vmul.f32 %v8349, %v8847
      %v8856 = vmul.f32 %v8349, %v8848
      %v8857 = vmul.f32 %v8353, %v8847
      %v8858 = vmul.f32 %v8353, %v8848
      %v8859 = vmul.f32 %v8357, %v8847
      %v8860 = vmul.f32 %v8357, %v8848
      %v8861 = vmul.f32 %v8361, %v8847
      %v8862 = vmul.f32 %v8361, %v8848
      %v8863 = vmul.f32 %v8365, %v8847
      %v8864 = vmul.f32 %v8365, %v8848
      %v8865 = vmul.f32 %v8369, %v8847
      %v8866 = vmul.f32 %v8369, %v8848
      %v8867 = vmul.f32 %v8373, %v8847
      %v8868 = vmul.f32 %v8373, %v8848
      %v8869 = vmul.f32 %v8377, %v8847
      %v8870 = vmul.f32 %v8377, %v8848
      %v8871 = vmul.f32 %v8381, %v8847
      %v8872 = vmul.f32 %v8381, %v8848
      %v8873 = vmul.f32 %v8385, %v8847
      %v8874 = vmul.f32 %v8385, %v8848
      %v8875 = vmul.f32 %v8389, %v8847
      %v8876 = vmul.f32 %v8389, %v8848
      %v8877 = vmul.f32 %v8393, %v8847
      %v8878 = vmul.f32 %v8393, %v8848
      %v8879 = vmul.f32 %v8397, %v8847
      %v8880 = vmul.f32 %v8397, %v8848
      %v8881 = vmul.f32 %v8401, %v8847
      %v8882 = vmul.f32 %v8401, %v8848
      %v8883 = vmul.f32 %v8405, %v8847
      %v8884 = vmul.f32 %v8405, %v8848
      %v8885 = vmul.f32 %v8409, %v8847
      %v8886 = vmul.f32 %v8409, %v8848
      %v8887 = vmul.f32 %v8413, %v8847
      %v8888 = vmul.f32 %v8413, %v8848
      %v8889 = vmul.f32 %v8417, %v8847
      %v8890 = vmul.f32 %v8417, %v8848
      %v8891 = vmul.f32 %v8421, %v8847
      %v8892 = vmul.f32 %v8421, %v8848
      %v8893 = vmul.f32 %v8425, %v8847
      %v8894 = vmul.f32 %v8425, %v8848
      %v8895 = vmul.f32 %v8429, %v8847
      %v8896 = vmul.f32 %v8429, %v8848
      %v8897 = vmul.f32 %v8433, %v8847
      %v8898 = vmul.f32 %v8433, %v8848
      %v8899 = vmul.f32 %v8437, %v8847
      %v8900 = vmul.f32 %v8437, %v8848
      %v8901 = vmul.f32 %v8441, %v8847
      %v8902 = vmul.f32 %v8441, %v8848
      %v8903 = vmul.f32 %v8445, %v8847
      %v8904 = vmul.f32 %v8445, %v8848
      %v8905 = vmul.f32 %v8449, %v8847
      %v8906 = vmul.f32 %v8449, %v8848
      %v8907 = vmul.f32 %v8453, %v8847
      %v8908 = vmul.f32 %v8453, %v8848
      %v8909 = vmul.f32 %v8457, %v8847
      %v8910 = vmul.f32 %v8457, %v8848
      %v8911 = vmul.f32 %v8461, %v8847
      %v8912 = vmul.f32 %v8461, %v8848
      %v8913 = vmul.f32 %v8465, %v8847
      %v8914 = vmul.f32 %v8465, %v8848
      %v8915 = vmul.f32 %v8469, %v8847
      %v8916 = vmul.f32 %v8469, %v8848
      %v8917 = vmul.f32 %v8473, %v8847
      %v8918 = vmul.f32 %v8473, %v8848
      %v8919 = vmul.f32 %v8477, %v8847
      %v8920 = vmul.f32 %v8477, %v8848
      %v8921 = vmul.f32 %v8481, %v8847
      %v8922 = vmul.f32 %v8481, %v8848
      %v8923 = vmul.f32 %v8485, %v8847
      %v8924 = vmul.f32 %v8485, %v8848
      %v8925 = vmul.f32 %v8489, %v8847
      %v8926 = vmul.f32 %v8489, %v8848
      %v8927 = vmul.f32 %v8493, %v8847
      %v8928 = vmul.f32 %v8493, %v8848
      %v8929 = vmul.f32 %v8497, %v8847
      %v8930 = vmul.f32 %v8497, %v8848
      %v8931 = vmul.f32 %v8501, %v8847
      %v8932 = vmul.f32 %v8501, %v8848
      %v8933 = vmul.f32 %v8505, %v8847
      %v8934 = vmul.f32 %v8505, %v8848
      %v8935 = vmul.f32 %v8509, %v8847
      %v8936 = vmul.f32 %v8509, %v8848
      %v8937 = vmul.f32 %v8513, %v8847
      %v8938 = vmul.f32 %v8513, %v8848
      %v8939 = vmul.f32 %v8517, %v8847
      %v8940 = vmul.f32 %v8517, %v8848
      %v8941 = vmul.f32 %v8521, %v8847
      %v8942 = vmul.f32 %v8521, %v8848
      %v8943 = vmul.f32 %v8525, %v8847
      %v8944 = vmul.f32 %v8525, %v8848
      %v8945 = vmul.f32 %v8529, %v8847
      %v8946 = vmul.f32 %v8529, %v8848
      %v8947 = vmul.f32 %v8533, %v8847
      %v8948 = vmul.f32 %v8533, %v8848
      %v8949 = vmul.f32 %v8537, %v8847
      %v8950 = vmul.f32 %v8537, %v8848
      %v8951 = vmul.f32 %v8541, %v8847
      %v8952 = vmul.f32 %v8541, %v8848
      %v8953 = vmul.f32 %v8545, %v8847
      %v8954 = vmul.f32 %v8545, %v8848
      %v8955 = vmul.f32 %v8549, %v8847
      %v8956 = vmul.f32 %v8549, %v8848
      %v8957 = vmul.f32 %v8553, %v8847
      %v8958 = vmul.f32 %v8553, %v8848
      %v8959 = vmul.f32 %v8557, %v8847
      %v8960 = vmul.f32 %v8557, %v8848
      %v8961 = vmul.f32 %v8561, %v8847
      %v8962 = vmul.f32 %v8561, %v8848
      %v8963 = vmul.f32 %v8565, %v8847
      %v8964 = vmul.f32 %v8565, %v8848
      %v8965 = vmul.f32 %v8569, %v8847
      %v8966 = vmul.f32 %v8569, %v8848
      %v8967 = vmul.f32 %v8573, %v8847
      %v8968 = vmul.f32 %v8573, %v8848
      %v8969 = vmul.f32 %v8577, %v8847
      %v8970 = vmul.f32 %v8577, %v8848
      %v8971 = vmul.f32 %v8581, %v8847
      %v8972 = vmul.f32 %v8581, %v8848
      %v8973 = vmul.f32 %v8585, %v8847
      %v8974 = vmul.f32 %v8585, %v8848
      %v8975 = vmul.f32 %v8589, %v8847
      %v8976 = vmul.f32 %v8589, %v8848
      %v8977 = vmul.f32 %v8593, %v8847
      %v8978 = vmul.f32 %v8593, %v8848
      %v8979 = vmul.f32 %v8597, %v8847
      %v8980 = vmul.f32 %v8597, %v8848
      %v8981 = vmul.f32 %v8601, %v8847
      %v8982 = vmul.f32 %v8601, %v8848
      %v8983 = vmul.f32 %v8605, %v8847
      %v8984 = vmul.f32 %v8605, %v8848
      %v8985 = vmul.f32 %v8609, %v8847
      %v8986 = vmul.f32 %v8609, %v8848
      %v8987 = vmul.f32 %v8613, %v8847
      %v8988 = vmul.f32 %v8613, %v8848
      %v8989 = vmul.f32 %v8617, %v8847
      %v8990 = vmul.f32 %v8617, %v8848
      %v8991 = vmul.f32 %v8621, %v8847
      %v8992 = vmul.f32 %v8621, %v8848
      %v8993 = vmul.f32 %v8625, %v8847
      %v8994 = vmul.f32 %v8625, %v8848
      %v8995 = vmul.f32 %v8629, %v8847
      %v8996 = vmul.f32 %v8629, %v8848
      %v8997 = vmul.f32 %v8633, %v8847
      %v8998 = vmul.f32 %v8633, %v8848
      %v8999 = vmul.f32 %v8637, %v8847
      %v9000 = vmul.f32 %v8637, %v8848
      %v9001 = vmul.f32 %v8641, %v8847
      %v9002 = vmul.f32 %v8641, %v8848
      %v9003 = vmul.f32 %v8645, %v8847
      %v9004 = vmul.f32 %v8645, %v8848
      %v9005 = vmul.f32 %v8649, %v8847
      %v9006 = vmul.f32 %v8649, %v8848
      %v9007 = vmul.f32 %v8653, %v8847
      %v9008 = vmul.f32 %v8653, %v8848
      %v9009 = vmul.f32 %v8657, %v8847
      %v9010 = vmul.f32 %v8657, %v8848
      %v9011 = vmul.f32 %v8661, %v8847
      %v9012 = vmul.f32 %v8661, %v8848
      %v9013 = vmul.f32 %v8665, %v8847
      %v9014 = vmul.f32 %v8665, %v8848
      %v9015 = vmul.f32 %v8669, %v8847
      %v9016 = vmul.f32 %v8669, %v8848
      %v9017 = vmul.f32 %v8673, %v8847
      %v9018 = vmul.f32 %v8673, %v8848
      %v9019 = vmul.f32 %v8677, %v8847
      %v9020 = vmul.f32 %v8677, %v8848
      %v9021 = vmul.f32 %v8681, %v8847
      %v9022 = vmul.f32 %v8681, %v8848
      %v9023 = vmul.f32 %v8685, %v8847
      %v9024 = vmul.f32 %v8685, %v8848
      %v9025 = vmul.f32 %v8689, %v8847
      %v9026 = vmul.f32 %v8689, %v8848
      %v9027 = vmul.f32 %v8693, %v8847
      %v9028 = vmul.f32 %v8693, %v8848
      %v9029 = vmul.f32 %v8697, %v8847
      %v9030 = vmul.f32 %v8697, %v8848
      %v9031 = vmul.f32 %v8701, %v8847
      %v9032 = vmul.f32 %v8701, %v8848
      %v9033 = vmul.f32 %v8705, %v8847
      %v9034 = vmul.f32 %v8705, %v8848
      %v9035 = vmul.f32 %v8709, %v8847
      %v9036 = vmul.f32 %v8709, %v8848
      %v9037 = vmul.f32 %v8713, %v8847
      %v9038 = vmul.f32 %v8713, %v8848
      %v9039 = vmul.f32 %v8717, %v8847
      %v9040 = vmul.f32 %v8717, %v8848
      %v9041 = vmul.f32 %v8721, %v8847
      %v9042 = vmul.f32 %v8721, %v8848
      %v9043 = vmul.f32 %v8725, %v8847
      %v9044 = vmul.f32 %v8725, %v8848
      %v9045 = vmul.f32 %v8729, %v8847
      %v9046 = vmul.f32 %v8729, %v8848
      %v9047 = vmul.f32 %v8733, %v8847
      %v9048 = vmul.f32 %v8733, %v8848
      %v9049 = vmul.f32 %v8737, %v8847
      %v9050 = vmul.f32 %v8737, %v8848
      %v9051 = vmul.f32 %v8741, %v8847
      %v9052 = vmul.f32 %v8741, %v8848
      %v9053 = vmul.f32 %v8745, %v8847
      %v9054 = vmul.f32 %v8745, %v8848
      %v9055 = vmul.f32 %v8749, %v8847
      %v9056 = vmul.f32 %v8749, %v8848
      %v9057 = vmul.f32 %v8753, %v8847
      %v9058 = vmul.f32 %v8753, %v8848
      %v9059 = vmul.f32 %v8757, %v8847
      %v9060 = vmul.f32 %v8757, %v8848
      %v9061 = vmul.f32 %v8761, %v8847
      %v9062 = vmul.f32 %v8761, %v8848
      %v9063 = vmul.f32 %v8765, %v8847
      %v9064 = vmul.f32 %v8765, %v8848
      %v9065 = vmul.f32 %v8769, %v8847
      %v9066 = vmul.f32 %v8769, %v8848
      %v9067 = vmul.f32 %v8773, %v8847
      %v9068 = vmul.f32 %v8773, %v8848
      %v9069 = vmul.f32 %v8777, %v8847
      %v9070 = vmul.f32 %v8777, %v8848
      %v9071 = vmul.f32 %v8781, %v8847
      %v9072 = vmul.f32 %v8781, %v8848
      %v9073 = vmul.f32 %v8785, %v8847
      %v9074 = vmul.f32 %v8785, %v8848
      %v9075 = vmul.f32 %v8789, %v8847
      %v9076 = vmul.f32 %v8789, %v8848
      %v9077 = vmul.f32 %v8793, %v8847
      %v9078 = vmul.f32 %v8793, %v8848
      %v9079 = vmul.f32 %v8797, %v8847
      %v9080 = vmul.f32 %v8797, %v8848
      %v9081 = vmul.f32 %v8801, %v8847
      %v9082 = vmul.f32 %v8801, %v8848
      %v9083 = vmul.f32 %v8805, %v8847
      %v9084 = vmul.f32 %v8805, %v8848
      %v9085 = vmul.f32 %v8809, %v8847
      %v9086 = vmul.f32 %v8809, %v8848
      %v9087 = vmul.f32 %v8813, %v8847
      %v9088 = vmul.f32 %v8813, %v8848
      %v9089 = vmul.f32 %v8817, %v8847
      %v9090 = vmul.f32 %v8817, %v8848
      %v9091 = vmul.f32 %v8821, %v8847
      %v9092 = vmul.f32 %v8821, %v8848
      %v9093 = vmul.f32 %v8825, %v8847
      %v9094 = vmul.f32 %v8825, %v8848
      %v9095 = vmul.f32 %v8829, %v8847
      %v9096 = vmul.f32 %v8829, %v8848
      %v9097 = vmul.f32 %v8833, %v8847
      %v9098 = vmul.f32 %v8833, %v8848
      %v9099 = vmul.f32 %v8837, %v8847
      %v9100 = vmul.f32 %v8837, %v8848
      %v9101 = vmul.f32 %v8841, %v8847
      %v9102 = vmul.f32 %v8841, %v8848
      %v9103 = vmul.f32 %v8845, %v8847
      %v9104 = vmul.f32 %v8845, %v8848
      %v9105 = vadd.f32 %v8079, %v8849
      %v9106 = vadd.f32 %v8080, %v8850
      %v9107 = vadd.f32 %v8081, %v8851
      %v9108 = vadd.f32 %v8082, %v8852
      %v9109 = vadd.f32 %v8083, %v8853
      %v9110 = vadd.f32 %v8084, %v8854
      %v9111 = vadd.f32 %v8085, %v8855
      %v9112 = vadd.f32 %v8086, %v8856
      %v9113 = vadd.f32 %v8087, %v8857
      %v9114 = vadd.f32 %v8088, %v8858
      %v9115 = vadd.f32 %v8089, %v8859
      %v9116 = vadd.f32 %v8090, %v8860
      %v9117 = vadd.f32 %v8091, %v8861
      %v9118 = vadd.f32 %v8092, %v8862
      %v9119 = vadd.f32 %v8093, %v8863
      %v9120 = vadd.f32 %v8094, %v8864
      %v9121 = vadd.f32 %v8095, %v8865
      %v9122 = vadd.f32 %v8096, %v8866
      %v9123 = vadd.f32 %v8097, %v8867
      %v9124 = vadd.f32 %v8098, %v8868
      %v9125 = vadd.f32 %v8099, %v8869
      %v9126 = vadd.f32 %v8100, %v8870
      %v9127 = vadd.f32 %v8101, %v8871
      %v9128 = vadd.f32 %v8102, %v8872
      %v9129 = vadd.f32 %v8103, %v8873
      %v9130 = vadd.f32 %v8104, %v8874
      %v9131 = vadd.f32 %v8105, %v8875
      %v9132 = vadd.f32 %v8106, %v8876
      %v9133 = vadd.f32 %v8107, %v8877
      %v9134 = vadd.f32 %v8108, %v8878
      %v9135 = vadd.f32 %v8109, %v8879
      %v9136 = vadd.f32 %v8110, %v8880
      %v9137 = vadd.f32 %v8111, %v8881
      %v9138 = vadd.f32 %v8112, %v8882
      %v9139 = vadd.f32 %v8113, %v8883
      %v9140 = vadd.f32 %v8114, %v8884
      %v9141 = vadd.f32 %v8115, %v8885
      %v9142 = vadd.f32 %v8116, %v8886
      %v9143 = vadd.f32 %v8117, %v8887
      %v9144 = vadd.f32 %v8118, %v8888
      %v9145 = vadd.f32 %v8119, %v8889
      %v9146 = vadd.f32 %v8120, %v8890
      %v9147 = vadd.f32 %v8121, %v8891
      %v9148 = vadd.f32 %v8122, %v8892
      %v9149 = vadd.f32 %v8123, %v8893
      %v9150 = vadd.f32 %v8124, %v8894
      %v9151 = vadd.f32 %v8125, %v8895
      %v9152 = vadd.f32 %v8126, %v8896
      %v9153 = vadd.f32 %v8127, %v8897
      %v9154 = vadd.f32 %v8128, %v8898
      %v9155 = vadd.f32 %v8129, %v8899
      %v9156 = vadd.f32 %v8130, %v8900
      %v9157 = vadd.f32 %v8131, %v8901
      %v9158 = vadd.f32 %v8132, %v8902
      %v9159 = vadd.f32 %v8133, %v8903
      %v9160 = vadd.f32 %v8134, %v8904
      %v9161 = vadd.f32 %v8135, %v8905
      %v9162 = vadd.f32 %v8136, %v8906
      %v9163 = vadd.f32 %v8137, %v8907
      %v9164 = vadd.f32 %v8138, %v8908
      %v9165 = vadd.f32 %v8139, %v8909
      %v9166 = vadd.f32 %v8140, %v8910
      %v9167 = vadd.f32 %v8141, %v8911
      %v9168 = vadd.f32 %v8142, %v8912
      %v9169 = vadd.f32 %v8143, %v8913
      %v9170 = vadd.f32 %v8144, %v8914
      %v9171 = vadd.f32 %v8145, %v8915
      %v9172 = vadd.f32 %v8146, %v8916
      %v9173 = vadd.f32 %v8147, %v8917
      %v9174 = vadd.f32 %v8148, %v8918
      %v9175 = vadd.f32 %v8149, %v8919
      %v9176 = vadd.f32 %v8150, %v8920
      %v9177 = vadd.f32 %v8151, %v8921
      %v9178 = vadd.f32 %v8152, %v8922
      %v9179 = vadd.f32 %v8153, %v8923
      %v9180 = vadd.f32 %v8154, %v8924
      %v9181 = vadd.f32 %v8155, %v8925
      %v9182 = vadd.f32 %v8156, %v8926
      %v9183 = vadd.f32 %v8157, %v8927
      %v9184 = vadd.f32 %v8158, %v8928
      %v9185 = vadd.f32 %v8159, %v8929
      %v9186 = vadd.f32 %v8160, %v8930
      %v9187 = vadd.f32 %v8161, %v8931
      %v9188 = vadd.f32 %v8162, %v8932
      %v9189 = vadd.f32 %v8163, %v8933
      %v9190 = vadd.f32 %v8164, %v8934
      %v9191 = vadd.f32 %v8165, %v8935
      %v9192 = vadd.f32 %v8166, %v8936
      %v9193 = vadd.f32 %v8167, %v8937
      %v9194 = vadd.f32 %v8168, %v8938
      %v9195 = vadd.f32 %v8169, %v8939
      %v9196 = vadd.f32 %v8170, %v8940
      %v9197 = vadd.f32 %v8171, %v8941
      %v9198 = vadd.f32 %v8172, %v8942
      %v9199 = vadd.f32 %v8173, %v8943
      %v9200 = vadd.f32 %v8174, %v8944
      %v9201 = vadd.f32 %v8175, %v8945
      %v9202 = vadd.f32 %v8176, %v8946
      %v9203 = vadd.f32 %v8177, %v8947
      %v9204 = vadd.f32 %v8178, %v8948
      %v9205 = vadd.f32 %v8179, %v8949
      %v9206 = vadd.f32 %v8180, %v8950
      %v9207 = vadd.f32 %v8181, %v8951
      %v9208 = vadd.f32 %v8182, %v8952
      %v9209 = vadd.f32 %v8183, %v8953
      %v9210 = vadd.f32 %v8184, %v8954
      %v9211 = vadd.f32 %v8185, %v8955
      %v9212 = vadd.f32 %v8186, %v8956
      %v9213 = vadd.f32 %v8187, %v8957
      %v9214 = vadd.f32 %v8188, %v8958
      %v9215 = vadd.f32 %v8189, %v8959
      %v9216 = vadd.f32 %v8190, %v8960
      %v9217 = vadd.f32 %v8191, %v8961
      %v9218 = vadd.f32 %v8192, %v8962
      %v9219 = vadd.f32 %v8193, %v8963
      %v9220 = vadd.f32 %v8194, %v8964
      %v9221 = vadd.f32 %v8195, %v8965
      %v9222 = vadd.f32 %v8196, %v8966
      %v9223 = vadd.f32 %v8197, %v8967
      %v9224 = vadd.f32 %v8198, %v8968
      %v9225 = vadd.f32 %v8199, %v8969
      %v9226 = vadd.f32 %v8200, %v8970
      %v9227 = vadd.f32 %v8201, %v8971
      %v9228 = vadd.f32 %v8202, %v8972
      %v9229 = vadd.f32 %v8203, %v8973
      %v9230 = vadd.f32 %v8204, %v8974
      %v9231 = vadd.f32 %v8205, %v8975
      %v9232 = vadd.f32 %v8206, %v8976
      %v9233 = vadd.f32 %v8207, %v8977
      %v9234 = vadd.f32 %v8208, %v8978
      %v9235 = vadd.f32 %v8209, %v8979
      %v9236 = vadd.f32 %v8210, %v8980
      %v9237 = vadd.f32 %v8211, %v8981
      %v9238 = vadd.f32 %v8212, %v8982
      %v9239 = vadd.f32 %v8213, %v8983
      %v9240 = vadd.f32 %v8214, %v8984
      %v9241 = vadd.f32 %v8215, %v8985
      %v9242 = vadd.f32 %v8216, %v8986
      %v9243 = vadd.f32 %v8217, %v8987
      %v9244 = vadd.f32 %v8218, %v8988
      %v9245 = vadd.f32 %v8219, %v8989
      %v9246 = vadd.f32 %v8220, %v8990
      %v9247 = vadd.f32 %v8221, %v8991
      %v9248 = vadd.f32 %v8222, %v8992
      %v9249 = vadd.f32 %v8223, %v8993
      %v9250 = vadd.f32 %v8224, %v8994
      %v9251 = vadd.f32 %v8225, %v8995
      %v9252 = vadd.f32 %v8226, %v8996
      %v9253 = vadd.f32 %v8227, %v8997
      %v9254 = vadd.f32 %v8228, %v8998
      %v9255 = vadd.f32 %v8229, %v8999
      %v9256 = vadd.f32 %v8230, %v9000
      %v9257 = vadd.f32 %v8231, %v9001
      %v9258 = vadd.f32 %v8232, %v9002
      %v9259 = vadd.f32 %v8233, %v9003
      %v9260 = vadd.f32 %v8234, %v9004
      %v9261 = vadd.f32 %v8235, %v9005
      %v9262 = vadd.f32 %v8236, %v9006
      %v9263 = vadd.f32 %v8237, %v9007
      %v9264 = vadd.f32 %v8238, %v9008
      %v9265 = vadd.f32 %v8239, %v9009
      %v9266 = vadd.f32 %v8240, %v9010
      %v9267 = vadd.f32 %v8241, %v9011
      %v9268 = vadd.f32 %v8242, %v9012
      %v9269 = vadd.f32 %v8243, %v9013
      %v9270 = vadd.f32 %v8244, %v9014
      %v9271 = vadd.f32 %v8245, %v9015
      %v9272 = vadd.f32 %v8246, %v9016
      %v9273 = vadd.f32 %v8247, %v9017
      %v9274 = vadd.f32 %v8248, %v9018
      %v9275 = vadd.f32 %v8249, %v9019
      %v9276 = vadd.f32 %v8250, %v9020
      %v9277 = vadd.f32 %v8251, %v9021
      %v9278 = vadd.f32 %v8252, %v9022
      %v9279 = vadd.f32 %v8253, %v9023
      %v9280 = vadd.f32 %v8254, %v9024
      %v9281 = vadd.f32 %v8255, %v9025
      %v9282 = vadd.f32 %v8256, %v9026
      %v9283 = vadd.f32 %v8257, %v9027
      %v9284 = vadd.f32 %v8258, %v9028
      %v9285 = vadd.f32 %v8259, %v9029
      %v9286 = vadd.f32 %v8260, %v9030
      %v9287 = vadd.f32 %v8261, %v9031
      %v9288 = vadd.f32 %v8262, %v9032
      %v9289 = vadd.f32 %v8263, %v9033
      %v9290 = vadd.f32 %v8264, %v9034
      %v9291 = vadd.f32 %v8265, %v9035
      %v9292 = vadd.f32 %v8266, %v9036
      %v9293 = vadd.f32 %v8267, %v9037
      %v9294 = vadd.f32 %v8268, %v9038
      %v9295 = vadd.f32 %v8269, %v9039
      %v9296 = vadd.f32 %v8270, %v9040
      %v9297 = vadd.f32 %v8271, %v9041
      %v9298 = vadd.f32 %v8272, %v9042
      %v9299 = vadd.f32 %v8273, %v9043
      %v9300 = vadd.f32 %v8274, %v9044
      %v9301 = vadd.f32 %v8275, %v9045
      %v9302 = vadd.f32 %v8276, %v9046
      %v9303 = vadd.f32 %v8277, %v9047
      %v9304 = vadd.f32 %v8278, %v9048
      %v9305 = vadd.f32 %v8279, %v9049
      %v9306 = vadd.f32 %v8280, %v9050
      %v9307 = vadd.f32 %v8281, %v9051
      %v9308 = vadd.f32 %v8282, %v9052
      %v9309 = vadd.f32 %v8283, %v9053
      %v9310 = vadd.f32 %v8284, %v9054
      %v9311 = vadd.f32 %v8285, %v9055
      %v9312 = vadd.f32 %v8286, %v9056
      %v9313 = vadd.f32 %v8287, %v9057
      %v9314 = vadd.f32 %v8288, %v9058
      %v9315 = vadd.f32 %v8289, %v9059
      %v9316 = vadd.f32 %v8290, %v9060
      %v9317 = vadd.f32 %v8291, %v9061
      %v9318 = vadd.f32 %v8292, %v9062
      %v9319 = vadd.f32 %v8293, %v9063
      %v9320 = vadd.f32 %v8294, %v9064
      %v9321 = vadd.f32 %v8295, %v9065
      %v9322 = vadd.f32 %v8296, %v9066
      %v9323 = vadd.f32 %v8297, %v9067
      %v9324 = vadd.f32 %v8298, %v9068
      %v9325 = vadd.f32 %v8299, %v9069
      %v9326 = vadd.f32 %v8300, %v9070
      %v9327 = vadd.f32 %v8301, %v9071
      %v9328 = vadd.f32 %v8302, %v9072
      %v9329 = vadd.f32 %v8303, %v9073
      %v9330 = vadd.f32 %v8304, %v9074
      %v9331 = vadd.f32 %v8305, %v9075
      %v9332 = vadd.f32 %v8306, %v9076
      %v9333 = vadd.f32 %v8307, %v9077
      %v9334 = vadd.f32 %v8308, %v9078
      %v9335 = vadd.f32 %v8309, %v9079
      %v9336 = vadd.f32 %v8310, %v9080
      %v9337 = vadd.f32 %v8311, %v9081
      %v9338 = vadd.f32 %v8312, %v9082
      %v9339 = vadd.f32 %v8313, %v9083
      %v9340 = vadd.f32 %v8314, %v9084
      %v9341 = vadd.f32 %v8315, %v9085
      %v9342 = vadd.f32 %v8316, %v9086
      %v9343 = vadd.f32 %v8317, %v9087
      %v9344 = vadd.f32 %v8318, %v9088
      %v9345 = vadd.f32 %v8319, %v9089
      %v9346 = vadd.f32 %v8320, %v9090
      %v9347 = vadd.f32 %v8321, %v9091
      %v9348 = vadd.f32 %v8322, %v9092
      %v9349 = vadd.f32 %v8323, %v9093
      %v9350 = vadd.f32 %v8324, %v9094
      %v9351 = vadd.f32 %v8325, %v9095
      %v9352 = vadd.f32 %v8326, %v9096
      %v9353 = vadd.f32 %v8327, %v9097
      %v9354 = vadd.f32 %v8328, %v9098
      %v9355 = vadd.f32 %v8329, %v9099
      %v9356 = vadd.f32 %v8330, %v9100
      %v9357 = vadd.f32 %v8331, %v9101
      %v9358 = vadd.f32 %v8332, %v9102
      %v9359 = vadd.f32 %v8333, %v9103
      %v9360 = vadd.f32 %v8334, %v9104
      %v9361 = vperm.slane %v3867, 5
      %v9362 = vperm.slane %v3868, 5
      %v9363 = vadd.f32 %v9105, %v9361
      %v9364 = vadd.f32 %v9106, %v9362
      %v9365 = vadd.f32 %v9107, %v9361
      %v9366 = vadd.f32 %v9108, %v9362
      %v9367 = vadd.f32 %v9109, %v9361
      %v9368 = vadd.f32 %v9110, %v9362
      %v9369 = vadd.f32 %v9111, %v9361
      %v9370 = vadd.f32 %v9112, %v9362
      %v9371 = vadd.f32 %v9113, %v9361
      %v9372 = vadd.f32 %v9114, %v9362
      %v9373 = vadd.f32 %v9115, %v9361
      %v9374 = vadd.f32 %v9116, %v9362
      %v9375 = vadd.f32 %v9117, %v9361
      %v9376 = vadd.f32 %v9118, %v9362
      %v9377 = vadd.f32 %v9119, %v9361
      %v9378 = vadd.f32 %v9120, %v9362
      %v9379 = vadd.f32 %v9121, %v9361
      %v9380 = vadd.f32 %v9122, %v9362
      %v9381 = vadd.f32 %v9123, %v9361
      %v9382 = vadd.f32 %v9124, %v9362
      %v9383 = vadd.f32 %v9125, %v9361
      %v9384 = vadd.f32 %v9126, %v9362
      %v9385 = vadd.f32 %v9127, %v9361
      %v9386 = vadd.f32 %v9128, %v9362
      %v9387 = vadd.f32 %v9129, %v9361
      %v9388 = vadd.f32 %v9130, %v9362
      %v9389 = vadd.f32 %v9131, %v9361
      %v9390 = vadd.f32 %v9132, %v9362
      %v9391 = vadd.f32 %v9133, %v9361
      %v9392 = vadd.f32 %v9134, %v9362
      %v9393 = vadd.f32 %v9135, %v9361
      %v9394 = vadd.f32 %v9136, %v9362
      %v9395 = vadd.f32 %v9137, %v9361
      %v9396 = vadd.f32 %v9138, %v9362
      %v9397 = vadd.f32 %v9139, %v9361
      %v9398 = vadd.f32 %v9140, %v9362
      %v9399 = vadd.f32 %v9141, %v9361
      %v9400 = vadd.f32 %v9142, %v9362
      %v9401 = vadd.f32 %v9143, %v9361
      %v9402 = vadd.f32 %v9144, %v9362
      %v9403 = vadd.f32 %v9145, %v9361
      %v9404 = vadd.f32 %v9146, %v9362
      %v9405 = vadd.f32 %v9147, %v9361
      %v9406 = vadd.f32 %v9148, %v9362
      %v9407 = vadd.f32 %v9149, %v9361
      %v9408 = vadd.f32 %v9150, %v9362
      %v9409 = vadd.f32 %v9151, %v9361
      %v9410 = vadd.f32 %v9152, %v9362
      %v9411 = vadd.f32 %v9153, %v9361
      %v9412 = vadd.f32 %v9154, %v9362
      %v9413 = vadd.f32 %v9155, %v9361
      %v9414 = vadd.f32 %v9156, %v9362
      %v9415 = vadd.f32 %v9157, %v9361
      %v9416 = vadd.f32 %v9158, %v9362
      %v9417 = vadd.f32 %v9159, %v9361
      %v9418 = vadd.f32 %v9160, %v9362
      %v9419 = vadd.f32 %v9161, %v9361
      %v9420 = vadd.f32 %v9162, %v9362
      %v9421 = vadd.f32 %v9163, %v9361
      %v9422 = vadd.f32 %v9164, %v9362
      %v9423 = vadd.f32 %v9165, %v9361
      %v9424 = vadd.f32 %v9166, %v9362
      %v9425 = vadd.f32 %v9167, %v9361
      %v9426 = vadd.f32 %v9168, %v9362
      %v9427 = vadd.f32 %v9169, %v9361
      %v9428 = vadd.f32 %v9170, %v9362
      %v9429 = vadd.f32 %v9171, %v9361
      %v9430 = vadd.f32 %v9172, %v9362
      %v9431 = vadd.f32 %v9173, %v9361
      %v9432 = vadd.f32 %v9174, %v9362
      %v9433 = vadd.f32 %v9175, %v9361
      %v9434 = vadd.f32 %v9176, %v9362
      %v9435 = vadd.f32 %v9177, %v9361
      %v9436 = vadd.f32 %v9178, %v9362
      %v9437 = vadd.f32 %v9179, %v9361
      %v9438 = vadd.f32 %v9180, %v9362
      %v9439 = vadd.f32 %v9181, %v9361
      %v9440 = vadd.f32 %v9182, %v9362
      %v9441 = vadd.f32 %v9183, %v9361
      %v9442 = vadd.f32 %v9184, %v9362
      %v9443 = vadd.f32 %v9185, %v9361
      %v9444 = vadd.f32 %v9186, %v9362
      %v9445 = vadd.f32 %v9187, %v9361
      %v9446 = vadd.f32 %v9188, %v9362
      %v9447 = vadd.f32 %v9189, %v9361
      %v9448 = vadd.f32 %v9190, %v9362
      %v9449 = vadd.f32 %v9191, %v9361
      %v9450 = vadd.f32 %v9192, %v9362
      %v9451 = vadd.f32 %v9193, %v9361
      %v9452 = vadd.f32 %v9194, %v9362
      %v9453 = vadd.f32 %v9195, %v9361
      %v9454 = vadd.f32 %v9196, %v9362
      %v9455 = vadd.f32 %v9197, %v9361
      %v9456 = vadd.f32 %v9198, %v9362
      %v9457 = vadd.f32 %v9199, %v9361
      %v9458 = vadd.f32 %v9200, %v9362
      %v9459 = vadd.f32 %v9201, %v9361
      %v9460 = vadd.f32 %v9202, %v9362
      %v9461 = vadd.f32 %v9203, %v9361
      %v9462 = vadd.f32 %v9204, %v9362
      %v9463 = vadd.f32 %v9205, %v9361
      %v9464 = vadd.f32 %v9206, %v9362
      %v9465 = vadd.f32 %v9207, %v9361
      %v9466 = vadd.f32 %v9208, %v9362
      %v9467 = vadd.f32 %v9209, %v9361
      %v9468 = vadd.f32 %v9210, %v9362
      %v9469 = vadd.f32 %v9211, %v9361
      %v9470 = vadd.f32 %v9212, %v9362
      %v9471 = vadd.f32 %v9213, %v9361
      %v9472 = vadd.f32 %v9214, %v9362
      %v9473 = vadd.f32 %v9215, %v9361
      %v9474 = vadd.f32 %v9216, %v9362
      %v9475 = vadd.f32 %v9217, %v9361
      %v9476 = vadd.f32 %v9218, %v9362
      %v9477 = vadd.f32 %v9219, %v9361
      %v9478 = vadd.f32 %v9220, %v9362
      %v9479 = vadd.f32 %v9221, %v9361
      %v9480 = vadd.f32 %v9222, %v9362
      %v9481 = vadd.f32 %v9223, %v9361
      %v9482 = vadd.f32 %v9224, %v9362
      %v9483 = vadd.f32 %v9225, %v9361
      %v9484 = vadd.f32 %v9226, %v9362
      %v9485 = vadd.f32 %v9227, %v9361
      %v9486 = vadd.f32 %v9228, %v9362
      %v9487 = vadd.f32 %v9229, %v9361
      %v9488 = vadd.f32 %v9230, %v9362
      %v9489 = vadd.f32 %v9231, %v9361
      %v9490 = vadd.f32 %v9232, %v9362
      %v9491 = vadd.f32 %v9233, %v9361
      %v9492 = vadd.f32 %v9234, %v9362
      %v9493 = vadd.f32 %v9235, %v9361
      %v9494 = vadd.f32 %v9236, %v9362
      %v9495 = vadd.f32 %v9237, %v9361
      %v9496 = vadd.f32 %v9238, %v9362
      %v9497 = vadd.f32 %v9239, %v9361
      %v9498 = vadd.f32 %v9240, %v9362
      %v9499 = vadd.f32 %v9241, %v9361
      %v9500 = vadd.f32 %v9242, %v9362
      %v9501 = vadd.f32 %v9243, %v9361
      %v9502 = vadd.f32 %v9244, %v9362
      %v9503 = vadd.f32 %v9245, %v9361
      %v9504 = vadd.f32 %v9246, %v9362
      %v9505 = vadd.f32 %v9247, %v9361
      %v9506 = vadd.f32 %v9248, %v9362
      %v9507 = vadd.f32 %v9249, %v9361
      %v9508 = vadd.f32 %v9250, %v9362
      %v9509 = vadd.f32 %v9251, %v9361
      %v9510 = vadd.f32 %v9252, %v9362
      %v9511 = vadd.f32 %v9253, %v9361
      %v9512 = vadd.f32 %v9254, %v9362
      %v9513 = vadd.f32 %v9255, %v9361
      %v9514 = vadd.f32 %v9256, %v9362
      %v9515 = vadd.f32 %v9257, %v9361
      %v9516 = vadd.f32 %v9258, %v9362
      %v9517 = vadd.f32 %v9259, %v9361
      %v9518 = vadd.f32 %v9260, %v9362
      %v9519 = vadd.f32 %v9261, %v9361
      %v9520 = vadd.f32 %v9262, %v9362
      %v9521 = vadd.f32 %v9263, %v9361
      %v9522 = vadd.f32 %v9264, %v9362
      %v9523 = vadd.f32 %v9265, %v9361
      %v9524 = vadd.f32 %v9266, %v9362
      %v9525 = vadd.f32 %v9267, %v9361
      %v9526 = vadd.f32 %v9268, %v9362
      %v9527 = vadd.f32 %v9269, %v9361
      %v9528 = vadd.f32 %v9270, %v9362
      %v9529 = vadd.f32 %v9271, %v9361
      %v9530 = vadd.f32 %v9272, %v9362
      %v9531 = vadd.f32 %v9273, %v9361
      %v9532 = vadd.f32 %v9274, %v9362
      %v9533 = vadd.f32 %v9275, %v9361
      %v9534 = vadd.f32 %v9276, %v9362
      %v9535 = vadd.f32 %v9277, %v9361
      %v9536 = vadd.f32 %v9278, %v9362
      %v9537 = vadd.f32 %v9279, %v9361
      %v9538 = vadd.f32 %v9280, %v9362
      %v9539 = vadd.f32 %v9281, %v9361
      %v9540 = vadd.f32 %v9282, %v9362
      %v9541 = vadd.f32 %v9283, %v9361
      %v9542 = vadd.f32 %v9284, %v9362
      %v9543 = vadd.f32 %v9285, %v9361
      %v9544 = vadd.f32 %v9286, %v9362
      %v9545 = vadd.f32 %v9287, %v9361
      %v9546 = vadd.f32 %v9288, %v9362
      %v9547 = vadd.f32 %v9289, %v9361
      %v9548 = vadd.f32 %v9290, %v9362
      %v9549 = vadd.f32 %v9291, %v9361
      %v9550 = vadd.f32 %v9292, %v9362
      %v9551 = vadd.f32 %v9293, %v9361
      %v9552 = vadd.f32 %v9294, %v9362
      %v9553 = vadd.f32 %v9295, %v9361
      %v9554 = vadd.f32 %v9296, %v9362
      %v9555 = vadd.f32 %v9297, %v9361
      %v9556 = vadd.f32 %v9298, %v9362
      %v9557 = vadd.f32 %v9299, %v9361
      %v9558 = vadd.f32 %v9300, %v9362
      %v9559 = vadd.f32 %v9301, %v9361
      %v9560 = vadd.f32 %v9302, %v9362
      %v9561 = vadd.f32 %v9303, %v9361
      %v9562 = vadd.f32 %v9304, %v9362
      %v9563 = vadd.f32 %v9305, %v9361
      %v9564 = vadd.f32 %v9306, %v9362
      %v9565 = vadd.f32 %v9307, %v9361
      %v9566 = vadd.f32 %v9308, %v9362
      %v9567 = vadd.f32 %v9309, %v9361
      %v9568 = vadd.f32 %v9310, %v9362
      %v9569 = vadd.f32 %v9311, %v9361
      %v9570 = vadd.f32 %v9312, %v9362
      %v9571 = vadd.f32 %v9313, %v9361
      %v9572 = vadd.f32 %v9314, %v9362
      %v9573 = vadd.f32 %v9315, %v9361
      %v9574 = vadd.f32 %v9316, %v9362
      %v9575 = vadd.f32 %v9317, %v9361
      %v9576 = vadd.f32 %v9318, %v9362
      %v9577 = vadd.f32 %v9319, %v9361
      %v9578 = vadd.f32 %v9320, %v9362
      %v9579 = vadd.f32 %v9321, %v9361
      %v9580 = vadd.f32 %v9322, %v9362
      %v9581 = vadd.f32 %v9323, %v9361
      %v9582 = vadd.f32 %v9324, %v9362
      %v9583 = vadd.f32 %v9325, %v9361
      %v9584 = vadd.f32 %v9326, %v9362
      %v9585 = vadd.f32 %v9327, %v9361
      %v9586 = vadd.f32 %v9328, %v9362
      %v9587 = vadd.f32 %v9329, %v9361
      %v9588 = vadd.f32 %v9330, %v9362
      %v9589 = vadd.f32 %v9331, %v9361
      %v9590 = vadd.f32 %v9332, %v9362
      %v9591 = vadd.f32 %v9333, %v9361
      %v9592 = vadd.f32 %v9334, %v9362
      %v9593 = vadd.f32 %v9335, %v9361
      %v9594 = vadd.f32 %v9336, %v9362
      %v9595 = vadd.f32 %v9337, %v9361
      %v9596 = vadd.f32 %v9338, %v9362
      %v9597 = vadd.f32 %v9339, %v9361
      %v9598 = vadd.f32 %v9340, %v9362
      %v9599 = vadd.f32 %v9341, %v9361
      %v9600 = vadd.f32 %v9342, %v9362
      %v9601 = vadd.f32 %v9343, %v9361
      %v9602 = vadd.f32 %v9344, %v9362
      %v9603 = vadd.f32 %v9345, %v9361
      %v9604 = vadd.f32 %v9346, %v9362
      %v9605 = vadd.f32 %v9347, %v9361
      %v9606 = vadd.f32 %v9348, %v9362
      %v9607 = vadd.f32 %v9349, %v9361
      %v9608 = vadd.f32 %v9350, %v9362
      %v9609 = vadd.f32 %v9351, %v9361
      %v9610 = vadd.f32 %v9352, %v9362
      %v9611 = vadd.f32 %v9353, %v9361
      %v9612 = vadd.f32 %v9354, %v9362
      %v9613 = vadd.f32 %v9355, %v9361
      %v9614 = vadd.f32 %v9356, %v9362
      %v9615 = vadd.f32 %v9357, %v9361
      %v9616 = vadd.f32 %v9358, %v9362
      %v9617 = vadd.f32 %v9359, %v9361
      %v9618 = vadd.f32 %v9360, %v9362
      %9619 = vst [vmem:[%s774] sm:$0xff] %v9363
      %9620 = vst [vmem:[%s774 + $0x8] sm:$0xff] %v9364
      %9621 = vst [vmem:[%s774 + $0x10] sm:$0xff] %v9365
      %9622 = vst [vmem:[%s774 + $0x18] sm:$0xff] %v9366
      %9623 = vst [vmem:[%s774 + $0x20] sm:$0xff] %v9367
      %9624 = vst [vmem:[%s774 + $0x28] sm:$0xff] %v9368
      %9625 = vst [vmem:[%s774 + $0x30] sm:$0xff] %v9369
      %9626 = vst [vmem:[%s774 + $0x38] sm:$0xff] %v9370
      %9627 = vst [vmem:[%s774 + $0x40] sm:$0xff] %v9371
      %9628 = vst [vmem:[%s774 + $0x48] sm:$0xff] %v9372
      %9629 = vst [vmem:[%s774 + $0x50] sm:$0xff] %v9373
      %9630 = vst [vmem:[%s774 + $0x58] sm:$0xff] %v9374
      %9631 = vst [vmem:[%s774 + $0x60] sm:$0xff] %v9375
      %9632 = vst [vmem:[%s774 + $0x68] sm:$0xff] %v9376
      %9633 = vst [vmem:[%s774 + $0x70] sm:$0xff] %v9377
      %9634 = vst [vmem:[%s774 + $0x78] sm:$0xff] %v9378
      %9635 = vst [vmem:[%s774 + $0x80] sm:$0xff] %v9379
      %9636 = vst [vmem:[%s774 + $0x88] sm:$0xff] %v9380
      %9637 = vst [vmem:[%s774 + $0x90] sm:$0xff] %v9381
      %9638 = vst [vmem:[%s774 + $0x98] sm:$0xff] %v9382
      %9639 = vst [vmem:[%s774 + $0xa0] sm:$0xff] %v9383
      %9640 = vst [vmem:[%s774 + $0xa8] sm:$0xff] %v9384
      %9641 = vst [vmem:[%s774 + $0xb0] sm:$0xff] %v9385
      %9642 = vst [vmem:[%s774 + $0xb8] sm:$0xff] %v9386
      %9643 = vst [vmem:[%s774 + $0xc0] sm:$0xff] %v9387
      %9644 = vst [vmem:[%s774 + $0xc8] sm:$0xff] %v9388
      %9645 = vst [vmem:[%s774 + $0xd0] sm:$0xff] %v9389
      %9646 = vst [vmem:[%s774 + $0xd8] sm:$0xff] %v9390
      %9647 = vst [vmem:[%s774 + $0xe0] sm:$0xff] %v9391
      %9648 = vst [vmem:[%s774 + $0xe8] sm:$0xff] %v9392
      %9649 = vst [vmem:[%s774 + $0xf0] sm:$0xff] %v9393
      %9650 = vst [vmem:[%s774 + $0xf8] sm:$0xff] %v9394
      %9651 = vst [vmem:[%s774 + $0x100] sm:$0xff] %v9395
      %9652 = vst [vmem:[%s774 + $0x108] sm:$0xff] %v9396
      %9653 = vst [vmem:[%s774 + $0x110] sm:$0xff] %v9397
      %9654 = vst [vmem:[%s774 + $0x118] sm:$0xff] %v9398
      %9655 = vst [vmem:[%s774 + $0x120] sm:$0xff] %v9399
      %9656 = vst [vmem:[%s774 + $0x128] sm:$0xff] %v9400
      %9657 = vst [vmem:[%s774 + $0x130] sm:$0xff] %v9401
      %9658 = vst [vmem:[%s774 + $0x138] sm:$0xff] %v9402
      %9659 = vst [vmem:[%s774 + $0x140] sm:$0xff] %v9403
      %9660 = vst [vmem:[%s774 + $0x148] sm:$0xff] %v9404
      %9661 = vst [vmem:[%s774 + $0x150] sm:$0xff] %v9405
      %9662 = vst [vmem:[%s774 + $0x158] sm:$0xff] %v9406
      %9663 = vst [vmem:[%s774 + $0x160] sm:$0xff] %v9407
      %9664 = vst [vmem:[%s774 + $0x168] sm:$0xff] %v9408
      %9665 = vst [vmem:[%s774 + $0x170] sm:$0xff] %v9409
      %9666 = vst [vmem:[%s774 + $0x178] sm:$0xff] %v9410
      %9667 = vst [vmem:[%s774 + $0x180] sm:$0xff] %v9411
      %9668 = vst [vmem:[%s774 + $0x188] sm:$0xff] %v9412
      %9669 = vst [vmem:[%s774 + $0x190] sm:$0xff] %v9413
      %9670 = vst [vmem:[%s774 + $0x198] sm:$0xff] %v9414
      %9671 = vst [vmem:[%s774 + $0x1a0] sm:$0xff] %v9415
      %9672 = vst [vmem:[%s774 + $0x1a8] sm:$0xff] %v9416
      %9673 = vst [vmem:[%s774 + $0x1b0] sm:$0xff] %v9417
      %9674 = vst [vmem:[%s774 + $0x1b8] sm:$0xff] %v9418
      %9675 = vst [vmem:[%s774 + $0x1c0] sm:$0xff] %v9419
      %9676 = vst [vmem:[%s774 + $0x1c8] sm:$0xff] %v9420
      %9677 = vst [vmem:[%s774 + $0x1d0] sm:$0xff] %v9421
      %9678 = vst [vmem:[%s774 + $0x1d8] sm:$0xff] %v9422
      %9679 = vst [vmem:[%s774 + $0x1e0] sm:$0xff] %v9423
      %9680 = vst [vmem:[%s774 + $0x1e8] sm:$0xff] %v9424
      %9681 = vst [vmem:[%s774 + $0x1f0] sm:$0xff] %v9425
      %9682 = vst [vmem:[%s774 + $0x1f8] sm:$0xff] %v9426
      %9683 = vst [vmem:[%s774 + $0x200] sm:$0xff] %v9427
      %9684 = vst [vmem:[%s774 + $0x208] sm:$0xff] %v9428
      %9685 = vst [vmem:[%s774 + $0x210] sm:$0xff] %v9429
      %9686 = vst [vmem:[%s774 + $0x218] sm:$0xff] %v9430
      %9687 = vst [vmem:[%s774 + $0x220] sm:$0xff] %v9431
      %9688 = vst [vmem:[%s774 + $0x228] sm:$0xff] %v9432
      %9689 = vst [vmem:[%s774 + $0x230] sm:$0xff] %v9433
      %9690 = vst [vmem:[%s774 + $0x238] sm:$0xff] %v9434
      %9691 = vst [vmem:[%s774 + $0x240] sm:$0xff] %v9435
      %9692 = vst [vmem:[%s774 + $0x248] sm:$0xff] %v9436
      %9693 = vst [vmem:[%s774 + $0x250] sm:$0xff] %v9437
      %9694 = vst [vmem:[%s774 + $0x258] sm:$0xff] %v9438
      %9695 = vst [vmem:[%s774 + $0x260] sm:$0xff] %v9439
      %9696 = vst [vmem:[%s774 + $0x268] sm:$0xff] %v9440
      %9697 = vst [vmem:[%s774 + $0x270] sm:$0xff] %v9441
      %9698 = vst [vmem:[%s774 + $0x278] sm:$0xff] %v9442
      %9699 = vst [vmem:[%s774 + $0x280] sm:$0xff] %v9443
      %9700 = vst [vmem:[%s774 + $0x288] sm:$0xff] %v9444
      %9701 = vst [vmem:[%s774 + $0x290] sm:$0xff] %v9445
      %9702 = vst [vmem:[%s774 + $0x298] sm:$0xff] %v9446
      %9703 = vst [vmem:[%s774 + $0x2a0] sm:$0xff] %v9447
      %9704 = vst [vmem:[%s774 + $0x2a8] sm:$0xff] %v9448
      %9705 = vst [vmem:[%s774 + $0x2b0] sm:$0xff] %v9449
      %9706 = vst [vmem:[%s774 + $0x2b8] sm:$0xff] %v9450
      %9707 = vst [vmem:[%s774 + $0x2c0] sm:$0xff] %v9451
      %9708 = vst [vmem:[%s774 + $0x2c8] sm:$0xff] %v9452
      %9709 = vst [vmem:[%s774 + $0x2d0] sm:$0xff] %v9453
      %9710 = vst [vmem:[%s774 + $0x2d8] sm:$0xff] %v9454
      %9711 = vst [vmem:[%s774 + $0x2e0] sm:$0xff] %v9455
      %9712 = vst [vmem:[%s774 + $0x2e8] sm:$0xff] %v9456
      %9713 = vst [vmem:[%s774 + $0x2f0] sm:$0xff] %v9457
      %9714 = vst [vmem:[%s774 + $0x2f8] sm:$0xff] %v9458
      %9715 = vst [vmem:[%s774 + $0x300] sm:$0xff] %v9459
      %9716 = vst [vmem:[%s774 + $0x308] sm:$0xff] %v9460
      %9717 = vst [vmem:[%s774 + $0x310] sm:$0xff] %v9461
      %9718 = vst [vmem:[%s774 + $0x318] sm:$0xff] %v9462
      %9719 = vst [vmem:[%s774 + $0x320] sm:$0xff] %v9463
      %9720 = vst [vmem:[%s774 + $0x328] sm:$0xff] %v9464
      %9721 = vst [vmem:[%s774 + $0x330] sm:$0xff] %v9465
      %9722 = vst [vmem:[%s774 + $0x338] sm:$0xff] %v9466
      %9723 = vst [vmem:[%s774 + $0x340] sm:$0xff] %v9467
      %9724 = vst [vmem:[%s774 + $0x348] sm:$0xff] %v9468
      %9725 = vst [vmem:[%s774 + $0x350] sm:$0xff] %v9469
      %9726 = vst [vmem:[%s774 + $0x358] sm:$0xff] %v9470
      %9727 = vst [vmem:[%s774 + $0x360] sm:$0xff] %v9471
      %9728 = vst [vmem:[%s774 + $0x368] sm:$0xff] %v9472
      %9729 = vst [vmem:[%s774 + $0x370] sm:$0xff] %v9473
      %9730 = vst [vmem:[%s774 + $0x378] sm:$0xff] %v9474
      %9731 = vst [vmem:[%s774 + $0x380] sm:$0xff] %v9475
      %9732 = vst [vmem:[%s774 + $0x388] sm:$0xff] %v9476
      %9733 = vst [vmem:[%s774 + $0x390] sm:$0xff] %v9477
      %9734 = vst [vmem:[%s774 + $0x398] sm:$0xff] %v9478
      %9735 = vst [vmem:[%s774 + $0x3a0] sm:$0xff] %v9479
      %9736 = vst [vmem:[%s774 + $0x3a8] sm:$0xff] %v9480
      %9737 = vst [vmem:[%s774 + $0x3b0] sm:$0xff] %v9481
      %9738 = vst [vmem:[%s774 + $0x3b8] sm:$0xff] %v9482
      %9739 = vst [vmem:[%s774 + $0x3c0] sm:$0xff] %v9483
      %9740 = vst [vmem:[%s774 + $0x3c8] sm:$0xff] %v9484
      %9741 = vst [vmem:[%s774 + $0x3d0] sm:$0xff] %v9485
      %9742 = vst [vmem:[%s774 + $0x3d8] sm:$0xff] %v9486
      %9743 = vst [vmem:[%s774 + $0x3e0] sm:$0xff] %v9487
      %9744 = vst [vmem:[%s774 + $0x3e8] sm:$0xff] %v9488
      %9745 = vst [vmem:[%s774 + $0x3f0] sm:$0xff] %v9489
      %9746 = vst [vmem:[%s774 + $0x3f8] sm:$0xff] %v9490
      %9747 = vst [vmem:[%s774 + $0x400] sm:$0xff] %v9491
      %9748 = vst [vmem:[%s774 + $0x408] sm:$0xff] %v9492
      %9749 = vst [vmem:[%s774 + $0x410] sm:$0xff] %v9493
      %9750 = vst [vmem:[%s774 + $0x418] sm:$0xff] %v9494
      %9751 = vst [vmem:[%s774 + $0x420] sm:$0xff] %v9495
      %9752 = vst [vmem:[%s774 + $0x428] sm:$0xff] %v9496
      %9753 = vst [vmem:[%s774 + $0x430] sm:$0xff] %v9497
      %9754 = vst [vmem:[%s774 + $0x438] sm:$0xff] %v9498
      %9755 = vst [vmem:[%s774 + $0x440] sm:$0xff] %v9499
      %9756 = vst [vmem:[%s774 + $0x448] sm:$0xff] %v9500
      %9757 = vst [vmem:[%s774 + $0x450] sm:$0xff] %v9501
      %9758 = vst [vmem:[%s774 + $0x458] sm:$0xff] %v9502
      %9759 = vst [vmem:[%s774 + $0x460] sm:$0xff] %v9503
      %9760 = vst [vmem:[%s774 + $0x468] sm:$0xff] %v9504
      %9761 = vst [vmem:[%s774 + $0x470] sm:$0xff] %v9505
      %9762 = vst [vmem:[%s774 + $0x478] sm:$0xff] %v9506
      %9763 = vst [vmem:[%s774 + $0x480] sm:$0xff] %v9507
      %9764 = vst [vmem:[%s774 + $0x488] sm:$0xff] %v9508
      %9765 = vst [vmem:[%s774 + $0x490] sm:$0xff] %v9509
      %9766 = vst [vmem:[%s774 + $0x498] sm:$0xff] %v9510
      %9767 = vst [vmem:[%s774 + $0x4a0] sm:$0xff] %v9511
      %9768 = vst [vmem:[%s774 + $0x4a8] sm:$0xff] %v9512
      %9769 = vst [vmem:[%s774 + $0x4b0] sm:$0xff] %v9513
      %9770 = vst [vmem:[%s774 + $0x4b8] sm:$0xff] %v9514
      %9771 = vst [vmem:[%s774 + $0x4c0] sm:$0xff] %v9515
      %9772 = vst [vmem:[%s774 + $0x4c8] sm:$0xff] %v9516
      %9773 = vst [vmem:[%s774 + $0x4d0] sm:$0xff] %v9517
      %9774 = vst [vmem:[%s774 + $0x4d8] sm:$0xff] %v9518
      %9775 = vst [vmem:[%s774 + $0x4e0] sm:$0xff] %v9519
      %9776 = vst [vmem:[%s774 + $0x4e8] sm:$0xff] %v9520
      %9777 = vst [vmem:[%s774 + $0x4f0] sm:$0xff] %v9521
      %9778 = vst [vmem:[%s774 + $0x4f8] sm:$0xff] %v9522
      %9779 = vst [vmem:[%s774 + $0x500] sm:$0xff] %v9523
      %9780 = vst [vmem:[%s774 + $0x508] sm:$0xff] %v9524
      %9781 = vst [vmem:[%s774 + $0x510] sm:$0xff] %v9525
      %9782 = vst [vmem:[%s774 + $0x518] sm:$0xff] %v9526
      %9783 = vst [vmem:[%s774 + $0x520] sm:$0xff] %v9527
      %9784 = vst [vmem:[%s774 + $0x528] sm:$0xff] %v9528
      %9785 = vst [vmem:[%s774 + $0x530] sm:$0xff] %v9529
      %9786 = vst [vmem:[%s774 + $0x538] sm:$0xff] %v9530
      %9787 = vst [vmem:[%s774 + $0x540] sm:$0xff] %v9531
      %9788 = vst [vmem:[%s774 + $0x548] sm:$0xff] %v9532
      %9789 = vst [vmem:[%s774 + $0x550] sm:$0xff] %v9533
      %9790 = vst [vmem:[%s774 + $0x558] sm:$0xff] %v9534
      %9791 = vst [vmem:[%s774 + $0x560] sm:$0xff] %v9535
      %9792 = vst [vmem:[%s774 + $0x568] sm:$0xff] %v9536
      %9793 = vst [vmem:[%s774 + $0x570] sm:$0xff] %v9537
      %9794 = vst [vmem:[%s774 + $0x578] sm:$0xff] %v9538
      %9795 = vst [vmem:[%s774 + $0x580] sm:$0xff] %v9539
      %9796 = vst [vmem:[%s774 + $0x588] sm:$0xff] %v9540
      %9797 = vst [vmem:[%s774 + $0x590] sm:$0xff] %v9541
      %9798 = vst [vmem:[%s774 + $0x598] sm:$0xff] %v9542
      %9799 = vst [vmem:[%s774 + $0x5a0] sm:$0xff] %v9543
      %9800 = vst [vmem:[%s774 + $0x5a8] sm:$0xff] %v9544
      %9801 = vst [vmem:[%s774 + $0x5b0] sm:$0xff] %v9545
      %9802 = vst [vmem:[%s774 + $0x5b8] sm:$0xff] %v9546
      %9803 = vst [vmem:[%s774 + $0x5c0] sm:$0xff] %v9547
      %9804 = vst [vmem:[%s774 + $0x5c8] sm:$0xff] %v9548
      %9805 = vst [vmem:[%s774 + $0x5d0] sm:$0xff] %v9549
      %9806 = vst [vmem:[%s774 + $0x5d8] sm:$0xff] %v9550
      %9807 = vst [vmem:[%s774 + $0x5e0] sm:$0xff] %v9551
      %9808 = vst [vmem:[%s774 + $0x5e8] sm:$0xff] %v9552
      %9809 = vst [vmem:[%s774 + $0x5f0] sm:$0xff] %v9553
      %9810 = vst [vmem:[%s774 + $0x5f8] sm:$0xff] %v9554
      %9811 = vst [vmem:[%s774 + $0x600] sm:$0xff] %v9555
      %9812 = vst [vmem:[%s774 + $0x608] sm:$0xff] %v9556
      %9813 = vst [vmem:[%s774 + $0x610] sm:$0xff] %v9557
      %9814 = vst [vmem:[%s774 + $0x618] sm:$0xff] %v9558
      %9815 = vst [vmem:[%s774 + $0x620] sm:$0xff] %v9559
      %9816 = vst [vmem:[%s774 + $0x628] sm:$0xff] %v9560
      %9817 = vst [vmem:[%s774 + $0x630] sm:$0xff] %v9561
      %9818 = vst [vmem:[%s774 + $0x638] sm:$0xff] %v9562
      %9819 = vst [vmem:[%s774 + $0x640] sm:$0xff] %v9563
      %9820 = vst [vmem:[%s774 + $0x648] sm:$0xff] %v9564
      %9821 = vst [vmem:[%s774 + $0x650] sm:$0xff] %v9565
      %9822 = vst [vmem:[%s774 + $0x658] sm:$0xff] %v9566
      %9823 = vst [vmem:[%s774 + $0x660] sm:$0xff] %v9567
      %9824 = vst [vmem:[%s774 + $0x668] sm:$0xff] %v9568
      %9825 = vst [vmem:[%s774 + $0x670] sm:$0xff] %v9569
      %9826 = vst [vmem:[%s774 + $0x678] sm:$0xff] %v9570
      %9827 = vst [vmem:[%s774 + $0x680] sm:$0xff] %v9571
      %9828 = vst [vmem:[%s774 + $0x688] sm:$0xff] %v9572
      %9829 = vst [vmem:[%s774 + $0x690] sm:$0xff] %v9573
      %9830 = vst [vmem:[%s774 + $0x698] sm:$0xff] %v9574
      %9831 = vst [vmem:[%s774 + $0x6a0] sm:$0xff] %v9575
      %9832 = vst [vmem:[%s774 + $0x6a8] sm:$0xff] %v9576
      %9833 = vst [vmem:[%s774 + $0x6b0] sm:$0xff] %v9577
      %9834 = vst [vmem:[%s774 + $0x6b8] sm:$0xff] %v9578
      %9835 = vst [vmem:[%s774 + $0x6c0] sm:$0xff] %v9579
      %9836 = vst [vmem:[%s774 + $0x6c8] sm:$0xff] %v9580
      %9837 = vst [vmem:[%s774 + $0x6d0] sm:$0xff] %v9581
      %9838 = vst [vmem:[%s774 + $0x6d8] sm:$0xff] %v9582
      %9839 = vst [vmem:[%s774 + $0x6e0] sm:$0xff] %v9583
      %9840 = vst [vmem:[%s774 + $0x6e8] sm:$0xff] %v9584
      %9841 = vst [vmem:[%s774 + $0x6f0] sm:$0xff] %v9585
      %9842 = vst [vmem:[%s774 + $0x6f8] sm:$0xff] %v9586
      %9843 = vst [vmem:[%s774 + $0x700] sm:$0xff] %v9587
      %9844 = vst [vmem:[%s774 + $0x708] sm:$0xff] %v9588
      %9845 = vst [vmem:[%s774 + $0x710] sm:$0xff] %v9589
      %9846 = vst [vmem:[%s774 + $0x718] sm:$0xff] %v9590
      %9847 = vst [vmem:[%s774 + $0x720] sm:$0xff] %v9591
      %9848 = vst [vmem:[%s774 + $0x728] sm:$0xff] %v9592
      %9849 = vst [vmem:[%s774 + $0x730] sm:$0xff] %v9593
      %9850 = vst [vmem:[%s774 + $0x738] sm:$0xff] %v9594
      %9851 = vst [vmem:[%s774 + $0x740] sm:$0xff] %v9595
      %9852 = vst [vmem:[%s774 + $0x748] sm:$0xff] %v9596
      %9853 = vst [vmem:[%s774 + $0x750] sm:$0xff] %v9597
      %9854 = vst [vmem:[%s774 + $0x758] sm:$0xff] %v9598
      %9855 = vst [vmem:[%s774 + $0x760] sm:$0xff] %v9599
      %9856 = vst [vmem:[%s774 + $0x768] sm:$0xff] %v9600
      %9857 = vst [vmem:[%s774 + $0x770] sm:$0xff] %v9601
      %9858 = vst [vmem:[%s774 + $0x778] sm:$0xff] %v9602
      %9859 = vst [vmem:[%s774 + $0x780] sm:$0xff] %v9603
      %9860 = vst [vmem:[%s774 + $0x788] sm:$0xff] %v9604
      %9861 = vst [vmem:[%s774 + $0x790] sm:$0xff] %v9605
      %9862 = vst [vmem:[%s774 + $0x798] sm:$0xff] %v9606
      %9863 = vst [vmem:[%s774 + $0x7a0] sm:$0xff] %v9607
      %9864 = vst [vmem:[%s774 + $0x7a8] sm:$0xff] %v9608
      %9865 = vst [vmem:[%s774 + $0x7b0] sm:$0xff] %v9609
      %9866 = vst [vmem:[%s774 + $0x7b8] sm:$0xff] %v9610
      %9867 = vst [vmem:[%s774 + $0x7c0] sm:$0xff] %v9611
      %9868 = vst [vmem:[%s774 + $0x7c8] sm:$0xff] %v9612
      %9869 = vst [vmem:[%s774 + $0x7d0] sm:$0xff] %v9613
      %9870 = vst [vmem:[%s774 + $0x7d8] sm:$0xff] %v9614
      %9871 = vst [vmem:[%s774 + $0x7e0] sm:$0xff] %v9615
      %9872 = vst [vmem:[%s774 + $0x7e8] sm:$0xff] %v9616
      %9873 = vst [vmem:[%s774 + $0x7f0] sm:$0xff] %v9617
      %9874 = vst [vmem:[%s774 + $0x7f8] sm:$0xff] %v9618
      %v9875 = vld [vmem:[%s11] sm:$0xff]
      %v9876 = vld [vmem:[%s11 + $0x8] sm:$0xff]
      %v9877 = vld [vmem:[%s10] sm:$0xff]
      %v9878 = vld [vmem:[%s10 + $0x8] sm:$0xff]
      %v9879 = vld [vmem:[%s10 + $0x10] sm:$0xff]
      %v9880 = vld [vmem:[%s10 + $0x18] sm:$0xff]
      %v9881 = vld [vmem:[%s10 + $0x20] sm:$0xff]
      %v9882 = vld [vmem:[%s10 + $0x28] sm:$0xff]
      %v9883 = vld [vmem:[%s10 + $0x30] sm:$0xff]
      %v9884 = vld [vmem:[%s10 + $0x38] sm:$0xff]
      %v9885 = vperm.slane %v9875, 0
      %v9886 = vperm.slane %v9876, 0
      %v9895 = vunpack.c.l.b16 %v9877
      %v9896 = vunpack.c.h.b16 %v9877
      %v9897 = vunpack.c.l.b16 %v9878
      %v9898 = vunpack.c.h.b16 %v9878
      %v9899 = vunpack.c.l.b16 %v9879
      %v9900 = vunpack.c.h.b16 %v9879
      %v9901 = vunpack.c.l.b16 %v9880
      %v9902 = vunpack.c.h.b16 %v9880
      %v9903 = vunpack.c.l.b16 %v9881
      %v9904 = vunpack.c.h.b16 %v9881
      %v9905 = vunpack.c.l.b16 %v9882
      %v9906 = vunpack.c.h.b16 %v9882
      %v9907 = vunpack.c.l.b16 %v9883
      %v9908 = vunpack.c.h.b16 %v9883
      %v9909 = vunpack.c.l.b16 %v9884
      %v9910 = vunpack.c.h.b16 %v9884
      %v9911 = vpack.c.b16 %v9897, %v9895
      %v9912 = vpack.c.b16 %v9898, %v9896
      %v9913 = vpack.c.b16 %v9901, %v9899
      %v9914 = vpack.c.b16 %v9902, %v9900
      %v9915 = vpack.c.b16 %v9905, %v9903
      %v9916 = vpack.c.b16 %v9906, %v9904
      %v9917 = vpack.c.b16 %v9909, %v9907
      %v9918 = vpack.c.b16 %v9910, %v9908
      %v9928 = vsel %vm3773, %v3611, 0
      %v9931 = vsel %vm3773, %v3612, 0
      %v9934 = vsel %vm3773, %v3613, 0
      %v9937 = vsel %vm3773, %v3614, 0
      %v9940 = vsel %vm3773, %v3615, 0
      %v9943 = vsel %vm3773, %v3616, 0
      %v9946 = vsel %vm3773, %v3617, 0
      %v9949 = vsel %vm3773, %v3618, 0
      %v9952 = vsel %vm3773, %v3619, 0
      %v9955 = vsel %vm3773, %v3620, 0
      %v9958 = vsel %vm3773, %v3621, 0
      %v9961 = vsel %vm3773, %v3622, 0
      %v9964 = vsel %vm3773, %v3623, 0
      %v9967 = vsel %vm3773, %v3624, 0
      %v9970 = vsel %vm3773, %v3625, 0
      %v9973 = vsel %vm3773, %v3626, 0
      %9975 = vmatpush.bf16.msra.mxu0 0
      %9976 = vmatpush.bf16.msra.mxu0 0
      %9977 = vmatpush.bf16.msra.mxu0 0
      %9978 = vmatpush.bf16.msra.mxu0 0
      %9979 = vmatpush.bf16.msra.mxu0 %v9917
      %9980 = vmatpush.bf16.msra.mxu0 %v9915
      %9981 = vmatpush.bf16.msra.mxu0 %v9913
      %9982 = vmatpush.bf16.msra.mxu0 %v9911
      %9983 = vmatmul.bf16.gmra.mxu0 %v9928
      %v9984 = vpop.f32.mrf.mxu0
      %v9985 = vadd.f32 %v9885, %v9984
      %v9986 = vpop.f32.mrf.mxu0
      %v9987 = vadd.f32 %v9885, %v9986
      %9988 = vmatmul.bf16.gmra.mxu0 %v9931
      %v9989 = vpop.f32.mrf.mxu0
      %v9990 = vadd.f32 %v9885, %v9989
      %v9991 = vpop.f32.mrf.mxu0
      %v9992 = vadd.f32 %v9885, %v9991
      %9993 = vmatmul.bf16.gmra.mxu0 %v9934
      %v9994 = vpop.f32.mrf.mxu0
      %v9995 = vadd.f32 %v9885, %v9994
      %v9996 = vpop.f32.mrf.mxu0
      %v9997 = vadd.f32 %v9885, %v9996
      %9998 = vmatmul.bf16.gmra.mxu0 %v9937
      %v9999 = vpop.f32.mrf.mxu0
      %v10000 = vadd.f32 %v9885, %v9999
      %v10001 = vpop.f32.mrf.mxu0
      %v10002 = vadd.f32 %v9885, %v10001
      %10003 = vmatmul.bf16.gmra.mxu0 %v9940
      %v10004 = vpop.f32.mrf.mxu0
      %v10005 = vadd.f32 %v9885, %v10004
      %v10006 = vpop.f32.mrf.mxu0
      %v10007 = vadd.f32 %v9885, %v10006
      %10008 = vmatmul.bf16.gmra.mxu0 %v9943
      %v10009 = vpop.f32.mrf.mxu0
      %v10010 = vadd.f32 %v9885, %v10009
      %v10011 = vpop.f32.mrf.mxu0
      %v10012 = vadd.f32 %v9885, %v10011
      %10013 = vmatmul.bf16.gmra.mxu0 %v9946
      %v10014 = vpop.f32.mrf.mxu0
      %v10015 = vadd.f32 %v9885, %v10014
      %v10016 = vpop.f32.mrf.mxu0
      %v10017 = vadd.f32 %v9885, %v10016
      %10018 = vmatmul.bf16.gmra.mxu0 %v9949
      %v10019 = vpop.f32.mrf.mxu0
      %v10020 = vadd.f32 %v9885, %v10019
      %v10021 = vpop.f32.mrf.mxu0
      %v10022 = vadd.f32 %v9885, %v10021
      %10023 = vmatmul.bf16.gmra.mxu0 %v9952
      %v10024 = vpop.f32.mrf.mxu0
      %v10025 = vadd.f32 %v9885, %v10024
      %v10026 = vpop.f32.mrf.mxu0
      %v10027 = vadd.f32 %v9885, %v10026
      %10028 = vmatmul.bf16.gmra.mxu0 %v9955
      %v10029 = vpop.f32.mrf.mxu0
      %v10030 = vadd.f32 %v9885, %v10029
      %v10031 = vpop.f32.mrf.mxu0
      %v10032 = vadd.f32 %v9885, %v10031
      %10033 = vmatmul.bf16.gmra.mxu0 %v9958
      %v10034 = vpop.f32.mrf.mxu0
      %v10035 = vadd.f32 %v9885, %v10034
      %v10036 = vpop.f32.mrf.mxu0
      %v10037 = vadd.f32 %v9885, %v10036
      %10038 = vmatmul.bf16.gmra.mxu0 %v9961
      %v10039 = vpop.f32.mrf.mxu0
      %v10040 = vadd.f32 %v9885, %v10039
      %v10041 = vpop.f32.mrf.mxu0
      %v10042 = vadd.f32 %v9885, %v10041
      %10043 = vmatmul.bf16.gmra.mxu0 %v9964
      %v10044 = vpop.f32.mrf.mxu0
      %v10045 = vadd.f32 %v9885, %v10044
      %v10046 = vpop.f32.mrf.mxu0
      %v10047 = vadd.f32 %v9885, %v10046
      %10048 = vmatmul.bf16.gmra.mxu0 %v9967
      %v10049 = vpop.f32.mrf.mxu0
      %v10050 = vadd.f32 %v9885, %v10049
      %v10051 = vpop.f32.mrf.mxu0
      %v10052 = vadd.f32 %v9885, %v10051
      %10053 = vmatmul.bf16.gmra.mxu0 %v9970
      %v10054 = vpop.f32.mrf.mxu0
      %v10055 = vadd.f32 %v9885, %v10054
      %v10056 = vpop.f32.mrf.mxu0
      %v10057 = vadd.f32 %v9885, %v10056
      %10058 = vmatmul.bf16.gmra.mxu0 %v9973
      %v10059 = vpop.f32.mrf.mxu0
      %v10060 = vadd.f32 %v9885, %v10059
      %v10061 = vpop.f32.mrf.mxu0
      %v10062 = vadd.f32 %v9885, %v10061
      %10063 = vdwg.mxu0
      %10064 = vmatpush.bf16.msra.mxu0 0
      %10065 = vmatpush.bf16.msra.mxu0 0
      %10066 = vmatpush.bf16.msra.mxu0 0
      %10067 = vmatpush.bf16.msra.mxu0 0
      %10068 = vmatpush.bf16.msra.mxu0 %v9918
      %10069 = vmatpush.bf16.msra.mxu0 %v9916
      %10070 = vmatpush.bf16.msra.mxu0 %v9914
      %10071 = vmatpush.bf16.msra.mxu0 %v9912
      %10072 = vmatmul.bf16.gmra.mxu0 %v9928
      %v10073 = vpop.f32.mrf.mxu0
      %v10074 = vadd.f32 %v9886, %v10073
      %v10075 = vpop.f32.mrf.mxu0
      %v10076 = vadd.f32 %v9886, %v10075
      %10077 = vmatmul.bf16.gmra.mxu0 %v9931
      %v10078 = vpop.f32.mrf.mxu0
      %v10079 = vadd.f32 %v9886, %v10078
      %v10080 = vpop.f32.mrf.mxu0
      %v10081 = vadd.f32 %v9886, %v10080
      %10082 = vmatmul.bf16.gmra.mxu0 %v9934
      %v10083 = vpop.f32.mrf.mxu0
      %v10084 = vadd.f32 %v9886, %v10083
      %v10085 = vpop.f32.mrf.mxu0
      %v10086 = vadd.f32 %v9886, %v10085
      %10087 = vmatmul.bf16.gmra.mxu0 %v9937
      %v10088 = vpop.f32.mrf.mxu0
      %v10089 = vadd.f32 %v9886, %v10088
      %v10090 = vpop.f32.mrf.mxu0
      %v10091 = vadd.f32 %v9886, %v10090
      %10092 = vmatmul.bf16.gmra.mxu0 %v9940
      %v10093 = vpop.f32.mrf.mxu0
      %v10094 = vadd.f32 %v9886, %v10093
      %v10095 = vpop.f32.mrf.mxu0
      %v10096 = vadd.f32 %v9886, %v10095
      %10097 = vmatmul.bf16.gmra.mxu0 %v9943
      %v10098 = vpop.f32.mrf.mxu0
      %v10099 = vadd.f32 %v9886, %v10098
      %v10100 = vpop.f32.mrf.mxu0
      %v10101 = vadd.f32 %v9886, %v10100
      %10102 = vmatmul.bf16.gmra.mxu0 %v9946
      %v10103 = vpop.f32.mrf.mxu0
      %v10104 = vadd.f32 %v9886, %v10103
      %v10105 = vpop.f32.mrf.mxu0
      %v10106 = vadd.f32 %v9886, %v10105
      %10107 = vmatmul.bf16.gmra.mxu0 %v9949
      %v10108 = vpop.f32.mrf.mxu0
      %v10109 = vadd.f32 %v9886, %v10108
      %v10110 = vpop.f32.mrf.mxu0
      %v10111 = vadd.f32 %v9886, %v10110
      %10112 = vmatmul.bf16.gmra.mxu0 %v9952
      %v10113 = vpop.f32.mrf.mxu0
      %v10114 = vadd.f32 %v9886, %v10113
      %v10115 = vpop.f32.mrf.mxu0
      %v10116 = vadd.f32 %v9886, %v10115
      %10117 = vmatmul.bf16.gmra.mxu0 %v9955
      %v10118 = vpop.f32.mrf.mxu0
      %v10119 = vadd.f32 %v9886, %v10118
      %v10120 = vpop.f32.mrf.mxu0
      %v10121 = vadd.f32 %v9886, %v10120
      %10122 = vmatmul.bf16.gmra.mxu0 %v9958
      %v10123 = vpop.f32.mrf.mxu0
      %v10124 = vadd.f32 %v9886, %v10123
      %v10125 = vpop.f32.mrf.mxu0
      %v10126 = vadd.f32 %v9886, %v10125
      %10127 = vmatmul.bf16.gmra.mxu0 %v9961
      %v10128 = vpop.f32.mrf.mxu0
      %v10129 = vadd.f32 %v9886, %v10128
      %v10130 = vpop.f32.mrf.mxu0
      %v10131 = vadd.f32 %v9886, %v10130
      %10132 = vmatmul.bf16.gmra.mxu0 %v9964
      %v10133 = vpop.f32.mrf.mxu0
      %v10134 = vadd.f32 %v9886, %v10133
      %v10135 = vpop.f32.mrf.mxu0
      %v10136 = vadd.f32 %v9886, %v10135
      %10137 = vmatmul.bf16.gmra.mxu0 %v9967
      %v10138 = vpop.f32.mrf.mxu0
      %v10139 = vadd.f32 %v9886, %v10138
      %v10140 = vpop.f32.mrf.mxu0
      %v10141 = vadd.f32 %v9886, %v10140
      %10142 = vmatmul.bf16.gmra.mxu0 %v9970
      %v10143 = vpop.f32.mrf.mxu0
      %v10144 = vadd.f32 %v9886, %v10143
      %v10145 = vpop.f32.mrf.mxu0
      %v10146 = vadd.f32 %v9886, %v10145
      %10147 = vmatmul.bf16.gmra.mxu0 %v9973
      %v10148 = vpop.f32.mrf.mxu0
      %v10149 = vadd.f32 %v9886, %v10148
      %v10150 = vpop.f32.mrf.mxu0
      %v10151 = vadd.f32 %v9886, %v10150
      %10152 = vdwg.mxu0
      %10153 = vst [vmem:[%s781] sm:$0xff] %v9985
      %10154 = vst [vmem:[%s781 + $0x8] sm:$0xff] %v10074
      %10155 = vst [vmem:[%s781 + $0x10] sm:$0xff] %v9987
      %10156 = vst [vmem:[%s781 + $0x18] sm:$0xff] %v10076
      %10157 = vst [vmem:[%s781 + $0x20] sm:$0xff] %v9990
      %10158 = vst [vmem:[%s781 + $0x28] sm:$0xff] %v10079
      %10159 = vst [vmem:[%s781 + $0x30] sm:$0xff] %v9992
      %10160 = vst [vmem:[%s781 + $0x38] sm:$0xff] %v10081
      %10161 = vst [vmem:[%s781 + $0x40] sm:$0xff] %v9995
      %10162 = vst [vmem:[%s781 + $0x48] sm:$0xff] %v10084
      %10163 = vst [vmem:[%s781 + $0x50] sm:$0xff] %v9997
      %10164 = vst [vmem:[%s781 + $0x58] sm:$0xff] %v10086
      %10165 = vst [vmem:[%s781 + $0x60] sm:$0xff] %v10000
      %10166 = vst [vmem:[%s781 + $0x68] sm:$0xff] %v10089
      %10167 = vst [vmem:[%s781 + $0x70] sm:$0xff] %v10002
      %10168 = vst [vmem:[%s781 + $0x78] sm:$0xff] %v10091
      %10169 = vst [vmem:[%s781 + $0x80] sm:$0xff] %v10005
      %10170 = vst [vmem:[%s781 + $0x88] sm:$0xff] %v10094
      %10171 = vst [vmem:[%s781 + $0x90] sm:$0xff] %v10007
      %10172 = vst [vmem:[%s781 + $0x98] sm:$0xff] %v10096
      %10173 = vst [vmem:[%s781 + $0xa0] sm:$0xff] %v10010
      %10174 = vst [vmem:[%s781 + $0xa8] sm:$0xff] %v10099
      %10175 = vst [vmem:[%s781 + $0xb0] sm:$0xff] %v10012
      %10176 = vst [vmem:[%s781 + $0xb8] sm:$0xff] %v10101
      %10177 = vst [vmem:[%s781 + $0xc0] sm:$0xff] %v10015
      %10178 = vst [vmem:[%s781 + $0xc8] sm:$0xff] %v10104
      %10179 = vst [vmem:[%s781 + $0xd0] sm:$0xff] %v10017
      %10180 = vst [vmem:[%s781 + $0xd8] sm:$0xff] %v10106
      %10181 = vst [vmem:[%s781 + $0xe0] sm:$0xff] %v10020
      %10182 = vst [vmem:[%s781 + $0xe8] sm:$0xff] %v10109
      %10183 = vst [vmem:[%s781 + $0xf0] sm:$0xff] %v10022
      %10184 = vst [vmem:[%s781 + $0xf8] sm:$0xff] %v10111
      %10185 = vst [vmem:[%s781 + $0x100] sm:$0xff] %v10025
      %10186 = vst [vmem:[%s781 + $0x108] sm:$0xff] %v10114
      %10187 = vst [vmem:[%s781 + $0x110] sm:$0xff] %v10027
      %10188 = vst [vmem:[%s781 + $0x118] sm:$0xff] %v10116
      %10189 = vst [vmem:[%s781 + $0x120] sm:$0xff] %v10030
      %10190 = vst [vmem:[%s781 + $0x128] sm:$0xff] %v10119
      %10191 = vst [vmem:[%s781 + $0x130] sm:$0xff] %v10032
      %10192 = vst [vmem:[%s781 + $0x138] sm:$0xff] %v10121
      %10193 = vst [vmem:[%s781 + $0x140] sm:$0xff] %v10035
      %10194 = vst [vmem:[%s781 + $0x148] sm:$0xff] %v10124
      %10195 = vst [vmem:[%s781 + $0x150] sm:$0xff] %v10037
      %10196 = vst [vmem:[%s781 + $0x158] sm:$0xff] %v10126
      %10197 = vst [vmem:[%s781 + $0x160] sm:$0xff] %v10040
      %10198 = vst [vmem:[%s781 + $0x168] sm:$0xff] %v10129
      %10199 = vst [vmem:[%s781 + $0x170] sm:$0xff] %v10042
      %10200 = vst [vmem:[%s781 + $0x178] sm:$0xff] %v10131
      %10201 = vst [vmem:[%s781 + $0x180] sm:$0xff] %v10045
      %10202 = vst [vmem:[%s781 + $0x188] sm:$0xff] %v10134
      %10203 = vst [vmem:[%s781 + $0x190] sm:$0xff] %v10047
      %10204 = vst [vmem:[%s781 + $0x198] sm:$0xff] %v10136
      %10205 = vst [vmem:[%s781 + $0x1a0] sm:$0xff] %v10050
      %10206 = vst [vmem:[%s781 + $0x1a8] sm:$0xff] %v10139
      %10207 = vst [vmem:[%s781 + $0x1b0] sm:$0xff] %v10052
      %10208 = vst [vmem:[%s781 + $0x1b8] sm:$0xff] %v10141
      %10209 = vst [vmem:[%s781 + $0x1c0] sm:$0xff] %v10055
      %10210 = vst [vmem:[%s781 + $0x1c8] sm:$0xff] %v10144
      %10211 = vst [vmem:[%s781 + $0x1d0] sm:$0xff] %v10057
      %10212 = vst [vmem:[%s781 + $0x1d8] sm:$0xff] %v10146
      %10213 = vst [vmem:[%s781 + $0x1e0] sm:$0xff] %v10060
      %10214 = vst [vmem:[%s781 + $0x1e8] sm:$0xff] %v10149
      %10215 = vst [vmem:[%s781 + $0x1f0] sm:$0xff] %v10062
      %10216 = vst [vmem:[%s781 + $0x1f8] sm:$0xff] %v10151
      %v10217 = vsub.f32 0.0, %v9985
      %v10218 = vsub.f32 0.0, %v10074
      %v10219 = vsub.f32 0.0, %v9987
      %v10220 = vsub.f32 0.0, %v10076
      %v10221 = vsub.f32 0.0, %v9990
      %v10222 = vsub.f32 0.0, %v10079
      %v10223 = vsub.f32 0.0, %v9992
      %v10224 = vsub.f32 0.0, %v10081
      %v10225 = vsub.f32 0.0, %v9995
      %v10226 = vsub.f32 0.0, %v10084
      %v10227 = vsub.f32 0.0, %v9997
      %v10228 = vsub.f32 0.0, %v10086
      %v10229 = vsub.f32 0.0, %v10000
      %v10230 = vsub.f32 0.0, %v10089
      %v10231 = vsub.f32 0.0, %v10002
      %v10232 = vsub.f32 0.0, %v10091
      %v10233 = vsub.f32 0.0, %v10005
      %v10234 = vsub.f32 0.0, %v10094
      %v10235 = vsub.f32 0.0, %v10007
      %v10236 = vsub.f32 0.0, %v10096
      %v10237 = vsub.f32 0.0, %v10010
      %v10238 = vsub.f32 0.0, %v10099
      %v10239 = vsub.f32 0.0, %v10012
      %v10240 = vsub.f32 0.0, %v10101
      %v10241 = vsub.f32 0.0, %v10015
      %v10242 = vsub.f32 0.0, %v10104
      %v10243 = vsub.f32 0.0, %v10017
      %v10244 = vsub.f32 0.0, %v10106
      %v10245 = vsub.f32 0.0, %v10020
      %v10246 = vsub.f32 0.0, %v10109
      %v10247 = vsub.f32 0.0, %v10022
      %v10248 = vsub.f32 0.0, %v10111
      %v10249 = vsub.f32 0.0, %v10025
      %v10250 = vsub.f32 0.0, %v10114
      %v10251 = vsub.f32 0.0, %v10027
      %v10252 = vsub.f32 0.0, %v10116
      %v10253 = vsub.f32 0.0, %v10030
      %v10254 = vsub.f32 0.0, %v10119
      %v10255 = vsub.f32 0.0, %v10032
      %v10256 = vsub.f32 0.0, %v10121
      %v10257 = vsub.f32 0.0, %v10035
      %v10258 = vsub.f32 0.0, %v10124
      %v10259 = vsub.f32 0.0, %v10037
      %v10260 = vsub.f32 0.0, %v10126
      %v10261 = vsub.f32 0.0, %v10040
      %v10262 = vsub.f32 0.0, %v10129
      %v10263 = vsub.f32 0.0, %v10042
      %v10264 = vsub.f32 0.0, %v10131
      %v10265 = vsub.f32 0.0, %v10045
      %v10266 = vsub.f32 0.0, %v10134
      %v10267 = vsub.f32 0.0, %v10047
      %v10268 = vsub.f32 0.0, %v10136
      %v10269 = vsub.f32 0.0, %v10050
      %v10270 = vsub.f32 0.0, %v10139
      %v10271 = vsub.f32 0.0, %v10052
      %v10272 = vsub.f32 0.0, %v10141
      %v10273 = vsub.f32 0.0, %v10055
      %v10274 = vsub.f32 0.0, %v10144
      %v10275 = vsub.f32 0.0, %v10057
      %v10276 = vsub.f32 0.0, %v10146
      %v10277 = vsub.f32 0.0, %v10060
      %v10278 = vsub.f32 0.0, %v10149
      %v10279 = vsub.f32 0.0, %v10062
      %v10280 = vsub.f32 0.0, %v10151
      %v10281 = vmul.f32 %v10217, 1.442695
      %v10282 = vpow.pop %v10281
      %v10283 = vmul.f32 %v10218, 1.442695
      %v10284 = vpow.pop %v10283
      %v10285 = vmul.f32 %v10219, 1.442695
      %v10286 = vpow.pop %v10285
      %v10287 = vmul.f32 %v10220, 1.442695
      %v10288 = vpow.pop %v10287
      %v10289 = vmul.f32 %v10221, 1.442695
      %v10290 = vpow.pop %v10289
      %v10291 = vmul.f32 %v10222, 1.442695
      %v10292 = vpow.pop %v10291
      %v10293 = vmul.f32 %v10223, 1.442695
      %v10294 = vpow.pop %v10293
      %v10295 = vmul.f32 %v10224, 1.442695
      %v10296 = vpow.pop %v10295
      %v10297 = vmul.f32 %v10225, 1.442695
      %v10298 = vpow.pop %v10297
      %v10299 = vmul.f32 %v10226, 1.442695
      %v10300 = vpow.pop %v10299
      %v10301 = vmul.f32 %v10227, 1.442695
      %v10302 = vpow.pop %v10301
      %v10303 = vmul.f32 %v10228, 1.442695
      %v10304 = vpow.pop %v10303
      %v10305 = vmul.f32 %v10229, 1.442695
      %v10306 = vpow.pop %v10305
      %v10307 = vmul.f32 %v10230, 1.442695
      %v10308 = vpow.pop %v10307
      %v10309 = vmul.f32 %v10231, 1.442695
      %v10310 = vpow.pop %v10309
      %v10311 = vmul.f32 %v10232, 1.442695
      %v10312 = vpow.pop %v10311
      %v10313 = vmul.f32 %v10233, 1.442695
      %v10314 = vpow.pop %v10313
      %v10315 = vmul.f32 %v10234, 1.442695
      %v10316 = vpow.pop %v10315
      %v10317 = vmul.f32 %v10235, 1.442695
      %v10318 = vpow.pop %v10317
      %v10319 = vmul.f32 %v10236, 1.442695
      %v10320 = vpow.pop %v10319
      %v10321 = vmul.f32 %v10237, 1.442695
      %v10322 = vpow.pop %v10321
      %v10323 = vmul.f32 %v10238, 1.442695
      %v10324 = vpow.pop %v10323
      %v10325 = vmul.f32 %v10239, 1.442695
      %v10326 = vpow.pop %v10325
      %v10327 = vmul.f32 %v10240, 1.442695
      %v10328 = vpow.pop %v10327
      %v10329 = vmul.f32 %v10241, 1.442695
      %v10330 = vpow.pop %v10329
      %v10331 = vmul.f32 %v10242, 1.442695
      %v10332 = vpow.pop %v10331
      %v10333 = vmul.f32 %v10243, 1.442695
      %v10334 = vpow.pop %v10333
      %v10335 = vmul.f32 %v10244, 1.442695
      %v10336 = vpow.pop %v10335
      %v10337 = vmul.f32 %v10245, 1.442695
      %v10338 = vpow.pop %v10337
      %v10339 = vmul.f32 %v10246, 1.442695
      %v10340 = vpow.pop %v10339
      %v10341 = vmul.f32 %v10247, 1.442695
      %v10342 = vpow.pop %v10341
      %v10343 = vmul.f32 %v10248, 1.442695
      %v10344 = vpow.pop %v10343
      %v10345 = vmul.f32 %v10249, 1.442695
      %v10346 = vpow.pop %v10345
      %v10347 = vmul.f32 %v10250, 1.442695
      %v10348 = vpow.pop %v10347
      %v10349 = vmul.f32 %v10251, 1.442695
      %v10350 = vpow.pop %v10349
      %v10351 = vmul.f32 %v10252, 1.442695
      %v10352 = vpow.pop %v10351
      %v10353 = vmul.f32 %v10253, 1.442695
      %v10354 = vpow.pop %v10353
      %v10355 = vmul.f32 %v10254, 1.442695
      %v10356 = vpow.pop %v10355
      %v10357 = vmul.f32 %v10255, 1.442695
      %v10358 = vpow.pop %v10357
      %v10359 = vmul.f32 %v10256, 1.442695
      %v10360 = vpow.pop %v10359
      %v10361 = vmul.f32 %v10257, 1.442695
      %v10362 = vpow.pop %v10361
      %v10363 = vmul.f32 %v10258, 1.442695
      %v10364 = vpow.pop %v10363
      %v10365 = vmul.f32 %v10259, 1.442695
      %v10366 = vpow.pop %v10365
      %v10367 = vmul.f32 %v10260, 1.442695
      %v10368 = vpow.pop %v10367
      %v10369 = vmul.f32 %v10261, 1.442695
      %v10370 = vpow.pop %v10369
      %v10371 = vmul.f32 %v10262, 1.442695
      %v10372 = vpow.pop %v10371
      %v10373 = vmul.f32 %v10263, 1.442695
      %v10374 = vpow.pop %v10373
      %v10375 = vmul.f32 %v10264, 1.442695
      %v10376 = vpow.pop %v10375
      %v10377 = vmul.f32 %v10265, 1.442695
      %v10378 = vpow.pop %v10377
      %v10379 = vmul.f32 %v10266, 1.442695
      %v10380 = vpow.pop %v10379
      %v10381 = vmul.f32 %v10267, 1.442695
      %v10382 = vpow.pop %v10381
      %v10383 = vmul.f32 %v10268, 1.442695
      %v10384 = vpow.pop %v10383
      %v10385 = vmul.f32 %v10269, 1.442695
      %v10386 = vpow.pop %v10385
      %v10387 = vmul.f32 %v10270, 1.442695
      %v10388 = vpow.pop %v10387
      %v10389 = vmul.f32 %v10271, 1.442695
      %v10390 = vpow.pop %v10389
      %v10391 = vmul.f32 %v10272, 1.442695
      %v10392 = vpow.pop %v10391
      %v10393 = vmul.f32 %v10273, 1.442695
      %v10394 = vpow.pop %v10393
      %v10395 = vmul.f32 %v10274, 1.442695
      %v10396 = vpow.pop %v10395
      %v10397 = vmul.f32 %v10275, 1.442695
      %v10398 = vpow.pop %v10397
      %v10399 = vmul.f32 %v10276, 1.442695
      %v10400 = vpow.pop %v10399
      %v10401 = vmul.f32 %v10277, 1.442695
      %v10402 = vpow.pop %v10401
      %v10403 = vmul.f32 %v10278, 1.442695
      %v10404 = vpow.pop %v10403
      %v10405 = vmul.f32 %v10279, 1.442695
      %v10406 = vpow.pop %v10405
      %v10407 = vmul.f32 %v10280, 1.442695
      %v10408 = vpow.pop %v10407
      %v10409 = vadd.f32 %v10282, 1.0
      %v10410 = vadd.f32 %v10284, 1.0
      %v10411 = vadd.f32 %v10286, 1.0
      %v10412 = vadd.f32 %v10288, 1.0
      %v10413 = vadd.f32 %v10290, 1.0
      %v10414 = vadd.f32 %v10292, 1.0
      %v10415 = vadd.f32 %v10294, 1.0
      %v10416 = vadd.f32 %v10296, 1.0
      %v10417 = vadd.f32 %v10298, 1.0
      %v10418 = vadd.f32 %v10300, 1.0
      %v10419 = vadd.f32 %v10302, 1.0
      %v10420 = vadd.f32 %v10304, 1.0
      %v10421 = vadd.f32 %v10306, 1.0
      %v10422 = vadd.f32 %v10308, 1.0
      %v10423 = vadd.f32 %v10310, 1.0
      %v10424 = vadd.f32 %v10312, 1.0
      %v10425 = vadd.f32 %v10314, 1.0
      %v10426 = vadd.f32 %v10316, 1.0
      %v10427 = vadd.f32 %v10318, 1.0
      %v10428 = vadd.f32 %v10320, 1.0
      %v10429 = vadd.f32 %v10322, 1.0
      %v10430 = vadd.f32 %v10324, 1.0
      %v10431 = vadd.f32 %v10326, 1.0
      %v10432 = vadd.f32 %v10328, 1.0
      %v10433 = vadd.f32 %v10330, 1.0
      %v10434 = vadd.f32 %v10332, 1.0
      %v10435 = vadd.f32 %v10334, 1.0
      %v10436 = vadd.f32 %v10336, 1.0
      %v10437 = vadd.f32 %v10338, 1.0
      %v10438 = vadd.f32 %v10340, 1.0
      %v10439 = vadd.f32 %v10342, 1.0
      %v10440 = vadd.f32 %v10344, 1.0
      %v10441 = vadd.f32 %v10346, 1.0
      %v10442 = vadd.f32 %v10348, 1.0
      %v10443 = vadd.f32 %v10350, 1.0
      %v10444 = vadd.f32 %v10352, 1.0
      %v10445 = vadd.f32 %v10354, 1.0
      %v10446 = vadd.f32 %v10356, 1.0
      %v10447 = vadd.f32 %v10358, 1.0
      %v10448 = vadd.f32 %v10360, 1.0
      %v10449 = vadd.f32 %v10362, 1.0
      %v10450 = vadd.f32 %v10364, 1.0
      %v10451 = vadd.f32 %v10366, 1.0
      %v10452 = vadd.f32 %v10368, 1.0
      %v10453 = vadd.f32 %v10370, 1.0
      %v10454 = vadd.f32 %v10372, 1.0
      %v10455 = vadd.f32 %v10374, 1.0
      %v10456 = vadd.f32 %v10376, 1.0
      %v10457 = vadd.f32 %v10378, 1.0
      %v10458 = vadd.f32 %v10380, 1.0
      %v10459 = vadd.f32 %v10382, 1.0
      %v10460 = vadd.f32 %v10384, 1.0
      %v10461 = vadd.f32 %v10386, 1.0
      %v10462 = vadd.f32 %v10388, 1.0
      %v10463 = vadd.f32 %v10390, 1.0
      %v10464 = vadd.f32 %v10392, 1.0
      %v10465 = vadd.f32 %v10394, 1.0
      %v10466 = vadd.f32 %v10396, 1.0
      %v10467 = vadd.f32 %v10398, 1.0
      %v10468 = vadd.f32 %v10400, 1.0
      %v10469 = vadd.f32 %v10402, 1.0
      %v10470 = vadd.f32 %v10404, 1.0
      %v10471 = vadd.f32 %v10406, 1.0
      %v10472 = vadd.f32 %v10408, 1.0
      %v10473 = vrcp.pop %v10409
      %v10474 = vrcp.pop %v10410
      %v10475 = vrcp.pop %v10411
      %v10476 = vrcp.pop %v10412
      %v10477 = vrcp.pop %v10413
      %v10478 = vrcp.pop %v10414
      %v10479 = vrcp.pop %v10415
      %v10480 = vrcp.pop %v10416
      %v10481 = vrcp.pop %v10417
      %v10482 = vrcp.pop %v10418
      %v10483 = vrcp.pop %v10419
      %v10484 = vrcp.pop %v10420
      %v10485 = vrcp.pop %v10421
      %v10486 = vrcp.pop %v10422
      %v10487 = vrcp.pop %v10423
      %v10488 = vrcp.pop %v10424
      %v10489 = vrcp.pop %v10425
      %v10490 = vrcp.pop %v10426
      %v10491 = vrcp.pop %v10427
      %v10492 = vrcp.pop %v10428
      %v10493 = vrcp.pop %v10429
      %v10494 = vrcp.pop %v10430
      %v10495 = vrcp.pop %v10431
      %v10496 = vrcp.pop %v10432
      %v10497 = vrcp.pop %v10433
      %v10498 = vrcp.pop %v10434
      %v10499 = vrcp.pop %v10435
      %v10500 = vrcp.pop %v10436
      %v10501 = vrcp.pop %v10437
      %v10502 = vrcp.pop %v10438
      %v10503 = vrcp.pop %v10439
      %v10504 = vrcp.pop %v10440
      %v10505 = vrcp.pop %v10441
      %v10506 = vrcp.pop %v10442
      %v10507 = vrcp.pop %v10443
      %v10508 = vrcp.pop %v10444
      %v10509 = vrcp.pop %v10445
      %v10510 = vrcp.pop %v10446
      %v10511 = vrcp.pop %v10447
      %v10512 = vrcp.pop %v10448
      %v10513 = vrcp.pop %v10449
      %v10514 = vrcp.pop %v10450
      %v10515 = vrcp.pop %v10451
      %v10516 = vrcp.pop %v10452
      %v10517 = vrcp.pop %v10453
      %v10518 = vrcp.pop %v10454
      %v10519 = vrcp.pop %v10455
      %v10520 = vrcp.pop %v10456
      %v10521 = vrcp.pop %v10457
      %v10522 = vrcp.pop %v10458
      %v10523 = vrcp.pop %v10459
      %v10524 = vrcp.pop %v10460
      %v10525 = vrcp.pop %v10461
      %v10526 = vrcp.pop %v10462
      %v10527 = vrcp.pop %v10463
      %v10528 = vrcp.pop %v10464
      %v10529 = vrcp.pop %v10465
      %v10530 = vrcp.pop %v10466
      %v10531 = vrcp.pop %v10467
      %v10532 = vrcp.pop %v10468
      %v10533 = vrcp.pop %v10469
      %v10534 = vrcp.pop %v10470
      %v10535 = vrcp.pop %v10471
      %v10536 = vrcp.pop %v10472
      %v10537 = vld [vmem:[%s754] sm:$0xff]
      %v10538 = vld [vmem:[%s754 + $0x8] sm:$0xff]
      %v10539 = vld [vmem:[%s754 + $0x10] sm:$0xff]
      %v10540 = vld [vmem:[%s754 + $0x18] sm:$0xff]
      %v10541 = vld [vmem:[%s754 + $0x20] sm:$0xff]
      %v10542 = vld [vmem:[%s754 + $0x28] sm:$0xff]
      %v10543 = vld [vmem:[%s754 + $0x30] sm:$0xff]
      %v10544 = vld [vmem:[%s754 + $0x38] sm:$0xff]
      %v10545 = vld [vmem:[%s754 + $0x40] sm:$0xff]
      %v10546 = vld [vmem:[%s754 + $0x48] sm:$0xff]
      %v10547 = vld [vmem:[%s754 + $0x50] sm:$0xff]
      %v10548 = vld [vmem:[%s754 + $0x58] sm:$0xff]
      %v10549 = vld [vmem:[%s754 + $0x60] sm:$0xff]
      %v10550 = vld [vmem:[%s754 + $0x68] sm:$0xff]
      %v10551 = vld [vmem:[%s754 + $0x70] sm:$0xff]
      %v10552 = vld [vmem:[%s754 + $0x78] sm:$0xff]
      %v10553 = vld [vmem:[%s754 + $0x80] sm:$0xff]
      %v10554 = vld [vmem:[%s754 + $0x88] sm:$0xff]
      %v10555 = vld [vmem:[%s754 + $0x90] sm:$0xff]
      %v10556 = vld [vmem:[%s754 + $0x98] sm:$0xff]
      %v10557 = vld [vmem:[%s754 + $0xa0] sm:$0xff]
      %v10558 = vld [vmem:[%s754 + $0xa8] sm:$0xff]
      %v10559 = vld [vmem:[%s754 + $0xb0] sm:$0xff]
      %v10560 = vld [vmem:[%s754 + $0xb8] sm:$0xff]
      %v10561 = vld [vmem:[%s754 + $0xc0] sm:$0xff]
      %v10562 = vld [vmem:[%s754 + $0xc8] sm:$0xff]
      %v10563 = vld [vmem:[%s754 + $0xd0] sm:$0xff]
      %v10564 = vld [vmem:[%s754 + $0xd8] sm:$0xff]
      %v10565 = vld [vmem:[%s754 + $0xe0] sm:$0xff]
      %v10566 = vld [vmem:[%s754 + $0xe8] sm:$0xff]
      %v10567 = vld [vmem:[%s754 + $0xf0] sm:$0xff]
      %v10568 = vld [vmem:[%s754 + $0xf8] sm:$0xff]
      %v10569 = vperm.slane %v9875, 1
      %v10570 = vperm.slane %v9876, 1
      %v10571 = vmul.f32 %v10569, %v10473
      %v10572 = vmul.f32 %v10570, %v10474
      %v10573 = vmul.f32 %v10569, %v10475
      %v10574 = vmul.f32 %v10570, %v10476
      %v10575 = vmul.f32 %v10569, %v10477
      %v10576 = vmul.f32 %v10570, %v10478
      %v10577 = vmul.f32 %v10569, %v10479
      %v10578 = vmul.f32 %v10570, %v10480
      %v10579 = vmul.f32 %v10569, %v10481
      %v10580 = vmul.f32 %v10570, %v10482
      %v10581 = vmul.f32 %v10569, %v10483
      %v10582 = vmul.f32 %v10570, %v10484
      %v10583 = vmul.f32 %v10569, %v10485
      %v10584 = vmul.f32 %v10570, %v10486
      %v10585 = vmul.f32 %v10569, %v10487
      %v10586 = vmul.f32 %v10570, %v10488
      %v10587 = vmul.f32 %v10569, %v10489
      %v10588 = vmul.f32 %v10570, %v10490
      %v10589 = vmul.f32 %v10569, %v10491
      %v10590 = vmul.f32 %v10570, %v10492
      %v10591 = vmul.f32 %v10569, %v10493
      %v10592 = vmul.f32 %v10570, %v10494
      %v10593 = vmul.f32 %v10569, %v10495
      %v10594 = vmul.f32 %v10570, %v10496
      %v10595 = vmul.f32 %v10569, %v10497
      %v10596 = vmul.f32 %v10570, %v10498
      %v10597 = vmul.f32 %v10569, %v10499
      %v10598 = vmul.f32 %v10570, %v10500
      %v10599 = vmul.f32 %v10569, %v10501
      %v10600 = vmul.f32 %v10570, %v10502
      %v10601 = vmul.f32 %v10569, %v10503
      %v10602 = vmul.f32 %v10570, %v10504
      %v10603 = vmul.f32 %v10569, %v10505
      %v10604 = vmul.f32 %v10570, %v10506
      %v10605 = vmul.f32 %v10569, %v10507
      %v10606 = vmul.f32 %v10570, %v10508
      %v10607 = vmul.f32 %v10569, %v10509
      %v10608 = vmul.f32 %v10570, %v10510
      %v10609 = vmul.f32 %v10569, %v10511
      %v10610 = vmul.f32 %v10570, %v10512
      %v10611 = vmul.f32 %v10569, %v10513
      %v10612 = vmul.f32 %v10570, %v10514
      %v10613 = vmul.f32 %v10569, %v10515
      %v10614 = vmul.f32 %v10570, %v10516
      %v10615 = vmul.f32 %v10569, %v10517
      %v10616 = vmul.f32 %v10570, %v10518
      %v10617 = vmul.f32 %v10569, %v10519
      %v10618 = vmul.f32 %v10570, %v10520
      %v10619 = vmul.f32 %v10569, %v10521
      %v10620 = vmul.f32 %v10570, %v10522
      %v10621 = vmul.f32 %v10569, %v10523
      %v10622 = vmul.f32 %v10570, %v10524
      %v10623 = vmul.f32 %v10569, %v10525
      %v10624 = vmul.f32 %v10570, %v10526
      %v10625 = vmul.f32 %v10569, %v10527
      %v10626 = vmul.f32 %v10570, %v10528
      %v10627 = vmul.f32 %v10569, %v10529
      %v10628 = vmul.f32 %v10570, %v10530
      %v10629 = vmul.f32 %v10569, %v10531
      %v10630 = vmul.f32 %v10570, %v10532
      %v10631 = vmul.f32 %v10569, %v10533
      %v10632 = vmul.f32 %v10570, %v10534
      %v10633 = vmul.f32 %v10569, %v10535
      %v10634 = vmul.f32 %v10570, %v10536
      %v10635 = vperm.slane %v9875, 2
      %v10636 = vperm.slane %v9876, 2
      %v10637 = vadd.f32 %v10571, %v10635
      %v10638 = vadd.f32 %v10572, %v10636
      %v10639 = vadd.f32 %v10573, %v10635
      %v10640 = vadd.f32 %v10574, %v10636
      %v10641 = vadd.f32 %v10575, %v10635
      %v10642 = vadd.f32 %v10576, %v10636
      %v10643 = vadd.f32 %v10577, %v10635
      %v10644 = vadd.f32 %v10578, %v10636
      %v10645 = vadd.f32 %v10579, %v10635
      %v10646 = vadd.f32 %v10580, %v10636
      %v10647 = vadd.f32 %v10581, %v10635
      %v10648 = vadd.f32 %v10582, %v10636
      %v10649 = vadd.f32 %v10583, %v10635
      %v10650 = vadd.f32 %v10584, %v10636
      %v10651 = vadd.f32 %v10585, %v10635
      %v10652 = vadd.f32 %v10586, %v10636
      %v10653 = vadd.f32 %v10587, %v10635
      %v10654 = vadd.f32 %v10588, %v10636
      %v10655 = vadd.f32 %v10589, %v10635
      %v10656 = vadd.f32 %v10590, %v10636
      %v10657 = vadd.f32 %v10591, %v10635
      %v10658 = vadd.f32 %v10592, %v10636
      %v10659 = vadd.f32 %v10593, %v10635
      %v10660 = vadd.f32 %v10594, %v10636
      %v10661 = vadd.f32 %v10595, %v10635
      %v10662 = vadd.f32 %v10596, %v10636
      %v10663 = vadd.f32 %v10597, %v10635
      %v10664 = vadd.f32 %v10598, %v10636
      %v10665 = vadd.f32 %v10599, %v10635
      %v10666 = vadd.f32 %v10600, %v10636
      %v10667 = vadd.f32 %v10601, %v10635
      %v10668 = vadd.f32 %v10602, %v10636
      %v10669 = vadd.f32 %v10603, %v10635
      %v10670 = vadd.f32 %v10604, %v10636
      %v10671 = vadd.f32 %v10605, %v10635
      %v10672 = vadd.f32 %v10606, %v10636
      %v10673 = vadd.f32 %v10607, %v10635
      %v10674 = vadd.f32 %v10608, %v10636
      %v10675 = vadd.f32 %v10609, %v10635
      %v10676 = vadd.f32 %v10610, %v10636
      %v10677 = vadd.f32 %v10611, %v10635
      %v10678 = vadd.f32 %v10612, %v10636
      %v10679 = vadd.f32 %v10613, %v10635
      %v10680 = vadd.f32 %v10614, %v10636
      %v10681 = vadd.f32 %v10615, %v10635
      %v10682 = vadd.f32 %v10616, %v10636
      %v10683 = vadd.f32 %v10617, %v10635
      %v10684 = vadd.f32 %v10618, %v10636
      %v10685 = vadd.f32 %v10619, %v10635
      %v10686 = vadd.f32 %v10620, %v10636
      %v10687 = vadd.f32 %v10621, %v10635
      %v10688 = vadd.f32 %v10622, %v10636
      %v10689 = vadd.f32 %v10623, %v10635
      %v10690 = vadd.f32 %v10624, %v10636
      %v10691 = vadd.f32 %v10625, %v10635
      %v10692 = vadd.f32 %v10626, %v10636
      %v10693 = vadd.f32 %v10627, %v10635
      %v10694 = vadd.f32 %v10628, %v10636
      %v10695 = vadd.f32 %v10629, %v10635
      %v10696 = vadd.f32 %v10630, %v10636
      %v10697 = vadd.f32 %v10631, %v10635
      %v10698 = vadd.f32 %v10632, %v10636
      %v10699 = vadd.f32 %v10633, %v10635
      %v10700 = vadd.f32 %v10634, %v10636
      %v10701 = vmul.f32 %v10473, %v10637
      %v10702 = vmul.f32 %v10474, %v10638
      %v10703 = vmul.f32 %v10475, %v10639
      %v10704 = vmul.f32 %v10476, %v10640
      %v10705 = vmul.f32 %v10477, %v10641
      %v10706 = vmul.f32 %v10478, %v10642
      %v10707 = vmul.f32 %v10479, %v10643
      %v10708 = vmul.f32 %v10480, %v10644
      %v10709 = vmul.f32 %v10481, %v10645
      %v10710 = vmul.f32 %v10482, %v10646
      %v10711 = vmul.f32 %v10483, %v10647
      %v10712 = vmul.f32 %v10484, %v10648
      %v10713 = vmul.f32 %v10485, %v10649
      %v10714 = vmul.f32 %v10486, %v10650
      %v10715 = vmul.f32 %v10487, %v10651
      %v10716 = vmul.f32 %v10488, %v10652
      %v10717 = vmul.f32 %v10489, %v10653
      %v10718 = vmul.f32 %v10490, %v10654
      %v10719 = vmul.f32 %v10491, %v10655
      %v10720 = vmul.f32 %v10492, %v10656
      %v10721 = vmul.f32 %v10493, %v10657
      %v10722 = vmul.f32 %v10494, %v10658
      %v10723 = vmul.f32 %v10495, %v10659
      %v10724 = vmul.f32 %v10496, %v10660
      %v10725 = vmul.f32 %v10497, %v10661
      %v10726 = vmul.f32 %v10498, %v10662
      %v10727 = vmul.f32 %v10499, %v10663
      %v10728 = vmul.f32 %v10500, %v10664
      %v10729 = vmul.f32 %v10501, %v10665
      %v10730 = vmul.f32 %v10502, %v10666
      %v10731 = vmul.f32 %v10503, %v10667
      %v10732 = vmul.f32 %v10504, %v10668
      %v10733 = vmul.f32 %v10505, %v10669
      %v10734 = vmul.f32 %v10506, %v10670
      %v10735 = vmul.f32 %v10507, %v10671
      %v10736 = vmul.f32 %v10508, %v10672
      %v10737 = vmul.f32 %v10509, %v10673
      %v10738 = vmul.f32 %v10510, %v10674
      %v10739 = vmul.f32 %v10511, %v10675
      %v10740 = vmul.f32 %v10512, %v10676
      %v10741 = vmul.f32 %v10513, %v10677
      %v10742 = vmul.f32 %v10514, %v10678
      %v10743 = vmul.f32 %v10515, %v10679
      %v10744 = vmul.f32 %v10516, %v10680
      %v10745 = vmul.f32 %v10517, %v10681
      %v10746 = vmul.f32 %v10518, %v10682
      %v10747 = vmul.f32 %v10519, %v10683
      %v10748 = vmul.f32 %v10520, %v10684
      %v10749 = vmul.f32 %v10521, %v10685
      %v10750 = vmul.f32 %v10522, %v10686
      %v10751 = vmul.f32 %v10523, %v10687
      %v10752 = vmul.f32 %v10524, %v10688
      %v10753 = vmul.f32 %v10525, %v10689
      %v10754 = vmul.f32 %v10526, %v10690
      %v10755 = vmul.f32 %v10527, %v10691
      %v10756 = vmul.f32 %v10528, %v10692
      %v10757 = vmul.f32 %v10529, %v10693
      %v10758 = vmul.f32 %v10530, %v10694
      %v10759 = vmul.f32 %v10531, %v10695
      %v10760 = vmul.f32 %v10532, %v10696
      %v10761 = vmul.f32 %v10533, %v10697
      %v10762 = vmul.f32 %v10534, %v10698
      %v10763 = vmul.f32 %v10535, %v10699
      %v10764 = vmul.f32 %v10536, %v10700
      %10766 = vset.pattern.permute.xlu0 0
      %10767 = vperm.xlu0 %10766, %v10537
      %v10768 = vpop.permute.xlu0 %10767
      %10771 = vset.pattern.permute.xlu0 0
      %10772 = vperm.xlu0 %10771, %v10538
      %v10773 = vpop.permute.xlu0 %10772
      %10776 = vset.pattern.permute.xlu0 0
      %10777 = vperm.xlu0 %10776, %v10539
      %v10778 = vpop.permute.xlu0 %10777
      %10781 = vset.pattern.permute.xlu0 0
      %10782 = vperm.xlu0 %10781, %v10540
      %v10783 = vpop.permute.xlu0 %10782
      %10786 = vset.pattern.permute.xlu0 0
      %10787 = vperm.xlu0 %10786, %v10541
      %v10788 = vpop.permute.xlu0 %10787
      %10791 = vset.pattern.permute.xlu0 0
      %10792 = vperm.xlu0 %10791, %v10542
      %v10793 = vpop.permute.xlu0 %10792
      %10796 = vset.pattern.permute.xlu0 0
      %10797 = vperm.xlu0 %10796, %v10543
      %v10798 = vpop.permute.xlu0 %10797
      %10801 = vset.pattern.permute.xlu0 0
      %10802 = vperm.xlu0 %10801, %v10544
      %v10803 = vpop.permute.xlu0 %10802
      %10806 = vset.pattern.permute.xlu0 0
      %10807 = vperm.xlu0 %10806, %v10545
      %v10808 = vpop.permute.xlu0 %10807
      %10811 = vset.pattern.permute.xlu0 0
      %10812 = vperm.xlu0 %10811, %v10546
      %v10813 = vpop.permute.xlu0 %10812
      %10816 = vset.pattern.permute.xlu0 0
      %10817 = vperm.xlu0 %10816, %v10547
      %v10818 = vpop.permute.xlu0 %10817
      %10821 = vset.pattern.permute.xlu0 0
      %10822 = vperm.xlu0 %10821, %v10548
      %v10823 = vpop.permute.xlu0 %10822
      %10826 = vset.pattern.permute.xlu0 0
      %10827 = vperm.xlu0 %10826, %v10549
      %v10828 = vpop.permute.xlu0 %10827
      %10831 = vset.pattern.permute.xlu0 0
      %10832 = vperm.xlu0 %10831, %v10550
      %v10833 = vpop.permute.xlu0 %10832
      %10836 = vset.pattern.permute.xlu0 0
      %10837 = vperm.xlu0 %10836, %v10551
      %v10838 = vpop.permute.xlu0 %10837
      %10841 = vset.pattern.permute.xlu0 0
      %10842 = vperm.xlu0 %10841, %v10552
      %v10843 = vpop.permute.xlu0 %10842
      %10846 = vset.pattern.permute.xlu0 0
      %10847 = vperm.xlu0 %10846, %v10553
      %v10848 = vpop.permute.xlu0 %10847
      %10851 = vset.pattern.permute.xlu0 0
      %10852 = vperm.xlu0 %10851, %v10554
      %v10853 = vpop.permute.xlu0 %10852
      %10856 = vset.pattern.permute.xlu0 0
      %10857 = vperm.xlu0 %10856, %v10555
      %v10858 = vpop.permute.xlu0 %10857
      %10861 = vset.pattern.permute.xlu0 0
      %10862 = vperm.xlu0 %10861, %v10556
      %v10863 = vpop.permute.xlu0 %10862
      %10866 = vset.pattern.permute.xlu0 0
      %10867 = vperm.xlu0 %10866, %v10557
      %v10868 = vpop.permute.xlu0 %10867
      %10871 = vset.pattern.permute.xlu0 0
      %10872 = vperm.xlu0 %10871, %v10558
      %v10873 = vpop.permute.xlu0 %10872
      %10876 = vset.pattern.permute.xlu0 0
      %10877 = vperm.xlu0 %10876, %v10559
      %v10878 = vpop.permute.xlu0 %10877
      %10881 = vset.pattern.permute.xlu0 0
      %10882 = vperm.xlu0 %10881, %v10560
      %v10883 = vpop.permute.xlu0 %10882
      %10886 = vset.pattern.permute.xlu0 0
      %10887 = vperm.xlu0 %10886, %v10561
      %v10888 = vpop.permute.xlu0 %10887
      %10891 = vset.pattern.permute.xlu0 0
      %10892 = vperm.xlu0 %10891, %v10562
      %v10893 = vpop.permute.xlu0 %10892
      %10896 = vset.pattern.permute.xlu0 0
      %10897 = vperm.xlu0 %10896, %v10563
      %v10898 = vpop.permute.xlu0 %10897
      %10901 = vset.pattern.permute.xlu0 0
      %10902 = vperm.xlu0 %10901, %v10564
      %v10903 = vpop.permute.xlu0 %10902
      %10906 = vset.pattern.permute.xlu0 0
      %10907 = vperm.xlu0 %10906, %v10565
      %v10908 = vpop.permute.xlu0 %10907
      %10911 = vset.pattern.permute.xlu0 0
      %10912 = vperm.xlu0 %10911, %v10566
      %v10913 = vpop.permute.xlu0 %10912
      %10916 = vset.pattern.permute.xlu0 0
      %10917 = vperm.xlu0 %10916, %v10567
      %v10918 = vpop.permute.xlu0 %10917
      %10921 = vset.pattern.permute.xlu0 0
      %10922 = vperm.xlu0 %10921, %v10568
      %v10923 = vpop.permute.xlu0 %10922
      %v10925 = vperm.slane %v9875, 3
      %v10926 = vperm.slane %v9876, 3
      %v10927 = vmul.f32 %v10768, %v10925
      %v10928 = vmul.f32 %v10768, %v10926
      %v10929 = vmul.f32 %v10773, %v10925
      %v10930 = vmul.f32 %v10773, %v10926
      %v10931 = vmul.f32 %v10778, %v10925
      %v10932 = vmul.f32 %v10778, %v10926
      %v10933 = vmul.f32 %v10783, %v10925
      %v10934 = vmul.f32 %v10783, %v10926
      %v10935 = vmul.f32 %v10788, %v10925
      %v10936 = vmul.f32 %v10788, %v10926
      %v10937 = vmul.f32 %v10793, %v10925
      %v10938 = vmul.f32 %v10793, %v10926
      %v10939 = vmul.f32 %v10798, %v10925
      %v10940 = vmul.f32 %v10798, %v10926
      %v10941 = vmul.f32 %v10803, %v10925
      %v10942 = vmul.f32 %v10803, %v10926
      %v10943 = vmul.f32 %v10808, %v10925
      %v10944 = vmul.f32 %v10808, %v10926
      %v10945 = vmul.f32 %v10813, %v10925
      %v10946 = vmul.f32 %v10813, %v10926
      %v10947 = vmul.f32 %v10818, %v10925
      %v10948 = vmul.f32 %v10818, %v10926
      %v10949 = vmul.f32 %v10823, %v10925
      %v10950 = vmul.f32 %v10823, %v10926
      %v10951 = vmul.f32 %v10828, %v10925
      %v10952 = vmul.f32 %v10828, %v10926
      %v10953 = vmul.f32 %v10833, %v10925
      %v10954 = vmul.f32 %v10833, %v10926
      %v10955 = vmul.f32 %v10838, %v10925
      %v10956 = vmul.f32 %v10838, %v10926
      %v10957 = vmul.f32 %v10843, %v10925
      %v10958 = vmul.f32 %v10843, %v10926
      %v10959 = vmul.f32 %v10848, %v10925
      %v10960 = vmul.f32 %v10848, %v10926
      %v10961 = vmul.f32 %v10853, %v10925
      %v10962 = vmul.f32 %v10853, %v10926
      %v10963 = vmul.f32 %v10858, %v10925
      %v10964 = vmul.f32 %v10858, %v10926
      %v10965 = vmul.f32 %v10863, %v10925
      %v10966 = vmul.f32 %v10863, %v10926
      %v10967 = vmul.f32 %v10868, %v10925
      %v10968 = vmul.f32 %v10868, %v10926
      %v10969 = vmul.f32 %v10873, %v10925
      %v10970 = vmul.f32 %v10873, %v10926
      %v10971 = vmul.f32 %v10878, %v10925
      %v10972 = vmul.f32 %v10878, %v10926
      %v10973 = vmul.f32 %v10883, %v10925
      %v10974 = vmul.f32 %v10883, %v10926
      %v10975 = vmul.f32 %v10888, %v10925
      %v10976 = vmul.f32 %v10888, %v10926
      %v10977 = vmul.f32 %v10893, %v10925
      %v10978 = vmul.f32 %v10893, %v10926
      %v10979 = vmul.f32 %v10898, %v10925
      %v10980 = vmul.f32 %v10898, %v10926
      %v10981 = vmul.f32 %v10903, %v10925
      %v10982 = vmul.f32 %v10903, %v10926
      %v10983 = vmul.f32 %v10908, %v10925
      %v10984 = vmul.f32 %v10908, %v10926
      %v10985 = vmul.f32 %v10913, %v10925
      %v10986 = vmul.f32 %v10913, %v10926
      %v10987 = vmul.f32 %v10918, %v10925
      %v10988 = vmul.f32 %v10918, %v10926
      %v10989 = vmul.f32 %v10923, %v10925
      %v10990 = vmul.f32 %v10923, %v10926
      %v10991 = vadd.f32 %v10701, %v10927
      %v10992 = vadd.f32 %v10702, %v10928
      %v10993 = vadd.f32 %v10703, %v10929
      %v10994 = vadd.f32 %v10704, %v10930
      %v10995 = vadd.f32 %v10705, %v10931
      %v10996 = vadd.f32 %v10706, %v10932
      %v10997 = vadd.f32 %v10707, %v10933
      %v10998 = vadd.f32 %v10708, %v10934
      %v10999 = vadd.f32 %v10709, %v10935
      %v11000 = vadd.f32 %v10710, %v10936
      %v11001 = vadd.f32 %v10711, %v10937
      %v11002 = vadd.f32 %v10712, %v10938
      %v11003 = vadd.f32 %v10713, %v10939
      %v11004 = vadd.f32 %v10714, %v10940
      %v11005 = vadd.f32 %v10715, %v10941
      %v11006 = vadd.f32 %v10716, %v10942
      %v11007 = vadd.f32 %v10717, %v10943
      %v11008 = vadd.f32 %v10718, %v10944
      %v11009 = vadd.f32 %v10719, %v10945
      %v11010 = vadd.f32 %v10720, %v10946
      %v11011 = vadd.f32 %v10721, %v10947
      %v11012 = vadd.f32 %v10722, %v10948
      %v11013 = vadd.f32 %v10723, %v10949
      %v11014 = vadd.f32 %v10724, %v10950
      %v11015 = vadd.f32 %v10725, %v10951
      %v11016 = vadd.f32 %v10726, %v10952
      %v11017 = vadd.f32 %v10727, %v10953
      %v11018 = vadd.f32 %v10728, %v10954
      %v11019 = vadd.f32 %v10729, %v10955
      %v11020 = vadd.f32 %v10730, %v10956
      %v11021 = vadd.f32 %v10731, %v10957
      %v11022 = vadd.f32 %v10732, %v10958
      %v11023 = vadd.f32 %v10733, %v10959
      %v11024 = vadd.f32 %v10734, %v10960
      %v11025 = vadd.f32 %v10735, %v10961
      %v11026 = vadd.f32 %v10736, %v10962
      %v11027 = vadd.f32 %v10737, %v10963
      %v11028 = vadd.f32 %v10738, %v10964
      %v11029 = vadd.f32 %v10739, %v10965
      %v11030 = vadd.f32 %v10740, %v10966
      %v11031 = vadd.f32 %v10741, %v10967
      %v11032 = vadd.f32 %v10742, %v10968
      %v11033 = vadd.f32 %v10743, %v10969
      %v11034 = vadd.f32 %v10744, %v10970
      %v11035 = vadd.f32 %v10745, %v10971
      %v11036 = vadd.f32 %v10746, %v10972
      %v11037 = vadd.f32 %v10747, %v10973
      %v11038 = vadd.f32 %v10748, %v10974
      %v11039 = vadd.f32 %v10749, %v10975
      %v11040 = vadd.f32 %v10750, %v10976
      %v11041 = vadd.f32 %v10751, %v10977
      %v11042 = vadd.f32 %v10752, %v10978
      %v11043 = vadd.f32 %v10753, %v10979
      %v11044 = vadd.f32 %v10754, %v10980
      %v11045 = vadd.f32 %v10755, %v10981
      %v11046 = vadd.f32 %v10756, %v10982
      %v11047 = vadd.f32 %v10757, %v10983
      %v11048 = vadd.f32 %v10758, %v10984
      %v11049 = vadd.f32 %v10759, %v10985
      %v11050 = vadd.f32 %v10760, %v10986
      %v11051 = vadd.f32 %v10761, %v10987
      %v11052 = vadd.f32 %v10762, %v10988
      %v11053 = vadd.f32 %v10763, %v10989
      %v11054 = vadd.f32 %v10764, %v10990
      %11055 = vset.pattern.permute.xlu0 1
      %11056 = vperm.xlu0 %11055, %v10537
      %v11057 = vpop.permute.xlu0 %11056
      %11059 = vset.pattern.permute.xlu0 1
      %11060 = vperm.xlu0 %11059, %v10538
      %v11061 = vpop.permute.xlu0 %11060
      %11063 = vset.pattern.permute.xlu0 1
      %11064 = vperm.xlu0 %11063, %v10539
      %v11065 = vpop.permute.xlu0 %11064
      %11067 = vset.pattern.permute.xlu0 1
      %11068 = vperm.xlu0 %11067, %v10540
      %v11069 = vpop.permute.xlu0 %11068
      %11071 = vset.pattern.permute.xlu0 1
      %11072 = vperm.xlu0 %11071, %v10541
      %v11073 = vpop.permute.xlu0 %11072
      %11075 = vset.pattern.permute.xlu0 1
      %11076 = vperm.xlu0 %11075, %v10542
      %v11077 = vpop.permute.xlu0 %11076
      %11079 = vset.pattern.permute.xlu0 1
      %11080 = vperm.xlu0 %11079, %v10543
      %v11081 = vpop.permute.xlu0 %11080
      %11083 = vset.pattern.permute.xlu0 1
      %11084 = vperm.xlu0 %11083, %v10544
      %v11085 = vpop.permute.xlu0 %11084
      %11087 = vset.pattern.permute.xlu0 1
      %11088 = vperm.xlu0 %11087, %v10545
      %v11089 = vpop.permute.xlu0 %11088
      %11091 = vset.pattern.permute.xlu0 1
      %11092 = vperm.xlu0 %11091, %v10546
      %v11093 = vpop.permute.xlu0 %11092
      %11095 = vset.pattern.permute.xlu0 1
      %11096 = vperm.xlu0 %11095, %v10547
      %v11097 = vpop.permute.xlu0 %11096
      %11099 = vset.pattern.permute.xlu0 1
      %11100 = vperm.xlu0 %11099, %v10548
      %v11101 = vpop.permute.xlu0 %11100
      %11103 = vset.pattern.permute.xlu0 1
      %11104 = vperm.xlu0 %11103, %v10549
      %v11105 = vpop.permute.xlu0 %11104
      %11107 = vset.pattern.permute.xlu0 1
      %11108 = vperm.xlu0 %11107, %v10550
      %v11109 = vpop.permute.xlu0 %11108
      %11111 = vset.pattern.permute.xlu0 1
      %11112 = vperm.xlu0 %11111, %v10551
      %v11113 = vpop.permute.xlu0 %11112
      %11115 = vset.pattern.permute.xlu0 1
      %11116 = vperm.xlu0 %11115, %v10552
      %v11117 = vpop.permute.xlu0 %11116
      %11119 = vset.pattern.permute.xlu0 1
      %11120 = vperm.xlu0 %11119, %v10553
      %v11121 = vpop.permute.xlu0 %11120
      %11123 = vset.pattern.permute.xlu0 1
      %11124 = vperm.xlu0 %11123, %v10554
      %v11125 = vpop.permute.xlu0 %11124
      %11127 = vset.pattern.permute.xlu0 1
      %11128 = vperm.xlu0 %11127, %v10555
      %v11129 = vpop.permute.xlu0 %11128
      %11131 = vset.pattern.permute.xlu0 1
      %11132 = vperm.xlu0 %11131, %v10556
      %v11133 = vpop.permute.xlu0 %11132
      %11135 = vset.pattern.permute.xlu0 1
      %11136 = vperm.xlu0 %11135, %v10557
      %v11137 = vpop.permute.xlu0 %11136
      %11139 = vset.pattern.permute.xlu0 1
      %11140 = vperm.xlu0 %11139, %v10558
      %v11141 = vpop.permute.xlu0 %11140
      %11143 = vset.pattern.permute.xlu0 1
      %11144 = vperm.xlu0 %11143, %v10559
      %v11145 = vpop.permute.xlu0 %11144
      %11147 = vset.pattern.permute.xlu0 1
      %11148 = vperm.xlu0 %11147, %v10560
      %v11149 = vpop.permute.xlu0 %11148
      %11151 = vset.pattern.permute.xlu0 1
      %11152 = vperm.xlu0 %11151, %v10561
      %v11153 = vpop.permute.xlu0 %11152
      %11155 = vset.pattern.permute.xlu0 1
      %11156 = vperm.xlu0 %11155, %v10562
      %v11157 = vpop.permute.xlu0 %11156
      %11159 = vset.pattern.permute.xlu0 1
      %11160 = vperm.xlu0 %11159, %v10563
      %v11161 = vpop.permute.xlu0 %11160
      %11163 = vset.pattern.permute.xlu0 1
      %11164 = vperm.xlu0 %11163, %v10564
      %v11165 = vpop.permute.xlu0 %11164
      %11167 = vset.pattern.permute.xlu0 1
      %11168 = vperm.xlu0 %11167, %v10565
      %v11169 = vpop.permute.xlu0 %11168
      %11171 = vset.pattern.permute.xlu0 1
      %11172 = vperm.xlu0 %11171, %v10566
      %v11173 = vpop.permute.xlu0 %11172
      %11175 = vset.pattern.permute.xlu0 1
      %11176 = vperm.xlu0 %11175, %v10567
      %v11177 = vpop.permute.xlu0 %11176
      %11179 = vset.pattern.permute.xlu0 1
      %11180 = vperm.xlu0 %11179, %v10568
      %v11181 = vpop.permute.xlu0 %11180
      %v11183 = vperm.slane %v9875, 4
      %v11184 = vperm.slane %v9876, 4
      %v11185 = vmul.f32 %v11057, %v11183
      %v11186 = vmul.f32 %v11057, %v11184
      %v11187 = vmul.f32 %v11061, %v11183
      %v11188 = vmul.f32 %v11061, %v11184
      %v11189 = vmul.f32 %v11065, %v11183
      %v11190 = vmul.f32 %v11065, %v11184
      %v11191 = vmul.f32 %v11069, %v11183
      %v11192 = vmul.f32 %v11069, %v11184
      %v11193 = vmul.f32 %v11073, %v11183
      %v11194 = vmul.f32 %v11073, %v11184
      %v11195 = vmul.f32 %v11077, %v11183
      %v11196 = vmul.f32 %v11077, %v11184
      %v11197 = vmul.f32 %v11081, %v11183
      %v11198 = vmul.f32 %v11081, %v11184
      %v11199 = vmul.f32 %v11085, %v11183
      %v11200 = vmul.f32 %v11085, %v11184
      %v11201 = vmul.f32 %v11089, %v11183
      %v11202 = vmul.f32 %v11089, %v11184
      %v11203 = vmul.f32 %v11093, %v11183
      %v11204 = vmul.f32 %v11093, %v11184
      %v11205 = vmul.f32 %v11097, %v11183
      %v11206 = vmul.f32 %v11097, %v11184
      %v11207 = vmul.f32 %v11101, %v11183
      %v11208 = vmul.f32 %v11101, %v11184
      %v11209 = vmul.f32 %v11105, %v11183
      %v11210 = vmul.f32 %v11105, %v11184
      %v11211 = vmul.f32 %v11109, %v11183
      %v11212 = vmul.f32 %v11109, %v11184
      %v11213 = vmul.f32 %v11113, %v11183
      %v11214 = vmul.f32 %v11113, %v11184
      %v11215 = vmul.f32 %v11117, %v11183
      %v11216 = vmul.f32 %v11117, %v11184
      %v11217 = vmul.f32 %v11121, %v11183
      %v11218 = vmul.f32 %v11121, %v11184
      %v11219 = vmul.f32 %v11125, %v11183
      %v11220 = vmul.f32 %v11125, %v11184
      %v11221 = vmul.f32 %v11129, %v11183
      %v11222 = vmul.f32 %v11129, %v11184
      %v11223 = vmul.f32 %v11133, %v11183
      %v11224 = vmul.f32 %v11133, %v11184
      %v11225 = vmul.f32 %v11137, %v11183
      %v11226 = vmul.f32 %v11137, %v11184
      %v11227 = vmul.f32 %v11141, %v11183
      %v11228 = vmul.f32 %v11141, %v11184
      %v11229 = vmul.f32 %v11145, %v11183
      %v11230 = vmul.f32 %v11145, %v11184
      %v11231 = vmul.f32 %v11149, %v11183
      %v11232 = vmul.f32 %v11149, %v11184
      %v11233 = vmul.f32 %v11153, %v11183
      %v11234 = vmul.f32 %v11153, %v11184
      %v11235 = vmul.f32 %v11157, %v11183
      %v11236 = vmul.f32 %v11157, %v11184
      %v11237 = vmul.f32 %v11161, %v11183
      %v11238 = vmul.f32 %v11161, %v11184
      %v11239 = vmul.f32 %v11165, %v11183
      %v11240 = vmul.f32 %v11165, %v11184
      %v11241 = vmul.f32 %v11169, %v11183
      %v11242 = vmul.f32 %v11169, %v11184
      %v11243 = vmul.f32 %v11173, %v11183
      %v11244 = vmul.f32 %v11173, %v11184
      %v11245 = vmul.f32 %v11177, %v11183
      %v11246 = vmul.f32 %v11177, %v11184
      %v11247 = vmul.f32 %v11181, %v11183
      %v11248 = vmul.f32 %v11181, %v11184
      %v11249 = vadd.f32 %v10991, %v11185
      %v11250 = vadd.f32 %v10992, %v11186
      %v11251 = vadd.f32 %v10993, %v11187
      %v11252 = vadd.f32 %v10994, %v11188
      %v11253 = vadd.f32 %v10995, %v11189
      %v11254 = vadd.f32 %v10996, %v11190
      %v11255 = vadd.f32 %v10997, %v11191
      %v11256 = vadd.f32 %v10998, %v11192
      %v11257 = vadd.f32 %v10999, %v11193
      %v11258 = vadd.f32 %v11000, %v11194
      %v11259 = vadd.f32 %v11001, %v11195
      %v11260 = vadd.f32 %v11002, %v11196
      %v11261 = vadd.f32 %v11003, %v11197
      %v11262 = vadd.f32 %v11004, %v11198
      %v11263 = vadd.f32 %v11005, %v11199
      %v11264 = vadd.f32 %v11006, %v11200
      %v11265 = vadd.f32 %v11007, %v11201
      %v11266 = vadd.f32 %v11008, %v11202
      %v11267 = vadd.f32 %v11009, %v11203
      %v11268 = vadd.f32 %v11010, %v11204
      %v11269 = vadd.f32 %v11011, %v11205
      %v11270 = vadd.f32 %v11012, %v11206
      %v11271 = vadd.f32 %v11013, %v11207
      %v11272 = vadd.f32 %v11014, %v11208
      %v11273 = vadd.f32 %v11015, %v11209
      %v11274 = vadd.f32 %v11016, %v11210
      %v11275 = vadd.f32 %v11017, %v11211
      %v11276 = vadd.f32 %v11018, %v11212
      %v11277 = vadd.f32 %v11019, %v11213
      %v11278 = vadd.f32 %v11020, %v11214
      %v11279 = vadd.f32 %v11021, %v11215
      %v11280 = vadd.f32 %v11022, %v11216
      %v11281 = vadd.f32 %v11023, %v11217
      %v11282 = vadd.f32 %v11024, %v11218
      %v11283 = vadd.f32 %v11025, %v11219
      %v11284 = vadd.f32 %v11026, %v11220
      %v11285 = vadd.f32 %v11027, %v11221
      %v11286 = vadd.f32 %v11028, %v11222
      %v11287 = vadd.f32 %v11029, %v11223
      %v11288 = vadd.f32 %v11030, %v11224
      %v11289 = vadd.f32 %v11031, %v11225
      %v11290 = vadd.f32 %v11032, %v11226
      %v11291 = vadd.f32 %v11033, %v11227
      %v11292 = vadd.f32 %v11034, %v11228
      %v11293 = vadd.f32 %v11035, %v11229
      %v11294 = vadd.f32 %v11036, %v11230
      %v11295 = vadd.f32 %v11037, %v11231
      %v11296 = vadd.f32 %v11038, %v11232
      %v11297 = vadd.f32 %v11039, %v11233
      %v11298 = vadd.f32 %v11040, %v11234
      %v11299 = vadd.f32 %v11041, %v11235
      %v11300 = vadd.f32 %v11042, %v11236
      %v11301 = vadd.f32 %v11043, %v11237
      %v11302 = vadd.f32 %v11044, %v11238
      %v11303 = vadd.f32 %v11045, %v11239
      %v11304 = vadd.f32 %v11046, %v11240
      %v11305 = vadd.f32 %v11047, %v11241
      %v11306 = vadd.f32 %v11048, %v11242
      %v11307 = vadd.f32 %v11049, %v11243
      %v11308 = vadd.f32 %v11050, %v11244
      %v11309 = vadd.f32 %v11051, %v11245
      %v11310 = vadd.f32 %v11052, %v11246
      %v11311 = vadd.f32 %v11053, %v11247
      %v11312 = vadd.f32 %v11054, %v11248
      %v11313 = vperm.slane %v9875, 5
      %v11314 = vperm.slane %v9876, 5
      %v11315 = vadd.f32 %v11249, %v11313
      %v11316 = vadd.f32 %v11250, %v11314
      %v11317 = vadd.f32 %v11251, %v11313
      %v11318 = vadd.f32 %v11252, %v11314
      %v11319 = vadd.f32 %v11253, %v11313
      %v11320 = vadd.f32 %v11254, %v11314
      %v11321 = vadd.f32 %v11255, %v11313
      %v11322 = vadd.f32 %v11256, %v11314
      %v11323 = vadd.f32 %v11257, %v11313
      %v11324 = vadd.f32 %v11258, %v11314
      %v11325 = vadd.f32 %v11259, %v11313
      %v11326 = vadd.f32 %v11260, %v11314
      %v11327 = vadd.f32 %v11261, %v11313
      %v11328 = vadd.f32 %v11262, %v11314
      %v11329 = vadd.f32 %v11263, %v11313
      %v11330 = vadd.f32 %v11264, %v11314
      %v11331 = vadd.f32 %v11265, %v11313
      %v11332 = vadd.f32 %v11266, %v11314
      %v11333 = vadd.f32 %v11267, %v11313
      %v11334 = vadd.f32 %v11268, %v11314
      %v11335 = vadd.f32 %v11269, %v11313
      %v11336 = vadd.f32 %v11270, %v11314
      %v11337 = vadd.f32 %v11271, %v11313
      %v11338 = vadd.f32 %v11272, %v11314
      %v11339 = vadd.f32 %v11273, %v11313
      %v11340 = vadd.f32 %v11274, %v11314
      %v11341 = vadd.f32 %v11275, %v11313
      %v11342 = vadd.f32 %v11276, %v11314
      %v11343 = vadd.f32 %v11277, %v11313
      %v11344 = vadd.f32 %v11278, %v11314
      %v11345 = vadd.f32 %v11279, %v11313
      %v11346 = vadd.f32 %v11280, %v11314
      %v11347 = vadd.f32 %v11281, %v11313
      %v11348 = vadd.f32 %v11282, %v11314
      %v11349 = vadd.f32 %v11283, %v11313
      %v11350 = vadd.f32 %v11284, %v11314
      %v11351 = vadd.f32 %v11285, %v11313
      %v11352 = vadd.f32 %v11286, %v11314
      %v11353 = vadd.f32 %v11287, %v11313
      %v11354 = vadd.f32 %v11288, %v11314
      %v11355 = vadd.f32 %v11289, %v11313
      %v11356 = vadd.f32 %v11290, %v11314
      %v11357 = vadd.f32 %v11291, %v11313
      %v11358 = vadd.f32 %v11292, %v11314
      %v11359 = vadd.f32 %v11293, %v11313
      %v11360 = vadd.f32 %v11294, %v11314
      %v11361 = vadd.f32 %v11295, %v11313
      %v11362 = vadd.f32 %v11296, %v11314
      %v11363 = vadd.f32 %v11297, %v11313
      %v11364 = vadd.f32 %v11298, %v11314
      %v11365 = vadd.f32 %v11299, %v11313
      %v11366 = vadd.f32 %v11300, %v11314
      %v11367 = vadd.f32 %v11301, %v11313
      %v11368 = vadd.f32 %v11302, %v11314
      %v11369 = vadd.f32 %v11303, %v11313
      %v11370 = vadd.f32 %v11304, %v11314
      %v11371 = vadd.f32 %v11305, %v11313
      %v11372 = vadd.f32 %v11306, %v11314
      %v11373 = vadd.f32 %v11307, %v11313
      %v11374 = vadd.f32 %v11308, %v11314
      %v11375 = vadd.f32 %v11309, %v11313
      %v11376 = vadd.f32 %v11310, %v11314
      %v11377 = vadd.f32 %v11311, %v11313
      %v11378 = vadd.f32 %v11312, %v11314
      %11379 = vst [vmem:[%s788] sm:$0xff] %v11315
      %11380 = vst [vmem:[%s788 + $0x8] sm:$0xff] %v11316
      %11381 = vst [vmem:[%s788 + $0x10] sm:$0xff] %v11317
      %11382 = vst [vmem:[%s788 + $0x18] sm:$0xff] %v11318
      %11383 = vst [vmem:[%s788 + $0x20] sm:$0xff] %v11319
      %11384 = vst [vmem:[%s788 + $0x28] sm:$0xff] %v11320
      %11385 = vst [vmem:[%s788 + $0x30] sm:$0xff] %v11321
      %11386 = vst [vmem:[%s788 + $0x38] sm:$0xff] %v11322
      %11387 = vst [vmem:[%s788 + $0x40] sm:$0xff] %v11323
      %11388 = vst [vmem:[%s788 + $0x48] sm:$0xff] %v11324
      %11389 = vst [vmem:[%s788 + $0x50] sm:$0xff] %v11325
      %11390 = vst [vmem:[%s788 + $0x58] sm:$0xff] %v11326
      %11391 = vst [vmem:[%s788 + $0x60] sm:$0xff] %v11327
      %11392 = vst [vmem:[%s788 + $0x68] sm:$0xff] %v11328
      %11393 = vst [vmem:[%s788 + $0x70] sm:$0xff] %v11329
      %11394 = vst [vmem:[%s788 + $0x78] sm:$0xff] %v11330
      %11395 = vst [vmem:[%s788 + $0x80] sm:$0xff] %v11331
      %11396 = vst [vmem:[%s788 + $0x88] sm:$0xff] %v11332
      %11397 = vst [vmem:[%s788 + $0x90] sm:$0xff] %v11333
      %11398 = vst [vmem:[%s788 + $0x98] sm:$0xff] %v11334
      %11399 = vst [vmem:[%s788 + $0xa0] sm:$0xff] %v11335
      %11400 = vst [vmem:[%s788 + $0xa8] sm:$0xff] %v11336
      %11401 = vst [vmem:[%s788 + $0xb0] sm:$0xff] %v11337
      %11402 = vst [vmem:[%s788 + $0xb8] sm:$0xff] %v11338
      %11403 = vst [vmem:[%s788 + $0xc0] sm:$0xff] %v11339
      %11404 = vst [vmem:[%s788 + $0xc8] sm:$0xff] %v11340
      %11405 = vst [vmem:[%s788 + $0xd0] sm:$0xff] %v11341
      %11406 = vst [vmem:[%s788 + $0xd8] sm:$0xff] %v11342
      %11407 = vst [vmem:[%s788 + $0xe0] sm:$0xff] %v11343
      %11408 = vst [vmem:[%s788 + $0xe8] sm:$0xff] %v11344
      %11409 = vst [vmem:[%s788 + $0xf0] sm:$0xff] %v11345
      %11410 = vst [vmem:[%s788 + $0xf8] sm:$0xff] %v11346
      %11411 = vst [vmem:[%s788 + $0x100] sm:$0xff] %v11347
      %11412 = vst [vmem:[%s788 + $0x108] sm:$0xff] %v11348
      %11413 = vst [vmem:[%s788 + $0x110] sm:$0xff] %v11349
      %11414 = vst [vmem:[%s788 + $0x118] sm:$0xff] %v11350
      %11415 = vst [vmem:[%s788 + $0x120] sm:$0xff] %v11351
      %11416 = vst [vmem:[%s788 + $0x128] sm:$0xff] %v11352
      %11417 = vst [vmem:[%s788 + $0x130] sm:$0xff] %v11353
      %11418 = vst [vmem:[%s788 + $0x138] sm:$0xff] %v11354
      %11419 = vst [vmem:[%s788 + $0x140] sm:$0xff] %v11355
      %11420 = vst [vmem:[%s788 + $0x148] sm:$0xff] %v11356
      %11421 = vst [vmem:[%s788 + $0x150] sm:$0xff] %v11357
      %11422 = vst [vmem:[%s788 + $0x158] sm:$0xff] %v11358
      %11423 = vst [vmem:[%s788 + $0x160] sm:$0xff] %v11359
      %11424 = vst [vmem:[%s788 + $0x168] sm:$0xff] %v11360
      %11425 = vst [vmem:[%s788 + $0x170] sm:$0xff] %v11361
      %11426 = vst [vmem:[%s788 + $0x178] sm:$0xff] %v11362
      %11427 = vst [vmem:[%s788 + $0x180] sm:$0xff] %v11363
      %11428 = vst [vmem:[%s788 + $0x188] sm:$0xff] %v11364
      %11429 = vst [vmem:[%s788 + $0x190] sm:$0xff] %v11365
      %11430 = vst [vmem:[%s788 + $0x198] sm:$0xff] %v11366
      %11431 = vst [vmem:[%s788 + $0x1a0] sm:$0xff] %v11367
      %11432 = vst [vmem:[%s788 + $0x1a8] sm:$0xff] %v11368
      %11433 = vst [vmem:[%s788 + $0x1b0] sm:$0xff] %v11369
      %11434 = vst [vmem:[%s788 + $0x1b8] sm:$0xff] %v11370
      %11435 = vst [vmem:[%s788 + $0x1c0] sm:$0xff] %v11371
      %11436 = vst [vmem:[%s788 + $0x1c8] sm:$0xff] %v11372
      %11437 = vst [vmem:[%s788 + $0x1d0] sm:$0xff] %v11373
      %11438 = vst [vmem:[%s788 + $0x1d8] sm:$0xff] %v11374
      %11439 = vst [vmem:[%s788 + $0x1e0] sm:$0xff] %v11375
      %11440 = vst [vmem:[%s788 + $0x1e8] sm:$0xff] %v11376
      %11441 = vst [vmem:[%s788 + $0x1f0] sm:$0xff] %v11377
      %11442 = vst [vmem:[%s788 + $0x1f8] sm:$0xff] %v11378
      %v11443 = vld [vmem:[%s14] sm:$0xff]
      %v11444 = vld [vmem:[%s14 + $0x8] sm:$0xff]
      %v11445 = vld [vmem:[%s13] sm:$0xff]
      %v11446 = vld [vmem:[%s13 + $0x8] sm:$0xff]
      %v11447 = vld [vmem:[%s13 + $0x10] sm:$0xff]
      %v11448 = vld [vmem:[%s13 + $0x18] sm:$0xff]
      %v11449 = vld [vmem:[%s13 + $0x20] sm:$0xff]
      %v11450 = vld [vmem:[%s13 + $0x28] sm:$0xff]
      %v11451 = vld [vmem:[%s13 + $0x30] sm:$0xff]
      %v11452 = vld [vmem:[%s13 + $0x38] sm:$0xff]
      %v11453 = vld [vmem:[%s13 + $0x40] sm:$0xff]
      %v11454 = vld [vmem:[%s13 + $0x48] sm:$0xff]
      %v11455 = vld [vmem:[%s13 + $0x50] sm:$0xff]
      %v11456 = vld [vmem:[%s13 + $0x58] sm:$0xff]
      %v11457 = vld [vmem:[%s13 + $0x60] sm:$0xff]
      %v11458 = vld [vmem:[%s13 + $0x68] sm:$0xff]
      %v11459 = vld [vmem:[%s13 + $0x70] sm:$0xff]
      %v11460 = vld [vmem:[%s13 + $0x78] sm:$0xff]
      %v11461 = vperm.slane %v11443, 0
      %v11462 = vperm.slane %v11444, 0
      %v11479 = vunpack.c.l.b16 %v11445
      %v11480 = vunpack.c.h.b16 %v11445
      %v11481 = vunpack.c.l.b16 %v11446
      %v11482 = vunpack.c.h.b16 %v11446
      %v11483 = vunpack.c.l.b16 %v11447
      %v11484 = vunpack.c.h.b16 %v11447
      %v11485 = vunpack.c.l.b16 %v11448
      %v11486 = vunpack.c.h.b16 %v11448
      %v11487 = vunpack.c.l.b16 %v11449
      %v11488 = vunpack.c.h.b16 %v11449
      %v11489 = vunpack.c.l.b16 %v11450
      %v11490 = vunpack.c.h.b16 %v11450
      %v11491 = vunpack.c.l.b16 %v11451
      %v11492 = vunpack.c.h.b16 %v11451
      %v11493 = vunpack.c.l.b16 %v11452
      %v11494 = vunpack.c.h.b16 %v11452
      %v11495 = vunpack.c.l.b16 %v11453
      %v11496 = vunpack.c.h.b16 %v11453
      %v11497 = vunpack.c.l.b16 %v11454
      %v11498 = vunpack.c.h.b16 %v11454
      %v11499 = vunpack.c.l.b16 %v11455
      %v11500 = vunpack.c.h.b16 %v11455
      %v11501 = vunpack.c.l.b16 %v11456
      %v11502 = vunpack.c.h.b16 %v11456
      %v11503 = vunpack.c.l.b16 %v11457
      %v11504 = vunpack.c.h.b16 %v11457
      %v11505 = vunpack.c.l.b16 %v11458
      %v11506 = vunpack.c.h.b16 %v11458
      %v11507 = vunpack.c.l.b16 %v11459
      %v11508 = vunpack.c.h.b16 %v11459
      %v11509 = vunpack.c.l.b16 %v11460
      %v11510 = vunpack.c.h.b16 %v11460
      %v11511 = vpack.c.b16 %v11481, %v11479
      %v11512 = vpack.c.b16 %v11482, %v11480
      %v11513 = vpack.c.b16 %v11485, %v11483
      %v11514 = vpack.c.b16 %v11486, %v11484
      %v11515 = vpack.c.b16 %v11489, %v11487
      %v11516 = vpack.c.b16 %v11490, %v11488
      %v11517 = vpack.c.b16 %v11493, %v11491
      %v11518 = vpack.c.b16 %v11494, %v11492
      %v11519 = vpack.c.b16 %v11497, %v11495
      %v11520 = vpack.c.b16 %v11498, %v11496
      %v11521 = vpack.c.b16 %v11501, %v11499
      %v11522 = vpack.c.b16 %v11502, %v11500
      %v11523 = vpack.c.b16 %v11505, %v11503
      %v11524 = vpack.c.b16 %v11506, %v11504
      %v11525 = vpack.c.b16 %v11509, %v11507
      %v11526 = vpack.c.b16 %v11510, %v11508
      %11543 = vmatpush.bf16.msra.mxu0 %v11525
      %11544 = vmatpush.bf16.msra.mxu0 %v11523
      %11545 = vmatpush.bf16.msra.mxu0 %v11521
      %11546 = vmatpush.bf16.msra.mxu0 %v11519
      %11547 = vmatpush.bf16.msra.mxu0 %v11517
      %11548 = vmatpush.bf16.msra.mxu0 %v11515
      %11549 = vmatpush.bf16.msra.mxu0 %v11513
      %11550 = vmatpush.bf16.msra.mxu0 %v11511
      %11551 = vmatmul.bf16.gmra.mxu0 %v3863
      %v11552 = vpop.f32.mrf.mxu0
      %v11553 = vadd.f32 %v11461, %v11552
      %v11554 = vpop.f32.mrf.mxu0
      %v11555 = vadd.f32 %v11461, %v11554
      %11556 = vmatmul.bf16.gmra.mxu0 %v3864
      %v11557 = vpop.f32.mrf.mxu0
      %v11558 = vadd.f32 %v11461, %v11557
      %v11559 = vpop.f32.mrf.mxu0
      %v11560 = vadd.f32 %v11461, %v11559
      %11561 = vmatmul.bf16.gmra.mxu0 %v3865
      %v11562 = vpop.f32.mrf.mxu0
      %v11563 = vadd.f32 %v11461, %v11562
      %v11564 = vpop.f32.mrf.mxu0
      %v11565 = vadd.f32 %v11461, %v11564
      %11566 = vmatmul.bf16.gmra.mxu0 %v3866
      %v11567 = vpop.f32.mrf.mxu0
      %v11568 = vadd.f32 %v11461, %v11567
      %v11569 = vpop.f32.mrf.mxu0
      %v11570 = vadd.f32 %v11461, %v11569
      %11571 = vdwg.mxu0
      %11572 = vmatpush.bf16.msra.mxu0 %v11526
      %11573 = vmatpush.bf16.msra.mxu0 %v11524
      %11574 = vmatpush.bf16.msra.mxu0 %v11522
      %11575 = vmatpush.bf16.msra.mxu0 %v11520
      %11576 = vmatpush.bf16.msra.mxu0 %v11518
      %11577 = vmatpush.bf16.msra.mxu0 %v11516
      %11578 = vmatpush.bf16.msra.mxu0 %v11514
      %11579 = vmatpush.bf16.msra.mxu0 %v11512
      %11580 = vmatmul.bf16.gmra.mxu0 %v3863
      %v11581 = vpop.f32.mrf.mxu0
      %v11582 = vadd.f32 %v11462, %v11581
      %v11583 = vpop.f32.mrf.mxu0
      %v11584 = vadd.f32 %v11462, %v11583
      %11585 = vmatmul.bf16.gmra.mxu0 %v3864
      %v11586 = vpop.f32.mrf.mxu0
      %v11587 = vadd.f32 %v11462, %v11586
      %v11588 = vpop.f32.mrf.mxu0
      %v11589 = vadd.f32 %v11462, %v11588
      %11590 = vmatmul.bf16.gmra.mxu0 %v3865
      %v11591 = vpop.f32.mrf.mxu0
      %v11592 = vadd.f32 %v11462, %v11591
      %v11593 = vpop.f32.mrf.mxu0
      %v11594 = vadd.f32 %v11462, %v11593
      %11595 = vmatmul.bf16.gmra.mxu0 %v3866
      %v11596 = vpop.f32.mrf.mxu0
      %v11597 = vadd.f32 %v11462, %v11596
      %v11598 = vpop.f32.mrf.mxu0
      %v11599 = vadd.f32 %v11462, %v11598
      %11600 = vdwg.mxu0
      %11601 = vst [vmem:[%s795] sm:$0xff] %v11553
      %11602 = vst [vmem:[%s795 + $0x8] sm:$0xff] %v11582
      %11603 = vst [vmem:[%s795 + $0x10] sm:$0xff] %v11555
      %11604 = vst [vmem:[%s795 + $0x18] sm:$0xff] %v11584
      %11605 = vst [vmem:[%s795 + $0x20] sm:$0xff] %v11558
      %11606 = vst [vmem:[%s795 + $0x28] sm:$0xff] %v11587
      %11607 = vst [vmem:[%s795 + $0x30] sm:$0xff] %v11560
      %11608 = vst [vmem:[%s795 + $0x38] sm:$0xff] %v11589
      %11609 = vst [vmem:[%s795 + $0x40] sm:$0xff] %v11563
      %11610 = vst [vmem:[%s795 + $0x48] sm:$0xff] %v11592
      %11611 = vst [vmem:[%s795 + $0x50] sm:$0xff] %v11565
      %11612 = vst [vmem:[%s795 + $0x58] sm:$0xff] %v11594
      %11613 = vst [vmem:[%s795 + $0x60] sm:$0xff] %v11568
      %11614 = vst [vmem:[%s795 + $0x68] sm:$0xff] %v11597
      %11615 = vst [vmem:[%s795 + $0x70] sm:$0xff] %v11570
      %11616 = vst [vmem:[%s795 + $0x78] sm:$0xff] %v11599
      %v11617 = vsub.f32 0.0, %v11553
      %v11618 = vsub.f32 0.0, %v11582
      %v11619 = vsub.f32 0.0, %v11555
      %v11620 = vsub.f32 0.0, %v11584
      %v11621 = vsub.f32 0.0, %v11558
      %v11622 = vsub.f32 0.0, %v11587
      %v11623 = vsub.f32 0.0, %v11560
      %v11624 = vsub.f32 0.0, %v11589
      %v11625 = vsub.f32 0.0, %v11563
      %v11626 = vsub.f32 0.0, %v11592
      %v11627 = vsub.f32 0.0, %v11565
      %v11628 = vsub.f32 0.0, %v11594
      %v11629 = vsub.f32 0.0, %v11568
      %v11630 = vsub.f32 0.0, %v11597
      %v11631 = vsub.f32 0.0, %v11570
      %v11632 = vsub.f32 0.0, %v11599
      %v11633 = vmul.f32 %v11617, 1.442695
      %v11634 = vpow.pop %v11633
      %v11635 = vmul.f32 %v11618, 1.442695
      %v11636 = vpow.pop %v11635
      %v11637 = vmul.f32 %v11619, 1.442695
      %v11638 = vpow.pop %v11637
      %v11639 = vmul.f32 %v11620, 1.442695
      %v11640 = vpow.pop %v11639
      %v11641 = vmul.f32 %v11621, 1.442695
      %v11642 = vpow.pop %v11641
      %v11643 = vmul.f32 %v11622, 1.442695
      %v11644 = vpow.pop %v11643
      %v11645 = vmul.f32 %v11623, 1.442695
      %v11646 = vpow.pop %v11645
      %v11647 = vmul.f32 %v11624, 1.442695
      %v11648 = vpow.pop %v11647
      %v11649 = vmul.f32 %v11625, 1.442695
      %v11650 = vpow.pop %v11649
      %v11651 = vmul.f32 %v11626, 1.442695
      %v11652 = vpow.pop %v11651
      %v11653 = vmul.f32 %v11627, 1.442695
      %v11654 = vpow.pop %v11653
      %v11655 = vmul.f32 %v11628, 1.442695
      %v11656 = vpow.pop %v11655
      %v11657 = vmul.f32 %v11629, 1.442695
      %v11658 = vpow.pop %v11657
      %v11659 = vmul.f32 %v11630, 1.442695
      %v11660 = vpow.pop %v11659
      %v11661 = vmul.f32 %v11631, 1.442695
      %v11662 = vpow.pop %v11661
      %v11663 = vmul.f32 %v11632, 1.442695
      %v11664 = vpow.pop %v11663
      %v11665 = vadd.f32 %v11634, 1.0
      %v11666 = vadd.f32 %v11636, 1.0
      %v11667 = vadd.f32 %v11638, 1.0
      %v11668 = vadd.f32 %v11640, 1.0
      %v11669 = vadd.f32 %v11642, 1.0
      %v11670 = vadd.f32 %v11644, 1.0
      %v11671 = vadd.f32 %v11646, 1.0
      %v11672 = vadd.f32 %v11648, 1.0
      %v11673 = vadd.f32 %v11650, 1.0
      %v11674 = vadd.f32 %v11652, 1.0
      %v11675 = vadd.f32 %v11654, 1.0
      %v11676 = vadd.f32 %v11656, 1.0
      %v11677 = vadd.f32 %v11658, 1.0
      %v11678 = vadd.f32 %v11660, 1.0
      %v11679 = vadd.f32 %v11662, 1.0
      %v11680 = vadd.f32 %v11664, 1.0
      %v11681 = vrcp.pop %v11665
      %v11682 = vrcp.pop %v11666
      %v11683 = vrcp.pop %v11667
      %v11684 = vrcp.pop %v11668
      %v11685 = vrcp.pop %v11669
      %v11686 = vrcp.pop %v11670
      %v11687 = vrcp.pop %v11671
      %v11688 = vrcp.pop %v11672
      %v11689 = vrcp.pop %v11673
      %v11690 = vrcp.pop %v11674
      %v11691 = vrcp.pop %v11675
      %v11692 = vrcp.pop %v11676
      %v11693 = vrcp.pop %v11677
      %v11694 = vrcp.pop %v11678
      %v11695 = vrcp.pop %v11679
      %v11696 = vrcp.pop %v11680
      %v11697 = vld [vmem:[%s760] sm:$0xff]
      %v11698 = vld [vmem:[%s760 + $0x8] sm:$0xff]
      %v11699 = vld [vmem:[%s760 + $0x10] sm:$0xff]
      %v11700 = vld [vmem:[%s760 + $0x18] sm:$0xff]
      %v11701 = vld [vmem:[%s760 + $0x20] sm:$0xff]
      %v11702 = vld [vmem:[%s760 + $0x28] sm:$0xff]
      %v11703 = vld [vmem:[%s760 + $0x30] sm:$0xff]
      %v11704 = vld [vmem:[%s760 + $0x38] sm:$0xff]
      %v11705 = vperm.slane %v11443, 1
      %v11706 = vperm.slane %v11444, 1
      %v11707 = vmul.f32 %v11705, %v11681
      %v11708 = vmul.f32 %v11706, %v11682
      %v11709 = vmul.f32 %v11705, %v11683
      %v11710 = vmul.f32 %v11706, %v11684
      %v11711 = vmul.f32 %v11705, %v11685
      %v11712 = vmul.f32 %v11706, %v11686
      %v11713 = vmul.f32 %v11705, %v11687
      %v11714 = vmul.f32 %v11706, %v11688
      %v11715 = vmul.f32 %v11705, %v11689
      %v11716 = vmul.f32 %v11706, %v11690
      %v11717 = vmul.f32 %v11705, %v11691
      %v11718 = vmul.f32 %v11706, %v11692
      %v11719 = vmul.f32 %v11705, %v11693
      %v11720 = vmul.f32 %v11706, %v11694
      %v11721 = vmul.f32 %v11705, %v11695
      %v11722 = vmul.f32 %v11706, %v11696
      %v11723 = vperm.slane %v11443, 2
      %v11724 = vperm.slane %v11444, 2
      %v11725 = vadd.f32 %v11707, %v11723
      %v11726 = vadd.f32 %v11708, %v11724
      %v11727 = vadd.f32 %v11709, %v11723
      %v11728 = vadd.f32 %v11710, %v11724
      %v11729 = vadd.f32 %v11711, %v11723
      %v11730 = vadd.f32 %v11712, %v11724
      %v11731 = vadd.f32 %v11713, %v11723
      %v11732 = vadd.f32 %v11714, %v11724
      %v11733 = vadd.f32 %v11715, %v11723
      %v11734 = vadd.f32 %v11716, %v11724
      %v11735 = vadd.f32 %v11717, %v11723
      %v11736 = vadd.f32 %v11718, %v11724
      %v11737 = vadd.f32 %v11719, %v11723
      %v11738 = vadd.f32 %v11720, %v11724
      %v11739 = vadd.f32 %v11721, %v11723
      %v11740 = vadd.f32 %v11722, %v11724
      %v11741 = vmul.f32 %v11681, %v11725
      %v11742 = vmul.f32 %v11682, %v11726
      %v11743 = vmul.f32 %v11683, %v11727
      %v11744 = vmul.f32 %v11684, %v11728
      %v11745 = vmul.f32 %v11685, %v11729
      %v11746 = vmul.f32 %v11686, %v11730
      %v11747 = vmul.f32 %v11687, %v11731
      %v11748 = vmul.f32 %v11688, %v11732
      %v11749 = vmul.f32 %v11689, %v11733
      %v11750 = vmul.f32 %v11690, %v11734
      %v11751 = vmul.f32 %v11691, %v11735
      %v11752 = vmul.f32 %v11692, %v11736
      %v11753 = vmul.f32 %v11693, %v11737
      %v11754 = vmul.f32 %v11694, %v11738
      %v11755 = vmul.f32 %v11695, %v11739
      %v11756 = vmul.f32 %v11696, %v11740
      %11758 = vset.pattern.permute.xlu0 0
      %11759 = vperm.xlu0 %11758, %v11697
      %v11760 = vpop.permute.xlu0 %11759
      %11763 = vset.pattern.permute.xlu0 0
      %11764 = vperm.xlu0 %11763, %v11698
      %v11765 = vpop.permute.xlu0 %11764
      %11768 = vset.pattern.permute.xlu0 0
      %11769 = vperm.xlu0 %11768, %v11699
      %v11770 = vpop.permute.xlu0 %11769
      %11773 = vset.pattern.permute.xlu0 0
      %11774 = vperm.xlu0 %11773, %v11700
      %v11775 = vpop.permute.xlu0 %11774
      %11778 = vset.pattern.permute.xlu0 0
      %11779 = vperm.xlu0 %11778, %v11701
      %v11780 = vpop.permute.xlu0 %11779
      %11783 = vset.pattern.permute.xlu0 0
      %11784 = vperm.xlu0 %11783, %v11702
      %v11785 = vpop.permute.xlu0 %11784
      %11788 = vset.pattern.permute.xlu0 0
      %11789 = vperm.xlu0 %11788, %v11703
      %v11790 = vpop.permute.xlu0 %11789
      %11793 = vset.pattern.permute.xlu0 0
      %11794 = vperm.xlu0 %11793, %v11704
      %v11795 = vpop.permute.xlu0 %11794
      %v11797 = vperm.slane %v11443, 3
      %v11798 = vperm.slane %v11444, 3
      %v11799 = vmul.f32 %v11760, %v11797
      %v11800 = vmul.f32 %v11760, %v11798
      %v11801 = vmul.f32 %v11765, %v11797
      %v11802 = vmul.f32 %v11765, %v11798
      %v11803 = vmul.f32 %v11770, %v11797
      %v11804 = vmul.f32 %v11770, %v11798
      %v11805 = vmul.f32 %v11775, %v11797
      %v11806 = vmul.f32 %v11775, %v11798
      %v11807 = vmul.f32 %v11780, %v11797
      %v11808 = vmul.f32 %v11780, %v11798
      %v11809 = vmul.f32 %v11785, %v11797
      %v11810 = vmul.f32 %v11785, %v11798
      %v11811 = vmul.f32 %v11790, %v11797
      %v11812 = vmul.f32 %v11790, %v11798
      %v11813 = vmul.f32 %v11795, %v11797
      %v11814 = vmul.f32 %v11795, %v11798
      %v11815 = vadd.f32 %v11741, %v11799
      %v11816 = vadd.f32 %v11742, %v11800
      %v11817 = vadd.f32 %v11743, %v11801
      %v11818 = vadd.f32 %v11744, %v11802
      %v11819 = vadd.f32 %v11745, %v11803
      %v11820 = vadd.f32 %v11746, %v11804
      %v11821 = vadd.f32 %v11747, %v11805
      %v11822 = vadd.f32 %v11748, %v11806
      %v11823 = vadd.f32 %v11749, %v11807
      %v11824 = vadd.f32 %v11750, %v11808
      %v11825 = vadd.f32 %v11751, %v11809
      %v11826 = vadd.f32 %v11752, %v11810
      %v11827 = vadd.f32 %v11753, %v11811
      %v11828 = vadd.f32 %v11754, %v11812
      %v11829 = vadd.f32 %v11755, %v11813
      %v11830 = vadd.f32 %v11756, %v11814
      %11831 = vset.pattern.permute.xlu0 1
      %11832 = vperm.xlu0 %11831, %v11697
      %v11833 = vpop.permute.xlu0 %11832
      %11835 = vset.pattern.permute.xlu0 1
      %11836 = vperm.xlu0 %11835, %v11698
      %v11837 = vpop.permute.xlu0 %11836
      %11839 = vset.pattern.permute.xlu0 1
      %11840 = vperm.xlu0 %11839, %v11699
      %v11841 = vpop.permute.xlu0 %11840
      %11843 = vset.pattern.permute.xlu0 1
      %11844 = vperm.xlu0 %11843, %v11700
      %v11845 = vpop.permute.xlu0 %11844
      %11847 = vset.pattern.permute.xlu0 1
      %11848 = vperm.xlu0 %11847, %v11701
      %v11849 = vpop.permute.xlu0 %11848
      %11851 = vset.pattern.permute.xlu0 1
      %11852 = vperm.xlu0 %11851, %v11702
      %v11853 = vpop.permute.xlu0 %11852
      %11855 = vset.pattern.permute.xlu0 1
      %11856 = vperm.xlu0 %11855, %v11703
      %v11857 = vpop.permute.xlu0 %11856
      %11859 = vset.pattern.permute.xlu0 1
      %11860 = vperm.xlu0 %11859, %v11704
      %v11861 = vpop.permute.xlu0 %11860
      %v11863 = vperm.slane %v11443, 4
      %v11864 = vperm.slane %v11444, 4
      %v11865 = vmul.f32 %v11833, %v11863
      %v11866 = vmul.f32 %v11833, %v11864
      %v11867 = vmul.f32 %v11837, %v11863
      %v11868 = vmul.f32 %v11837, %v11864
      %v11869 = vmul.f32 %v11841, %v11863
      %v11870 = vmul.f32 %v11841, %v11864
      %v11871 = vmul.f32 %v11845, %v11863
      %v11872 = vmul.f32 %v11845, %v11864
      %v11873 = vmul.f32 %v11849, %v11863
      %v11874 = vmul.f32 %v11849, %v11864
      %v11875 = vmul.f32 %v11853, %v11863
      %v11876 = vmul.f32 %v11853, %v11864
      %v11877 = vmul.f32 %v11857, %v11863
      %v11878 = vmul.f32 %v11857, %v11864
      %v11879 = vmul.f32 %v11861, %v11863
      %v11880 = vmul.f32 %v11861, %v11864
      %v11881 = vadd.f32 %v11815, %v11865
      %v11882 = vadd.f32 %v11816, %v11866
      %v11883 = vadd.f32 %v11817, %v11867
      %v11884 = vadd.f32 %v11818, %v11868
      %v11885 = vadd.f32 %v11819, %v11869
      %v11886 = vadd.f32 %v11820, %v11870
      %v11887 = vadd.f32 %v11821, %v11871
      %v11888 = vadd.f32 %v11822, %v11872
      %v11889 = vadd.f32 %v11823, %v11873
      %v11890 = vadd.f32 %v11824, %v11874
      %v11891 = vadd.f32 %v11825, %v11875
      %v11892 = vadd.f32 %v11826, %v11876
      %v11893 = vadd.f32 %v11827, %v11877
      %v11894 = vadd.f32 %v11828, %v11878
      %v11895 = vadd.f32 %v11829, %v11879
      %v11896 = vadd.f32 %v11830, %v11880
      %v11897 = vperm.slane %v11443, 5
      %v11898 = vperm.slane %v11444, 5
      %v11899 = vadd.f32 %v11881, %v11897
      %v11900 = vadd.f32 %v11882, %v11898
      %v11901 = vadd.f32 %v11883, %v11897
      %v11902 = vadd.f32 %v11884, %v11898
      %v11903 = vadd.f32 %v11885, %v11897
      %v11904 = vadd.f32 %v11886, %v11898
      %v11905 = vadd.f32 %v11887, %v11897
      %v11906 = vadd.f32 %v11888, %v11898
      %v11907 = vadd.f32 %v11889, %v11897
      %v11908 = vadd.f32 %v11890, %v11898
      %v11909 = vadd.f32 %v11891, %v11897
      %v11910 = vadd.f32 %v11892, %v11898
      %v11911 = vadd.f32 %v11893, %v11897
      %v11912 = vadd.f32 %v11894, %v11898
      %v11913 = vadd.f32 %v11895, %v11897
      %v11914 = vadd.f32 %v11896, %v11898
      %11915 = vst [vmem:[%s802] sm:$0xff] %v11899
      %11916 = vst [vmem:[%s802 + $0x8] sm:$0xff] %v11900
      %11917 = vst [vmem:[%s802 + $0x10] sm:$0xff] %v11901
      %11918 = vst [vmem:[%s802 + $0x18] sm:$0xff] %v11902
      %11919 = vst [vmem:[%s802 + $0x20] sm:$0xff] %v11903
      %11920 = vst [vmem:[%s802 + $0x28] sm:$0xff] %v11904
      %11921 = vst [vmem:[%s802 + $0x30] sm:$0xff] %v11905
      %11922 = vst [vmem:[%s802 + $0x38] sm:$0xff] %v11906
      %11923 = vst [vmem:[%s802 + $0x40] sm:$0xff] %v11907
      %11924 = vst [vmem:[%s802 + $0x48] sm:$0xff] %v11908
      %11925 = vst [vmem:[%s802 + $0x50] sm:$0xff] %v11909
      %11926 = vst [vmem:[%s802 + $0x58] sm:$0xff] %v11910
      %11927 = vst [vmem:[%s802 + $0x60] sm:$0xff] %v11911
      %11928 = vst [vmem:[%s802 + $0x68] sm:$0xff] %v11912
      %11929 = vst [vmem:[%s802 + $0x70] sm:$0xff] %v11913
      %11930 = vst [vmem:[%s802 + $0x78] sm:$0xff] %v11914
      %s11931 = smul.u32 128, %s33
      %p11932 = scmp.lt.s32.totalorder %s11931, 255
      %s11933 = scalar_select %p11932, %s11931, 255
      %s11934 = smul.addr %s11933, 2
      %s11935 = smul.addr %s11934, 8
      %s11936 = scalar_lea.vmem %s16, %s11935
      %s11937 = smul.u32 128, %s33
      %p11938 = scmp.lt.s32.totalorder %s11937, 255
      %s11939 = scalar_select %p11938, %s11937, 255
      %s11940 = smul.addr %s11939, 2
      %s11941 = smul.addr %s11940, 8
      %s11942 = scalar_lea.vmem %s17, %s11941
      %s11943 = smul.u32 32, %s33
      %p11944 = scmp.lt.s32.totalorder %s11943, 63
      %s11945 = scalar_select %p11944, %s11943, 63
      %s11946 = smul.addr %s11945, 2
      %s11947 = smul.addr %s11946, 8
      %s11948 = scalar_lea.vmem %s18, %s11947
      %s11949 = smul.u32 32, %s33
      %p11950 = scmp.lt.s32.totalorder %s11949, 63
      %s11951 = scalar_select %p11950, %s11949, 63
      %s11952 = smul.addr %s11951, 2
      %s11953 = smul.addr %s11952, 8
      %s11954 = scalar_lea.vmem %s19, %s11953
      %s11955 = smul.u32 8, %s33
      %p11956 = scmp.lt.s32.totalorder %s11955, 15
      %s11957 = scalar_select %p11956, %s11955, 15
      %s11958 = smul.addr %s11957, 2
      %s11959 = smul.addr %s11958, 8
      %s11960 = scalar_lea.vmem %s20, %s11959
      %s11961 = smul.u32 8, %s33
      %p11962 = scmp.lt.s32.totalorder %s11961, 15
      %s11963 = scalar_select %p11962, %s11961, 15
      %s11964 = smul.addr %s11963, 2
      %s11965 = smul.addr %s11964, 8
      %s11966 = scalar_lea.vmem %s21, %s11965
      // Predicated region
      $region85: #{yolo_forward.1} parent=83 // pred_check
        %p11967 = pneg %p407
      $region86: #{yolo_forward.1} parent=83 // pred_check_branch
        %11969 = sbr.rel (%p11967) target = $region88
      $region87: #{yolo_forward.1} parent=83 // pred_region
        %s11970 = smul.u32 128, %s33
      $region88: #{yolo_forward.1} parent=83 // pred_fallthru
        _
      // Predicated region
      $region89: #{yolo_forward.1} parent=83 // pred_check
        %p11971 = pneg %p433
      $region90: #{yolo_forward.1} parent=83 // pred_check_branch
        %11973 = sbr.rel (%p11971) target = $region92
      $region91: #{yolo_forward.1} parent=83 // pred_region
        %s11974 = smul.u32 128, %s33
      $region92: #{yolo_forward.1} parent=83 // pred_fallthru
        _
      // Predicated region
      $region93: #{yolo_forward.1} parent=83 // pred_check
        %p11975 = pneg %p459
      $region94: #{yolo_forward.1} parent=83 // pred_check_branch
        %11977 = sbr.rel (%p11975) target = $region96
      $region95: #{yolo_forward.1} parent=83 // pred_region
        %s11978 = smul.u32 32, %s33
      $region96: #{yolo_forward.1} parent=83 // pred_fallthru
        _
      // Predicated region
      $region97: #{yolo_forward.1} parent=83 // pred_check
        %p11979 = pneg %p485
      $region98: #{yolo_forward.1} parent=83 // pred_check_branch
        %11981 = sbr.rel (%p11979) target = $region100
      $region99: #{yolo_forward.1} parent=83 // pred_region
        %s11982 = smul.u32 32, %s33
      $region100: #{yolo_forward.1} parent=83 // pred_fallthru
        _
      // Predicated region
      $region101: #{yolo_forward.1} parent=83 // pred_check
        %p11983 = pneg %p511
      $region102: #{yolo_forward.1} parent=83 // pred_check_branch
        %11985 = sbr.rel (%p11983) target = $region104
      $region103: #{yolo_forward.1} parent=83 // pred_region
        %s11986 = smul.u32 8, %s33
      $region104: #{yolo_forward.1} parent=83 // pred_fallthru
        _
      // Predicated region
      $region105: #{yolo_forward.1} parent=83 // pred_check
        %p11987 = pneg %p537
      $region106: #{yolo_forward.1} parent=83 // pred_check_branch
        %11989 = sbr.rel (%p11987) target = $region108
      $region107: #{yolo_forward.1} parent=83 // pred_region
        %s11990 = smul.u32 8, %s33
      $region108: #{yolo_forward.1} parent=83 // pred_fallthru
        _
    $region84: #{yolo_forward.1} parent=5 // pred_fallthru
      _
    %p11991 = scmp.le.s32.totalorder 2, %s28
    // Predicated region
    $region109: #{yolo_forward.1} parent=5 // pred_check
      %p11992 = pneg %p11991
    $region110: #{yolo_forward.1} parent=5 // pred_check_branch
      %11994 = sbr.rel (%p11992) target = $region112
    $region111: #{yolo_forward.1} parent=5 // pred_region
      %s11995 = ssub.s32 %s28, 2
      // Predicated region
      $region113: #{yolo_forward.1} parent=111 // pred_check
        %p11996 = pneg %p413
      $region114: #{yolo_forward.1} parent=111 // pred_check_branch
        %11998 = sbr.rel (%p11996) target = $region116
      $region115: #{yolo_forward.1} parent=111 // pred_region
        %s11999 = smul.u32 128, %s34
        %p12000 = scmp.lt.s32.totalorder %s11999, 255
        %s12001 = scalar_select %p12000, %s11999, 255
        %s12002 = smul.addr %s12001, 2
        %s12003 = smul.addr %s12002, 8
        %s12004 = scalar_lea.vmem %s16, %s12003
      $region116: #{yolo_forward.1} parent=111 // pred_fallthru
        _
      // Predicated region
      $region117: #{yolo_forward.1} parent=111 // pred_check
        %p12005 = pneg %p439
      $region118: #{yolo_forward.1} parent=111 // pred_check_branch
        %12007 = sbr.rel (%p12005) target = $region120
      $region119: #{yolo_forward.1} parent=111 // pred_region
        %s12008 = smul.u32 128, %s34
        %p12009 = scmp.lt.s32.totalorder %s12008, 255
        %s12010 = scalar_select %p12009, %s12008, 255
        %s12011 = smul.addr %s12010, 2
        %s12012 = smul.addr %s12011, 8
        %s12013 = scalar_lea.vmem %s17, %s12012
      $region120: #{yolo_forward.1} parent=111 // pred_fallthru
        _
      // Predicated region
      $region121: #{yolo_forward.1} parent=111 // pred_check
        %p12014 = pneg %p465
      $region122: #{yolo_forward.1} parent=111 // pred_check_branch
        %12016 = sbr.rel (%p12014) target = $region124
      $region123: #{yolo_forward.1} parent=111 // pred_region
        %s12017 = smul.u32 32, %s34
        %p12018 = scmp.lt.s32.totalorder %s12017, 63
        %s12019 = scalar_select %p12018, %s12017, 63
        %s12020 = smul.addr %s12019, 2
        %s12021 = smul.addr %s12020, 8
        %s12022 = scalar_lea.vmem %s18, %s12021
      $region124: #{yolo_forward.1} parent=111 // pred_fallthru
        _
      // Predicated region
      $region125: #{yolo_forward.1} parent=111 // pred_check
        %p12023 = pneg %p491
      $region126: #{yolo_forward.1} parent=111 // pred_check_branch
        %12025 = sbr.rel (%p12023) target = $region128
      $region127: #{yolo_forward.1} parent=111 // pred_region
        %s12026 = smul.u32 32, %s34
        %p12027 = scmp.lt.s32.totalorder %s12026, 63
        %s12028 = scalar_select %p12027, %s12026, 63
        %s12029 = smul.addr %s12028, 2
        %s12030 = smul.addr %s12029, 8
        %s12031 = scalar_lea.vmem %s19, %s12030
      $region128: #{yolo_forward.1} parent=111 // pred_fallthru
        _
      // Predicated region
      $region129: #{yolo_forward.1} parent=111 // pred_check
        %p12032 = pneg %p517
      $region130: #{yolo_forward.1} parent=111 // pred_check_branch
        %12034 = sbr.rel (%p12032) target = $region132
      $region131: #{yolo_forward.1} parent=111 // pred_region
        %s12035 = smul.u32 8, %s34
        %p12036 = scmp.lt.s32.totalorder %s12035, 15
        %s12037 = scalar_select %p12036, %s12035, 15
        %s12038 = smul.addr %s12037, 2
        %s12039 = smul.addr %s12038, 8
        %s12040 = scalar_lea.vmem %s20, %s12039
      $region132: #{yolo_forward.1} parent=111 // pred_fallthru
        _
      // Predicated region
      $region133: #{yolo_forward.1} parent=111 // pred_check
        %p12041 = pneg %p543
      $region134: #{yolo_forward.1} parent=111 // pred_check_branch
        %12043 = sbr.rel (%p12041) target = $region136
      $region135: #{yolo_forward.1} parent=111 // pred_region
        %s12044 = smul.u32 8, %s34
        %p12045 = scmp.lt.s32.totalorder %s12044, 15
        %s12046 = scalar_select %p12045, %s12044, 15
        %s12047 = smul.addr %s12046, 2
        %s12048 = smul.addr %s12047, 8
        %s12049 = scalar_lea.vmem %s21, %s12048
      $region136: #{yolo_forward.1} parent=111 // pred_fallthru
        _
    $region112: #{yolo_forward.1} parent=5 // pred_fallthru
      _
  $region6: #{yolo_forward.1} parent=0 // loop_footer
    %s32 = sadd.s32 1, %s28
  $region7: #{yolo_forward.1} parent=0 // loop_footer_branch
    %27 = sbr.rel target = $region3
  $region8: #{yolo_forward.1} parent=0 // loop_exit
    _

</llo_original>
